<compile_context>
chip_gen: v7x
topology: tpu7x:2x2x1
jax: 0.10.0
libtpu: 0.0.40
codegen_flags: <defaults>
</compile_context>

<pallas_src>
import functools

import jax
import jax.numpy as jnp
from jax import lax
from jax.experimental import pallas as pl
from jax.experimental.pallas import tpu as pltpu

NUM_GROUPS = 32
EPS = 1e-6
LANE = 128
# Set to False for strict numerical parity with torch.softmax (exact reciprocal).
SOFTMAX_APPROX_RECIPROCAL = True


# ----------------------------------------------------------------------------
# Wrapper-side helpers (lane padding, weight stacking, specs).
# ----------------------------------------------------------------------------
def _pad128(c):
    return ((c + LANE - 1) // LANE) * LANE


def _pad_axis(a, axis, target):
    if a.shape[axis] == target:
        return a
    widths = [(0, 0)] * a.ndim
    widths[axis] = (0, target - a.shape[axis])
    return jnp.pad(a, widths)


def _stack_conv3_weight(w, cin_pad, cout_pad):
    """(3, Cin, Cout) -> (3*Cin_pad, Cout_pad); tap order [w0; w1; w2] so a single MXU
    matmul against [x[s-1] | x[s] | x[s+1]] reproduces the k=3, pad=1 conv."""
    taps = [_pad_axis(_pad_axis(w[t], 0, cin_pad), 1, cout_pad) for t in range(3)]
    return jnp.concatenate(taps, axis=0)


def _group_onehot(c_real, c_pad):
    """(C_pad, 32) one-hot channel->group matrix; zero rows for padded lanes so they never
    contribute to the group statistics."""
    assert c_real % NUM_GROUPS == 0
    cg = c_real // NUM_GROUPS
    ch = jnp.arange(c_pad)
    onehot = ((ch[:, None] // cg) == jnp.arange(NUM_GROUPS)[None, :]) & (ch[:, None] < c_real)
    return onehot.astype(jnp.float32)


def _act_spec(s, c):
    return pl.BlockSpec((1, s, c), lambda bb: (bb, 0, 0))


def _rep_spec(shape):
    """Grid-invariant (replicated) operand: single-buffer it -- its index_map never changes
    across the batch grid, so double-buffering would only double its VMEM footprint."""
    idx = lambda bb: (0,) * len(shape)
    try:
        return pl.BlockSpec(shape, idx, pipeline_mode=pl.Buffered(1))
    except (TypeError, AttributeError):      # older jax without pipeline_mode / Buffered
        return pl.BlockSpec(shape, idx)


def _cparams(est_bytes):
    """Explicit scoped-VMEM limit, >= default on v5e/v6e/v7x and <= v7x physical VMEM."""
    lim = int(min(64 * 1024 * 1024, max(32 * 1024 * 1024, 2 * est_bytes)))
    return pltpu.CompilerParams(dimension_semantics=("parallel",), vmem_limit_bytes=lim)


def _kv_chunk(s):
    """Key-chunk size for the online-softmax attention (caps the (S, chunk) logits slab)."""
    for c in (512, 256, 128):
        if s > c and s % c == 0:
            return c
    return s


# ----------------------------------------------------------------------------
# In-kernel building blocks (operate on (S, C) f32 tiles).
# ----------------------------------------------------------------------------
def _shift_down(h):
    """out[i] = h[i-1], out[0] = 0.  XLU roll + one select; no misaligned concat copies."""
    rolled = pltpu.roll(h, 1, axis=0)
    row = lax.broadcasted_iota(jnp.int32, h.shape, 0)
    return jnp.where(row == 0, 0.0, rolled)


def _shift_up(h):
    """out[i] = h[i+1], out[S-1] = 0."""
    s = h.shape[0]
    rolled = pltpu.roll(h, s - 1, axis=0)    # == roll by -1
    row = lax.broadcasted_iota(jnp.int32, h.shape, 0)
    return jnp.where(row == s - 1, 0.0, rolled)


def _group_norm(x, gamma_ref, beta_ref, gmat_ref, *, c_per_group, swish):
    """GroupNorm(32 groups, eps=1e-6, affine) over an (S, C_pad) f32 tile, optional swish.

    Group reductions use a tiny matmul against the one-hot (C_pad, 32) matrix (padded lanes
    excluded); normalization folds into one per-channel scale/shift.  The group->channel
    back-projection reuses the same one-hot matrix (transposed contraction), so no gmat_t
    operand is shipped.  c_per_group is the REAL channels-per-group count.
    """
    s_len = x.shape[0]
    inv_n = 1.0 / float(s_len * c_per_group)
    gmat = gmat_ref[...]
    chan_sum = jnp.sum(x, axis=0, keepdims=True)                                   # (1, C)
    chan_sq = jnp.sum(x * x, axis=0, keepdims=True)                                # (1, C)
    g_mean = jnp.dot(chan_sum, gmat, preferred_element_type=jnp.float32) * inv_n   # (1, G)
    g_sq = jnp.dot(chan_sq, gmat, preferred_element_type=jnp.float32) * inv_n      # (1, G)
    g_var = jnp.maximum(g_sq - g_mean * g_mean, 0.0)       # clamp E[x^2]-E[x]^2 cancellation
    back = (((1,), (1,)), ((), ()))                        # contract the group axis of gmat
    mean_c = lax.dot_general(g_mean, gmat, back, preferred_element_type=jnp.float32)  # (1, C)
    var_c = lax.dot_general(g_var, gmat, back, preferred_element_type=jnp.float32)    # (1, C)
    inv = lax.rsqrt(var_c + EPS)
    scale = gamma_ref[...].astype(jnp.float32) * inv
    offset = beta_ref[...].astype(jnp.float32) - mean_c * scale
    y = x * scale + offset
    if swish:                                              # nonlinearity(x) = x * sigmoid(x)
        y = y * jax.nn.sigmoid(y)
    return y


def _conv3(h, w_ref, b_ref):
    """Conv1d(k=3, s=1, p=1) on an (S, Cin_pad) tile as ONE MXU matmul:
    [x[s-1] | x[s] | x[s+1]] (S, 3*Cin) @ [w0; w1; w2] (3*Cin, Cout) + b."""
    h3 = jnp.concatenate([_shift_down(h), h, _shift_up(h)], axis=1)   # lane-aligned concat
    return jnp.dot(h3, w_ref[...], preferred_element_type=jnp.float32) \
        + b_ref[...].astype(jnp.float32)


# ----------------------------------------------------------------------------
# Fused kernels.  Grid is over batch; one (S, C) tile per grid step.
# ----------------------------------------------------------------------------
def _conv3_plain_kernel(x_ref, w_ref, b_ref, o_ref):
    """conv_in: Conv1d(k=3, s=1, p=1), no norm / activation."""
    x = x_ref[0].astype(jnp.float32)
    o_ref[0] = _conv3(x, w_ref, b_ref).astype(o_ref.dtype)


def _gn_conv3_kernel(x_ref, g_ref, bt_ref, gm_ref, w_ref, b_ref, o_ref, *, swish, c_per_group):
    """GroupNorm(+swish) fused with Conv1d(k=3, s=1, p=1)."""
    x = x_ref[0].astype(jnp.float32)
    h = _group_norm(x, g_ref, bt_ref, gm_ref, c_per_group=c_per_group, swish=swish)
    o_ref[0] = _conv3(h, w_ref, b_ref).astype(o_ref.dtype)


def _gn_conv3_res_kernel(x_ref, g_ref, bt_ref, gm_ref, w_ref, b_ref, r_ref, o_ref, *,
                         swish, c_per_group):
    """GroupNorm(+swish) + Conv1d(k=3) + identity residual add."""
    x = x_ref[0].astype(jnp.float32)
    h = _group_norm(x, g_ref, bt_ref, gm_ref, c_per_group=c_per_group, swish=swish)
    o_ref[0] = (_conv3(h, w_ref, b_ref) + r_ref[0].astype(jnp.float32)).astype(o_ref.dtype)


def _gn_conv3_nin_kernel(x_ref, g_ref, bt_ref, gm_ref, w_ref, b_ref, r_ref, wn_ref, bn_ref,
                         o_ref, *, swish, c_per_group):
    """GroupNorm(+swish) + Conv1d(k=3) + 1x1 nin_shortcut(residual) add."""
    x = x_ref[0].astype(jnp.float32)
    h = _group_norm(x, g_ref, bt_ref, gm_ref, c_per_group=c_per_group, swish=swish)
    r = r_ref[0].astype(jnp.float32)
    shortcut = jnp.dot(r, wn_ref[...], preferred_element_type=jnp.float32) \
        + bn_ref[...].astype(jnp.float32)
    o_ref[0] = (_conv3(h, w_ref, b_ref) + shortcut).astype(o_ref.dtype)


def _down_conv_kernel(xr_ref, w12_ref, w0_ref, b_ref, o_ref, *, c_pad):
    """Downsample1D: F.pad(x, (1, 1)) then Conv1d(k=3, stride=2), evaluated directly at the
    stride-2 output positions.  Input row j of xr is [x[2j] | x[2j+1]] (free reshape), so
    y[j] = x[2j-1] @ w0 + x[2j] @ w1 + x[2j+1] @ w2 + b  (x[-1] = 0 from the symmetric pad,
    matching the 1D module's F.pad(x, (1, 1)))."""
    xr = xr_ref[0].astype(jnp.float32)                      # (S_out, 2*C)
    x_odd_prev = _shift_down(xr[:, c_pad:])                 # row j -> x[2j-1]; aligned lane slice
    acc = jnp.dot(xr, w12_ref[...], preferred_element_type=jnp.float32)            # w1, w2 taps
    acc = acc + jnp.dot(x_odd_prev, w0_ref[...], preferred_element_type=jnp.float32)  # w0 tap
    o_ref[0] = (acc + b_ref[...].astype(jnp.float32)).astype(o_ref.dtype)


def _gn_attn_kernel(x_ref, g_ref, bt_ref, gm_ref,
                    wq_ref, bq_ref, wk_ref, bk_ref, wv_ref, bv_ref, wp_ref, bp_ref,
                    o_ref, *, scale, c_per_group, kv_chunk):
    """AttnBlock1D fused: GroupNorm, q/k/v 1x1 convs, online-softmax attention over key
    chunks (logits capped at (S, kv_chunk)), proj_out, residual add."""
    x = x_ref[0].astype(jnp.float32)                        # (S, C)
    hn = _group_norm(x, g_ref, bt_ref, gm_ref, c_per_group=c_per_group, swish=False)
    q = jnp.dot(hn, wq_ref[...], preferred_element_type=jnp.float32) + bq_ref[...].astype(jnp.float32)
    k = jnp.dot(hn, wk_ref[...], preferred_element_type=jnp.float32) + bk_ref[...].astype(jnp.float32)
    v = jnp.dot(hn, wv_ref[...], preferred_element_type=jnp.float32) + bv_ref[...].astype(jnp.float32)

    s_len = q.shape[0]
    n_chunks = s_len // kv_chunk
    m = l = acc = None
    for ci in range(n_chunks):                              # static, unrolled online softmax
        ks = k[ci * kv_chunk:(ci + 1) * kv_chunk, :]
        vs = v[ci * kv_chunk:(ci + 1) * kv_chunk, :]
        logits = lax.dot_general(q, ks, (((1,), (1,)), ((), ())),
                                 preferred_element_type=jnp.float32) * scale    # (S, kv_chunk)
        # TODO(synk): on v6e/v7x the exp below could run on bf16 logits (2x EUP throughput);
        #             kept f32 so the same kernel is also correct on v5e (no bf16 EUP).
        blk_max = jnp.max(logits, axis=-1, keepdims=True)
        if ci == 0:
            m = blk_max
            p = jnp.exp(logits - m)
            l = jnp.sum(p, axis=-1, keepdims=True)
            acc = jnp.dot(p, vs, preferred_element_type=jnp.float32)
        else:
            m_new = jnp.maximum(m, blk_max)
            alpha = jnp.exp(m - m_new)
            p = jnp.exp(logits - m_new)
            l = alpha * l + jnp.sum(p, axis=-1, keepdims=True)
            acc = alpha * acc + jnp.dot(p, vs, preferred_element_type=jnp.float32)
            m = m_new
    h = acc * pl.reciprocal(l, approx=SOFTMAX_APPROX_RECIPROCAL)
    out = jnp.dot(h, wp_ref[...], preferred_element_type=jnp.float32) + bp_ref[...].astype(jnp.float32)
    o_ref[0] = (x + out).astype(o_ref.dtype)


# ----------------------------------------------------------------------------
# Wrappers (BlockSpecs / grids / lane padding).
# ----------------------------------------------------------------------------
def conv3(x, w, b, *, out_dtype=None):
    """conv_in: plain Conv1d(k=3, s=1, p=1).  x: (B, S, Cin_pad); w: (3, Cin, Cout)."""
    B, S, cin_pad = x.shape
    _, cin, cout = w.shape
    cout_pad = _pad128(cout)
    assert _pad128(cin) == cin_pad
    out_dtype = out_dtype or x.dtype
    w_stk = _stack_conv3_weight(w, cin_pad, cout_pad)
    b_p = _pad_axis(b, 1, cout_pad)
    est = 4 * (6 * S * cin_pad + 4 * S * cout_pad + 3 * cin_pad * cout_pad)
    return pl.pallas_call(
        _conv3_plain_kernel,
        out_shape=jax.ShapeDtypeStruct((B, S, cout_pad), out_dtype),
        grid=(B,),
        in_specs=[_act_spec(S, cin_pad),
                  _rep_spec((3 * cin_pad, cout_pad)), _rep_spec((1, cout_pad))],
        out_specs=_act_spec(S, cout_pad),
        compiler_params=_cparams(est),
    )(x, w_stk, b_p)


def gn_conv3(x, gamma, beta, w, b, *, swish=True, residual=None, shortcut=None, out_dtype=None):
    """Fused GroupNorm(+swish) -> Conv1d(k=3,s=1,p=1) [+ residual | + nin_shortcut(residual)]."""
    B, S, cin_pad = x.shape
    _, cin, cout = w.shape
    cout_pad = _pad128(cout)
    assert _pad128(cin) == cin_pad
    out_dtype = out_dtype or x.dtype

    args = [x, _pad_axis(gamma, 1, cin_pad), _pad_axis(beta, 1, cin_pad),
            _group_onehot(cin, cin_pad),
            _stack_conv3_weight(w, cin_pad, cout_pad), _pad_axis(b, 1, cout_pad)]
    in_specs = [_act_spec(S, cin_pad), _rep_spec((1, cin_pad)), _rep_spec((1, cin_pad)),
                _rep_spec((cin_pad, NUM_GROUPS)),
                _rep_spec((3 * cin_pad, cout_pad)), _rep_spec((1, cout_pad))]
    opts = dict(swish=swish, c_per_group=cin // NUM_GROUPS)
    if residual is None:
        kernel = functools.partial(_gn_conv3_kernel, **opts)
    elif shortcut is None:
        kernel = functools.partial(_gn_conv3_res_kernel, **opts)
        args.append(residual)
        in_specs.append(_act_spec(S, residual.shape[2]))
    else:
        wn, bn = shortcut
        cr_pad = residual.shape[2]
        assert _pad128(wn.shape[0]) == cr_pad
        kernel = functools.partial(_gn_conv3_nin_kernel, **opts)
        args += [residual, _pad_axis(_pad_axis(wn, 0, cr_pad), 1, cout_pad),
                 _pad_axis(bn, 1, cout_pad)]
        in_specs += [_act_spec(S, cr_pad),
                     _rep_spec((cr_pad, cout_pad)), _rep_spec((1, cout_pad))]

    est = 4 * (8 * S * cin_pad + 6 * S * cout_pad + 4 * cin_pad * cout_pad)
    return pl.pallas_call(
        kernel,
        out_shape=jax.ShapeDtypeStruct((B, S, cout_pad), out_dtype),
        grid=(B,),
        in_specs=in_specs,
        out_specs=_act_spec(S, cout_pad),
        compiler_params=_cparams(est),
    )(*args)


def downsample_conv(x, w, b):
    """Downsample1D with conv: F.pad(x,(1,1)) then Conv1d(k=3, stride=2), in-kernel stride-2
    on the free (B,S,C)->(B,S/2,2C) reshape (no wrapper-side pad / strided gather)."""
    B, S, c_pad = x.shape
    _, cin, cout = w.shape
    assert _pad128(cin) == c_pad
    assert S % 2 == 0, "Encoder1D requires even sequence length at every downsample."
    cout_pad = _pad128(cout)
    s_out = S // 2
    xr = x.reshape(B, s_out, 2 * c_pad)                     # row j = [x[2j] | x[2j+1]]

    def pw(t):
        return _pad_axis(_pad_axis(w[t], 0, c_pad), 1, cout_pad)

    w12 = jnp.concatenate([pw(1), pw(2)], axis=0)           # taps for x[2j], x[2j+1]
    w0 = pw(0)                                              # tap for x[2j-1]
    b_p = _pad_axis(b, 1, cout_pad)
    est = 4 * (8 * s_out * c_pad + 4 * s_out * cout_pad + 3 * c_pad * cout_pad)
    return pl.pallas_call(
        functools.partial(_down_conv_kernel, c_pad=c_pad),
        out_shape=jax.ShapeDtypeStruct((B, s_out, cout_pad), x.dtype),
        grid=(B,),
        in_specs=[_act_spec(s_out, 2 * c_pad),
                  _rep_spec((2 * c_pad, cout_pad)), _rep_spec((c_pad, cout_pad)),
                  _rep_spec((1, cout_pad))],
        out_specs=_act_spec(s_out, cout_pad),
        compiler_params=_cparams(est),
    )(xr, w12, w0, b_p)


def attn_block(x, p):
    """AttnBlock1D: one fused kernel (norm + qkv + online softmax + proj + residual)."""
    B, S, c_pad = x.shape
    c = p["q_w"].shape[0]
    assert _pad128(c) == c_pad
    gmat = _group_onehot(c, c_pad)

    def pw(wt):
        return _pad_axis(_pad_axis(wt, 0, c_pad), 1, c_pad)

    def pb(bt):
        return _pad_axis(bt, 1, c_pad)

    kv_chunk = _kv_chunk(S)
    kernel = functools.partial(_gn_attn_kernel, scale=float(int(c)) ** (-0.5),
                               c_per_group=c // NUM_GROUPS, kv_chunk=kv_chunk)
    mat = _rep_spec((c_pad, c_pad))
    vec = _rep_spec((1, c_pad))
    est = 4 * (12 * S * c_pad + 4 * c_pad * c_pad + 3 * S * kv_chunk)
    return pl.pallas_call(
        kernel,
        out_shape=jax.ShapeDtypeStruct((B, S, c_pad), x.dtype),
        grid=(B,),
        in_specs=[_act_spec(S, c_pad), vec, vec, _rep_spec((c_pad, NUM_GROUPS)),
                  mat, vec, mat, vec, mat, vec, mat, vec],
        out_specs=_act_spec(S, c_pad),
        compiler_params=_cparams(est),
    )(x, _pad_axis(p["norm_g"], 1, c_pad), _pad_axis(p["norm_b"], 1, c_pad), gmat,
      pw(p["q_w"]), pb(p["q_b"]), pw(p["k_w"]), pb(p["k_b"]),
      pw(p["v_w"]), pb(p["v_b"]), pw(p["proj_w"]), pb(p["proj_b"]))


# ----------------------------------------------------------------------------
# Composite blocks / full encoder forward.
# ----------------------------------------------------------------------------
def resnet_block(x, p):
    # temb is None (temb_ch == 0); dropout(p=0.0) is identity.
    # TODO(synk): nn.Dropout with p>0 (training mode) not implemented; p=0.0 here.
    h = gn_conv3(x, p["norm1_g"], p["norm1_b"], p["conv1_w"], p["conv1_b"], swish=True)
    if "nin_w" in p:
        return gn_conv3(h, p["norm2_g"], p["norm2_b"], p["conv2_w"], p["conv2_b"],
                        swish=True, residual=x, shortcut=(p["nin_w"], p["nin_b"]))
    return gn_conv3(h, p["norm2_g"], p["norm2_b"], p["conv2_w"], p["conv2_b"],
                    swish=True, residual=x)


def encoder_forward(x, params, cfg, *, act_dtype=jnp.bfloat16):
    """x: (B, S, in_channels).  Intermediate activations travel lane-padded (multiple of 128)
    and in `act_dtype` (bf16 halves inter-layer HBM traffic); all in-kernel math is f32."""
    num_resolutions = len(cfg["ch_mult"])
    out_dtype = x.dtype
    h = _pad_axis(x, 2, _pad128(x.shape[2]))
    h = conv3(h, params["conv_in_w"], params["conv_in_b"], out_dtype=act_dtype)
    curr_res = cfg["resolution"]
    for i_level in range(num_resolutions):
        level = params["down"][i_level]
        for i_block in range(cfg["num_res_blocks"]):
            h = resnet_block(h, level["block"][i_block])
            if curr_res in cfg["attn_resolutions"]:
                h = attn_block(h, level["attn"][i_block])
        if i_level != num_resolutions - 1:
            h = downsample_conv(h, level["down_w"], level["down_b"])
            curr_res //= 2
    h = resnet_block(h, params["mid_block1"])
    h = attn_block(h, params["mid_attn"])
    h = resnet_block(h, params["mid_block2"])
    # norm_out + swish + conv_out fused in one kernel; final result back in the input dtype.
    h = gn_conv3(h, params["norm_out_g"], params["norm_out_b"],
                 params["conv_out_w"], params["conv_out_b"], swish=True, out_dtype=out_dtype)
    return h[..., :params["conv_out_w"].shape[2]]           # strip lane padding


# ----------------------------------------------------------------------------
# Deterministic parameter construction (synthetic weights, no checkpoint).
# Conv1d(k=3) weights stored as (3, C_in, C_out); 1x1 conv weights (C_in, C_out);
# biases (1, C_out); GroupNorm affine params (1, C).
# ----------------------------------------------------------------------------
def _init_norm(key, c):
    k1, k2 = jax.random.split(key)
    g = 1.0 + 0.05 * jax.random.normal(k1, (1, c), jnp.float32)
    b = 0.05 * jax.random.normal(k2, (1, c), jnp.float32)
    return g, b


def _init_conv3(key, cin, cout):
    k1, k2 = jax.random.split(key)
    w = 0.05 * jax.random.normal(k1, (3, cin, cout), jnp.float32)
    b = 0.05 * jax.random.normal(k2, (1, cout), jnp.float32)
    return w, b


def _init_conv1(key, cin, cout):
    k1, k2 = jax.random.split(key)
    w = 0.05 * jax.random.normal(k1, (cin, cout), jnp.float32)
    b = 0.05 * jax.random.normal(k2, (1, cout), jnp.float32)
    return w, b


def _init_resnet(key, cin, cout):
    ks = jax.random.split(key, 5)
    d = {}
    d["norm1_g"], d["norm1_b"] = _init_norm(ks[0], cin)
    d["conv1_w"], d["conv1_b"] = _init_conv3(ks[1], cin, cout)
    d["norm2_g"], d["norm2_b"] = _init_norm(ks[2], cout)
    d["conv2_w"], d["conv2_b"] = _init_conv3(ks[3], cout, cout)
    if cin != cout:
        d["nin_w"], d["nin_b"] = _init_conv1(ks[4], cin, cout)
    return d


def _init_attn(key, c):
    ks = jax.random.split(key, 5)
    d = {}
    d["norm_g"], d["norm_b"] = _init_norm(ks[0], c)
    for name, kk in zip(("q", "k", "v", "proj"), ks[1:]):
        d[name + "_w"], d[name + "_b"] = _init_conv1(kk, c, c)
    return d


def init_params(key, cfg):
    ch = cfg["ch"]
    ch_mult = cfg["ch_mult"]
    out_c = 2 * cfg["z_channels"] if cfg["double_z"] else cfg["z_channels"]
    keys = iter(jax.random.split(key, 128))
    nk = lambda: next(keys)

    p = {}
    p["conv_in_w"], p["conv_in_b"] = _init_conv3(nk(), cfg["in_channels"], ch)
    curr_res = cfg["resolution"]
    in_ch_mult = (1,) + tuple(ch_mult)
    downs = []
    block_in = ch * in_ch_mult[0]
    for i_level in range(len(ch_mult)):
        block_in = ch * in_ch_mult[i_level]
        block_out = ch * ch_mult[i_level]
        level = {"block": [], "attn": []}
        for _ in range(cfg["num_res_blocks"]):
            level["block"].append(_init_resnet(nk(), block_in, block_out))
            block_in = block_out
            if curr_res in cfg["attn_resolutions"]:
                level["attn"].append(_init_attn(nk(), block_in))
        if i_level != len(ch_mult) - 1:
            level["down_w"], level["down_b"] = _init_conv3(nk(), block_in, block_in)
            curr_res //= 2
        downs.append(level)
    p["down"] = downs
    p["mid_block1"] = _init_resnet(nk(), block_in, block_in)
    p["mid_attn"] = _init_attn(nk(), block_in)
    p["mid_block2"] = _init_resnet(nk(), block_in, block_in)
    p["norm_out_g"], p["norm_out_b"] = _init_norm(nk(), block_in)
    p["conv_out_w"], p["conv_out_b"] = _init_conv3(nk(), block_in, out_c)
    return p


if __name__ == "__main__":
    cfg = dict(
        ch=32,                  # base channels (GroupNorm needs multiples of 32)
        ch_mult=(1, 2),         # 2 resolutions: 16 -> 8
        num_res_blocks=1,
        attn_resolutions=(8,),  # attention at res 8 (down level 1) + mid
        in_channels=4,
        resolution=16,
        z_channels=8,
        double_z=True,
    )
    key = jax.random.PRNGKey(0)
    pkey, xkey = jax.random.split(key)
    params = init_params(pkey, cfg)

    B = 2
    # (B, S, C) layout; the equivalent torch input would be shape (2, 4, 16) in NCS.
    x = jax.random.normal(xkey, (B, cfg["resolution"], cfg["in_channels"]), jnp.float32)

    fwd = jax.jit(lambda xx: encoder_forward(xx, params, cfg, act_dtype=jnp.bfloat16))
    out = fwd(x)
    jax.block_until_ready(out)

    expected = (B, cfg["resolution"] // 2 ** (len(cfg["ch_mult"]) - 1), 2 * cfg["z_channels"])
    assert out.shape == expected, (out.shape, expected)
    assert out.dtype == x.dtype
    assert bool(jnp.all(jnp.isfinite(out)))
    print("KERNEL_OK")
</pallas_src>

<mosaic_0001>
module attributes {stable_mosaic.version = 11 : i64} {
  func.func @_conv3_plain_kernel(%arg0: i32, %arg1: memref<1x16x128xf32, #tpu.memory_space<vmem>>, %arg2: memref<384x128xf32, #tpu.memory_space<vmem>>, %arg3: memref<1x128xf32, #tpu.memory_space<vmem>>, %arg4: memref<1x16x128xbf16, #tpu.memory_space<vmem>>) attributes {dimension_semantics = [#tpu.dimension_semantics<parallel>], iteration_bounds = array<i64: 2>, scalar_prefetch = 0 : i64, scratch_operands = 0 : i64, tpu.core_type = #tpu.core_type<tc>, window_params = [{transform_indices = @transform_0, window_bounds = array<i64: 1, 16, 128>}, {pipeline_mode = #tpu.pipeline_mode<synchronous>, transform_indices = @transform_1, window_bounds = array<i64: 384, 128>}, {pipeline_mode = #tpu.pipeline_mode<synchronous>, transform_indices = @transform_2, window_bounds = array<i64: 1, 128>}, {transform_indices = @transform_3, window_bounds = array<i64: 1, 16, 128>}]} {
    %c0 = arith.constant 0 : index
    %c0_0 = arith.constant 0 : index
    %c0_1 = arith.constant 0 : index
    %0 = vector.load %arg1[%c0, %c0_0, %c0_1] : memref<1x16x128xf32, #tpu.memory_space<vmem>>, vector<1x16x128xf32>
    %1 = vector.shape_cast %0 : vector<1x16x128xf32> to vector<16x128xf32>
    %c1_i32 = arith.constant 1 : i32
    %2 = tpu.dynamic_rotate %1 by %c1_i32 dim 0 : vector<16x128xf32>, i32 -> vector<16x128xf32>
    %3 = tpu.iota {dimensions = array<i32: 0>} : vector<16x128xi32>
    %c0_i32 = arith.constant 0 : i32
    %4 = vector.broadcast %c0_i32 : i32 to vector<16x128xi32>
    %5 = arith.cmpi eq, %3, %4 : vector<16x128xi32>
    %cst = arith.constant 0.000000e+00 : f32
    %6 = vector.broadcast %cst : f32 to vector<16x128xf32>
    %7 = arith.select %5, %6, %2 : vector<16x128xi1>, vector<16x128xf32>
    %c15_i32 = arith.constant 15 : i32
    %8 = tpu.dynamic_rotate %1 by %c15_i32 dim 0 : vector<16x128xf32>, i32 -> vector<16x128xf32>
    %9 = tpu.iota {dimensions = array<i32: 0>} : vector<16x128xi32>
    %c15_i32_2 = arith.constant 15 : i32
    %10 = vector.broadcast %c15_i32_2 : i32 to vector<16x128xi32>
    %11 = arith.cmpi eq, %9, %10 : vector<16x128xi32>
    %cst_3 = arith.constant 0.000000e+00 : f32
    %12 = vector.broadcast %cst_3 : f32 to vector<16x128xf32>
    %13 = arith.select %11, %12, %8 : vector<16x128xi1>, vector<16x128xf32>
    %14 = tpu.concatenate %7, %1, %13 in 1 : vector<16x128xf32>, vector<16x128xf32>, vector<16x128xf32> -> vector<16x384xf32>
    %c0_4 = arith.constant 0 : index
    %c0_5 = arith.constant 0 : index
    %15 = vector.load %arg2[%c0_4, %c0_5] : memref<384x128xf32, #tpu.memory_space<vmem>>, vector<384x128xf32>
    %cst_6 = arith.constant dense<0.000000e+00> : vector<16x128xf32>
    %16 = tpu.matmul %14, %15, %cst_6 {dimension_numbers = #tpu.dot_dimension_numbers<[1], [0], [0], [1], [0, 0, 1, 1], [], []>} : vector<16x384xf32>, vector<384x128xf32>, vector<16x128xf32> -> vector<16x128xf32>
    %c0_7 = arith.constant 0 : index
    %c0_8 = arith.constant 0 : index
    %17 = vector.load %arg3[%c0_7, %c0_8] : memref<1x128xf32, #tpu.memory_space<vmem>>, vector<1x128xf32>
    %18 = vector.broadcast %17 : vector<1x128xf32> to vector<16x128xf32>
    %19 = arith.addf %16, %18 : vector<16x128xf32>
    %20 = arith.truncf %19 : vector<16x128xf32> to vector<16x128xbf16>
    %c0_9 = arith.constant 0 : index
    %c0_10 = arith.constant 0 : index
    %c0_11 = arith.constant 0 : index
    %21 = vector.load %arg4[%c0_9, %c0_10, %c0_11] : memref<1x16x128xbf16, #tpu.memory_space<vmem>>, vector<1x16x128xbf16>
    %22 = vector.shape_cast %21 : vector<1x16x128xbf16> to vector<16x128xbf16>
    %23 = vector.shape_cast %20 : vector<16x128xbf16> to vector<1x16x128xbf16>
    tpu.vector_store %arg4[%c0_9, %c0_10, %c0_11], %23 {strides = array<i32>} : memref<1x16x128xbf16, #tpu.memory_space<vmem>>, vector<1x16x128xbf16>,
    return
  }
  func.func @transform_0(%arg0: i32) -> (i32, i32, i32) {
    %c0_i32 = arith.constant 0 : i32
    %c0_i32_0 = arith.constant 0 : i32
    %c0_i32_1 = arith.constant 0 : i32
    return %arg0, %c0_i32, %c0_i32_0 : i32, i32, i32
  }
  func.func @transform_1(%arg0: i32) -> (i32, i32) {
    %c0_i32 = arith.constant 0 : i32
    %c0_i32_0 = arith.constant 0 : i32
    %c0_i32_1 = arith.constant 0 : i32
    return %c0_i32, %c0_i32_0 : i32, i32
  }
  func.func @transform_2(%arg0: i32) -> (i32, i32) {
    %c0_i32 = arith.constant 0 : i32
    %c0_i32_0 = arith.constant 0 : i32
    %c0_i32_1 = arith.constant 0 : i32
    return %c0_i32, %c0_i32_0 : i32, i32
  }
  func.func @transform_3(%arg0: i32) -> (i32, i32, i32) {
    %c0_i32 = arith.constant 0 : i32
    %c0_i32_0 = arith.constant 0 : i32
    %c0_i32_1 = arith.constant 0 : i32
    return %arg0, %c0_i32, %c0_i32_0 : i32, i32, i32
  }
}

module attributes {stable_mosaic.version = 11 : i64} {
  func.func @_gn_conv3_kernel(%arg0: i32, %arg1: memref<1x16x128xbf16, #tpu.memory_space<vmem>>, %arg2: memref<1x128xf32, #tpu.memory_space<vmem>>, %arg3: memref<1x128xf32, #tpu.memory_space<vmem>>, %arg4: memref<128x32xf32, #tpu.memory_space<vmem>>, %arg5: memref<384x128xf32, #tpu.memory_space<vmem>>, %arg6: memref<1x128xf32, #tpu.memory_space<vmem>>, %arg7: memref<1x16x128xbf16, #tpu.memory_space<vmem>>) attributes {dimension_semantics = [#tpu.dimension_semantics<parallel>], iteration_bounds = array<i64: 2>, scalar_prefetch = 0 : i64, scratch_operands = 0 : i64, tpu.core_type = #tpu.core_type<tc>, window_params = [{transform_indices = @transform_0, window_bounds = array<i64: 1, 16, 128>}, {pipeline_mode = #tpu.pipeline_mode<synchronous>, transform_indices = @transform_1, window_bounds = array<i64: 1, 128>}, {pipeline_mode = #tpu.pipeline_mode<synchronous>, transform_indices = @transform_2, window_bounds = array<i64: 1, 128>}, {pipeline_mode = #tpu.pipeline_mode<synchronous>, transform_indices = @transform_3, window_bounds = array<i64: 128, 32>}, {pipeline_mode = #tpu.pipeline_mode<synchronous>, transform_indices = @transform_4, window_bounds = array<i64: 384, 128>}, {pipeline_mode = #tpu.pipeline_mode<synchronous>, transform_indices = @transform_5, window_bounds = array<i64: 1, 128>}, {transform_indices = @transform_6, window_bounds = array<i64: 1, 16, 128>}]} {
    %c0 = arith.constant 0 : index
    %c0_0 = arith.constant 0 : index
    %c0_1 = arith.constant 0 : index
    %0 = vector.load %arg1[%c0, %c0_0, %c0_1] : memref<1x16x128xbf16, #tpu.memory_space<vmem>>, vector<1x16x128xbf16>
    %1 = vector.shape_cast %0 : vector<1x16x128xbf16> to vector<16x128xbf16>
    %2 = arith.extf %1 : vector<16x128xbf16> to vector<16x128xf32>
    %c0_2 = arith.constant 0 : index
    %c0_3 = arith.constant 0 : index
    %3 = vector.load %arg4[%c0_2, %c0_3] : memref<128x32xf32, #tpu.memory_space<vmem>>, vector<128x32xf32>
    %cst = arith.constant dense<0.000000e+00> : vector<128xf32>
    %4 = vector.multi_reduction <add>, %2, %cst [0] : vector<16x128xf32> to vector<128xf32>
    %5 = vector.shape_cast %4 : vector<128xf32> to vector<1x128xf32>
    %6 = arith.mulf %2, %2 : vector<16x128xf32>
    %cst_4 = arith.constant dense<0.000000e+00> : vector<128xf32>
    %7 = vector.multi_reduction <add>, %6, %cst_4 [0] : vector<16x128xf32> to vector<128xf32>
    %8 = vector.shape_cast %7 : vector<128xf32> to vector<1x128xf32>
    %cst_5 = arith.constant dense<0.000000e+00> : vector<1x32xf32>
    %9 = tpu.matmul %5, %3, %cst_5 {dimension_numbers = #tpu.dot_dimension_numbers<[1], [0], [0], [1], [0, 0, 1, 1], [], []>} : vector<1x128xf32>, vector<128x32xf32>, vector<1x32xf32> -> vector<1x32xf32>
    %cst_6 = arith.constant 6.250000e-02 : f32
    %10 = vector.broadcast %cst_6 : f32 to vector<1x32xf32>
    %11 = arith.mulf %9, %10 : vector<1x32xf32>
    %cst_7 = arith.constant dense<0.000000e+00> : vector<1x32xf32>
    %12 = tpu.matmul %8, %3, %cst_7 {dimension_numbers = #tpu.dot_dimension_numbers<[1], [0], [0], [1], [0, 0, 1, 1], [], []>} : vector<1x128xf32>, vector<128x32xf32>, vector<1x32xf32> -> vector<1x32xf32>
    %cst_8 = arith.constant 6.250000e-02 : f32
    %13 = vector.broadcast %cst_8 : f32 to vector<1x32xf32>
    %14 = arith.mulf %12, %13 : vector<1x32xf32>
    %15 = arith.mulf %11, %11 : vector<1x32xf32>
    %16 = arith.subf %14, %15 : vector<1x32xf32>
    %cst_9 = arith.constant 0.000000e+00 : f32
    %17 = vector.broadcast %cst_9 : f32 to vector<1x32xf32>
    %18 = arith.maximumf %16, %17 : vector<1x32xf32>
    %cst_10 = arith.constant dense<0.000000e+00> : vector<1x128xf32>
    %19 = tpu.matmul %11, %3, %cst_10 {dimension_numbers = #tpu.dot_dimension_numbers<[1], [1], [0], [0], [0, 0, 1, 0], [], []>} : vector<1x32xf32>, vector<128x32xf32>, vector<1x128xf32> -> vector<1x128xf32>
    %cst_11 = arith.constant dense<0.000000e+00> : vector<1x128xf32>
    %20 = tpu.matmul %18, %3, %cst_11 {dimension_numbers = #tpu.dot_dimension_numbers<[1], [1], [0], [0], [0, 0, 1, 0], [], []>} : vector<1x32xf32>, vector<128x32xf32>, vector<1x128xf32> -> vector<1x128xf32>
    %cst_12 = arith.constant 9.99999997E-7 : f32
    %21 = vector.broadcast %cst_12 : f32 to vector<1x128xf32>
    %22 = arith.addf %20, %21 : vector<1x128xf32>
    %23 = math.rsqrt %22 : vector<1x128xf32>
    %c0_13 = arith.constant 0 : index
    %c0_14 = arith.constant 0 : index
    %24 = vector.load %arg2[%c0_13, %c0_14] : memref<1x128xf32, #tpu.memory_space<vmem>>, vector<1x128xf32>
    %25 = arith.mulf %24, %23 : vector<1x128xf32>
    %c0_15 = arith.constant 0 : index
    %c0_16 = arith.constant 0 : index
    %26 = vector.load %arg3[%c0_15, %c0_16] : memref<1x128xf32, #tpu.memory_space<vmem>>, vector<1x128xf32>
    %27 = arith.mulf %19, %25 : vector<1x128xf32>
    %28 = arith.subf %26, %27 : vector<1x128xf32>
    %29 = vector.broadcast %25 : vector<1x128xf32> to vector<16x128xf32>
    %30 = arith.mulf %2, %29 : vector<16x128xf32>
    %31 = vector.broadcast %28 : vector<1x128xf32> to vector<16x128xf32>
    %32 = arith.addf %30, %31 : vector<16x128xf32>
    %33 = arith.negf %32 : vector<16x128xf32>
    %34 = math.exp %33 : vector<16x128xf32>
    %cst_17 = arith.constant 1.000000e+00 : f32
    %35 = vector.broadcast %cst_17 : f32 to vector<16x128xf32>
    %36 = arith.addf %35, %34 : vector<16x128xf32>
    %37 = arith.divf %35, %36 : vector<16x128xf32>
    %38 = arith.mulf %32, %37 : vector<16x128xf32>
    %c1_i32 = arith.constant 1 : i32
    %39 = tpu.dynamic_rotate %38 by %c1_i32 dim 0 : vector<16x128xf32>, i32 -> vector<16x128xf32>
    %40 = tpu.iota {dimensions = array<i32: 0>} : vector<16x128xi32>
    %c0_i32 = arith.constant 0 : i32
    %41 = vector.broadcast %c0_i32 : i32 to vector<16x128xi32>
    %42 = arith.cmpi eq, %40, %41 : vector<16x128xi32>
    %cst_18 = arith.constant 0.000000e+00 : f32
    %43 = vector.broadcast %cst_18 : f32 to vector<16x128xf32>
    %44 = arith.select %42, %43, %39 : vector<16x128xi1>, vector<16x128xf32>
    %c15_i32 = arith.constant 15 : i32
    %45 = tpu.dynamic_rotate %38 by %c15_i32 dim 0 : vector<16x128xf32>, i32 -> vector<16x128xf32>
    %46 = tpu.iota {dimensions = array<i32: 0>} : vector<16x128xi32>
    %c15_i32_19 = arith.constant 15 : i32
    %47 = vector.broadcast %c15_i32_19 : i32 to vector<16x128xi32>
    %48 = arith.cmpi eq, %46, %47 : vector<16x128xi32>
    %cst_20 = arith.constant 0.000000e+00 : f32
    %49 = vector.broadcast %cst_20 : f32 to vector<16x128xf32>
    %50 = arith.select %48, %49, %45 : vector<16x128xi1>, vector<16x128xf32>
    %51 = tpu.concatenate %44, %38, %50 in 1 : vector<16x128xf32>, vector<16x128xf32>, vector<16x128xf32> -> vector<16x384xf32>
    %c0_21 = arith.constant 0 : index
    %c0_22 = arith.constant 0 : index
    %52 = vector.load %arg5[%c0_21, %c0_22] : memref<384x128xf32, #tpu.memory_space<vmem>>, vector<384x128xf32>
    %cst_23 = arith.constant dense<0.000000e+00> : vector<16x128xf32>
    %53 = tpu.matmul %51, %52, %cst_23 {dimension_numbers = #tpu.dot_dimension_numbers<[1], [0], [0], [1], [0, 0, 1, 1], [], []>} : vector<16x384xf32>, vector<384x128xf32>, vector<16x128xf32> -> vector<16x128xf32>
    %c0_24 = arith.constant 0 : index
    %c0_25 = arith.constant 0 : index
    %54 = vector.load %arg6[%c0_24, %c0_25] : memref<1x128xf32, #tpu.memory_space<vmem>>, vector<1x128xf32>
    %55 = vector.broadcast %54 : vector<1x128xf32> to vector<16x128xf32>
    %56 = arith.addf %53, %55 : vector<16x128xf32>
    %57 = arith.truncf %56 : vector<16x128xf32> to vector<16x128xbf16>
    %c0_26 = arith.constant 0 : index
    %c0_27 = arith.constant 0 : index
    %c0_28 = arith.constant 0 : index
    %58 = vector.load %arg7[%c0_26, %c0_27, %c0_28] : memref<1x16x128xbf16, #tpu.memory_space<vmem>>, vector<1x16x128xbf16>
    %59 = vector.shape_cast %58 : vector<1x16x128xbf16> to vector<16x128xbf16>
    %60 = vector.shape_cast %57 : vector<16x128xbf16> to vector<1x16x128xbf16>
    tpu.vector_store %arg7[%c0_26, %c0_27, %c0_28], %60 {strides = array<i32>} : memref<1x16x128xbf16, #tpu.memory_space<vmem>>, vector<1x16x128xbf16>,
    return
  }
  func.func @transform_0(%arg0: i32) -> (i32, i32, i32) {
    %c0_i32 = arith.constant 0 : i32
    %c0_i32_0 = arith.constant 0 : i32
    %c0_i32_1 = arith.constant 0 : i32
    return %arg0, %c0_i32, %c0_i32_0 : i32, i32, i32
  }
  func.func @transform_1(%arg0: i32) -> (i32, i32) {
    %c0_i32 = arith.constant 0 : i32
    %c0_i32_0 = arith.constant 0 : i32
    %c0_i32_1 = arith.constant 0 : i32
    return %c0_i32, %c0_i32_0 : i32, i32
  }
  func.func @transform_2(%arg0: i32) -> (i32, i32) {
    %c0_i32 = arith.constant 0 : i32
    %c0_i32_0 = arith.constant 0 : i32
    %c0_i32_1 = arith.constant 0 : i32
    return %c0_i32, %c0_i32_0 : i32, i32
  }
  func.func @transform_3(%arg0: i32) -> (i32, i32) {
    %c0_i32 = arith.constant 0 : i32
    %c0_i32_0 = arith.constant 0 : i32
    %c0_i32_1 = arith.constant 0 : i32
    return %c0_i32, %c0_i32_0 : i32, i32
  }
  func.func @transform_4(%arg0: i32) -> (i32, i32) {
    %c0_i32 = arith.constant 0 : i32
    %c0_i32_0 = arith.constant 0 : i32
    %c0_i32_1 = arith.constant 0 : i32
    return %c0_i32, %c0_i32_0 : i32, i32
  }
  func.func @transform_5(%arg0: i32) -> (i32, i32) {
    %c0_i32 = arith.constant 0 : i32
    %c0_i32_0 = arith.constant 0 : i32
    %c0_i32_1 = arith.constant 0 : i32
    return %c0_i32, %c0_i32_0 : i32, i32
  }
  func.func @transform_6(%arg0: i32) -> (i32, i32, i32) {
    %c0_i32 = arith.constant 0 : i32
    %c0_i32_0 = arith.constant 0 : i32
    %c0_i32_1 = arith.constant 0 : i32
    return %arg0, %c0_i32, %c0_i32_0 : i32, i32, i32
  }
}

module attributes {stable_mosaic.version = 11 : i64} {
  func.func @_gn_conv3_res_kernel(%arg0: i32, %arg1: memref<1x16x128xbf16, #tpu.memory_space<vmem>>, %arg2: memref<1x128xf32, #tpu.memory_space<vmem>>, %arg3: memref<1x128xf32, #tpu.memory_space<vmem>>, %arg4: memref<128x32xf32, #tpu.memory_space<vmem>>, %arg5: memref<384x128xf32, #tpu.memory_space<vmem>>, %arg6: memref<1x128xf32, #tpu.memory_space<vmem>>, %arg7: memref<1x16x128xbf16, #tpu.memory_space<vmem>>, %arg8: memref<1x16x128xbf16, #tpu.memory_space<vmem>>) attributes {dimension_semantics = [#tpu.dimension_semantics<parallel>], iteration_bounds = array<i64: 2>, scalar_prefetch = 0 : i64, scratch_operands = 0 : i64, tpu.core_type = #tpu.core_type<tc>, window_params = [{transform_indices = @transform_0, window_bounds = array<i64: 1, 16, 128>}, {pipeline_mode = #tpu.pipeline_mode<synchronous>, transform_indices = @transform_1, window_bounds = array<i64: 1, 128>}, {pipeline_mode = #tpu.pipeline_mode<synchronous>, transform_indices = @transform_2, window_bounds = array<i64: 1, 128>}, {pipeline_mode = #tpu.pipeline_mode<synchronous>, transform_indices = @transform_3, window_bounds = array<i64: 128, 32>}, {pipeline_mode = #tpu.pipeline_mode<synchronous>, transform_indices = @transform_4, window_bounds = array<i64: 384, 128>}, {pipeline_mode = #tpu.pipeline_mode<synchronous>, transform_indices = @transform_5, window_bounds = array<i64: 1, 128>}, {transform_indices = @transform_6, window_bounds = array<i64: 1, 16, 128>}, {transform_indices = @transform_7, window_bounds = array<i64: 1, 16, 128>}]} {
    %c0 = arith.constant 0 : index
    %c0_0 = arith.constant 0 : index
    %c0_1 = arith.constant 0 : index
    %0 = vector.load %arg1[%c0, %c0_0, %c0_1] : memref<1x16x128xbf16, #tpu.memory_space<vmem>>, vector<1x16x128xbf16>
    %1 = vector.shape_cast %0 : vector<1x16x128xbf16> to vector<16x128xbf16>
    %2 = arith.extf %1 : vector<16x128xbf16> to vector<16x128xf32>
    %c0_2 = arith.constant 0 : index
    %c0_3 = arith.constant 0 : index
    %3 = vector.load %arg4[%c0_2, %c0_3] : memref<128x32xf32, #tpu.memory_space<vmem>>, vector<128x32xf32>
    %cst = arith.constant dense<0.000000e+00> : vector<128xf32>
    %4 = vector.multi_reduction <add>, %2, %cst [0] : vector<16x128xf32> to vector<128xf32>
    %5 = vector.shape_cast %4 : vector<128xf32> to vector<1x128xf32>
    %6 = arith.mulf %2, %2 : vector<16x128xf32>
    %cst_4 = arith.constant dense<0.000000e+00> : vector<128xf32>
    %7 = vector.multi_reduction <add>, %6, %cst_4 [0] : vector<16x128xf32> to vector<128xf32>
    %8 = vector.shape_cast %7 : vector<128xf32> to vector<1x128xf32>
    %cst_5 = arith.constant dense<0.000000e+00> : vector<1x32xf32>
    %9 = tpu.matmul %5, %3, %cst_5 {dimension_numbers = #tpu.dot_dimension_numbers<[1], [0], [0], [1], [0, 0, 1, 1], [], []>} : vector<1x128xf32>, vector<128x32xf32>, vector<1x32xf32> -> vector<1x32xf32>
    %cst_6 = arith.constant 6.250000e-02 : f32
    %10 = vector.broadcast %cst_6 : f32 to vector<1x32xf32>
    %11 = arith.mulf %9, %10 : vector<1x32xf32>
    %cst_7 = arith.constant dense<0.000000e+00> : vector<1x32xf32>
    %12 = tpu.matmul %8, %3, %cst_7 {dimension_numbers = #tpu.dot_dimension_numbers<[1], [0], [0], [1], [0, 0, 1, 1], [], []>} : vector<1x128xf32>, vector<128x32xf32>, vector<1x32xf32> -> vector<1x32xf32>
    %cst_8 = arith.constant 6.250000e-02 : f32
    %13 = vector.broadcast %cst_8 : f32 to vector<1x32xf32>
    %14 = arith.mulf %12, %13 : vector<1x32xf32>
    %15 = arith.mulf %11, %11 : vector<1x32xf32>
    %16 = arith.subf %14, %15 : vector<1x32xf32>
    %cst_9 = arith.constant 0.000000e+00 : f32
    %17 = vector.broadcast %cst_9 : f32 to vector<1x32xf32>
    %18 = arith.maximumf %16, %17 : vector<1x32xf32>
    %cst_10 = arith.constant dense<0.000000e+00> : vector<1x128xf32>
    %19 = tpu.matmul %11, %3, %cst_10 {dimension_numbers = #tpu.dot_dimension_numbers<[1], [1], [0], [0], [0, 0, 1, 0], [], []>} : vector<1x32xf32>, vector<128x32xf32>, vector<1x128xf32> -> vector<1x128xf32>
    %cst_11 = arith.constant dense<0.000000e+00> : vector<1x128xf32>
    %20 = tpu.matmul %18, %3, %cst_11 {dimension_numbers = #tpu.dot_dimension_numbers<[1], [1], [0], [0], [0, 0, 1, 0], [], []>} : vector<1x32xf32>, vector<128x32xf32>, vector<1x128xf32> -> vector<1x128xf32>
    %cst_12 = arith.constant 9.99999997E-7 : f32
    %21 = vector.broadcast %cst_12 : f32 to vector<1x128xf32>
    %22 = arith.addf %20, %21 : vector<1x128xf32>
    %23 = math.rsqrt %22 : vector<1x128xf32>
    %c0_13 = arith.constant 0 : index
    %c0_14 = arith.constant 0 : index
    %24 = vector.load %arg2[%c0_13, %c0_14] : memref<1x128xf32, #tpu.memory_space<vmem>>, vector<1x128xf32>
    %25 = arith.mulf %24, %23 : vector<1x128xf32>
    %c0_15 = arith.constant 0 : index
    %c0_16 = arith.constant 0 : index
    %26 = vector.load %arg3[%c0_15, %c0_16] : memref<1x128xf32, #tpu.memory_space<vmem>>, vector<1x128xf32>
    %27 = arith.mulf %19, %25 : vector<1x128xf32>
    %28 = arith.subf %26, %27 : vector<1x128xf32>
    %29 = vector.broadcast %25 : vector<1x128xf32> to vector<16x128xf32>
    %30 = arith.mulf %2, %29 : vector<16x128xf32>
    %31 = vector.broadcast %28 : vector<1x128xf32> to vector<16x128xf32>
    %32 = arith.addf %30, %31 : vector<16x128xf32>
    %33 = arith.negf %32 : vector<16x128xf32>
    %34 = math.exp %33 : vector<16x128xf32>
    %cst_17 = arith.constant 1.000000e+00 : f32
    %35 = vector.broadcast %cst_17 : f32 to vector<16x128xf32>
    %36 = arith.addf %35, %34 : vector<16x128xf32>
    %37 = arith.divf %35, %36 : vector<16x128xf32>
    %38 = arith.mulf %32, %37 : vector<16x128xf32>
    %c1_i32 = arith.constant 1 : i32
    %39 = tpu.dynamic_rotate %38 by %c1_i32 dim 0 : vector<16x128xf32>, i32 -> vector<16x128xf32>
    %40 = tpu.iota {dimensions = array<i32: 0>} : vector<16x128xi32>
    %c0_i32 = arith.constant 0 : i32
    %41 = vector.broadcast %c0_i32 : i32 to vector<16x128xi32>
    %42 = arith.cmpi eq, %40, %41 : vector<16x128xi32>
    %cst_18 = arith.constant 0.000000e+00 : f32
    %43 = vector.broadcast %cst_18 : f32 to vector<16x128xf32>
    %44 = arith.select %42, %43, %39 : vector<16x128xi1>, vector<16x128xf32>
    %c15_i32 = arith.constant 15 : i32
    %45 = tpu.dynamic_rotate %38 by %c15_i32 dim 0 : vector<16x128xf32>, i32 -> vector<16x128xf32>
    %46 = tpu.iota {dimensions = array<i32: 0>} : vector<16x128xi32>
    %c15_i32_19 = arith.constant 15 : i32
    %47 = vector.broadcast %c15_i32_19 : i32 to vector<16x128xi32>
    %48 = arith.cmpi eq, %46, %47 : vector<16x128xi32>
    %cst_20 = arith.constant 0.000000e+00 : f32
    %49 = vector.broadcast %cst_20 : f32 to vector<16x128xf32>
    %50 = arith.select %48, %49, %45 : vector<16x128xi1>, vector<16x128xf32>
    %51 = tpu.concatenate %44, %38, %50 in 1 : vector<16x128xf32>, vector<16x128xf32>, vector<16x128xf32> -> vector<16x384xf32>
    %c0_21 = arith.constant 0 : index
    %c0_22 = arith.constant 0 : index
    %52 = vector.load %arg5[%c0_21, %c0_22] : memref<384x128xf32, #tpu.memory_space<vmem>>, vector<384x128xf32>
    %cst_23 = arith.constant dense<0.000000e+00> : vector<16x128xf32>
    %53 = tpu.matmul %51, %52, %cst_23 {dimension_numbers = #tpu.dot_dimension_numbers<[1], [0], [0], [1], [0, 0, 1, 1], [], []>} : vector<16x384xf32>, vector<384x128xf32>, vector<16x128xf32> -> vector<16x128xf32>
    %c0_24 = arith.constant 0 : index
    %c0_25 = arith.constant 0 : index
    %54 = vector.load %arg6[%c0_24, %c0_25] : memref<1x128xf32, #tpu.memory_space<vmem>>, vector<1x128xf32>
    %55 = vector.broadcast %54 : vector<1x128xf32> to vector<16x128xf32>
    %56 = arith.addf %53, %55 : vector<16x128xf32>
    %c0_26 = arith.constant 0 : index
    %c0_27 = arith.constant 0 : index
    %c0_28 = arith.constant 0 : index
    %57 = vector.load %arg7[%c0_26, %c0_27, %c0_28] : memref<1x16x128xbf16, #tpu.memory_space<vmem>>, vector<1x16x128xbf16>
    %58 = vector.shape_cast %57 : vector<1x16x128xbf16> to vector<16x128xbf16>
    %59 = arith.extf %58 : vector<16x128xbf16> to vector<16x128xf32>
    %60 = arith.addf %56, %59 : vector<16x128xf32>
    %61 = arith.truncf %60 : vector<16x128xf32> to vector<16x128xbf16>
    %c0_29 = arith.constant 0 : index
    %c0_30 = arith.constant 0 : index
    %c0_31 = arith.constant 0 : index
    %62 = vector.load %arg8[%c0_29, %c0_30, %c0_31] : memref<1x16x128xbf16, #tpu.memory_space<vmem>>, vector<1x16x128xbf16>
    %63 = vector.shape_cast %62 : vector<1x16x128xbf16> to vector<16x128xbf16>
    %64 = vector.shape_cast %61 : vector<16x128xbf16> to vector<1x16x128xbf16>
    tpu.vector_store %arg8[%c0_29, %c0_30, %c0_31], %64 {strides = array<i32>} : memref<1x16x128xbf16, #tpu.memory_space<vmem>>, vector<1x16x128xbf16>,
    return
  }
  func.func @transform_0(%arg0: i32) -> (i32, i32, i32) {
    %c0_i32 = arith.constant 0 : i32
    %c0_i32_0 = arith.constant 0 : i32
    %c0_i32_1 = arith.constant 0 : i32
    return %arg0, %c0_i32, %c0_i32_0 : i32, i32, i32
  }
  func.func @transform_1(%arg0: i32) -> (i32, i32) {
    %c0_i32 = arith.constant 0 : i32
    %c0_i32_0 = arith.constant 0 : i32
    %c0_i32_1 = arith.constant 0 : i32
    return %c0_i32, %c0_i32_0 : i32, i32
  }
  func.func @transform_2(%arg0: i32) -> (i32, i32) {
    %c0_i32 = arith.constant 0 : i32
    %c0_i32_0 = arith.constant 0 : i32
    %c0_i32_1 = arith.constant 0 : i32
    return %c0_i32, %c0_i32_0 : i32, i32
  }
  func.func @transform_3(%arg0: i32) -> (i32, i32) {
    %c0_i32 = arith.constant 0 : i32
    %c0_i32_0 = arith.constant 0 : i32
    %c0_i32_1 = arith.constant 0 : i32
    return %c0_i32, %c0_i32_0 : i32, i32
  }
  func.func @transform_4(%arg0: i32) -> (i32, i32) {
    %c0_i32 = arith.constant 0 : i32
    %c0_i32_0 = arith.constant 0 : i32
    %c0_i32_1 = arith.constant 0 : i32
    return %c0_i32, %c0_i32_0 : i32, i32
  }
  func.func @transform_5(%arg0: i32) -> (i32, i32) {
    %c0_i32 = arith.constant 0 : i32
    %c0_i32_0 = arith.constant 0 : i32
    %c0_i32_1 = arith.constant 0 : i32
    return %c0_i32, %c0_i32_0 : i32, i32
  }
  func.func @transform_6(%arg0: i32) -> (i32, i32, i32) {
    %c0_i32 = arith.constant 0 : i32
    %c0_i32_0 = arith.constant 0 : i32
    %c0_i32_1 = arith.constant 0 : i32
    return %arg0, %c0_i32, %c0_i32_0 : i32, i32, i32
  }
  func.func @transform_7(%arg0: i32) -> (i32, i32, i32) {
    %c0_i32 = arith.constant 0 : i32
    %c0_i32_0 = arith.constant 0 : i32
    %c0_i32_1 = arith.constant 0 : i32
    return %arg0, %c0_i32, %c0_i32_0 : i32, i32, i32
  }
}

module attributes {stable_mosaic.version = 11 : i64} {
  func.func @_down_conv_kernel(%arg0: i32, %arg1: memref<1x8x256xbf16, #tpu.memory_space<vmem>>, %arg2: memref<256x128xf32, #tpu.memory_space<vmem>>, %arg3: memref<128x128xf32, #tpu.memory_space<vmem>>, %arg4: memref<1x128xf32, #tpu.memory_space<vmem>>, %arg5: memref<1x8x128xbf16, #tpu.memory_space<vmem>>) attributes {dimension_semantics = [#tpu.dimension_semantics<parallel>], iteration_bounds = array<i64: 2>, scalar_prefetch = 0 : i64, scratch_operands = 0 : i64, tpu.core_type = #tpu.core_type<tc>, window_params = [{transform_indices = @transform_0, window_bounds = array<i64: 1, 8, 256>}, {pipeline_mode = #tpu.pipeline_mode<synchronous>, transform_indices = @transform_1, window_bounds = array<i64: 256, 128>}, {pipeline_mode = #tpu.pipeline_mode<synchronous>, transform_indices = @transform_2, window_bounds = array<i64: 128, 128>}, {pipeline_mode = #tpu.pipeline_mode<synchronous>, transform_indices = @transform_3, window_bounds = array<i64: 1, 128>}, {transform_indices = @transform_4, window_bounds = array<i64: 1, 8, 128>}]} {
    %c0 = arith.constant 0 : index
    %c0_0 = arith.constant 0 : index
    %c0_1 = arith.constant 0 : index
    %0 = vector.load %arg1[%c0, %c0_0, %c0_1] : memref<1x8x256xbf16, #tpu.memory_space<vmem>>, vector<1x8x256xbf16>
    %1 = vector.shape_cast %0 : vector<1x8x256xbf16> to vector<8x256xbf16>
    %2 = arith.extf %1 : vector<8x256xbf16> to vector<8x256xf32>
    %3 = vector.extract_strided_slice %2 {offsets = [0, 128], sizes = [8, 128], strides = [1, 1]} : vector<8x256xf32> to vector<8x128xf32>
    %c1_i32 = arith.constant 1 : i32
    %4 = tpu.dynamic_rotate %3 by %c1_i32 dim 0 : vector<8x128xf32>, i32 -> vector<8x128xf32>
    %5 = tpu.iota {dimensions = array<i32: 0>} : vector<8x128xi32>
    %c0_i32 = arith.constant 0 : i32
    %6 = vector.broadcast %c0_i32 : i32 to vector<8x128xi32>
    %7 = arith.cmpi eq, %5, %6 : vector<8x128xi32>
    %cst = arith.constant 0.000000e+00 : f32
    %8 = vector.broadcast %cst : f32 to vector<8x128xf32>
    %9 = arith.select %7, %8, %4 : vector<8x128xi1>, vector<8x128xf32>
    %c0_2 = arith.constant 0 : index
    %c0_3 = arith.constant 0 : index
    %10 = vector.load %arg2[%c0_2, %c0_3] : memref<256x128xf32, #tpu.memory_space<vmem>>, vector<256x128xf32>
    %cst_4 = arith.constant dense<0.000000e+00> : vector<8x128xf32>
    %11 = tpu.matmul %2, %10, %cst_4 {dimension_numbers = #tpu.dot_dimension_numbers<[1], [0], [0], [1], [0, 0, 1, 1], [], []>} : vector<8x256xf32>, vector<256x128xf32>, vector<8x128xf32> -> vector<8x128xf32>
    %c0_5 = arith.constant 0 : index
    %c0_6 = arith.constant 0 : index
    %12 = vector.load %arg3[%c0_5, %c0_6] : memref<128x128xf32, #tpu.memory_space<vmem>>, vector<128x128xf32>
    %cst_7 = arith.constant dense<0.000000e+00> : vector<8x128xf32>
    %13 = tpu.matmul %9, %12, %cst_7 {dimension_numbers = #tpu.dot_dimension_numbers<[1], [0], [0], [1], [0, 0, 1, 1], [], []>} : vector<8x128xf32>, vector<128x128xf32>, vector<8x128xf32> -> vector<8x128xf32>
    %14 = arith.addf %11, %13 : vector<8x128xf32>
    %c0_8 = arith.constant 0 : index
    %c0_9 = arith.constant 0 : index
    %15 = vector.load %arg4[%c0_8, %c0_9] : memref<1x128xf32, #tpu.memory_space<vmem>>, vector<1x128xf32>
    %16 = vector.broadcast %15 : vector<1x128xf32> to vector<8x128xf32>
    %17 = arith.addf %14, %16 : vector<8x128xf32>
    %18 = arith.truncf %17 : vector<8x128xf32> to vector<8x128xbf16>
    %c0_10 = arith.constant 0 : index
    %c0_11 = arith.constant 0 : index
    %c0_12 = arith.constant 0 : index
    %19 = vector.load %arg5[%c0_10, %c0_11, %c0_12] : memref<1x8x128xbf16, #tpu.memory_space<vmem>>, vector<1x8x128xbf16>
    %20 = vector.shape_cast %19 : vector<1x8x128xbf16> to vector<8x128xbf16>
    %21 = vector.shape_cast %18 : vector<8x128xbf16> to vector<1x8x128xbf16>
    tpu.vector_store %arg5[%c0_10, %c0_11, %c0_12], %21 {strides = array<i32>} : memref<1x8x128xbf16, #tpu.memory_space<vmem>>, vector<1x8x128xbf16>,
    return
  }
  func.func @transform_0(%arg0: i32) -> (i32, i32, i32) {
    %c0_i32 = arith.constant 0 : i32
    %c0_i32_0 = arith.constant 0 : i32
    %c0_i32_1 = arith.constant 0 : i32
    return %arg0, %c0_i32, %c0_i32_0 : i32, i32, i32
  }
  func.func @transform_1(%arg0: i32) -> (i32, i32) {
    %c0_i32 = arith.constant 0 : i32
    %c0_i32_0 = arith.constant 0 : i32
    %c0_i32_1 = arith.constant 0 : i32
    return %c0_i32, %c0_i32_0 : i32, i32
  }
  func.func @transform_2(%arg0: i32) -> (i32, i32) {
    %c0_i32 = arith.constant 0 : i32
    %c0_i32_0 = arith.constant 0 : i32
    %c0_i32_1 = arith.constant 0 : i32
    return %c0_i32, %c0_i32_0 : i32, i32
  }
  func.func @transform_3(%arg0: i32) -> (i32, i32) {
    %c0_i32 = arith.constant 0 : i32
    %c0_i32_0 = arith.constant 0 : i32
    %c0_i32_1 = arith.constant 0 : i32
    return %c0_i32, %c0_i32_0 : i32, i32
  }
  func.func @transform_4(%arg0: i32) -> (i32, i32, i32) {
    %c0_i32 = arith.constant 0 : i32
    %c0_i32_0 = arith.constant 0 : i32
    %c0_i32_1 = arith.constant 0 : i32
    return %arg0, %c0_i32, %c0_i32_0 : i32, i32, i32
  }
}

module attributes {stable_mosaic.version = 11 : i64} {
  func.func @_gn_conv3_kernel(%arg0: i32, %arg1: memref<1x8x128xbf16, #tpu.memory_space<vmem>>, %arg2: memref<1x128xf32, #tpu.memory_space<vmem>>, %arg3: memref<1x128xf32, #tpu.memory_space<vmem>>, %arg4: memref<128x32xf32, #tpu.memory_space<vmem>>, %arg5: memref<384x128xf32, #tpu.memory_space<vmem>>, %arg6: memref<1x128xf32, #tpu.memory_space<vmem>>, %arg7: memref<1x8x128xbf16, #tpu.memory_space<vmem>>) attributes {dimension_semantics = [#tpu.dimension_semantics<parallel>], iteration_bounds = array<i64: 2>, scalar_prefetch = 0 : i64, scratch_operands = 0 : i64, tpu.core_type = #tpu.core_type<tc>, window_params = [{transform_indices = @transform_0, window_bounds = array<i64: 1, 8, 128>}, {pipeline_mode = #tpu.pipeline_mode<synchronous>, transform_indices = @transform_1, window_bounds = array<i64: 1, 128>}, {pipeline_mode = #tpu.pipeline_mode<synchronous>, transform_indices = @transform_2, window_bounds = array<i64: 1, 128>}, {pipeline_mode = #tpu.pipeline_mode<synchronous>, transform_indices = @transform_3, window_bounds = array<i64: 128, 32>}, {pipeline_mode = #tpu.pipeline_mode<synchronous>, transform_indices = @transform_4, window_bounds = array<i64: 384, 128>}, {pipeline_mode = #tpu.pipeline_mode<synchronous>, transform_indices = @transform_5, window_bounds = array<i64: 1, 128>}, {transform_indices = @transform_6, window_bounds = array<i64: 1, 8, 128>}]} {
    %c0 = arith.constant 0 : index
    %c0_0 = arith.constant 0 : index
    %c0_1 = arith.constant 0 : index
    %0 = vector.load %arg1[%c0, %c0_0, %c0_1] : memref<1x8x128xbf16, #tpu.memory_space<vmem>>, vector<1x8x128xbf16>
    %1 = vector.shape_cast %0 : vector<1x8x128xbf16> to vector<8x128xbf16>
    %2 = arith.extf %1 : vector<8x128xbf16> to vector<8x128xf32>
    %c0_2 = arith.constant 0 : index
    %c0_3 = arith.constant 0 : index
    %3 = vector.load %arg4[%c0_2, %c0_3] : memref<128x32xf32, #tpu.memory_space<vmem>>, vector<128x32xf32>
    %cst = arith.constant dense<0.000000e+00> : vector<128xf32>
    %4 = vector.multi_reduction <add>, %2, %cst [0] : vector<8x128xf32> to vector<128xf32>
    %5 = vector.shape_cast %4 : vector<128xf32> to vector<1x128xf32>
    %6 = arith.mulf %2, %2 : vector<8x128xf32>
    %cst_4 = arith.constant dense<0.000000e+00> : vector<128xf32>
    %7 = vector.multi_reduction <add>, %6, %cst_4 [0] : vector<8x128xf32> to vector<128xf32>
    %8 = vector.shape_cast %7 : vector<128xf32> to vector<1x128xf32>
    %cst_5 = arith.constant dense<0.000000e+00> : vector<1x32xf32>
    %9 = tpu.matmul %5, %3, %cst_5 {dimension_numbers = #tpu.dot_dimension_numbers<[1], [0], [0], [1], [0, 0, 1, 1], [], []>} : vector<1x128xf32>, vector<128x32xf32>, vector<1x32xf32> -> vector<1x32xf32>
    %cst_6 = arith.constant 1.250000e-01 : f32
    %10 = vector.broadcast %cst_6 : f32 to vector<1x32xf32>
    %11 = arith.mulf %9, %10 : vector<1x32xf32>
    %cst_7 = arith.constant dense<0.000000e+00> : vector<1x32xf32>
    %12 = tpu.matmul %8, %3, %cst_7 {dimension_numbers = #tpu.dot_dimension_numbers<[1], [0], [0], [1], [0, 0, 1, 1], [], []>} : vector<1x128xf32>, vector<128x32xf32>, vector<1x32xf32> -> vector<1x32xf32>
    %cst_8 = arith.constant 1.250000e-01 : f32
    %13 = vector.broadcast %cst_8 : f32 to vector<1x32xf32>
    %14 = arith.mulf %12, %13 : vector<1x32xf32>
    %15 = arith.mulf %11, %11 : vector<1x32xf32>
    %16 = arith.subf %14, %15 : vector<1x32xf32>
    %cst_9 = arith.constant 0.000000e+00 : f32
    %17 = vector.broadcast %cst_9 : f32 to vector<1x32xf32>
    %18 = arith.maximumf %16, %17 : vector<1x32xf32>
    %cst_10 = arith.constant dense<0.000000e+00> : vector<1x128xf32>
    %19 = tpu.matmul %11, %3, %cst_10 {dimension_numbers = #tpu.dot_dimension_numbers<[1], [1], [0], [0], [0, 0, 1, 0], [], []>} : vector<1x32xf32>, vector<128x32xf32>, vector<1x128xf32> -> vector<1x128xf32>
    %cst_11 = arith.constant dense<0.000000e+00> : vector<1x128xf32>
    %20 = tpu.matmul %18, %3, %cst_11 {dimension_numbers = #tpu.dot_dimension_numbers<[1], [1], [0], [0], [0, 0, 1, 0], [], []>} : vector<1x32xf32>, vector<128x32xf32>, vector<1x128xf32> -> vector<1x128xf32>
    %cst_12 = arith.constant 9.99999997E-7 : f32
    %21 = vector.broadcast %cst_12 : f32 to vector<1x128xf32>
    %22 = arith.addf %20, %21 : vector<1x128xf32>
    %23 = math.rsqrt %22 : vector<1x128xf32>
    %c0_13 = arith.constant 0 : index
    %c0_14 = arith.constant 0 : index
    %24 = vector.load %arg2[%c0_13, %c0_14] : memref<1x128xf32, #tpu.memory_space<vmem>>, vector<1x128xf32>
    %25 = arith.mulf %24, %23 : vector<1x128xf32>
    %c0_15 = arith.constant 0 : index
    %c0_16 = arith.constant 0 : index
    %26 = vector.load %arg3[%c0_15, %c0_16] : memref<1x128xf32, #tpu.memory_space<vmem>>, vector<1x128xf32>
    %27 = arith.mulf %19, %25 : vector<1x128xf32>
    %28 = arith.subf %26, %27 : vector<1x128xf32>
    %29 = vector.broadcast %25 : vector<1x128xf32> to vector<8x128xf32>
    %30 = arith.mulf %2, %29 : vector<8x128xf32>
    %31 = vector.broadcast %28 : vector<1x128xf32> to vector<8x128xf32>
    %32 = arith.addf %30, %31 : vector<8x128xf32>
    %33 = arith.negf %32 : vector<8x128xf32>
    %34 = math.exp %33 : vector<8x128xf32>
    %cst_17 = arith.constant 1.000000e+00 : f32
    %35 = vector.broadcast %cst_17 : f32 to vector<8x128xf32>
    %36 = arith.addf %35, %34 : vector<8x128xf32>
    %37 = arith.divf %35, %36 : vector<8x128xf32>
    %38 = arith.mulf %32, %37 : vector<8x128xf32>
    %c1_i32 = arith.constant 1 : i32
    %39 = tpu.dynamic_rotate %38 by %c1_i32 dim 0 : vector<8x128xf32>, i32 -> vector<8x128xf32>
    %40 = tpu.iota {dimensions = array<i32: 0>} : vector<8x128xi32>
    %c0_i32 = arith.constant 0 : i32
    %41 = vector.broadcast %c0_i32 : i32 to vector<8x128xi32>
    %42 = arith.cmpi eq, %40, %41 : vector<8x128xi32>
    %cst_18 = arith.constant 0.000000e+00 : f32
    %43 = vector.broadcast %cst_18 : f32 to vector<8x128xf32>
    %44 = arith.select %42, %43, %39 : vector<8x128xi1>, vector<8x128xf32>
    %c7_i32 = arith.constant 7 : i32
    %45 = tpu.dynamic_rotate %38 by %c7_i32 dim 0 : vector<8x128xf32>, i32 -> vector<8x128xf32>
    %46 = tpu.iota {dimensions = array<i32: 0>} : vector<8x128xi32>
    %c7_i32_19 = arith.constant 7 : i32
    %47 = vector.broadcast %c7_i32_19 : i32 to vector<8x128xi32>
    %48 = arith.cmpi eq, %46, %47 : vector<8x128xi32>
    %cst_20 = arith.constant 0.000000e+00 : f32
    %49 = vector.broadcast %cst_20 : f32 to vector<8x128xf32>
    %50 = arith.select %48, %49, %45 : vector<8x128xi1>, vector<8x128xf32>
    %51 = tpu.concatenate %44, %38, %50 in 1 : vector<8x128xf32>, vector<8x128xf32>, vector<8x128xf32> -> vector<8x384xf32>
    %c0_21 = arith.constant 0 : index
    %c0_22 = arith.constant 0 : index
    %52 = vector.load %arg5[%c0_21, %c0_22] : memref<384x128xf32, #tpu.memory_space<vmem>>, vector<384x128xf32>
    %cst_23 = arith.constant dense<0.000000e+00> : vector<8x128xf32>
    %53 = tpu.matmul %51, %52, %cst_23 {dimension_numbers = #tpu.dot_dimension_numbers<[1], [0], [0], [1], [0, 0, 1, 1], [], []>} : vector<8x384xf32>, vector<384x128xf32>, vector<8x128xf32> -> vector<8x128xf32>
    %c0_24 = arith.constant 0 : index
    %c0_25 = arith.constant 0 : index
    %54 = vector.load %arg6[%c0_24, %c0_25] : memref<1x128xf32, #tpu.memory_space<vmem>>, vector<1x128xf32>
    %55 = vector.broadcast %54 : vector<1x128xf32> to vector<8x128xf32>
    %56 = arith.addf %53, %55 : vector<8x128xf32>
    %57 = arith.truncf %56 : vector<8x128xf32> to vector<8x128xbf16>
    %c0_26 = arith.constant 0 : index
    %c0_27 = arith.constant 0 : index
    %c0_28 = arith.constant 0 : index
    %58 = vector.load %arg7[%c0_26, %c0_27, %c0_28] : memref<1x8x128xbf16, #tpu.memory_space<vmem>>, vector<1x8x128xbf16>
    %59 = vector.shape_cast %58 : vector<1x8x128xbf16> to vector<8x128xbf16>
    %60 = vector.shape_cast %57 : vector<8x128xbf16> to vector<1x8x128xbf16>
    tpu.vector_store %arg7[%c0_26, %c0_27, %c0_28], %60 {strides = array<i32>} : memref<1x8x128xbf16, #tpu.memory_space<vmem>>, vector<1x8x128xbf16>,
    return
  }
  func.func @transform_0(%arg0: i32) -> (i32, i32, i32) {
    %c0_i32 = arith.constant 0 : i32
    %c0_i32_0 = arith.constant 0 : i32
    %c0_i32_1 = arith.constant 0 : i32
    return %arg0, %c0_i32, %c0_i32_0 : i32, i32, i32
  }
  func.func @transform_1(%arg0: i32) -> (i32, i32) {
    %c0_i32 = arith.constant 0 : i32
    %c0_i32_0 = arith.constant 0 : i32
    %c0_i32_1 = arith.constant 0 : i32
    return %c0_i32, %c0_i32_0 : i32, i32
  }
  func.func @transform_2(%arg0: i32) -> (i32, i32) {
    %c0_i32 = arith.constant 0 : i32
    %c0_i32_0 = arith.constant 0 : i32
    %c0_i32_1 = arith.constant 0 : i32
    return %c0_i32, %c0_i32_0 : i32, i32
  }
  func.func @transform_3(%arg0: i32) -> (i32, i32) {
    %c0_i32 = arith.constant 0 : i32
    %c0_i32_0 = arith.constant 0 : i32
    %c0_i32_1 = arith.constant 0 : i32
    return %c0_i32, %c0_i32_0 : i32, i32
  }
  func.func @transform_4(%arg0: i32) -> (i32, i32) {
    %c0_i32 = arith.constant 0 : i32
    %c0_i32_0 = arith.constant 0 : i32
    %c0_i32_1 = arith.constant 0 : i32
    return %c0_i32, %c0_i32_0 : i32, i32
  }
  func.func @transform_5(%arg0: i32) -> (i32, i32) {
    %c0_i32 = arith.constant 0 : i32
    %c0_i32_0 = arith.constant 0 : i32
    %c0_i32_1 = arith.constant 0 : i32
    return %c0_i32, %c0_i32_0 : i32, i32
  }
  func.func @transform_6(%arg0: i32) -> (i32, i32, i32) {
    %c0_i32 = arith.constant 0 : i32
    %c0_i32_0 = arith.constant 0 : i32
    %c0_i32_1 = arith.constant 0 : i32
    return %arg0, %c0_i32, %c0_i32_0 : i32, i32, i32
  }
}

module attributes {stable_mosaic.version = 11 : i64} {
  func.func @_gn_conv3_nin_kernel(%arg0: i32, %arg1: memref<1x8x128xbf16, #tpu.memory_space<vmem>>, %arg2: memref<1x128xf32, #tpu.memory_space<vmem>>, %arg3: memref<1x128xf32, #tpu.memory_space<vmem>>, %arg4: memref<128x32xf32, #tpu.memory_space<vmem>>, %arg5: memref<384x128xf32, #tpu.memory_space<vmem>>, %arg6: memref<1x128xf32, #tpu.memory_space<vmem>>, %arg7: memref<1x8x128xbf16, #tpu.memory_space<vmem>>, %arg8: memref<128x128xf32, #tpu.memory_space<vmem>>, %arg9: memref<1x128xf32, #tpu.memory_space<vmem>>, %arg10: memref<1x8x128xbf16, #tpu.memory_space<vmem>>) attributes {dimension_semantics = [#tpu.dimension_semantics<parallel>], iteration_bounds = array<i64: 2>, scalar_prefetch = 0 : i64, scratch_operands = 0 : i64, tpu.core_type = #tpu.core_type<tc>, window_params = [{transform_indices = @transform_0, window_bounds = array<i64: 1, 8, 128>}, {pipeline_mode = #tpu.pipeline_mode<synchronous>, transform_indices = @transform_1, window_bounds = array<i64: 1, 128>}, {pipeline_mode = #tpu.pipeline_mode<synchronous>, transform_indices = @transform_2, window_bounds = array<i64: 1, 128>}, {pipeline_mode = #tpu.pipeline_mode<synchronous>, transform_indices = @transform_3, window_bounds = array<i64: 128, 32>}, {pipeline_mode = #tpu.pipeline_mode<synchronous>, transform_indices = @transform_4, window_bounds = array<i64: 384, 128>}, {pipeline_mode = #tpu.pipeline_mode<synchronous>, transform_indices = @transform_5, window_bounds = array<i64: 1, 128>}, {transform_indices = @transform_6, window_bounds = array<i64: 1, 8, 128>}, {pipeline_mode = #tpu.pipeline_mode<synchronous>, transform_indices = @transform_7, window_bounds = array<i64: 128, 128>}, {pipeline_mode = #tpu.pipeline_mode<synchronous>, transform_indices = @transform_8, window_bounds = array<i64: 1, 128>}, {transform_indices = @transform_9, window_bounds = array<i64: 1, 8, 128>}]} {
    %c0 = arith.constant 0 : index
    %c0_0 = arith.constant 0 : index
    %c0_1 = arith.constant 0 : index
    %0 = vector.load %arg1[%c0, %c0_0, %c0_1] : memref<1x8x128xbf16, #tpu.memory_space<vmem>>, vector<1x8x128xbf16>
    %1 = vector.shape_cast %0 : vector<1x8x128xbf16> to vector<8x128xbf16>
    %2 = arith.extf %1 : vector<8x128xbf16> to vector<8x128xf32>
    %c0_2 = arith.constant 0 : index
    %c0_3 = arith.constant 0 : index
    %3 = vector.load %arg4[%c0_2, %c0_3] : memref<128x32xf32, #tpu.memory_space<vmem>>, vector<128x32xf32>
    %cst = arith.constant dense<0.000000e+00> : vector<128xf32>
    %4 = vector.multi_reduction <add>, %2, %cst [0] : vector<8x128xf32> to vector<128xf32>
    %5 = vector.shape_cast %4 : vector<128xf32> to vector<1x128xf32>
    %6 = arith.mulf %2, %2 : vector<8x128xf32>
    %cst_4 = arith.constant dense<0.000000e+00> : vector<128xf32>
    %7 = vector.multi_reduction <add>, %6, %cst_4 [0] : vector<8x128xf32> to vector<128xf32>
    %8 = vector.shape_cast %7 : vector<128xf32> to vector<1x128xf32>
    %cst_5 = arith.constant dense<0.000000e+00> : vector<1x32xf32>
    %9 = tpu.matmul %5, %3, %cst_5 {dimension_numbers = #tpu.dot_dimension_numbers<[1], [0], [0], [1], [0, 0, 1, 1], [], []>} : vector<1x128xf32>, vector<128x32xf32>, vector<1x32xf32> -> vector<1x32xf32>
    %cst_6 = arith.constant 6.250000e-02 : f32
    %10 = vector.broadcast %cst_6 : f32 to vector<1x32xf32>
    %11 = arith.mulf %9, %10 : vector<1x32xf32>
    %cst_7 = arith.constant dense<0.000000e+00> : vector<1x32xf32>
    %12 = tpu.matmul %8, %3, %cst_7 {dimension_numbers = #tpu.dot_dimension_numbers<[1], [0], [0], [1], [0, 0, 1, 1], [], []>} : vector<1x128xf32>, vector<128x32xf32>, vector<1x32xf32> -> vector<1x32xf32>
    %cst_8 = arith.constant 6.250000e-02 : f32
    %13 = vector.broadcast %cst_8 : f32 to vector<1x32xf32>
    %14 = arith.mulf %12, %13 : vector<1x32xf32>
    %15 = arith.mulf %11, %11 : vector<1x32xf32>
    %16 = arith.subf %14, %15 : vector<1x32xf32>
    %cst_9 = arith.constant 0.000000e+00 : f32
    %17 = vector.broadcast %cst_9 : f32 to vector<1x32xf32>
    %18 = arith.maximumf %16, %17 : vector<1x32xf32>
    %cst_10 = arith.constant dense<0.000000e+00> : vector<1x128xf32>
    %19 = tpu.matmul %11, %3, %cst_10 {dimension_numbers = #tpu.dot_dimension_numbers<[1], [1], [0], [0], [0, 0, 1, 0], [], []>} : vector<1x32xf32>, vector<128x32xf32>, vector<1x128xf32> -> vector<1x128xf32>
    %cst_11 = arith.constant dense<0.000000e+00> : vector<1x128xf32>
    %20 = tpu.matmul %18, %3, %cst_11 {dimension_numbers = #tpu.dot_dimension_numbers<[1], [1], [0], [0], [0, 0, 1, 0], [], []>} : vector<1x32xf32>, vector<128x32xf32>, vector<1x128xf32> -> vector<1x128xf32>
    %cst_12 = arith.constant 9.99999997E-7 : f32
    %21 = vector.broadcast %cst_12 : f32 to vector<1x128xf32>
    %22 = arith.addf %20, %21 : vector<1x128xf32>
    %23 = math.rsqrt %22 : vector<1x128xf32>
    %c0_13 = arith.constant 0 : index
    %c0_14 = arith.constant 0 : index
    %24 = vector.load %arg2[%c0_13, %c0_14] : memref<1x128xf32, #tpu.memory_space<vmem>>, vector<1x128xf32>
    %25 = arith.mulf %24, %23 : vector<1x128xf32>
    %c0_15 = arith.constant 0 : index
    %c0_16 = arith.constant 0 : index
    %26 = vector.load %arg3[%c0_15, %c0_16] : memref<1x128xf32, #tpu.memory_space<vmem>>, vector<1x128xf32>
    %27 = arith.mulf %19, %25 : vector<1x128xf32>
    %28 = arith.subf %26, %27 : vector<1x128xf32>
    %29 = vector.broadcast %25 : vector<1x128xf32> to vector<8x128xf32>
    %30 = arith.mulf %2, %29 : vector<8x128xf32>
    %31 = vector.broadcast %28 : vector<1x128xf32> to vector<8x128xf32>
    %32 = arith.addf %30, %31 : vector<8x128xf32>
    %33 = arith.negf %32 : vector<8x128xf32>
    %34 = math.exp %33 : vector<8x128xf32>
    %cst_17 = arith.constant 1.000000e+00 : f32
    %35 = vector.broadcast %cst_17 : f32 to vector<8x128xf32>
    %36 = arith.addf %35, %34 : vector<8x128xf32>
    %37 = arith.divf %35, %36 : vector<8x128xf32>
    %38 = arith.mulf %32, %37 : vector<8x128xf32>
    %c0_18 = arith.constant 0 : index
    %c0_19 = arith.constant 0 : index
    %c0_20 = arith.constant 0 : index
    %39 = vector.load %arg7[%c0_18, %c0_19, %c0_20] : memref<1x8x128xbf16, #tpu.memory_space<vmem>>, vector<1x8x128xbf16>
    %40 = vector.shape_cast %39 : vector<1x8x128xbf16> to vector<8x128xbf16>
    %41 = arith.extf %40 : vector<8x128xbf16> to vector<8x128xf32>
    %c0_21 = arith.constant 0 : index
    %c0_22 = arith.constant 0 : index
    %42 = vector.load %arg8[%c0_21, %c0_22] : memref<128x128xf32, #tpu.memory_space<vmem>>, vector<128x128xf32>
    %cst_23 = arith.constant dense<0.000000e+00> : vector<8x128xf32>
    %43 = tpu.matmul %41, %42, %cst_23 {dimension_numbers = #tpu.dot_dimension_numbers<[1], [0], [0], [1], [0, 0, 1, 1], [], []>} : vector<8x128xf32>, vector<128x128xf32>, vector<8x128xf32> -> vector<8x128xf32>
    %c0_24 = arith.constant 0 : index
    %c0_25 = arith.constant 0 : index
    %44 = vector.load %arg9[%c0_24, %c0_25] : memref<1x128xf32, #tpu.memory_space<vmem>>, vector<1x128xf32>
    %45 = vector.broadcast %44 : vector<1x128xf32> to vector<8x128xf32>
    %46 = arith.addf %43, %45 : vector<8x128xf32>
    %c1_i32 = arith.constant 1 : i32
    %47 = tpu.dynamic_rotate %38 by %c1_i32 dim 0 : vector<8x128xf32>, i32 -> vector<8x128xf32>
    %48 = tpu.iota {dimensions = array<i32: 0>} : vector<8x128xi32>
    %c0_i32 = arith.constant 0 : i32
    %49 = vector.broadcast %c0_i32 : i32 to vector<8x128xi32>
    %50 = arith.cmpi eq, %48, %49 : vector<8x128xi32>
    %cst_26 = arith.constant 0.000000e+00 : f32
    %51 = vector.broadcast %cst_26 : f32 to vector<8x128xf32>
    %52 = arith.select %50, %51, %47 : vector<8x128xi1>, vector<8x128xf32>
    %c7_i32 = arith.constant 7 : i32
    %53 = tpu.dynamic_rotate %38 by %c7_i32 dim 0 : vector<8x128xf32>, i32 -> vector<8x128xf32>
    %54 = tpu.iota {dimensions = array<i32: 0>} : vector<8x128xi32>
    %c7_i32_27 = arith.constant 7 : i32
    %55 = vector.broadcast %c7_i32_27 : i32 to vector<8x128xi32>
    %56 = arith.cmpi eq, %54, %55 : vector<8x128xi32>
    %cst_28 = arith.constant 0.000000e+00 : f32
    %57 = vector.broadcast %cst_28 : f32 to vector<8x128xf32>
    %58 = arith.select %56, %57, %53 : vector<8x128xi1>, vector<8x128xf32>
    %59 = tpu.concatenate %52, %38, %58 in 1 : vector<8x128xf32>, vector<8x128xf32>, vector<8x128xf32> -> vector<8x384xf32>
    %c0_29 = arith.constant 0 : index
    %c0_30 = arith.constant 0 : index
    %60 = vector.load %arg5[%c0_29, %c0_30] : memref<384x128xf32, #tpu.memory_space<vmem>>, vector<384x128xf32>
    %cst_31 = arith.constant dense<0.000000e+00> : vector<8x128xf32>
    %61 = tpu.matmul %59, %60, %cst_31 {dimension_numbers = #tpu.dot_dimension_numbers<[1], [0], [0], [1], [0, 0, 1, 1], [], []>} : vector<8x384xf32>, vector<384x128xf32>, vector<8x128xf32> -> vector<8x128xf32>
    %c0_32 = arith.constant 0 : index
    %c0_33 = arith.constant 0 : index
    %62 = vector.load %arg6[%c0_32, %c0_33] : memref<1x128xf32, #tpu.memory_space<vmem>>, vector<1x128xf32>
    %63 = vector.broadcast %62 : vector<1x128xf32> to vector<8x128xf32>
    %64 = arith.addf %61, %63 : vector<8x128xf32>
    %65 = arith.addf %64, %46 : vector<8x128xf32>
    %66 = arith.truncf %65 : vector<8x128xf32> to vector<8x128xbf16>
    %c0_34 = arith.constant 0 : index
    %c0_35 = arith.constant 0 : index
    %c0_36 = arith.constant 0 : index
    %67 = vector.load %arg10[%c0_34, %c0_35, %c0_36] : memref<1x8x128xbf16, #tpu.memory_space<vmem>>, vector<1x8x128xbf16>
    %68 = vector.shape_cast %67 : vector<1x8x128xbf16> to vector<8x128xbf16>
    %69 = vector.shape_cast %66 : vector<8x128xbf16> to vector<1x8x128xbf16>
    tpu.vector_store %arg10[%c0_34, %c0_35, %c0_36], %69 {strides = array<i32>} : memref<1x8x128xbf16, #tpu.memory_space<vmem>>, vector<1x8x128xbf16>,
    return
  }
  func.func @transform_0(%arg0: i32) -> (i32, i32, i32) {
    %c0_i32 = arith.constant 0 : i32
    %c0_i32_0 = arith.constant 0 : i32
    %c0_i32_1 = arith.constant 0 : i32
    return %arg0, %c0_i32, %c0_i32_0 : i32, i32, i32
  }
  func.func @transform_1(%arg0: i32) -> (i32, i32) {
    %c0_i32 = arith.constant 0 : i32
    %c0_i32_0 = arith.constant 0 : i32
    %c0_i32_1 = arith.constant 0 : i32
    return %c0_i32, %c0_i32_0 : i32, i32
  }
  func.func @transform_2(%arg0: i32) -> (i32, i32) {
    %c0_i32 = arith.constant 0 : i32
    %c0_i32_0 = arith.constant 0 : i32
    %c0_i32_1 = arith.constant 0 : i32
    return %c0_i32, %c0_i32_0 : i32, i32
  }
  func.func @transform_3(%arg0: i32) -> (i32, i32) {
    %c0_i32 = arith.constant 0 : i32
    %c0_i32_0 = arith.constant 0 : i32
    %c0_i32_1 = arith.constant 0 : i32
    return %c0_i32, %c0_i32_0 : i32, i32
  }
  func.func @transform_4(%arg0: i32) -> (i32, i32) {
    %c0_i32 = arith.constant 0 : i32
    %c0_i32_0 = arith.constant 0 : i32
    %c0_i32_1 = arith.constant 0 : i32
    return %c0_i32, %c0_i32_0 : i32, i32
  }
  func.func @transform_5(%arg0: i32) -> (i32, i32) {
    %c0_i32 = arith.constant 0 : i32
    %c0_i32_0 = arith.constant 0 : i32
    %c0_i32_1 = arith.constant 0 : i32
    return %c0_i32, %c0_i32_0 : i32, i32
  }
  func.func @transform_6(%arg0: i32) -> (i32, i32, i32) {
    %c0_i32 = arith.constant 0 : i32
    %c0_i32_0 = arith.constant 0 : i32
    %c0_i32_1 = arith.constant 0 : i32
    return %arg0, %c0_i32, %c0_i32_0 : i32, i32, i32
  }
  func.func @transform_7(%arg0: i32) -> (i32, i32) {
    %c0_i32 = arith.constant 0 : i32
    %c0_i32_0 = arith.constant 0 : i32
    %c0_i32_1 = arith.constant 0 : i32
    return %c0_i32, %c0_i32_0 : i32, i32
  }
  func.func @transform_8(%arg0: i32) -> (i32, i32) {
    %c0_i32 = arith.constant 0 : i32
    %c0_i32_0 = arith.constant 0 : i32
    %c0_i32_1 = arith.constant 0 : i32
    return %c0_i32, %c0_i32_0 : i32, i32
  }
  func.func @transform_9(%arg0: i32) -> (i32, i32, i32) {
    %c0_i32 = arith.constant 0 : i32
    %c0_i32_0 = arith.constant 0 : i32
    %c0_i32_1 = arith.constant 0 : i32
    return %arg0, %c0_i32, %c0_i32_0 : i32, i32, i32
  }
}

module attributes {stable_mosaic.version = 11 : i64} {
  func.func @_gn_conv3_res_kernel(%arg0: i32, %arg1: memref<1x8x128xbf16, #tpu.memory_space<vmem>>, %arg2: memref<1x128xf32, #tpu.memory_space<vmem>>, %arg3: memref<1x128xf32, #tpu.memory_space<vmem>>, %arg4: memref<128x32xf32, #tpu.memory_space<vmem>>, %arg5: memref<384x128xf32, #tpu.memory_space<vmem>>, %arg6: memref<1x128xf32, #tpu.memory_space<vmem>>, %arg7: memref<1x8x128xbf16, #tpu.memory_space<vmem>>, %arg8: memref<1x8x128xbf16, #tpu.memory_space<vmem>>) attributes {dimension_semantics = [#tpu.dimension_semantics<parallel>], iteration_bounds = array<i64: 2>, scalar_prefetch = 0 : i64, scratch_operands = 0 : i64, tpu.core_type = #tpu.core_type<tc>, window_params = [{transform_indices = @transform_0, window_bounds = array<i64: 1, 8, 128>}, {pipeline_mode = #tpu.pipeline_mode<synchronous>, transform_indices = @transform_1, window_bounds = array<i64: 1, 128>}, {pipeline_mode = #tpu.pipeline_mode<synchronous>, transform_indices = @transform_2, window_bounds = array<i64: 1, 128>}, {pipeline_mode = #tpu.pipeline_mode<synchronous>, transform_indices = @transform_3, window_bounds = array<i64: 128, 32>}, {pipeline_mode = #tpu.pipeline_mode<synchronous>, transform_indices = @transform_4, window_bounds = array<i64: 384, 128>}, {pipeline_mode = #tpu.pipeline_mode<synchronous>, transform_indices = @transform_5, window_bounds = array<i64: 1, 128>}, {transform_indices = @transform_6, window_bounds = array<i64: 1, 8, 128>}, {transform_indices = @transform_7, window_bounds = array<i64: 1, 8, 128>}]} {
    %c0 = arith.constant 0 : index
    %c0_0 = arith.constant 0 : index
    %c0_1 = arith.constant 0 : index
    %0 = vector.load %arg1[%c0, %c0_0, %c0_1] : memref<1x8x128xbf16, #tpu.memory_space<vmem>>, vector<1x8x128xbf16>
    %1 = vector.shape_cast %0 : vector<1x8x128xbf16> to vector<8x128xbf16>
    %2 = arith.extf %1 : vector<8x128xbf16> to vector<8x128xf32>
    %c0_2 = arith.constant 0 : index
    %c0_3 = arith.constant 0 : index
    %3 = vector.load %arg4[%c0_2, %c0_3] : memref<128x32xf32, #tpu.memory_space<vmem>>, vector<128x32xf32>
    %cst = arith.constant dense<0.000000e+00> : vector<128xf32>
    %4 = vector.multi_reduction <add>, %2, %cst [0] : vector<8x128xf32> to vector<128xf32>
    %5 = vector.shape_cast %4 : vector<128xf32> to vector<1x128xf32>
    %6 = arith.mulf %2, %2 : vector<8x128xf32>
    %cst_4 = arith.constant dense<0.000000e+00> : vector<128xf32>
    %7 = vector.multi_reduction <add>, %6, %cst_4 [0] : vector<8x128xf32> to vector<128xf32>
    %8 = vector.shape_cast %7 : vector<128xf32> to vector<1x128xf32>
    %cst_5 = arith.constant dense<0.000000e+00> : vector<1x32xf32>
    %9 = tpu.matmul %5, %3, %cst_5 {dimension_numbers = #tpu.dot_dimension_numbers<[1], [0], [0], [1], [0, 0, 1, 1], [], []>} : vector<1x128xf32>, vector<128x32xf32>, vector<1x32xf32> -> vector<1x32xf32>
    %cst_6 = arith.constant 6.250000e-02 : f32
    %10 = vector.broadcast %cst_6 : f32 to vector<1x32xf32>
    %11 = arith.mulf %9, %10 : vector<1x32xf32>
    %cst_7 = arith.constant dense<0.000000e+00> : vector<1x32xf32>
    %12 = tpu.matmul %8, %3, %cst_7 {dimension_numbers = #tpu.dot_dimension_numbers<[1], [0], [0], [1], [0, 0, 1, 1], [], []>} : vector<1x128xf32>, vector<128x32xf32>, vector<1x32xf32> -> vector<1x32xf32>
    %cst_8 = arith.constant 6.250000e-02 : f32
    %13 = vector.broadcast %cst_8 : f32 to vector<1x32xf32>
    %14 = arith.mulf %12, %13 : vector<1x32xf32>
    %15 = arith.mulf %11, %11 : vector<1x32xf32>
    %16 = arith.subf %14, %15 : vector<1x32xf32>
    %cst_9 = arith.constant 0.000000e+00 : f32
    %17 = vector.broadcast %cst_9 : f32 to vector<1x32xf32>
    %18 = arith.maximumf %16, %17 : vector<1x32xf32>
    %cst_10 = arith.constant dense<0.000000e+00> : vector<1x128xf32>
    %19 = tpu.matmul %11, %3, %cst_10 {dimension_numbers = #tpu.dot_dimension_numbers<[1], [1], [0], [0], [0, 0, 1, 0], [], []>} : vector<1x32xf32>, vector<128x32xf32>, vector<1x128xf32> -> vector<1x128xf32>
    %cst_11 = arith.constant dense<0.000000e+00> : vector<1x128xf32>
    %20 = tpu.matmul %18, %3, %cst_11 {dimension_numbers = #tpu.dot_dimension_numbers<[1], [1], [0], [0], [0, 0, 1, 0], [], []>} : vector<1x32xf32>, vector<128x32xf32>, vector<1x128xf32> -> vector<1x128xf32>
    %cst_12 = arith.constant 9.99999997E-7 : f32
    %21 = vector.broadcast %cst_12 : f32 to vector<1x128xf32>
    %22 = arith.addf %20, %21 : vector<1x128xf32>
    %23 = math.rsqrt %22 : vector<1x128xf32>
    %c0_13 = arith.constant 0 : index
    %c0_14 = arith.constant 0 : index
    %24 = vector.load %arg2[%c0_13, %c0_14] : memref<1x128xf32, #tpu.memory_space<vmem>>, vector<1x128xf32>
    %25 = arith.mulf %24, %23 : vector<1x128xf32>
    %c0_15 = arith.constant 0 : index
    %c0_16 = arith.constant 0 : index
    %26 = vector.load %arg3[%c0_15, %c0_16] : memref<1x128xf32, #tpu.memory_space<vmem>>, vector<1x128xf32>
    %27 = arith.mulf %19, %25 : vector<1x128xf32>
    %28 = arith.subf %26, %27 : vector<1x128xf32>
    %29 = vector.broadcast %25 : vector<1x128xf32> to vector<8x128xf32>
    %30 = arith.mulf %2, %29 : vector<8x128xf32>
    %31 = vector.broadcast %28 : vector<1x128xf32> to vector<8x128xf32>
    %32 = arith.addf %30, %31 : vector<8x128xf32>
    %33 = arith.negf %32 : vector<8x128xf32>
    %34 = math.exp %33 : vector<8x128xf32>
    %cst_17 = arith.constant 1.000000e+00 : f32
    %35 = vector.broadcast %cst_17 : f32 to vector<8x128xf32>
    %36 = arith.addf %35, %34 : vector<8x128xf32>
    %37 = arith.divf %35, %36 : vector<8x128xf32>
    %38 = arith.mulf %32, %37 : vector<8x128xf32>
    %c1_i32 = arith.constant 1 : i32
    %39 = tpu.dynamic_rotate %38 by %c1_i32 dim 0 : vector<8x128xf32>, i32 -> vector<8x128xf32>
    %40 = tpu.iota {dimensions = array<i32: 0>} : vector<8x128xi32>
    %c0_i32 = arith.constant 0 : i32
    %41 = vector.broadcast %c0_i32 : i32 to vector<8x128xi32>
    %42 = arith.cmpi eq, %40, %41 : vector<8x128xi32>
    %cst_18 = arith.constant 0.000000e+00 : f32
    %43 = vector.broadcast %cst_18 : f32 to vector<8x128xf32>
    %44 = arith.select %42, %43, %39 : vector<8x128xi1>, vector<8x128xf32>
    %c7_i32 = arith.constant 7 : i32
    %45 = tpu.dynamic_rotate %38 by %c7_i32 dim 0 : vector<8x128xf32>, i32 -> vector<8x128xf32>
    %46 = tpu.iota {dimensions = array<i32: 0>} : vector<8x128xi32>
    %c7_i32_19 = arith.constant 7 : i32
    %47 = vector.broadcast %c7_i32_19 : i32 to vector<8x128xi32>
    %48 = arith.cmpi eq, %46, %47 : vector<8x128xi32>
    %cst_20 = arith.constant 0.000000e+00 : f32
    %49 = vector.broadcast %cst_20 : f32 to vector<8x128xf32>
    %50 = arith.select %48, %49, %45 : vector<8x128xi1>, vector<8x128xf32>
    %51 = tpu.concatenate %44, %38, %50 in 1 : vector<8x128xf32>, vector<8x128xf32>, vector<8x128xf32> -> vector<8x384xf32>
    %c0_21 = arith.constant 0 : index
    %c0_22 = arith.constant 0 : index
    %52 = vector.load %arg5[%c0_21, %c0_22] : memref<384x128xf32, #tpu.memory_space<vmem>>, vector<384x128xf32>
    %cst_23 = arith.constant dense<0.000000e+00> : vector<8x128xf32>
    %53 = tpu.matmul %51, %52, %cst_23 {dimension_numbers = #tpu.dot_dimension_numbers<[1], [0], [0], [1], [0, 0, 1, 1], [], []>} : vector<8x384xf32>, vector<384x128xf32>, vector<8x128xf32> -> vector<8x128xf32>
    %c0_24 = arith.constant 0 : index
    %c0_25 = arith.constant 0 : index
    %54 = vector.load %arg6[%c0_24, %c0_25] : memref<1x128xf32, #tpu.memory_space<vmem>>, vector<1x128xf32>
    %55 = vector.broadcast %54 : vector<1x128xf32> to vector<8x128xf32>
    %56 = arith.addf %53, %55 : vector<8x128xf32>
    %c0_26 = arith.constant 0 : index
    %c0_27 = arith.constant 0 : index
    %c0_28 = arith.constant 0 : index
    %57 = vector.load %arg7[%c0_26, %c0_27, %c0_28] : memref<1x8x128xbf16, #tpu.memory_space<vmem>>, vector<1x8x128xbf16>
    %58 = vector.shape_cast %57 : vector<1x8x128xbf16> to vector<8x128xbf16>
    %59 = arith.extf %58 : vector<8x128xbf16> to vector<8x128xf32>
    %60 = arith.addf %56, %59 : vector<8x128xf32>
    %61 = arith.truncf %60 : vector<8x128xf32> to vector<8x128xbf16>
    %c0_29 = arith.constant 0 : index
    %c0_30 = arith.constant 0 : index
    %c0_31 = arith.constant 0 : index
    %62 = vector.load %arg8[%c0_29, %c0_30, %c0_31] : memref<1x8x128xbf16, #tpu.memory_space<vmem>>, vector<1x8x128xbf16>
    %63 = vector.shape_cast %62 : vector<1x8x128xbf16> to vector<8x128xbf16>
    %64 = vector.shape_cast %61 : vector<8x128xbf16> to vector<1x8x128xbf16>
    tpu.vector_store %arg8[%c0_29, %c0_30, %c0_31], %64 {strides = array<i32>} : memref<1x8x128xbf16, #tpu.memory_space<vmem>>, vector<1x8x128xbf16>,
    return
  }
  func.func @transform_0(%arg0: i32) -> (i32, i32, i32) {
    %c0_i32 = arith.constant 0 : i32
    %c0_i32_0 = arith.constant 0 : i32
    %c0_i32_1 = arith.constant 0 : i32
    return %arg0, %c0_i32, %c0_i32_0 : i32, i32, i32
  }
  func.func @transform_1(%arg0: i32) -> (i32, i32) {
    %c0_i32 = arith.constant 0 : i32
    %c0_i32_0 = arith.constant 0 : i32
    %c0_i32_1 = arith.constant 0 : i32
    return %c0_i32, %c0_i32_0 : i32, i32
  }
  func.func @transform_2(%arg0: i32) -> (i32, i32) {
    %c0_i32 = arith.constant 0 : i32
    %c0_i32_0 = arith.constant 0 : i32
    %c0_i32_1 = arith.constant 0 : i32
    return %c0_i32, %c0_i32_0 : i32, i32
  }
  func.func @transform_3(%arg0: i32) -> (i32, i32) {
    %c0_i32 = arith.constant 0 : i32
    %c0_i32_0 = arith.constant 0 : i32
    %c0_i32_1 = arith.constant 0 : i32
    return %c0_i32, %c0_i32_0 : i32, i32
  }
  func.func @transform_4(%arg0: i32) -> (i32, i32) {
    %c0_i32 = arith.constant 0 : i32
    %c0_i32_0 = arith.constant 0 : i32
    %c0_i32_1 = arith.constant 0 : i32
    return %c0_i32, %c0_i32_0 : i32, i32
  }
  func.func @transform_5(%arg0: i32) -> (i32, i32) {
    %c0_i32 = arith.constant 0 : i32
    %c0_i32_0 = arith.constant 0 : i32
    %c0_i32_1 = arith.constant 0 : i32
    return %c0_i32, %c0_i32_0 : i32, i32
  }
  func.func @transform_6(%arg0: i32) -> (i32, i32, i32) {
    %c0_i32 = arith.constant 0 : i32
    %c0_i32_0 = arith.constant 0 : i32
    %c0_i32_1 = arith.constant 0 : i32
    return %arg0, %c0_i32, %c0_i32_0 : i32, i32, i32
  }
  func.func @transform_7(%arg0: i32) -> (i32, i32, i32) {
    %c0_i32 = arith.constant 0 : i32
    %c0_i32_0 = arith.constant 0 : i32
    %c0_i32_1 = arith.constant 0 : i32
    return %arg0, %c0_i32, %c0_i32_0 : i32, i32, i32
  }
}

module attributes {stable_mosaic.version = 11 : i64} {
  func.func @_gn_attn_kernel(%arg0: i32, %arg1: memref<1x8x128xbf16, #tpu.memory_space<vmem>>, %arg2: memref<1x128xf32, #tpu.memory_space<vmem>>, %arg3: memref<1x128xf32, #tpu.memory_space<vmem>>, %arg4: memref<128x32xf32, #tpu.memory_space<vmem>>, %arg5: memref<128x128xf32, #tpu.memory_space<vmem>>, %arg6: memref<1x128xf32, #tpu.memory_space<vmem>>, %arg7: memref<128x128xf32, #tpu.memory_space<vmem>>, %arg8: memref<1x128xf32, #tpu.memory_space<vmem>>, %arg9: memref<128x128xf32, #tpu.memory_space<vmem>>, %arg10: memref<1x128xf32, #tpu.memory_space<vmem>>, %arg11: memref<128x128xf32, #tpu.memory_space<vmem>>, %arg12: memref<1x128xf32, #tpu.memory_space<vmem>>, %arg13: memref<1x8x128xbf16, #tpu.memory_space<vmem>>) attributes {dimension_semantics = [#tpu.dimension_semantics<parallel>], iteration_bounds = array<i64: 2>, scalar_prefetch = 0 : i64, scratch_operands = 0 : i64, tpu.core_type = #tpu.core_type<tc>, window_params = [{transform_indices = @transform_0, window_bounds = array<i64: 1, 8, 128>}, {pipeline_mode = #tpu.pipeline_mode<synchronous>, transform_indices = @transform_1, window_bounds = array<i64: 1, 128>}, {pipeline_mode = #tpu.pipeline_mode<synchronous>, transform_indices = @transform_2, window_bounds = array<i64: 1, 128>}, {pipeline_mode = #tpu.pipeline_mode<synchronous>, transform_indices = @transform_3, window_bounds = array<i64: 128, 32>}, {pipeline_mode = #tpu.pipeline_mode<synchronous>, transform_indices = @transform_4, window_bounds = array<i64: 128, 128>}, {pipeline_mode = #tpu.pipeline_mode<synchronous>, transform_indices = @transform_5, window_bounds = array<i64: 1, 128>}, {pipeline_mode = #tpu.pipeline_mode<synchronous>, transform_indices = @transform_6, window_bounds = array<i64: 128, 128>}, {pipeline_mode = #tpu.pipeline_mode<synchronous>, transform_indices = @transform_7, window_bounds = array<i64: 1, 128>}, {pipeline_mode = #tpu.pipeline_mode<synchronous>, transform_indices = @transform_8, window_bounds = array<i64: 128, 128>}, {pipeline_mode = #tpu.pipeline_mode<synchronous>, transform_indices = @transform_9, window_bounds = array<i64: 1, 128>}, {pipeline_mode = #tpu.pipeline_mode<synchronous>, transform_indices = @transform_10, window_bounds = array<i64: 128, 128>}, {pipeline_mode = #tpu.pipeline_mode<synchronous>, transform_indices = @transform_11, window_bounds = array<i64: 1, 128>}, {transform_indices = @transform_12, window_bounds = array<i64: 1, 8, 128>}]} {
    %c0 = arith.constant 0 : index
    %c0_0 = arith.constant 0 : index
    %c0_1 = arith.constant 0 : index
    %0 = vector.load %arg1[%c0, %c0_0, %c0_1] : memref<1x8x128xbf16, #tpu.memory_space<vmem>>, vector<1x8x128xbf16>
    %1 = vector.shape_cast %0 : vector<1x8x128xbf16> to vector<8x128xbf16>
    %2 = arith.extf %1 : vector<8x128xbf16> to vector<8x128xf32>
    %c0_2 = arith.constant 0 : index
    %c0_3 = arith.constant 0 : index
    %3 = vector.load %arg4[%c0_2, %c0_3] : memref<128x32xf32, #tpu.memory_space<vmem>>, vector<128x32xf32>
    %cst = arith.constant dense<0.000000e+00> : vector<128xf32>
    %4 = vector.multi_reduction <add>, %2, %cst [0] : vector<8x128xf32> to vector<128xf32>
    %5 = vector.shape_cast %4 : vector<128xf32> to vector<1x128xf32>
    %6 = arith.mulf %2, %2 : vector<8x128xf32>
    %cst_4 = arith.constant dense<0.000000e+00> : vector<128xf32>
    %7 = vector.multi_reduction <add>, %6, %cst_4 [0] : vector<8x128xf32> to vector<128xf32>
    %8 = vector.shape_cast %7 : vector<128xf32> to vector<1x128xf32>
    %cst_5 = arith.constant dense<0.000000e+00> : vector<1x32xf32>
    %9 = tpu.matmul %5, %3, %cst_5 {dimension_numbers = #tpu.dot_dimension_numbers<[1], [0], [0], [1], [0, 0, 1, 1], [], []>} : vector<1x128xf32>, vector<128x32xf32>, vector<1x32xf32> -> vector<1x32xf32>
    %cst_6 = arith.constant 6.250000e-02 : f32
    %10 = vector.broadcast %cst_6 : f32 to vector<1x32xf32>
    %11 = arith.mulf %9, %10 : vector<1x32xf32>
    %cst_7 = arith.constant dense<0.000000e+00> : vector<1x32xf32>
    %12 = tpu.matmul %8, %3, %cst_7 {dimension_numbers = #tpu.dot_dimension_numbers<[1], [0], [0], [1], [0, 0, 1, 1], [], []>} : vector<1x128xf32>, vector<128x32xf32>, vector<1x32xf32> -> vector<1x32xf32>
    %cst_8 = arith.constant 6.250000e-02 : f32
    %13 = vector.broadcast %cst_8 : f32 to vector<1x32xf32>
    %14 = arith.mulf %12, %13 : vector<1x32xf32>
    %15 = arith.mulf %11, %11 : vector<1x32xf32>
    %16 = arith.subf %14, %15 : vector<1x32xf32>
    %cst_9 = arith.constant 0.000000e+00 : f32
    %17 = vector.broadcast %cst_9 : f32 to vector<1x32xf32>
    %18 = arith.maximumf %16, %17 : vector<1x32xf32>
    %cst_10 = arith.constant dense<0.000000e+00> : vector<1x128xf32>
    %19 = tpu.matmul %11, %3, %cst_10 {dimension_numbers = #tpu.dot_dimension_numbers<[1], [1], [0], [0], [0, 0, 1, 0], [], []>} : vector<1x32xf32>, vector<128x32xf32>, vector<1x128xf32> -> vector<1x128xf32>
    %cst_11 = arith.constant dense<0.000000e+00> : vector<1x128xf32>
    %20 = tpu.matmul %18, %3, %cst_11 {dimension_numbers = #tpu.dot_dimension_numbers<[1], [1], [0], [0], [0, 0, 1, 0], [], []>} : vector<1x32xf32>, vector<128x32xf32>, vector<1x128xf32> -> vector<1x128xf32>
    %cst_12 = arith.constant 9.99999997E-7 : f32
    %21 = vector.broadcast %cst_12 : f32 to vector<1x128xf32>
    %22 = arith.addf %20, %21 : vector<1x128xf32>
    %23 = math.rsqrt %22 : vector<1x128xf32>
    %c0_13 = arith.constant 0 : index
    %c0_14 = arith.constant 0 : index
    %24 = vector.load %arg2[%c0_13, %c0_14] : memref<1x128xf32, #tpu.memory_space<vmem>>, vector<1x128xf32>
    %25 = arith.mulf %24, %23 : vector<1x128xf32>
    %c0_15 = arith.constant 0 : index
    %c0_16 = arith.constant 0 : index
    %26 = vector.load %arg3[%c0_15, %c0_16] : memref<1x128xf32, #tpu.memory_space<vmem>>, vector<1x128xf32>
    %27 = arith.mulf %19, %25 : vector<1x128xf32>
    %28 = arith.subf %26, %27 : vector<1x128xf32>
    %29 = vector.broadcast %25 : vector<1x128xf32> to vector<8x128xf32>
    %30 = arith.mulf %2, %29 : vector<8x128xf32>
    %31 = vector.broadcast %28 : vector<1x128xf32> to vector<8x128xf32>
    %32 = arith.addf %30, %31 : vector<8x128xf32>
    %c0_17 = arith.constant 0 : index
    %c0_18 = arith.constant 0 : index
    %33 = vector.load %arg5[%c0_17, %c0_18] : memref<128x128xf32, #tpu.memory_space<vmem>>, vector<128x128xf32>
    %cst_19 = arith.constant dense<0.000000e+00> : vector<8x128xf32>
    %34 = tpu.matmul %32, %33, %cst_19 {dimension_numbers = #tpu.dot_dimension_numbers<[1], [0], [0], [1], [0, 0, 1, 1], [], []>} : vector<8x128xf32>, vector<128x128xf32>, vector<8x128xf32> -> vector<8x128xf32>
    %c0_20 = arith.constant 0 : index
    %c0_21 = arith.constant 0 : index
    %35 = vector.load %arg6[%c0_20, %c0_21] : memref<1x128xf32, #tpu.memory_space<vmem>>, vector<1x128xf32>
    %36 = vector.broadcast %35 : vector<1x128xf32> to vector<8x128xf32>
    %37 = arith.addf %34, %36 : vector<8x128xf32>
    %c0_22 = arith.constant 0 : index
    %c0_23 = arith.constant 0 : index
    %38 = vector.load %arg7[%c0_22, %c0_23] : memref<128x128xf32, #tpu.memory_space<vmem>>, vector<128x128xf32>
    %cst_24 = arith.constant dense<0.000000e+00> : vector<8x128xf32>
    %39 = tpu.matmul %32, %38, %cst_24 {dimension_numbers = #tpu.dot_dimension_numbers<[1], [0], [0], [1], [0, 0, 1, 1], [], []>} : vector<8x128xf32>, vector<128x128xf32>, vector<8x128xf32> -> vector<8x128xf32>
    %c0_25 = arith.constant 0 : index
    %c0_26 = arith.constant 0 : index
    %40 = vector.load %arg8[%c0_25, %c0_26] : memref<1x128xf32, #tpu.memory_space<vmem>>, vector<1x128xf32>
    %41 = vector.broadcast %40 : vector<1x128xf32> to vector<8x128xf32>
    %42 = arith.addf %39, %41 : vector<8x128xf32>
    %c0_27 = arith.constant 0 : index
    %c0_28 = arith.constant 0 : index
    %43 = vector.load %arg9[%c0_27, %c0_28] : memref<128x128xf32, #tpu.memory_space<vmem>>, vector<128x128xf32>
    %cst_29 = arith.constant dense<0.000000e+00> : vector<8x128xf32>
    %44 = tpu.matmul %32, %43, %cst_29 {dimension_numbers = #tpu.dot_dimension_numbers<[1], [0], [0], [1], [0, 0, 1, 1], [], []>} : vector<8x128xf32>, vector<128x128xf32>, vector<8x128xf32> -> vector<8x128xf32>
    %c0_30 = arith.constant 0 : index
    %c0_31 = arith.constant 0 : index
    %45 = vector.load %arg10[%c0_30, %c0_31] : memref<1x128xf32, #tpu.memory_space<vmem>>, vector<1x128xf32>
    %46 = vector.broadcast %45 : vector<1x128xf32> to vector<8x128xf32>
    %47 = arith.addf %44, %46 : vector<8x128xf32>
    %cst_32 = arith.constant dense<0.000000e+00> : vector<8x8xf32>
    %48 = tpu.matmul %37, %42, %cst_32 {dimension_numbers = #tpu.dot_dimension_numbers<[1], [1], [0], [0], [0, 0, 1, 0], [], []>} : vector<8x128xf32>, vector<8x128xf32>, vector<8x8xf32> -> vector<8x8xf32>
    %cst_33 = arith.constant 1.250000e-01 : f32
    %49 = vector.broadcast %cst_33 : f32 to vector<8x8xf32>
    %50 = arith.mulf %48, %49 : vector<8x8xf32>
    %cst_34 = arith.constant dense<0xFF800000> : vector<8xf32>
    %51 = vector.multi_reduction <maximumf>, %50, %cst_34 [1] : vector<8x8xf32> to vector<8xf32>
    %52 = vector.shape_cast %51 : vector<8xf32> to vector<8x1xf32>
    %53 = vector.broadcast %52 : vector<8x1xf32> to vector<8x8xf32>
    %54 = arith.subf %50, %53 : vector<8x8xf32>
    %55 = math.exp %54 : vector<8x8xf32>
    %cst_35 = arith.constant dense<0.000000e+00> : vector<8xf32>
    %56 = vector.multi_reduction <add>, %55, %cst_35 [1] : vector<8x8xf32> to vector<8xf32>
    %57 = vector.shape_cast %56 : vector<8xf32> to vector<8x1xf32>
    %cst_36 = arith.constant dense<0.000000e+00> : vector<8x128xf32>
    %58 = tpu.matmul %55, %47, %cst_36 {dimension_numbers = #tpu.dot_dimension_numbers<[1], [0], [0], [1], [0, 0, 1, 1], [], []>} : vector<8x8xf32>, vector<8x128xf32>, vector<8x128xf32> -> vector<8x128xf32>
    %59 = tpu.reciprocal %57 {approx = true} : vector<8x1xf32> -> vector<8x1xf32>
    %60 = vector.broadcast %59 : vector<8x1xf32> to vector<8x128xf32>
    %61 = arith.mulf %58, %60 : vector<8x128xf32>
    %c0_37 = arith.constant 0 : index
    %c0_38 = arith.constant 0 : index
    %62 = vector.load %arg11[%c0_37, %c0_38] : memref<128x128xf32, #tpu.memory_space<vmem>>, vector<128x128xf32>
    %cst_39 = arith.constant dense<0.000000e+00> : vector<8x128xf32>
    %63 = tpu.matmul %61, %62, %cst_39 {dimension_numbers = #tpu.dot_dimension_numbers<[1], [0], [0], [1], [0, 0, 1, 1], [], []>} : vector<8x128xf32>, vector<128x128xf32>, vector<8x128xf32> -> vector<8x128xf32>
    %c0_40 = arith.constant 0 : index
    %c0_41 = arith.constant 0 : index
    %64 = vector.load %arg12[%c0_40, %c0_41] : memref<1x128xf32, #tpu.memory_space<vmem>>, vector<1x128xf32>
    %65 = vector.broadcast %64 : vector<1x128xf32> to vector<8x128xf32>
    %66 = arith.addf %63, %65 : vector<8x128xf32>
    %67 = arith.addf %2, %66 : vector<8x128xf32>
    %68 = arith.truncf %67 : vector<8x128xf32> to vector<8x128xbf16>
    %c0_42 = arith.constant 0 : index
    %c0_43 = arith.constant 0 : index
    %c0_44 = arith.constant 0 : index
    %69 = vector.load %arg13[%c0_42, %c0_43, %c0_44] : memref<1x8x128xbf16, #tpu.memory_space<vmem>>, vector<1x8x128xbf16>
    %70 = vector.shape_cast %69 : vector<1x8x128xbf16> to vector<8x128xbf16>
    %71 = vector.shape_cast %68 : vector<8x128xbf16> to vector<1x8x128xbf16>
    tpu.vector_store %arg13[%c0_42, %c0_43, %c0_44], %71 {strides = array<i32>} : memref<1x8x128xbf16, #tpu.memory_space<vmem>>, vector<1x8x128xbf16>,
    return
  }
  func.func @transform_0(%arg0: i32) -> (i32, i32, i32) {
    %c0_i32 = arith.constant 0 : i32
    %c0_i32_0 = arith.constant 0 : i32
    %c0_i32_1 = arith.constant 0 : i32
    return %arg0, %c0_i32, %c0_i32_0 : i32, i32, i32
  }
  func.func @transform_1(%arg0: i32) -> (i32, i32) {
    %c0_i32 = arith.constant 0 : i32
    %c0_i32_0 = arith.constant 0 : i32
    %c0_i32_1 = arith.constant 0 : i32
    return %c0_i32, %c0_i32_0 : i32, i32
  }
  func.func @transform_2(%arg0: i32) -> (i32, i32) {
    %c0_i32 = arith.constant 0 : i32
    %c0_i32_0 = arith.constant 0 : i32
    %c0_i32_1 = arith.constant 0 : i32
    return %c0_i32, %c0_i32_0 : i32, i32
  }
  func.func @transform_3(%arg0: i32) -> (i32, i32) {
    %c0_i32 = arith.constant 0 : i32
    %c0_i32_0 = arith.constant 0 : i32
    %c0_i32_1 = arith.constant 0 : i32
    return %c0_i32, %c0_i32_0 : i32, i32
  }
  func.func @transform_4(%arg0: i32) -> (i32, i32) {
    %c0_i32 = arith.constant 0 : i32
    %c0_i32_0 = arith.constant 0 : i32
    %c0_i32_1 = arith.constant 0 : i32
    return %c0_i32, %c0_i32_0 : i32, i32
  }
  func.func @transform_5(%arg0: i32) -> (i32, i32) {
    %c0_i32 = arith.constant 0 : i32
    %c0_i32_0 = arith.constant 0 : i32
    %c0_i32_1 = arith.constant 0 : i32
    return %c0_i32, %c0_i32_0 : i32, i32
  }
  func.func @transform_6(%arg0: i32) -> (i32, i32) {
    %c0_i32 = arith.constant 0 : i32
    %c0_i32_0 = arith.constant 0 : i32
    %c0_i32_1 = arith.constant 0 : i32
    return %c0_i32, %c0_i32_0 : i32, i32
  }
  func.func @transform_7(%arg0: i32) -> (i32, i32) {
    %c0_i32 = arith.constant 0 : i32
    %c0_i32_0 = arith.constant 0 : i32
    %c0_i32_1 = arith.constant 0 : i32
    return %c0_i32, %c0_i32_0 : i32, i32
  }
  func.func @transform_8(%arg0: i32) -> (i32, i32) {
    %c0_i32 = arith.constant 0 : i32
    %c0_i32_0 = arith.constant 0 : i32
    %c0_i32_1 = arith.constant 0 : i32
    return %c0_i32, %c0_i32_0 : i32, i32
  }
  func.func @transform_9(%arg0: i32) -> (i32, i32) {
    %c0_i32 = arith.constant 0 : i32
    %c0_i32_0 = arith.constant 0 : i32
    %c0_i32_1 = arith.constant 0 : i32
    return %c0_i32, %c0_i32_0 : i32, i32
  }
  func.func @transform_10(%arg0: i32) -> (i32, i32) {
    %c0_i32 = arith.constant 0 : i32
    %c0_i32_0 = arith.constant 0 : i32
    %c0_i32_1 = arith.constant 0 : i32
    return %c0_i32, %c0_i32_0 : i32, i32
  }
  func.func @transform_11(%arg0: i32) -> (i32, i32) {
    %c0_i32 = arith.constant 0 : i32
    %c0_i32_0 = arith.constant 0 : i32
    %c0_i32_1 = arith.constant 0 : i32
    return %c0_i32, %c0_i32_0 : i32, i32
  }
  func.func @transform_12(%arg0: i32) -> (i32, i32, i32) {
    %c0_i32 = arith.constant 0 : i32
    %c0_i32_0 = arith.constant 0 : i32
    %c0_i32_1 = arith.constant 0 : i32
    return %arg0, %c0_i32, %c0_i32_0 : i32, i32, i32
  }
}

module attributes {stable_mosaic.version = 11 : i64} {
  func.func @_gn_conv3_kernel(%arg0: i32, %arg1: memref<1x8x128xbf16, #tpu.memory_space<vmem>>, %arg2: memref<1x128xf32, #tpu.memory_space<vmem>>, %arg3: memref<1x128xf32, #tpu.memory_space<vmem>>, %arg4: memref<128x32xf32, #tpu.memory_space<vmem>>, %arg5: memref<384x128xf32, #tpu.memory_space<vmem>>, %arg6: memref<1x128xf32, #tpu.memory_space<vmem>>, %arg7: memref<1x8x128xbf16, #tpu.memory_space<vmem>>) attributes {dimension_semantics = [#tpu.dimension_semantics<parallel>], iteration_bounds = array<i64: 2>, scalar_prefetch = 0 : i64, scratch_operands = 0 : i64, tpu.core_type = #tpu.core_type<tc>, window_params = [{transform_indices = @transform_0, window_bounds = array<i64: 1, 8, 128>}, {pipeline_mode = #tpu.pipeline_mode<synchronous>, transform_indices = @transform_1, window_bounds = array<i64: 1, 128>}, {pipeline_mode = #tpu.pipeline_mode<synchronous>, transform_indices = @transform_2, window_bounds = array<i64: 1, 128>}, {pipeline_mode = #tpu.pipeline_mode<synchronous>, transform_indices = @transform_3, window_bounds = array<i64: 128, 32>}, {pipeline_mode = #tpu.pipeline_mode<synchronous>, transform_indices = @transform_4, window_bounds = array<i64: 384, 128>}, {pipeline_mode = #tpu.pipeline_mode<synchronous>, transform_indices = @transform_5, window_bounds = array<i64: 1, 128>}, {transform_indices = @transform_6, window_bounds = array<i64: 1, 8, 128>}]} {
    %c0 = arith.constant 0 : index
    %c0_0 = arith.constant 0 : index
    %c0_1 = arith.constant 0 : index
    %0 = vector.load %arg1[%c0, %c0_0, %c0_1] : memref<1x8x128xbf16, #tpu.memory_space<vmem>>, vector<1x8x128xbf16>
    %1 = vector.shape_cast %0 : vector<1x8x128xbf16> to vector<8x128xbf16>
    %2 = arith.extf %1 : vector<8x128xbf16> to vector<8x128xf32>
    %c0_2 = arith.constant 0 : index
    %c0_3 = arith.constant 0 : index
    %3 = vector.load %arg4[%c0_2, %c0_3] : memref<128x32xf32, #tpu.memory_space<vmem>>, vector<128x32xf32>
    %cst = arith.constant dense<0.000000e+00> : vector<128xf32>
    %4 = vector.multi_reduction <add>, %2, %cst [0] : vector<8x128xf32> to vector<128xf32>
    %5 = vector.shape_cast %4 : vector<128xf32> to vector<1x128xf32>
    %6 = arith.mulf %2, %2 : vector<8x128xf32>
    %cst_4 = arith.constant dense<0.000000e+00> : vector<128xf32>
    %7 = vector.multi_reduction <add>, %6, %cst_4 [0] : vector<8x128xf32> to vector<128xf32>
    %8 = vector.shape_cast %7 : vector<128xf32> to vector<1x128xf32>
    %cst_5 = arith.constant dense<0.000000e+00> : vector<1x32xf32>
    %9 = tpu.matmul %5, %3, %cst_5 {dimension_numbers = #tpu.dot_dimension_numbers<[1], [0], [0], [1], [0, 0, 1, 1], [], []>} : vector<1x128xf32>, vector<128x32xf32>, vector<1x32xf32> -> vector<1x32xf32>
    %cst_6 = arith.constant 6.250000e-02 : f32
    %10 = vector.broadcast %cst_6 : f32 to vector<1x32xf32>
    %11 = arith.mulf %9, %10 : vector<1x32xf32>
    %cst_7 = arith.constant dense<0.000000e+00> : vector<1x32xf32>
    %12 = tpu.matmul %8, %3, %cst_7 {dimension_numbers = #tpu.dot_dimension_numbers<[1], [0], [0], [1], [0, 0, 1, 1], [], []>} : vector<1x128xf32>, vector<128x32xf32>, vector<1x32xf32> -> vector<1x32xf32>
    %cst_8 = arith.constant 6.250000e-02 : f32
    %13 = vector.broadcast %cst_8 : f32 to vector<1x32xf32>
    %14 = arith.mulf %12, %13 : vector<1x32xf32>
    %15 = arith.mulf %11, %11 : vector<1x32xf32>
    %16 = arith.subf %14, %15 : vector<1x32xf32>
    %cst_9 = arith.constant 0.000000e+00 : f32
    %17 = vector.broadcast %cst_9 : f32 to vector<1x32xf32>
    %18 = arith.maximumf %16, %17 : vector<1x32xf32>
    %cst_10 = arith.constant dense<0.000000e+00> : vector<1x128xf32>
    %19 = tpu.matmul %11, %3, %cst_10 {dimension_numbers = #tpu.dot_dimension_numbers<[1], [1], [0], [0], [0, 0, 1, 0], [], []>} : vector<1x32xf32>, vector<128x32xf32>, vector<1x128xf32> -> vector<1x128xf32>
    %cst_11 = arith.constant dense<0.000000e+00> : vector<1x128xf32>
    %20 = tpu.matmul %18, %3, %cst_11 {dimension_numbers = #tpu.dot_dimension_numbers<[1], [1], [0], [0], [0, 0, 1, 0], [], []>} : vector<1x32xf32>, vector<128x32xf32>, vector<1x128xf32> -> vector<1x128xf32>
    %cst_12 = arith.constant 9.99999997E-7 : f32
    %21 = vector.broadcast %cst_12 : f32 to vector<1x128xf32>
    %22 = arith.addf %20, %21 : vector<1x128xf32>
    %23 = math.rsqrt %22 : vector<1x128xf32>
    %c0_13 = arith.constant 0 : index
    %c0_14 = arith.constant 0 : index
    %24 = vector.load %arg2[%c0_13, %c0_14] : memref<1x128xf32, #tpu.memory_space<vmem>>, vector<1x128xf32>
    %25 = arith.mulf %24, %23 : vector<1x128xf32>
    %c0_15 = arith.constant 0 : index
    %c0_16 = arith.constant 0 : index
    %26 = vector.load %arg3[%c0_15, %c0_16] : memref<1x128xf32, #tpu.memory_space<vmem>>, vector<1x128xf32>
    %27 = arith.mulf %19, %25 : vector<1x128xf32>
    %28 = arith.subf %26, %27 : vector<1x128xf32>
    %29 = vector.broadcast %25 : vector<1x128xf32> to vector<8x128xf32>
    %30 = arith.mulf %2, %29 : vector<8x128xf32>
    %31 = vector.broadcast %28 : vector<1x128xf32> to vector<8x128xf32>
    %32 = arith.addf %30, %31 : vector<8x128xf32>
    %33 = arith.negf %32 : vector<8x128xf32>
    %34 = math.exp %33 : vector<8x128xf32>
    %cst_17 = arith.constant 1.000000e+00 : f32
    %35 = vector.broadcast %cst_17 : f32 to vector<8x128xf32>
    %36 = arith.addf %35, %34 : vector<8x128xf32>
    %37 = arith.divf %35, %36 : vector<8x128xf32>
    %38 = arith.mulf %32, %37 : vector<8x128xf32>
    %c1_i32 = arith.constant 1 : i32
    %39 = tpu.dynamic_rotate %38 by %c1_i32 dim 0 : vector<8x128xf32>, i32 -> vector<8x128xf32>
    %40 = tpu.iota {dimensions = array<i32: 0>} : vector<8x128xi32>
    %c0_i32 = arith.constant 0 : i32
    %41 = vector.broadcast %c0_i32 : i32 to vector<8x128xi32>
    %42 = arith.cmpi eq, %40, %41 : vector<8x128xi32>
    %cst_18 = arith.constant 0.000000e+00 : f32
    %43 = vector.broadcast %cst_18 : f32 to vector<8x128xf32>
    %44 = arith.select %42, %43, %39 : vector<8x128xi1>, vector<8x128xf32>
    %c7_i32 = arith.constant 7 : i32
    %45 = tpu.dynamic_rotate %38 by %c7_i32 dim 0 : vector<8x128xf32>, i32 -> vector<8x128xf32>
    %46 = tpu.iota {dimensions = array<i32: 0>} : vector<8x128xi32>
    %c7_i32_19 = arith.constant 7 : i32
    %47 = vector.broadcast %c7_i32_19 : i32 to vector<8x128xi32>
    %48 = arith.cmpi eq, %46, %47 : vector<8x128xi32>
    %cst_20 = arith.constant 0.000000e+00 : f32
    %49 = vector.broadcast %cst_20 : f32 to vector<8x128xf32>
    %50 = arith.select %48, %49, %45 : vector<8x128xi1>, vector<8x128xf32>
    %51 = tpu.concatenate %44, %38, %50 in 1 : vector<8x128xf32>, vector<8x128xf32>, vector<8x128xf32> -> vector<8x384xf32>
    %c0_21 = arith.constant 0 : index
    %c0_22 = arith.constant 0 : index
    %52 = vector.load %arg5[%c0_21, %c0_22] : memref<384x128xf32, #tpu.memory_space<vmem>>, vector<384x128xf32>
    %cst_23 = arith.constant dense<0.000000e+00> : vector<8x128xf32>
    %53 = tpu.matmul %51, %52, %cst_23 {dimension_numbers = #tpu.dot_dimension_numbers<[1], [0], [0], [1], [0, 0, 1, 1], [], []>} : vector<8x384xf32>, vector<384x128xf32>, vector<8x128xf32> -> vector<8x128xf32>
    %c0_24 = arith.constant 0 : index
    %c0_25 = arith.constant 0 : index
    %54 = vector.load %arg6[%c0_24, %c0_25] : memref<1x128xf32, #tpu.memory_space<vmem>>, vector<1x128xf32>
    %55 = vector.broadcast %54 : vector<1x128xf32> to vector<8x128xf32>
    %56 = arith.addf %53, %55 : vector<8x128xf32>
    %57 = arith.truncf %56 : vector<8x128xf32> to vector<8x128xbf16>
    %c0_26 = arith.constant 0 : index
    %c0_27 = arith.constant 0 : index
    %c0_28 = arith.constant 0 : index
    %58 = vector.load %arg7[%c0_26, %c0_27, %c0_28] : memref<1x8x128xbf16, #tpu.memory_space<vmem>>, vector<1x8x128xbf16>
    %59 = vector.shape_cast %58 : vector<1x8x128xbf16> to vector<8x128xbf16>
    %60 = vector.shape_cast %57 : vector<8x128xbf16> to vector<1x8x128xbf16>
    tpu.vector_store %arg7[%c0_26, %c0_27, %c0_28], %60 {strides = array<i32>} : memref<1x8x128xbf16, #tpu.memory_space<vmem>>, vector<1x8x128xbf16>,
    return
  }
  func.func @transform_0(%arg0: i32) -> (i32, i32, i32) {
    %c0_i32 = arith.constant 0 : i32
    %c0_i32_0 = arith.constant 0 : i32
    %c0_i32_1 = arith.constant 0 : i32
    return %arg0, %c0_i32, %c0_i32_0 : i32, i32, i32
  }
  func.func @transform_1(%arg0: i32) -> (i32, i32) {
    %c0_i32 = arith.constant 0 : i32
    %c0_i32_0 = arith.constant 0 : i32
    %c0_i32_1 = arith.constant 0 : i32
    return %c0_i32, %c0_i32_0 : i32, i32
  }
  func.func @transform_2(%arg0: i32) -> (i32, i32) {
    %c0_i32 = arith.constant 0 : i32
    %c0_i32_0 = arith.constant 0 : i32
    %c0_i32_1 = arith.constant 0 : i32
    return %c0_i32, %c0_i32_0 : i32, i32
  }
  func.func @transform_3(%arg0: i32) -> (i32, i32) {
    %c0_i32 = arith.constant 0 : i32
    %c0_i32_0 = arith.constant 0 : i32
    %c0_i32_1 = arith.constant 0 : i32
    return %c0_i32, %c0_i32_0 : i32, i32
  }
  func.func @transform_4(%arg0: i32) -> (i32, i32) {
    %c0_i32 = arith.constant 0 : i32
    %c0_i32_0 = arith.constant 0 : i32
    %c0_i32_1 = arith.constant 0 : i32
    return %c0_i32, %c0_i32_0 : i32, i32
  }
  func.func @transform_5(%arg0: i32) -> (i32, i32) {
    %c0_i32 = arith.constant 0 : i32
    %c0_i32_0 = arith.constant 0 : i32
    %c0_i32_1 = arith.constant 0 : i32
    return %c0_i32, %c0_i32_0 : i32, i32
  }
  func.func @transform_6(%arg0: i32) -> (i32, i32, i32) {
    %c0_i32 = arith.constant 0 : i32
    %c0_i32_0 = arith.constant 0 : i32
    %c0_i32_1 = arith.constant 0 : i32
    return %arg0, %c0_i32, %c0_i32_0 : i32, i32, i32
  }
}

module attributes {stable_mosaic.version = 11 : i64} {
  func.func @_gn_conv3_kernel(%arg0: i32, %arg1: memref<1x8x128xbf16, #tpu.memory_space<vmem>>, %arg2: memref<1x128xf32, #tpu.memory_space<vmem>>, %arg3: memref<1x128xf32, #tpu.memory_space<vmem>>, %arg4: memref<128x32xf32, #tpu.memory_space<vmem>>, %arg5: memref<384x128xf32, #tpu.memory_space<vmem>>, %arg6: memref<1x128xf32, #tpu.memory_space<vmem>>, %arg7: memref<1x8x128xf32, #tpu.memory_space<vmem>>) attributes {dimension_semantics = [#tpu.dimension_semantics<parallel>], iteration_bounds = array<i64: 2>, scalar_prefetch = 0 : i64, scratch_operands = 0 : i64, tpu.core_type = #tpu.core_type<tc>, window_params = [{transform_indices = @transform_0, window_bounds = array<i64: 1, 8, 128>}, {pipeline_mode = #tpu.pipeline_mode<synchronous>, transform_indices = @transform_1, window_bounds = array<i64: 1, 128>}, {pipeline_mode = #tpu.pipeline_mode<synchronous>, transform_indices = @transform_2, window_bounds = array<i64: 1, 128>}, {pipeline_mode = #tpu.pipeline_mode<synchronous>, transform_indices = @transform_3, window_bounds = array<i64: 128, 32>}, {pipeline_mode = #tpu.pipeline_mode<synchronous>, transform_indices = @transform_4, window_bounds = array<i64: 384, 128>}, {pipeline_mode = #tpu.pipeline_mode<synchronous>, transform_indices = @transform_5, window_bounds = array<i64: 1, 128>}, {transform_indices = @transform_6, window_bounds = array<i64: 1, 8, 128>}]} {
    %c0 = arith.constant 0 : index
    %c0_0 = arith.constant 0 : index
    %c0_1 = arith.constant 0 : index
    %0 = vector.load %arg1[%c0, %c0_0, %c0_1] : memref<1x8x128xbf16, #tpu.memory_space<vmem>>, vector<1x8x128xbf16>
    %1 = vector.shape_cast %0 : vector<1x8x128xbf16> to vector<8x128xbf16>
    %2 = arith.extf %1 : vector<8x128xbf16> to vector<8x128xf32>
    %c0_2 = arith.constant 0 : index
    %c0_3 = arith.constant 0 : index
    %3 = vector.load %arg4[%c0_2, %c0_3] : memref<128x32xf32, #tpu.memory_space<vmem>>, vector<128x32xf32>
    %cst = arith.constant dense<0.000000e+00> : vector<128xf32>
    %4 = vector.multi_reduction <add>, %2, %cst [0] : vector<8x128xf32> to vector<128xf32>
    %5 = vector.shape_cast %4 : vector<128xf32> to vector<1x128xf32>
    %6 = arith.mulf %2, %2 : vector<8x128xf32>
    %cst_4 = arith.constant dense<0.000000e+00> : vector<128xf32>
    %7 = vector.multi_reduction <add>, %6, %cst_4 [0] : vector<8x128xf32> to vector<128xf32>
    %8 = vector.shape_cast %7 : vector<128xf32> to vector<1x128xf32>
    %cst_5 = arith.constant dense<0.000000e+00> : vector<1x32xf32>
    %9 = tpu.matmul %5, %3, %cst_5 {dimension_numbers = #tpu.dot_dimension_numbers<[1], [0], [0], [1], [0, 0, 1, 1], [], []>} : vector<1x128xf32>, vector<128x32xf32>, vector<1x32xf32> -> vector<1x32xf32>
    %cst_6 = arith.constant 6.250000e-02 : f32
    %10 = vector.broadcast %cst_6 : f32 to vector<1x32xf32>
    %11 = arith.mulf %9, %10 : vector<1x32xf32>
    %cst_7 = arith.constant dense<0.000000e+00> : vector<1x32xf32>
    %12 = tpu.matmul %8, %3, %cst_7 {dimension_numbers = #tpu.dot_dimension_numbers<[1], [0], [0], [1], [0, 0, 1, 1], [], []>} : vector<1x128xf32>, vector<128x32xf32>, vector<1x32xf32> -> vector<1x32xf32>
    %cst_8 = arith.constant 6.250000e-02 : f32
    %13 = vector.broadcast %cst_8 : f32 to vector<1x32xf32>
    %14 = arith.mulf %12, %13 : vector<1x32xf32>
    %15 = arith.mulf %11, %11 : vector<1x32xf32>
    %16 = arith.subf %14, %15 : vector<1x32xf32>
    %cst_9 = arith.constant 0.000000e+00 : f32
    %17 = vector.broadcast %cst_9 : f32 to vector<1x32xf32>
    %18 = arith.maximumf %16, %17 : vector<1x32xf32>
    %cst_10 = arith.constant dense<0.000000e+00> : vector<1x128xf32>
    %19 = tpu.matmul %11, %3, %cst_10 {dimension_numbers = #tpu.dot_dimension_numbers<[1], [1], [0], [0], [0, 0, 1, 0], [], []>} : vector<1x32xf32>, vector<128x32xf32>, vector<1x128xf32> -> vector<1x128xf32>
    %cst_11 = arith.constant dense<0.000000e+00> : vector<1x128xf32>
    %20 = tpu.matmul %18, %3, %cst_11 {dimension_numbers = #tpu.dot_dimension_numbers<[1], [1], [0], [0], [0, 0, 1, 0], [], []>} : vector<1x32xf32>, vector<128x32xf32>, vector<1x128xf32> -> vector<1x128xf32>
    %cst_12 = arith.constant 9.99999997E-7 : f32
    %21 = vector.broadcast %cst_12 : f32 to vector<1x128xf32>
    %22 = arith.addf %20, %21 : vector<1x128xf32>
    %23 = math.rsqrt %22 : vector<1x128xf32>
    %c0_13 = arith.constant 0 : index
    %c0_14 = arith.constant 0 : index
    %24 = vector.load %arg2[%c0_13, %c0_14] : memref<1x128xf32, #tpu.memory_space<vmem>>, vector<1x128xf32>
    %25 = arith.mulf %24, %23 : vector<1x128xf32>
    %c0_15 = arith.constant 0 : index
    %c0_16 = arith.constant 0 : index
    %26 = vector.load %arg3[%c0_15, %c0_16] : memref<1x128xf32, #tpu.memory_space<vmem>>, vector<1x128xf32>
    %27 = arith.mulf %19, %25 : vector<1x128xf32>
    %28 = arith.subf %26, %27 : vector<1x128xf32>
    %29 = vector.broadcast %25 : vector<1x128xf32> to vector<8x128xf32>
    %30 = arith.mulf %2, %29 : vector<8x128xf32>
    %31 = vector.broadcast %28 : vector<1x128xf32> to vector<8x128xf32>
    %32 = arith.addf %30, %31 : vector<8x128xf32>
    %33 = arith.negf %32 : vector<8x128xf32>
    %34 = math.exp %33 : vector<8x128xf32>
    %cst_17 = arith.constant 1.000000e+00 : f32
    %35 = vector.broadcast %cst_17 : f32 to vector<8x128xf32>
    %36 = arith.addf %35, %34 : vector<8x128xf32>
    %37 = arith.divf %35, %36 : vector<8x128xf32>
    %38 = arith.mulf %32, %37 : vector<8x128xf32>
    %c1_i32 = arith.constant 1 : i32
    %39 = tpu.dynamic_rotate %38 by %c1_i32 dim 0 : vector<8x128xf32>, i32 -> vector<8x128xf32>
    %40 = tpu.iota {dimensions = array<i32: 0>} : vector<8x128xi32>
    %c0_i32 = arith.constant 0 : i32
    %41 = vector.broadcast %c0_i32 : i32 to vector<8x128xi32>
    %42 = arith.cmpi eq, %40, %41 : vector<8x128xi32>
    %cst_18 = arith.constant 0.000000e+00 : f32
    %43 = vector.broadcast %cst_18 : f32 to vector<8x128xf32>
    %44 = arith.select %42, %43, %39 : vector<8x128xi1>, vector<8x128xf32>
    %c7_i32 = arith.constant 7 : i32
    %45 = tpu.dynamic_rotate %38 by %c7_i32 dim 0 : vector<8x128xf32>, i32 -> vector<8x128xf32>
    %46 = tpu.iota {dimensions = array<i32: 0>} : vector<8x128xi32>
    %c7_i32_19 = arith.constant 7 : i32
    %47 = vector.broadcast %c7_i32_19 : i32 to vector<8x128xi32>
    %48 = arith.cmpi eq, %46, %47 : vector<8x128xi32>
    %cst_20 = arith.constant 0.000000e+00 : f32
    %49 = vector.broadcast %cst_20 : f32 to vector<8x128xf32>
    %50 = arith.select %48, %49, %45 : vector<8x128xi1>, vector<8x128xf32>
    %51 = tpu.concatenate %44, %38, %50 in 1 : vector<8x128xf32>, vector<8x128xf32>, vector<8x128xf32> -> vector<8x384xf32>
    %c0_21 = arith.constant 0 : index
    %c0_22 = arith.constant 0 : index
    %52 = vector.load %arg5[%c0_21, %c0_22] : memref<384x128xf32, #tpu.memory_space<vmem>>, vector<384x128xf32>
    %cst_23 = arith.constant dense<0.000000e+00> : vector<8x128xf32>
    %53 = tpu.matmul %51, %52, %cst_23 {dimension_numbers = #tpu.dot_dimension_numbers<[1], [0], [0], [1], [0, 0, 1, 1], [], []>} : vector<8x384xf32>, vector<384x128xf32>, vector<8x128xf32> -> vector<8x128xf32>
    %c0_24 = arith.constant 0 : index
    %c0_25 = arith.constant 0 : index
    %54 = vector.load %arg6[%c0_24, %c0_25] : memref<1x128xf32, #tpu.memory_space<vmem>>, vector<1x128xf32>
    %55 = vector.broadcast %54 : vector<1x128xf32> to vector<8x128xf32>
    %56 = arith.addf %53, %55 : vector<8x128xf32>
    %c0_26 = arith.constant 0 : index
    %c0_27 = arith.constant 0 : index
    %c0_28 = arith.constant 0 : index
    %57 = vector.load %arg7[%c0_26, %c0_27, %c0_28] : memref<1x8x128xf32, #tpu.memory_space<vmem>>, vector<1x8x128xf32>
    %58 = vector.shape_cast %57 : vector<1x8x128xf32> to vector<8x128xf32>
    %59 = vector.shape_cast %56 : vector<8x128xf32> to vector<1x8x128xf32>
    tpu.vector_store %arg7[%c0_26, %c0_27, %c0_28], %59 {strides = array<i32>} : memref<1x8x128xf32, #tpu.memory_space<vmem>>, vector<1x8x128xf32>,
    return
  }
  func.func @transform_0(%arg0: i32) -> (i32, i32, i32) {
    %c0_i32 = arith.constant 0 : i32
    %c0_i32_0 = arith.constant 0 : i32
    %c0_i32_1 = arith.constant 0 : i32
    return %arg0, %c0_i32, %c0_i32_0 : i32, i32, i32
  }
  func.func @transform_1(%arg0: i32) -> (i32, i32) {
    %c0_i32 = arith.constant 0 : i32
    %c0_i32_0 = arith.constant 0 : i32
    %c0_i32_1 = arith.constant 0 : i32
    return %c0_i32, %c0_i32_0 : i32, i32
  }
  func.func @transform_2(%arg0: i32) -> (i32, i32) {
    %c0_i32 = arith.constant 0 : i32
    %c0_i32_0 = arith.constant 0 : i32
    %c0_i32_1 = arith.constant 0 : i32
    return %c0_i32, %c0_i32_0 : i32, i32
  }
  func.func @transform_3(%arg0: i32) -> (i32, i32) {
    %c0_i32 = arith.constant 0 : i32
    %c0_i32_0 = arith.constant 0 : i32
    %c0_i32_1 = arith.constant 0 : i32
    return %c0_i32, %c0_i32_0 : i32, i32
  }
  func.func @transform_4(%arg0: i32) -> (i32, i32) {
    %c0_i32 = arith.constant 0 : i32
    %c0_i32_0 = arith.constant 0 : i32
    %c0_i32_1 = arith.constant 0 : i32
    return %c0_i32, %c0_i32_0 : i32, i32
  }
  func.func @transform_5(%arg0: i32) -> (i32, i32) {
    %c0_i32 = arith.constant 0 : i32
    %c0_i32_0 = arith.constant 0 : i32
    %c0_i32_1 = arith.constant 0 : i32
    return %c0_i32, %c0_i32_0 : i32, i32
  }
  func.func @transform_6(%arg0: i32) -> (i32, i32, i32) {
    %c0_i32 = arith.constant 0 : i32
    %c0_i32_0 = arith.constant 0 : i32
    %c0_i32_1 = arith.constant 0 : i32
    return %arg0, %c0_i32, %c0_i32_0 : i32, i32, i32
  }
}

</mosaic_0001>

<llo_original>
// kernel: _lambda_.13
$region0: #{_lambda_.13}
  #allocation0 [shape = 'u32[]', space=smem, size = 0x4, offset = 0x4, fixed_abs, tag = 'smem constant byte address 0x4 - core index']
  #allocation1 [shape = 'u32[144,128]{1,0:T(1,128)}', space=vmem, size = 0x12000, scoped, tag = 'internal scratch']
  %s0 = inlined_call_operand.vmem [shape: f32[2,16,128], index: 0, kind: input, shape index: {}]
  %s1 = inlined_call_operand.hbm [shape: f32[384,128], index: 1, kind: input, shape index: {}]
  %s2 = inlined_call_operand.vmem [shape: f32[1,128], index: 2, kind: input, shape index: {}]
  %s3 = inlined_call_operand.vmem [shape: bf16[2,16,128], index: 3, kind: output, shape index: {}]
  %s4 = sld [smem:[#allocation0]]
  $region49: #{_lambda_.13} parent=0
    _
  %s6 = ssub.s32 1, %s4
  %s7 = scalar_select 0, %s6, %s4
  $region1: #{_lambda_.13} parent=0
    #allocation2 [shape = 'u8[196608]{0}', space=vmem, size = 0x30000, scoped, tag = 'input window, operand 1, single buffered']
    #allocation3 [shape = 's32[2]{0}', space=sflag, size = 0x8, scoped, tag = 'scoped memory for _lambda_.13']
    %8 = vsyncpa [#allocation3], 0
    loop: start=0, step=1, limit=4
    $region2: #{_lambda_.13} parent=1 // loop_pre_header
      _
    $region3: #{_lambda_.13} parent=1 // loop_header
      %s10 = sphi 0, %s14
      %p11 = scmp.ge.s32.totalorder %s10, 4
      %s20 = sphi 0, %s22
      %s23 = sphi 0, %s20
      %s24 = sphi 0, %s23
      %s40 = sphi 0, %s24
      %s44 = sphi 0, %s44
      %s46 = sphi 0, %s44
      %s47 = sphi 0, %s46
      %s61 = sphi 0, %s47
      %s65 = sphi 0, %s65
      %s67 = sphi 0, %s65
      %s68 = sphi 0, %s67
      %s82 = sphi 0, %s68
      %s88 = sphi 0, %s90
      %s91 = sphi 0, %s88
      %s92 = sphi 0, %s91
      %s108 = sphi 0, %s92
    $region4: #{_lambda_.13} parent=1 // loop_header_branch
      %13 = sbr.rel (%p11) target = $region8
    $region5: #{_lambda_.13} parent=1 // loop_body
      %s15 = ssub.s32 %s10, 1
      %s16 = ssub.s32 %s10, 2
      %s17 = sadd.s32 %s10, 1
      %s18 = ssub.s32 %s10, %s17
      %p19 = scmp.eq.s32.totalorder %s18, 0
      %s21 = sadd.s32 %s20, 1
      %s22 = scalar_select %p19, %s20, %s21
      %p25 = pneg %p19
      %p26 = scmp.eq.s32.totalorder %s10, 1
      %p27 = por %p25, %p26
      %p28 = scmp.ne.s32.totalorder %s20, %s23
      %p29 = scmp.eq.s32.totalorder %s10, 0
      %p30 = por %p28, %p29
      %p31 = scmp.ne.s32.totalorder %s20, %s23
      %p32 = scmp.eq.s32.totalorder %s15, 1
      %p33 = por %p31, %p32
      %p34 = scmp.ne.s32.totalorder %s23, %s24
      %p35 = scmp.eq.s32.totalorder %s15, 0
      %p36 = por %p34, %p35
      %p37 = scmp.ne.s32.totalorder %s23, %s24
      %p38 = scmp.eq.s32.totalorder %s16, 1
      %p39 = por %p37, %p38
      %p41 = scmp.ne.s32.totalorder %s24, %s40
      %p42 = scmp.eq.s32.totalorder %s16, 0
      %p43 = por %p41, %p42
      %s45 = sadd.s32 %s44, 1
      %p48 = scmp.eq.s32.totalorder %s10, 1
      %p49 = scmp.ne.s32.totalorder %s44, %s46
      %p50 = scmp.eq.s32.totalorder %s10, 0
      %p51 = por %p49, %p50
      %p52 = scmp.ne.s32.totalorder %s44, %s46
      %p53 = scmp.eq.s32.totalorder %s15, 1
      %p54 = por %p52, %p53
      %p55 = scmp.ne.s32.totalorder %s46, %s47
      %p56 = scmp.eq.s32.totalorder %s15, 0
      %p57 = por %p55, %p56
      %p58 = scmp.ne.s32.totalorder %s46, %s47
      %p59 = scmp.eq.s32.totalorder %s16, 1
      %p60 = por %p58, %p59
      %p62 = scmp.ne.s32.totalorder %s47, %s61
      %p63 = scmp.eq.s32.totalorder %s16, 0
      %p64 = por %p62, %p63
      %s66 = sadd.s32 %s65, 1
      %p69 = scmp.eq.s32.totalorder %s10, 1
      %p70 = scmp.ne.s32.totalorder %s65, %s67
      %p71 = scmp.eq.s32.totalorder %s10, 0
      %p72 = por %p70, %p71
      %p73 = scmp.ne.s32.totalorder %s65, %s67
      %p74 = scmp.eq.s32.totalorder %s15, 1
      %p75 = por %p73, %p74
      %p76 = scmp.ne.s32.totalorder %s67, %s68
      %p77 = scmp.eq.s32.totalorder %s15, 0
      %p78 = por %p76, %p77
      %p79 = scmp.ne.s32.totalorder %s67, %s68
      %p80 = scmp.eq.s32.totalorder %s16, 1
      %p81 = por %p79, %p80
      %p83 = scmp.ne.s32.totalorder %s68, %s82
      %p84 = scmp.eq.s32.totalorder %s16, 0
      %p85 = por %p83, %p84
      %s86 = ssub.s32 %s10, %s17
      %p87 = scmp.eq.s32.totalorder %s86, 0
      %s89 = sadd.s32 %s88, 1
      %s90 = scalar_select %p87, %s88, %s89
      %p93 = pneg %p87
      %p94 = scmp.eq.s32.totalorder %s10, 1
      %p95 = por %p93, %p94
      %p96 = scmp.ne.s32.totalorder %s88, %s91
      %p97 = scmp.eq.s32.totalorder %s10, 0
      %p98 = por %p96, %p97
      %p99 = scmp.ne.s32.totalorder %s88, %s91
      %p100 = scmp.eq.s32.totalorder %s15, 1
      %p101 = por %p99, %p100
      %p102 = scmp.ne.s32.totalorder %s91, %s92
      %p103 = scmp.eq.s32.totalorder %s15, 0
      %p104 = por %p102, %p103
      %p105 = scmp.ne.s32.totalorder %s91, %s92
      %p106 = scmp.eq.s32.totalorder %s16, 1
      %p107 = por %p105, %p106
      %p109 = scmp.ne.s32.totalorder %s92, %s108
      %p110 = scmp.eq.s32.totalorder %s16, 0
      %p111 = por %p109, %p110
      %p112 = scmp.le.s32.totalorder 1, %s10
      %p113 = scmp.lt.s32.totalorder %s10, 3
      %p114 = pnand %p112, %p113
      %p115 = pneg %p114
      // Predicated region
      $region9: #{_lambda_.13} parent=5 // pred_check
        _
      $region10: #{_lambda_.13} parent=5 // pred_check_branch
        %117 = sbr.rel (%p114) target = $region12
      $region11: #{_lambda_.13} parent=5 // pred_region
        %s118 = ssub.s32 %s10, 1
        // Predicated region
        $region13: #{_lambda_.13} parent=11 // pred_check
          %p119 = pneg %p57
        $region14: #{_lambda_.13} parent=11 // pred_check_branch
          %121 = sbr.rel (%p119) target = $region16
        $region15: #{_lambda_.13} parent=11 // pred_region
          %s123 = ssub.s32 6144, 6144
          %124 = vsyncadd [#allocation3], %s123
          %s125 = sshll.u32 [#allocation2], 4
          %s126 = int_to_ptr.vmem [resolvable:$true] %s125
          %131 = dma.hbm_to_vmem [thread:$0]  %s1, 6144, %s126, [#allocation3], 128, 128, 8
        $region16: #{_lambda_.13} parent=11 // pred_fallthru
          _
        // Predicated region
        $region17: #{_lambda_.13} parent=11 // pred_check
          %p132 = pneg %p78
        $region18: #{_lambda_.13} parent=11 // pred_check_branch
          %134 = sbr.rel (%p132) target = $region20
        $region19: #{_lambda_.13} parent=11 // pred_region
          _
        $region20: #{_lambda_.13} parent=11 // pred_fallthru
          _
      $region12: #{_lambda_.13} parent=5 // pred_fallthru
        _
      %p135 = scmp.lt.s32.totalorder %s10, 2
      // Predicated region
      $region21: #{_lambda_.13} parent=5 // pred_check
        %p136 = pneg %p135
      $region22: #{_lambda_.13} parent=5 // pred_check_branch
        %138 = sbr.rel (%p136) target = $region24
      $region23: #{_lambda_.13} parent=5 // pred_region
        // Predicated region
        $region25: #{_lambda_.13} parent=23 // pred_check
          %p139 = pneg %p30
        $region26: #{_lambda_.13} parent=23 // pred_check_branch
          %141 = sbr.rel (%p139) target = $region28
        $region27: #{_lambda_.13} parent=23 // pred_region
          %p142 = scmp.lt.s32.totalorder %s10, 1
          %s143 = scalar_select %p142, %s10, 1
          %s144 = smul.addr %s143, 2
          %s145 = smul.addr %s144, 8
          %s146 = scalar_lea.vmem %s0, %s145
        $region28: #{_lambda_.13} parent=23 // pred_fallthru
          _
      $region24: #{_lambda_.13} parent=5 // pred_fallthru
        _
      %p147 = scmp.le.s32.totalorder 1, %s10
      %p148 = scmp.lt.s32.totalorder %s10, 3
      %p149 = pnand %p147, %p148
      %p150 = pneg %p149
      // Predicated region
      $region29: #{_lambda_.13} parent=5 // pred_check
        _
      $region30: #{_lambda_.13} parent=5 // pred_check_branch
        %152 = sbr.rel (%p149) target = $region32
      $region31: #{_lambda_.13} parent=5 // pred_region
        %s153 = ssub.s32 %s10, 1
        // Predicated region
        $region33: #{_lambda_.13} parent=31 // pred_check
          %p154 = pneg %p57
        $region34: #{_lambda_.13} parent=31 // pred_check_branch
          %156 = sbr.rel (%p154) target = $region36
        $region35: #{_lambda_.13} parent=31 // pred_region
          %157 = dma.done [#allocation3], 6144
        $region36: #{_lambda_.13} parent=31 // pred_fallthru
          _
        %p158 = scmp.lt.s32.totalorder %s15, 1
        %s159 = scalar_select %p158, %s15, 1
        %s160 = smul.addr %s159, 2
        %s161 = smul.addr %s160, 8
        %s162 = scalar_lea.vmem %s0, %s161
        %p163 = pneg %p36
        %p164 = pneg %p33
        %p165 = pneg %p57
        %p166 = pneg %p54
        %p167 = pneg %p78
        %p168 = pneg %p75
        %p169 = pneg %p104
        %p170 = pneg %p101
        %p171 = scmp.lt.s32.totalorder %s15, 1
        %s172 = scalar_select %p171, %s15, 1
        %s173 = smul.addr %s172, 2
        %s174 = smul.addr %s173, 4
        %s175 = scalar_lea.vmem %s3, %s174
        %p176 = scmp.lt.s32.totalorder %s15, 1
        %s177 = scalar_select %p176, %s15, 1
        %s178 = smul.addr %s177, 2
        %s179 = smul.addr %s178, 8
        %s180 = scalar_lea.vmem %s0, %s179
        %p181 = scmp.lt.s32.totalorder %s15, 1
        %s182 = scalar_select %p181, %s15, 1
        %s183 = smul.addr %s182, 2
        %s184 = smul.addr %s183, 4
        %s185 = scalar_lea.vmem %s3, %s184
        %v186 = vld [vmem:[%s180] sm:$0xff]
        %v187 = vld [vmem:[%s180 + $0x8] sm:$0xff]
        %v188 = vrot.slane %v186, 7
        %v189 = vrot.slane %v187, 7
        %v190 = vlaneseq
        %v191 = vshrl.u32 %v190, 7
        %vm192 = vcmp.lt.s32.totalorder %v191, 1
        %v193 = vsel %vm192, %v188, %v189
        %v194 = vsel %vm192, %v189, %v188
        %v195 = vadd.s32 %v191, 8
        %vm196 = vcmp.eq.s32.totalorder %v191, 0
        %vm197 = vcmp.eq.s32.totalorder %v195, 0
        %v198 = vsel %vm196, 0.0, %v194
        %v199 = vsel %vm197, 0.0, %v193
        %v200 = vrot.slane %v186, 1
        %v201 = vrot.slane %v187, 1
        %vm202 = vcmp.lt.s32.totalorder %v191, 7
        %v203 = vsel %vm202, %v200, %v201
        %v204 = vsel %vm202, %v201, %v200
        %vm205 = vcmp.eq.s32.totalorder %v191, 15
        %vm206 = vcmp.eq.s32.totalorder %v195, 15
        %v207 = vsel %vm205, 0.0, %v203
        %v208 = vsel %vm206, 0.0, %v204
        %v209 = vld [vmem:[#allocation2] sm:$0xff]
        %v210 = vld [vmem:[#allocation2 + $0x8] sm:$0xff]
        %v211 = vld [vmem:[#allocation2 + $0x10] sm:$0xff]
        %v212 = vld [vmem:[#allocation2 + $0x18] sm:$0xff]
        %v213 = vld [vmem:[#allocation2 + $0x20] sm:$0xff]
        %v214 = vld [vmem:[#allocation2 + $0x28] sm:$0xff]
        %v215 = vld [vmem:[#allocation2 + $0x30] sm:$0xff]
        %v216 = vld [vmem:[#allocation2 + $0x38] sm:$0xff]
        %v217 = vld [vmem:[#allocation2 + $0x40] sm:$0xff]
        %v218 = vld [vmem:[#allocation2 + $0x48] sm:$0xff]
        %v219 = vld [vmem:[#allocation2 + $0x50] sm:$0xff]
        %v220 = vld [vmem:[#allocation2 + $0x58] sm:$0xff]
        %v221 = vld [vmem:[#allocation2 + $0x60] sm:$0xff]
        %v222 = vld [vmem:[#allocation2 + $0x68] sm:$0xff]
        %v223 = vld [vmem:[#allocation2 + $0x70] sm:$0xff]
        %v224 = vld [vmem:[#allocation2 + $0x78] sm:$0xff]
        %v225 = vld [vmem:[#allocation2 + $0x80] sm:$0xff]
        %v226 = vld [vmem:[#allocation2 + $0x88] sm:$0xff]
        %v227 = vld [vmem:[#allocation2 + $0x90] sm:$0xff]
        %v228 = vld [vmem:[#allocation2 + $0x98] sm:$0xff]
        %v229 = vld [vmem:[#allocation2 + $0xa0] sm:$0xff]
        %v230 = vld [vmem:[#allocation2 + $0xa8] sm:$0xff]
        %v231 = vld [vmem:[#allocation2 + $0xb0] sm:$0xff]
        %v232 = vld [vmem:[#allocation2 + $0xb8] sm:$0xff]
        %v233 = vld [vmem:[#allocation2 + $0xc0] sm:$0xff]
        %v234 = vld [vmem:[#allocation2 + $0xc8] sm:$0xff]
        %v235 = vld [vmem:[#allocation2 + $0xd0] sm:$0xff]
        %v236 = vld [vmem:[#allocation2 + $0xd8] sm:$0xff]
        %v237 = vld [vmem:[#allocation2 + $0xe0] sm:$0xff]
        %v238 = vld [vmem:[#allocation2 + $0xe8] sm:$0xff]
        %v239 = vld [vmem:[#allocation2 + $0xf0] sm:$0xff]
        %v240 = vld [vmem:[#allocation2 + $0xf8] sm:$0xff]
        %v241 = vld [vmem:[#allocation2 + $0x100] sm:$0xff]
        %v242 = vld [vmem:[#allocation2 + $0x108] sm:$0xff]
        %v243 = vld [vmem:[#allocation2 + $0x110] sm:$0xff]
        %v244 = vld [vmem:[#allocation2 + $0x118] sm:$0xff]
        %v245 = vld [vmem:[#allocation2 + $0x120] sm:$0xff]
        %v246 = vld [vmem:[#allocation2 + $0x128] sm:$0xff]
        %v247 = vld [vmem:[#allocation2 + $0x130] sm:$0xff]
        %v248 = vld [vmem:[#allocation2 + $0x138] sm:$0xff]
        %v249 = vld [vmem:[#allocation2 + $0x140] sm:$0xff]
        %v250 = vld [vmem:[#allocation2 + $0x148] sm:$0xff]
        %v251 = vld [vmem:[#allocation2 + $0x150] sm:$0xff]
        %v252 = vld [vmem:[#allocation2 + $0x158] sm:$0xff]
        %v253 = vld [vmem:[#allocation2 + $0x160] sm:$0xff]
        %v254 = vld [vmem:[#allocation2 + $0x168] sm:$0xff]
        %v255 = vld [vmem:[#allocation2 + $0x170] sm:$0xff]
        %v256 = vld [vmem:[#allocation2 + $0x178] sm:$0xff]
        %v257 = vld [vmem:[%s2] sm:$0x1]
        %v259 = vlaneseq
        %v260 = vshrl.u32 %v259, 7
        %v261 = vsub.s32 0, %v260
        %v262 = vrot.slane %v257, %v261
        %264 = vmatprep.subr.mxu0 0.0
        %265 = vmatpush1.msra.mxu0 %v209
        %266 = vmatprep.subr.mxu0 0.0
        %267 = vmatpush1.msra.mxu0 %v210
        %268 = vmatprep.subr.mxu0 0.0
        %269 = vmatpush1.msra.mxu0 %v211
        %270 = vmatprep.subr.mxu0 0.0
        %271 = vmatpush1.msra.mxu0 %v212
        %272 = vmatprep.subr.mxu0 0.0
        %273 = vmatpush1.msra.mxu0 %v213
        %274 = vmatprep.subr.mxu0 0.0
        %275 = vmatpush1.msra.mxu0 %v214
        %276 = vmatprep.subr.mxu0 0.0
        %277 = vmatpush1.msra.mxu0 %v215
        %278 = vmatprep.subr.mxu0 0.0
        %279 = vmatpush1.msra.mxu0 %v216
        %280 = vmatprep.subr.mxu0 0.0
        %281 = vmatpush1.msra.mxu0 %v217
        %282 = vmatprep.subr.mxu0 0.0
        %283 = vmatpush1.msra.mxu0 %v218
        %284 = vmatprep.subr.mxu0 0.0
        %285 = vmatpush1.msra.mxu0 %v219
        %286 = vmatprep.subr.mxu0 0.0
        %287 = vmatpush1.msra.mxu0 %v220
        %288 = vmatprep.subr.mxu0 0.0
        %289 = vmatpush1.msra.mxu0 %v221
        %290 = vmatprep.subr.mxu0 0.0
        %291 = vmatpush1.msra.mxu0 %v222
        %292 = vmatprep.subr.mxu0 0.0
        %293 = vmatpush1.msra.mxu0 %v223
        %294 = vmatprep.subr.mxu0 0.0
        %295 = vmatpush1.msra.mxu0 %v224
        %296 = vmatprep.subr.mxu0 0.0
        %297 = vmatpush1.msra.mxu0 %v225
        %298 = vmatprep.subr.mxu0 0.0
        %299 = vmatpush1.msra.mxu0 %v226
        %300 = vmatprep.subr.mxu0 0.0
        %301 = vmatpush1.msra.mxu0 %v227
        %302 = vmatprep.subr.mxu0 0.0
        %303 = vmatpush1.msra.mxu0 %v228
        %304 = vmatprep.subr.mxu0 0.0
        %305 = vmatpush1.msra.mxu0 %v229
        %306 = vmatprep.subr.mxu0 0.0
        %307 = vmatpush1.msra.mxu0 %v230
        %308 = vmatprep.subr.mxu0 0.0
        %309 = vmatpush1.msra.mxu0 %v231
        %310 = vmatprep.subr.mxu0 0.0
        %311 = vmatpush1.msra.mxu0 %v232
        %312 = vmatprep.subr.mxu0 0.0
        %313 = vmatpush1.msra.mxu0 %v233
        %314 = vmatprep.subr.mxu0 0.0
        %315 = vmatpush1.msra.mxu0 %v234
        %316 = vmatprep.subr.mxu0 0.0
        %317 = vmatpush1.msra.mxu0 %v235
        %318 = vmatprep.subr.mxu0 0.0
        %319 = vmatpush1.msra.mxu0 %v236
        %320 = vmatprep.subr.mxu0 0.0
        %321 = vmatpush1.msra.mxu0 %v237
        %322 = vmatprep.subr.mxu0 0.0
        %323 = vmatpush1.msra.mxu0 %v238
        %324 = vmatprep.subr.mxu0 0.0
        %325 = vmatpush1.msra.mxu0 %v239
        %326 = vmatprep.subr.mxu0 0.0
        %327 = vmatpush1.msra.mxu0 %v240
        %328 = vmatprep.mubr.f32.mxu0 %v186
        %329 = vmatmul.mubr.f32.gmra.mrb[0].mxu0 %v198
        %v330 = vpop.f32.mrb[0].mxu0
        %v331 = vadd.f32 %v262, %v330
        %v332 = vpop.f32.mrb[0].mxu0
        %333 = vmatprep.mubr.f32.mxu0 %v187
        %334 = vmatmul.mubr.f32.gmra.mrb[0].mxu0 %v199
        %v335 = vpop.f32.mrb[0].mxu0
        %v336 = vadd.f32 %v262, %v335
        %v337 = vpop.f32.mrb[0].mxu0
        %338 = vdwg.mxu0
        %339 = vmatprep.subr.mxu0 0.0
        %340 = vmatpush1.msra.mxu0 %v241
        %341 = vmatprep.subr.mxu0 0.0
        %342 = vmatpush1.msra.mxu0 %v242
        %343 = vmatprep.subr.mxu0 0.0
        %344 = vmatpush1.msra.mxu0 %v243
        %345 = vmatprep.subr.mxu0 0.0
        %346 = vmatpush1.msra.mxu0 %v244
        %347 = vmatprep.subr.mxu0 0.0
        %348 = vmatpush1.msra.mxu0 %v245
        %349 = vmatprep.subr.mxu0 0.0
        %350 = vmatpush1.msra.mxu0 %v246
        %351 = vmatprep.subr.mxu0 0.0
        %352 = vmatpush1.msra.mxu0 %v247
        %353 = vmatprep.subr.mxu0 0.0
        %354 = vmatpush1.msra.mxu0 %v248
        %355 = vmatprep.subr.mxu0 0.0
        %356 = vmatpush1.msra.mxu0 %v249
        %357 = vmatprep.subr.mxu0 0.0
        %358 = vmatpush1.msra.mxu0 %v250
        %359 = vmatprep.subr.mxu0 0.0
        %360 = vmatpush1.msra.mxu0 %v251
        %361 = vmatprep.subr.mxu0 0.0
        %362 = vmatpush1.msra.mxu0 %v252
        %363 = vmatprep.subr.mxu0 0.0
        %364 = vmatpush1.msra.mxu0 %v253
        %365 = vmatprep.subr.mxu0 0.0
        %366 = vmatpush1.msra.mxu0 %v254
        %367 = vmatprep.subr.mxu0 0.0
        %368 = vmatpush1.msra.mxu0 %v255
        %369 = vmatprep.subr.mxu0 0.0
        %370 = vmatpush1.msra.mxu0 %v256
        %371 = vmatprep.subr.mxu0 0.0
        %372 = vmatpush1.msra.mxu0 0.0
        %373 = vmatprep.subr.mxu0 0.0
        %374 = vmatpush1.msra.mxu0 0.0
        %375 = vmatprep.subr.mxu0 0.0
        %376 = vmatpush1.msra.mxu0 0.0
        %377 = vmatprep.subr.mxu0 0.0
        %378 = vmatpush1.msra.mxu0 0.0
        %379 = vmatprep.subr.mxu0 0.0
        %380 = vmatpush1.msra.mxu0 0.0
        %381 = vmatprep.subr.mxu0 0.0
        %382 = vmatpush1.msra.mxu0 0.0
        %383 = vmatprep.subr.mxu0 0.0
        %384 = vmatpush1.msra.mxu0 0.0
        %385 = vmatprep.subr.mxu0 0.0
        %386 = vmatpush1.msra.mxu0 0.0
        %387 = vmatprep.subr.mxu0 0.0
        %388 = vmatpush1.msra.mxu0 0.0
        %389 = vmatprep.subr.mxu0 0.0
        %390 = vmatpush1.msra.mxu0 0.0
        %391 = vmatprep.subr.mxu0 0.0
        %392 = vmatpush1.msra.mxu0 0.0
        %393 = vmatprep.subr.mxu0 0.0
        %394 = vmatpush1.msra.mxu0 0.0
        %395 = vmatprep.subr.mxu0 0.0
        %396 = vmatpush1.msra.mxu0 0.0
        %397 = vmatprep.subr.mxu0 0.0
        %398 = vmatpush1.msra.mxu0 0.0
        %399 = vmatprep.subr.mxu0 0.0
        %400 = vmatpush1.msra.mxu0 0.0
        %401 = vmatprep.subr.mxu0 0.0
        %402 = vmatpush1.msra.mxu0 0.0
        %403 = vmatprep.mubr.f32.mxu0 0.0
        %404 = vmatmul.mubr.f32.gmra.mrb[0].mxu0 %v207
        %v405 = vpop.f32.mrb[0].mxu0
        %v406 = vadd.f32 %v331, %v405
        %v407 = vpop.f32.mrb[0].mxu0
        %408 = vmatprep.mubr.f32.mxu0 0.0
        %409 = vmatmul.mubr.f32.gmra.mrb[0].mxu0 %v208
        %v410 = vpop.f32.mrb[0].mxu0
        %v411 = vadd.f32 %v336, %v410
        %v412 = vpop.f32.mrb[0].mxu0
        %413 = vdwg.mxu0
        %v414 = vpack.c.bf16 %v411, %v406
        %v416 = vunpack.c.l.b16 %v414
        %v417 = vunpack.c.h.b16 %v414
        %v418 = vpack.c.b16 %v416, %v416
        %v419 = vpack.c.b16 %v417, %v417
        %422 = vst [vmem:[%s185] sm:$0xf] %v418
        %423 = vst [vmem:[%s185 + $0x4] sm:$0xf] %v419
        %p424 = scmp.lt.s32.totalorder %s15, 1
        %s425 = scalar_select %p424, %s15, 1
        %s426 = smul.addr %s425, 2
        %s427 = smul.addr %s426, 4
        %s428 = scalar_lea.vmem %s3, %s427
        // Predicated region
        $region37: #{_lambda_.13} parent=31 // pred_check
          %p429 = pneg %p101
        $region38: #{_lambda_.13} parent=31 // pred_check_branch
          %431 = sbr.rel (%p429) target = $region40
        $region39: #{_lambda_.13} parent=31 // pred_region
          _
        $region40: #{_lambda_.13} parent=31 // pred_fallthru
          _
      $region32: #{_lambda_.13} parent=5 // pred_fallthru
        _
      %p432 = scmp.le.s32.totalorder 2, %s10
      // Predicated region
      $region41: #{_lambda_.13} parent=5 // pred_check
        %p433 = pneg %p432
      $region42: #{_lambda_.13} parent=5 // pred_check_branch
        %435 = sbr.rel (%p433) target = $region44
      $region43: #{_lambda_.13} parent=5 // pred_region
        %s436 = ssub.s32 %s10, 2
        // Predicated region
        $region45: #{_lambda_.13} parent=43 // pred_check
          %p437 = pneg %p107
        $region46: #{_lambda_.13} parent=43 // pred_check_branch
          %439 = sbr.rel (%p437) target = $region48
        $region47: #{_lambda_.13} parent=43 // pred_region
          %p440 = scmp.lt.s32.totalorder %s16, 1
          %s441 = scalar_select %p440, %s16, 1
          %s442 = smul.addr %s441, 2
          %s443 = smul.addr %s442, 4
          %s444 = scalar_lea.vmem %s3, %s443
        $region48: #{_lambda_.13} parent=43 // pred_fallthru
          _
      $region44: #{_lambda_.13} parent=5 // pred_fallthru
        _
    $region6: #{_lambda_.13} parent=1 // loop_footer
      %s14 = sadd.s32 1, %s10
    $region7: #{_lambda_.13} parent=1 // loop_footer_branch
      %9 = sbr.rel target = $region3
    $region8: #{_lambda_.13} parent=1 // loop_exit
      _
    %445 = vsyncpa [#allocation3], 1
    %s446 = scalar_lea.sflag [#allocation3], 1
    %447 = vsyncpa %s446, 1

// kernel: _lambda_.14
$region0: #{_lambda_.14}
  #allocation0 [shape = 'u32[]', space=smem, size = 0x4, offset = 0x4, fixed_abs, tag = 'smem constant byte address 0x4 - core index']
  #allocation1 [shape = 'u32[144,128]{1,0:T(1,128)}', space=vmem, size = 0x12000, scoped, tag = 'internal scratch']
  %s0 = inlined_call_operand.vmem [shape: bf16[2,16,128], index: 0, kind: input, shape index: {}]
  %s1 = inlined_call_operand.vmem [shape: f32[1,128], index: 1, kind: input, shape index: {}]
  %s2 = inlined_call_operand.vmem [shape: f32[1,128], index: 2, kind: input, shape index: {}]
  %s3 = inlined_call_operand.vmem [shape: f32[128,32], index: 3, kind: input, shape index: {}]
  %s4 = inlined_call_operand.vmem [shape: f32[384,128], index: 4, kind: input, shape index: {}]
  %s5 = inlined_call_operand.vmem [shape: f32[1,128], index: 5, kind: input, shape index: {}]
  %s6 = inlined_call_operand.vmem [shape: bf16[2,16,128], index: 6, kind: output, shape index: {}]
  %s7 = sld [smem:[#allocation0]]
  $region57: #{_lambda_.14} parent=0
    _
  %s9 = ssub.s32 1, %s7
  %s10 = scalar_select 0, %s9, %s7
  loop: start=0, step=1, limit=4
  $region2: #{_lambda_.14} parent=0 // loop_pre_header
    _
  $region3: #{_lambda_.14} parent=0 // loop_header
    %s12 = sphi 0, %s16
    %p13 = scmp.ge.s32.totalorder %s12, 4
    %s22 = sphi 0, %s24
    %s25 = sphi 0, %s22
    %s26 = sphi 0, %s25
    %s42 = sphi 0, %s26
    %s46 = sphi 0, %s46
    %s48 = sphi 0, %s46
    %s49 = sphi 0, %s48
    %s63 = sphi 0, %s49
    %s67 = sphi 0, %s67
    %s69 = sphi 0, %s67
    %s70 = sphi 0, %s69
    %s84 = sphi 0, %s70
    %s88 = sphi 0, %s88
    %s90 = sphi 0, %s88
    %s91 = sphi 0, %s90
    %s105 = sphi 0, %s91
    %s109 = sphi 0, %s109
    %s111 = sphi 0, %s109
    %s112 = sphi 0, %s111
    %s126 = sphi 0, %s112
    %s130 = sphi 0, %s130
    %s132 = sphi 0, %s130
    %s133 = sphi 0, %s132
    %s147 = sphi 0, %s133
    %s153 = sphi 0, %s155
    %s156 = sphi 0, %s153
    %s157 = sphi 0, %s156
    %s173 = sphi 0, %s157
  $region4: #{_lambda_.14} parent=0 // loop_header_branch
    %15 = sbr.rel (%p13) target = $region8
  $region5: #{_lambda_.14} parent=0 // loop_body
    %s17 = ssub.s32 %s12, 1
    %s18 = ssub.s32 %s12, 2
    %s19 = sadd.s32 %s12, 1
    %s20 = ssub.s32 %s12, %s19
    %p21 = scmp.eq.s32.totalorder %s20, 0
    %s23 = sadd.s32 %s22, 1
    %s24 = scalar_select %p21, %s22, %s23
    %p27 = pneg %p21
    %p28 = scmp.eq.s32.totalorder %s12, 1
    %p29 = por %p27, %p28
    %p30 = scmp.ne.s32.totalorder %s22, %s25
    %p31 = scmp.eq.s32.totalorder %s12, 0
    %p32 = por %p30, %p31
    %p33 = scmp.ne.s32.totalorder %s22, %s25
    %p34 = scmp.eq.s32.totalorder %s17, 1
    %p35 = por %p33, %p34
    %p36 = scmp.ne.s32.totalorder %s25, %s26
    %p37 = scmp.eq.s32.totalorder %s17, 0
    %p38 = por %p36, %p37
    %p39 = scmp.ne.s32.totalorder %s25, %s26
    %p40 = scmp.eq.s32.totalorder %s18, 1
    %p41 = por %p39, %p40
    %p43 = scmp.ne.s32.totalorder %s26, %s42
    %p44 = scmp.eq.s32.totalorder %s18, 0
    %p45 = por %p43, %p44
    %s47 = sadd.s32 %s46, 1
    %p50 = scmp.eq.s32.totalorder %s12, 1
    %p51 = scmp.ne.s32.totalorder %s46, %s48
    %p52 = scmp.eq.s32.totalorder %s12, 0
    %p53 = por %p51, %p52
    %p54 = scmp.ne.s32.totalorder %s46, %s48
    %p55 = scmp.eq.s32.totalorder %s17, 1
    %p56 = por %p54, %p55
    %p57 = scmp.ne.s32.totalorder %s48, %s49
    %p58 = scmp.eq.s32.totalorder %s17, 0
    %p59 = por %p57, %p58
    %p60 = scmp.ne.s32.totalorder %s48, %s49
    %p61 = scmp.eq.s32.totalorder %s18, 1
    %p62 = por %p60, %p61
    %p64 = scmp.ne.s32.totalorder %s49, %s63
    %p65 = scmp.eq.s32.totalorder %s18, 0
    %p66 = por %p64, %p65
    %s68 = sadd.s32 %s67, 1
    %p71 = scmp.eq.s32.totalorder %s12, 1
    %p72 = scmp.ne.s32.totalorder %s67, %s69
    %p73 = scmp.eq.s32.totalorder %s12, 0
    %p74 = por %p72, %p73
    %p75 = scmp.ne.s32.totalorder %s67, %s69
    %p76 = scmp.eq.s32.totalorder %s17, 1
    %p77 = por %p75, %p76
    %p78 = scmp.ne.s32.totalorder %s69, %s70
    %p79 = scmp.eq.s32.totalorder %s17, 0
    %p80 = por %p78, %p79
    %p81 = scmp.ne.s32.totalorder %s69, %s70
    %p82 = scmp.eq.s32.totalorder %s18, 1
    %p83 = por %p81, %p82
    %p85 = scmp.ne.s32.totalorder %s70, %s84
    %p86 = scmp.eq.s32.totalorder %s18, 0
    %p87 = por %p85, %p86
    %s89 = sadd.s32 %s88, 1
    %p92 = scmp.eq.s32.totalorder %s12, 1
    %p93 = scmp.ne.s32.totalorder %s88, %s90
    %p94 = scmp.eq.s32.totalorder %s12, 0
    %p95 = por %p93, %p94
    %p96 = scmp.ne.s32.totalorder %s88, %s90
    %p97 = scmp.eq.s32.totalorder %s17, 1
    %p98 = por %p96, %p97
    %p99 = scmp.ne.s32.totalorder %s90, %s91
    %p100 = scmp.eq.s32.totalorder %s17, 0
    %p101 = por %p99, %p100
    %p102 = scmp.ne.s32.totalorder %s90, %s91
    %p103 = scmp.eq.s32.totalorder %s18, 1
    %p104 = por %p102, %p103
    %p106 = scmp.ne.s32.totalorder %s91, %s105
    %p107 = scmp.eq.s32.totalorder %s18, 0
    %p108 = por %p106, %p107
    %s110 = sadd.s32 %s109, 1
    %p113 = scmp.eq.s32.totalorder %s12, 1
    %p114 = scmp.ne.s32.totalorder %s109, %s111
    %p115 = scmp.eq.s32.totalorder %s12, 0
    %p116 = por %p114, %p115
    %p117 = scmp.ne.s32.totalorder %s109, %s111
    %p118 = scmp.eq.s32.totalorder %s17, 1
    %p119 = por %p117, %p118
    %p120 = scmp.ne.s32.totalorder %s111, %s112
    %p121 = scmp.eq.s32.totalorder %s17, 0
    %p122 = por %p120, %p121
    %p123 = scmp.ne.s32.totalorder %s111, %s112
    %p124 = scmp.eq.s32.totalorder %s18, 1
    %p125 = por %p123, %p124
    %p127 = scmp.ne.s32.totalorder %s112, %s126
    %p128 = scmp.eq.s32.totalorder %s18, 0
    %p129 = por %p127, %p128
    %s131 = sadd.s32 %s130, 1
    %p134 = scmp.eq.s32.totalorder %s12, 1
    %p135 = scmp.ne.s32.totalorder %s130, %s132
    %p136 = scmp.eq.s32.totalorder %s12, 0
    %p137 = por %p135, %p136
    %p138 = scmp.ne.s32.totalorder %s130, %s132
    %p139 = scmp.eq.s32.totalorder %s17, 1
    %p140 = por %p138, %p139
    %p141 = scmp.ne.s32.totalorder %s132, %s133
    %p142 = scmp.eq.s32.totalorder %s17, 0
    %p143 = por %p141, %p142
    %p144 = scmp.ne.s32.totalorder %s132, %s133
    %p145 = scmp.eq.s32.totalorder %s18, 1
    %p146 = por %p144, %p145
    %p148 = scmp.ne.s32.totalorder %s133, %s147
    %p149 = scmp.eq.s32.totalorder %s18, 0
    %p150 = por %p148, %p149
    %s151 = ssub.s32 %s12, %s19
    %p152 = scmp.eq.s32.totalorder %s151, 0
    %s154 = sadd.s32 %s153, 1
    %s155 = scalar_select %p152, %s153, %s154
    %p158 = pneg %p152
    %p159 = scmp.eq.s32.totalorder %s12, 1
    %p160 = por %p158, %p159
    %p161 = scmp.ne.s32.totalorder %s153, %s156
    %p162 = scmp.eq.s32.totalorder %s12, 0
    %p163 = por %p161, %p162
    %p164 = scmp.ne.s32.totalorder %s153, %s156
    %p165 = scmp.eq.s32.totalorder %s17, 1
    %p166 = por %p164, %p165
    %p167 = scmp.ne.s32.totalorder %s156, %s157
    %p168 = scmp.eq.s32.totalorder %s17, 0
    %p169 = por %p167, %p168
    %p170 = scmp.ne.s32.totalorder %s156, %s157
    %p171 = scmp.eq.s32.totalorder %s18, 1
    %p172 = por %p170, %p171
    %p174 = scmp.ne.s32.totalorder %s157, %s173
    %p175 = scmp.eq.s32.totalorder %s18, 0
    %p176 = por %p174, %p175
    %p177 = scmp.le.s32.totalorder 1, %s12
    %p178 = scmp.lt.s32.totalorder %s12, 3
    %p179 = pnand %p177, %p178
    %p180 = pneg %p179
    // Predicated region
    $region9: #{_lambda_.14} parent=5 // pred_check
      _
    $region10: #{_lambda_.14} parent=5 // pred_check_branch
      %182 = sbr.rel (%p179) target = $region12
    $region11: #{_lambda_.14} parent=5 // pred_region
      %s183 = ssub.s32 %s12, 1
      // Predicated region
      $region13: #{_lambda_.14} parent=11 // pred_check
        %p184 = pneg %p59
      $region14: #{_lambda_.14} parent=11 // pred_check_branch
        %186 = sbr.rel (%p184) target = $region16
      $region15: #{_lambda_.14} parent=11 // pred_region
        _
      $region16: #{_lambda_.14} parent=11 // pred_fallthru
        _
      // Predicated region
      $region17: #{_lambda_.14} parent=11 // pred_check
        %p187 = pneg %p80
      $region18: #{_lambda_.14} parent=11 // pred_check_branch
        %189 = sbr.rel (%p187) target = $region20
      $region19: #{_lambda_.14} parent=11 // pred_region
        _
      $region20: #{_lambda_.14} parent=11 // pred_fallthru
        _
      // Predicated region
      $region21: #{_lambda_.14} parent=11 // pred_check
        %p190 = pneg %p101
      $region22: #{_lambda_.14} parent=11 // pred_check_branch
        %192 = sbr.rel (%p190) target = $region24
      $region23: #{_lambda_.14} parent=11 // pred_region
        _
      $region24: #{_lambda_.14} parent=11 // pred_fallthru
        _
      // Predicated region
      $region25: #{_lambda_.14} parent=11 // pred_check
        %p193 = pneg %p122
      $region26: #{_lambda_.14} parent=11 // pred_check_branch
        %195 = sbr.rel (%p193) target = $region28
      $region27: #{_lambda_.14} parent=11 // pred_region
        _
      $region28: #{_lambda_.14} parent=11 // pred_fallthru
        _
      // Predicated region
      $region29: #{_lambda_.14} parent=11 // pred_check
        %p196 = pneg %p143
      $region30: #{_lambda_.14} parent=11 // pred_check_branch
        %198 = sbr.rel (%p196) target = $region32
      $region31: #{_lambda_.14} parent=11 // pred_region
        _
      $region32: #{_lambda_.14} parent=11 // pred_fallthru
        _
    $region12: #{_lambda_.14} parent=5 // pred_fallthru
      _
    %p199 = scmp.lt.s32.totalorder %s12, 2
    // Predicated region
    $region33: #{_lambda_.14} parent=5 // pred_check
      %p200 = pneg %p199
    $region34: #{_lambda_.14} parent=5 // pred_check_branch
      %202 = sbr.rel (%p200) target = $region36
    $region35: #{_lambda_.14} parent=5 // pred_region
      // Predicated region
      $region37: #{_lambda_.14} parent=35 // pred_check
        %p203 = pneg %p32
      $region38: #{_lambda_.14} parent=35 // pred_check_branch
        %205 = sbr.rel (%p203) target = $region40
      $region39: #{_lambda_.14} parent=35 // pred_region
        %p206 = scmp.lt.s32.totalorder %s12, 1
        %s207 = scalar_select %p206, %s12, 1
        %s208 = smul.addr %s207, 2
        %s209 = smul.addr %s208, 4
        %s210 = scalar_lea.vmem %s0, %s209
      $region40: #{_lambda_.14} parent=35 // pred_fallthru
        _
    $region36: #{_lambda_.14} parent=5 // pred_fallthru
      _
    %p211 = scmp.le.s32.totalorder 1, %s12
    %p212 = scmp.lt.s32.totalorder %s12, 3
    %p213 = pnand %p211, %p212
    %p214 = pneg %p213
    // Predicated region
    $region41: #{_lambda_.14} parent=5 // pred_check
      _
    $region42: #{_lambda_.14} parent=5 // pred_check_branch
      %216 = sbr.rel (%p213) target = $region44
    $region43: #{_lambda_.14} parent=5 // pred_region
      %s217 = ssub.s32 %s12, 1
      %p218 = scmp.lt.s32.totalorder %s17, 1
      %s219 = scalar_select %p218, %s17, 1
      %s220 = smul.addr %s219, 2
      %s221 = smul.addr %s220, 4
      %s222 = scalar_lea.vmem %s0, %s221
      %p223 = pneg %p38
      %p224 = pneg %p35
      %p225 = pneg %p59
      %p226 = pneg %p56
      %p227 = pneg %p80
      %p228 = pneg %p77
      %p229 = pneg %p101
      %p230 = pneg %p98
      %p231 = pneg %p122
      %p232 = pneg %p119
      %p233 = pneg %p143
      %p234 = pneg %p140
      %p235 = pneg %p169
      %p236 = pneg %p166
      %p237 = scmp.lt.s32.totalorder %s17, 1
      %s238 = scalar_select %p237, %s17, 1
      %s239 = smul.addr %s238, 2
      %s240 = smul.addr %s239, 4
      %s241 = scalar_lea.vmem %s6, %s240
      %p242 = scmp.lt.s32.totalorder %s17, 1
      %s243 = scalar_select %p242, %s17, 1
      %s244 = smul.addr %s243, 2
      %s245 = smul.addr %s244, 4
      %s246 = scalar_lea.vmem %s0, %s245
      %p247 = scmp.lt.s32.totalorder %s17, 1
      %s248 = scalar_select %p247, %s17, 1
      %s249 = smul.addr %s248, 2
      %s250 = smul.addr %s249, 4
      %s251 = scalar_lea.vmem %s6, %s250
      %v252 = vld [vmem:[%s246] sm:$0xf]
      %v253 = vld [vmem:[%s246 + $0x4] sm:$0xf]
      %v254 = vunpack.c.l.bf16 %v252
      %v255 = vunpack.c.l.bf16 %v253
      %v256 = vld [vmem:[%s3] sm:$0xff]
      %v257 = vld [vmem:[%s3 + $0x8] sm:$0xff]
      %v258 = vld [vmem:[%s3 + $0x10] sm:$0xff]
      %v259 = vld [vmem:[%s3 + $0x18] sm:$0xff]
      %v260 = vld [vmem:[%s3 + $0x20] sm:$0xff]
      %v261 = vld [vmem:[%s3 + $0x28] sm:$0xff]
      %v262 = vld [vmem:[%s3 + $0x30] sm:$0xff]
      %v263 = vld [vmem:[%s3 + $0x38] sm:$0xff]
      %v264 = vld [vmem:[%s3 + $0x40] sm:$0xff]
      %v265 = vld [vmem:[%s3 + $0x48] sm:$0xff]
      %v266 = vld [vmem:[%s3 + $0x50] sm:$0xff]
      %v267 = vld [vmem:[%s3 + $0x58] sm:$0xff]
      %v268 = vld [vmem:[%s3 + $0x60] sm:$0xff]
      %v269 = vld [vmem:[%s3 + $0x68] sm:$0xff]
      %v270 = vld [vmem:[%s3 + $0x70] sm:$0xff]
      %v271 = vld [vmem:[%s3 + $0x78] sm:$0xff]
      %v272 = vadd.f32 %v254, %v255
      %v273 = vrot.slane %v272, 4
      %v274 = vadd.f32 %v272, %v273
      %v275 = vrot.slane %v274, 2
      %v276 = vadd.f32 %v274, %v275
      %v277 = vrot.slane %v276, 1
      %v278 = vadd.f32 %v276, %v277
      %v279 = vmul.f32 %v254, %v254
      %v280 = vmul.f32 %v255, %v255
      %v281 = vadd.f32 %v279, %v280
      %v282 = vrot.slane %v281, 4
      %v283 = vadd.f32 %v281, %v282
      %v284 = vrot.slane %v283, 2
      %v285 = vadd.f32 %v283, %v284
      %v286 = vrot.slane %v285, 1
      %v287 = vadd.f32 %v285, %v286
      %288 = vmatprep.subr.mxu0 0.0
      %289 = vmatpush1.msra.mxu0 %v256
      %290 = vmatprep.subr.mxu0 0.0
      %291 = vmatpush1.msra.mxu0 %v257
      %292 = vmatprep.subr.mxu0 0.0
      %293 = vmatpush1.msra.mxu0 %v258
      %294 = vmatprep.subr.mxu0 0.0
      %295 = vmatpush1.msra.mxu0 %v259
      %296 = vmatprep.subr.mxu0 0.0
      %297 = vmatpush1.msra.mxu0 %v260
      %298 = vmatprep.subr.mxu0 0.0
      %299 = vmatpush1.msra.mxu0 %v261
      %300 = vmatprep.subr.mxu0 0.0
      %301 = vmatpush1.msra.mxu0 %v262
      %302 = vmatprep.subr.mxu0 0.0
      %303 = vmatpush1.msra.mxu0 %v263
      %304 = vmatprep.subr.mxu0 0.0
      %305 = vmatpush1.msra.mxu0 %v264
      %306 = vmatprep.subr.mxu0 0.0
      %307 = vmatpush1.msra.mxu0 %v265
      %308 = vmatprep.subr.mxu0 0.0
      %309 = vmatpush1.msra.mxu0 %v266
      %310 = vmatprep.subr.mxu0 0.0
      %311 = vmatpush1.msra.mxu0 %v267
      %312 = vmatprep.subr.mxu0 0.0
      %313 = vmatpush1.msra.mxu0 %v268
      %314 = vmatprep.subr.mxu0 0.0
      %315 = vmatpush1.msra.mxu0 %v269
      %316 = vmatprep.subr.mxu0 0.0
      %317 = vmatpush1.msra.mxu0 %v270
      %318 = vmatprep.subr.mxu0 0.0
      %319 = vmatpush1.msra.mxu0 %v271
      %320 = vmatprep.subr.mxu0 0.0
      %321 = vmatpush1.msra.mxu0 0.0
      %322 = vmatprep.subr.mxu0 0.0
      %323 = vmatpush1.msra.mxu0 0.0
      %324 = vmatprep.subr.mxu0 0.0
      %325 = vmatpush1.msra.mxu0 0.0
      %326 = vmatprep.subr.mxu0 0.0
      %327 = vmatpush1.msra.mxu0 0.0
      %328 = vmatprep.subr.mxu0 0.0
      %329 = vmatpush1.msra.mxu0 0.0
      %330 = vmatprep.subr.mxu0 0.0
      %331 = vmatpush1.msra.mxu0 0.0
      %332 = vmatprep.subr.mxu0 0.0
      %333 = vmatpush1.msra.mxu0 0.0
      %334 = vmatprep.subr.mxu0 0.0
      %335 = vmatpush1.msra.mxu0 0.0
      %336 = vmatprep.subr.mxu0 0.0
      %337 = vmatpush1.msra.mxu0 0.0
      %338 = vmatprep.subr.mxu0 0.0
      %339 = vmatpush1.msra.mxu0 0.0
      %340 = vmatprep.subr.mxu0 0.0
      %341 = vmatpush1.msra.mxu0 0.0
      %342 = vmatprep.subr.mxu0 0.0
      %343 = vmatpush1.msra.mxu0 0.0
      %344 = vmatprep.subr.mxu0 0.0
      %345 = vmatpush1.msra.mxu0 0.0
      %346 = vmatprep.subr.mxu0 0.0
      %347 = vmatpush1.msra.mxu0 0.0
      %348 = vmatprep.subr.mxu0 0.0
      %349 = vmatpush1.msra.mxu0 0.0
      %350 = vmatprep.subr.mxu0 0.0
      %351 = vmatpush1.msra.mxu0 0.0
      %352 = vmatprep.mubr.f32.mxu0 0.0
      %353 = vmatmul.mubr.f32.gmra.mrb[0].mxu0 %v278
      %v354 = vpop.f32.mrb[0].mxu0
      %v355 = vadd.f32 0.0, %v354
      %v356 = vpop.f32.mrb[0].mxu0
      %357 = vdwg.mxu0
      %v358 = vmul.f32 %v355, 0.0625
      %359 = vmatprep.subr.mxu0 0.0
      %360 = vmatpush1.msra.mxu0 %v256
      %361 = vmatprep.subr.mxu0 0.0
      %362 = vmatpush1.msra.mxu0 %v257
      %363 = vmatprep.subr.mxu0 0.0
      %364 = vmatpush1.msra.mxu0 %v258
      %365 = vmatprep.subr.mxu0 0.0
      %366 = vmatpush1.msra.mxu0 %v259
      %367 = vmatprep.subr.mxu0 0.0
      %368 = vmatpush1.msra.mxu0 %v260
      %369 = vmatprep.subr.mxu0 0.0
      %370 = vmatpush1.msra.mxu0 %v261
      %371 = vmatprep.subr.mxu0 0.0
      %372 = vmatpush1.msra.mxu0 %v262
      %373 = vmatprep.subr.mxu0 0.0
      %374 = vmatpush1.msra.mxu0 %v263
      %375 = vmatprep.subr.mxu0 0.0
      %376 = vmatpush1.msra.mxu0 %v264
      %377 = vmatprep.subr.mxu0 0.0
      %378 = vmatpush1.msra.mxu0 %v265
      %379 = vmatprep.subr.mxu0 0.0
      %380 = vmatpush1.msra.mxu0 %v266
      %381 = vmatprep.subr.mxu0 0.0
      %382 = vmatpush1.msra.mxu0 %v267
      %383 = vmatprep.subr.mxu0 0.0
      %384 = vmatpush1.msra.mxu0 %v268
      %385 = vmatprep.subr.mxu0 0.0
      %386 = vmatpush1.msra.mxu0 %v269
      %387 = vmatprep.subr.mxu0 0.0
      %388 = vmatpush1.msra.mxu0 %v270
      %389 = vmatprep.subr.mxu0 0.0
      %390 = vmatpush1.msra.mxu0 %v271
      %391 = vmatprep.subr.mxu0 0.0
      %392 = vmatpush1.msra.mxu0 0.0
      %393 = vmatprep.subr.mxu0 0.0
      %394 = vmatpush1.msra.mxu0 0.0
      %395 = vmatprep.subr.mxu0 0.0
      %396 = vmatpush1.msra.mxu0 0.0
      %397 = vmatprep.subr.mxu0 0.0
      %398 = vmatpush1.msra.mxu0 0.0
      %399 = vmatprep.subr.mxu0 0.0
      %400 = vmatpush1.msra.mxu0 0.0
      %401 = vmatprep.subr.mxu0 0.0
      %402 = vmatpush1.msra.mxu0 0.0
      %403 = vmatprep.subr.mxu0 0.0
      %404 = vmatpush1.msra.mxu0 0.0
      %405 = vmatprep.subr.mxu0 0.0
      %406 = vmatpush1.msra.mxu0 0.0
      %407 = vmatprep.subr.mxu0 0.0
      %408 = vmatpush1.msra.mxu0 0.0
      %409 = vmatprep.subr.mxu0 0.0
      %410 = vmatpush1.msra.mxu0 0.0
      %411 = vmatprep.subr.mxu0 0.0
      %412 = vmatpush1.msra.mxu0 0.0
      %413 = vmatprep.subr.mxu0 0.0
      %414 = vmatpush1.msra.mxu0 0.0
      %415 = vmatprep.subr.mxu0 0.0
      %416 = vmatpush1.msra.mxu0 0.0
      %417 = vmatprep.subr.mxu0 0.0
      %418 = vmatpush1.msra.mxu0 0.0
      %419 = vmatprep.subr.mxu0 0.0
      %420 = vmatpush1.msra.mxu0 0.0
      %421 = vmatprep.subr.mxu0 0.0
      %422 = vmatpush1.msra.mxu0 0.0
      %423 = vmatprep.mubr.f32.mxu0 0.0
      %424 = vmatmul.mubr.f32.gmra.mrb[0].mxu0 %v287
      %v425 = vpop.f32.mrb[0].mxu0
      %v426 = vadd.f32 0.0, %v425
      %v427 = vpop.f32.mrb[0].mxu0
      %428 = vdwg.mxu0
      %v429 = vmul.f32 %v426, 0.0625
      %v430 = vmul.f32 %v358, %v358
      %v431 = vsub.f32 %v429, %v430
      %v432 = vmax.f32 %v431, 0.0
      %vm433 = vcmask 261120
      %v435 = vsel %vm433, %v358, 0
      %v438 = vsel %vm433, %v256, 0
      %v441 = vsel %vm433, %v257, 0
      %v444 = vsel %vm433, %v258, 0
      %v447 = vsel %vm433, %v259, 0
      %v450 = vsel %vm433, %v260, 0
      %v453 = vsel %vm433, %v261, 0
      %v456 = vsel %vm433, %v262, 0
      %v459 = vsel %vm433, %v263, 0
      %v462 = vsel %vm433, %v264, 0
      %v465 = vsel %vm433, %v265, 0
      %v468 = vsel %vm433, %v266, 0
      %v471 = vsel %vm433, %v267, 0
      %v474 = vsel %vm433, %v268, 0
      %v477 = vsel %vm433, %v269, 0
      %v480 = vsel %vm433, %v270, 0
      %v483 = vsel %vm433, %v271, 0
      %485 = vmatprep.subr.mxu0 0.0
      %486 = vmatpush1.xpose.msra.mxu0 %v438
      %487 = vmatprep.subr.mxu0 0.0
      %488 = vmatpush1.xpose.msra.mxu0 %v441
      %489 = vmatprep.subr.mxu0 0.0
      %490 = vmatpush1.xpose.msra.mxu0 %v444
      %491 = vmatprep.subr.mxu0 0.0
      %492 = vmatpush1.xpose.msra.mxu0 %v447
      %493 = vmatprep.subr.mxu0 0.0
      %494 = vmatpush1.xpose.msra.mxu0 %v450
      %495 = vmatprep.subr.mxu0 0.0
      %496 = vmatpush1.xpose.msra.mxu0 %v453
      %497 = vmatprep.subr.mxu0 0.0
      %498 = vmatpush1.xpose.msra.mxu0 %v456
      %499 = vmatprep.subr.mxu0 0.0
      %500 = vmatpush1.xpose.msra.mxu0 %v459
      %501 = vmatprep.subr.mxu0 0.0
      %502 = vmatpush1.xpose.msra.mxu0 %v462
      %503 = vmatprep.subr.mxu0 0.0
      %504 = vmatpush1.xpose.msra.mxu0 %v465
      %505 = vmatprep.subr.mxu0 0.0
      %506 = vmatpush1.xpose.msra.mxu0 %v468
      %507 = vmatprep.subr.mxu0 0.0
      %508 = vmatpush1.xpose.msra.mxu0 %v471
      %509 = vmatprep.subr.mxu0 0.0
      %510 = vmatpush1.xpose.msra.mxu0 %v474
      %511 = vmatprep.subr.mxu0 0.0
      %512 = vmatpush1.xpose.msra.mxu0 %v477
      %513 = vmatprep.subr.mxu0 0.0
      %514 = vmatpush1.xpose.msra.mxu0 %v480
      %515 = vmatprep.subr.mxu0 0.0
      %516 = vmatpush1.xpose.msra.mxu0 %v483
      %517 = vmatprep.subr.mxu0 0.0
      %518 = vmatpush1.xpose.msra.mxu0 0.0
      %519 = vmatprep.subr.mxu0 0.0
      %520 = vmatpush1.xpose.msra.mxu0 0.0
      %521 = vmatprep.subr.mxu0 0.0
      %522 = vmatpush1.xpose.msra.mxu0 0.0
      %523 = vmatprep.subr.mxu0 0.0
      %524 = vmatpush1.xpose.msra.mxu0 0.0
      %525 = vmatprep.subr.mxu0 0.0
      %526 = vmatpush1.xpose.msra.mxu0 0.0
      %527 = vmatprep.subr.mxu0 0.0
      %528 = vmatpush1.xpose.msra.mxu0 0.0
      %529 = vmatprep.subr.mxu0 0.0
      %530 = vmatpush1.xpose.msra.mxu0 0.0
      %531 = vmatprep.subr.mxu0 0.0
      %532 = vmatpush1.xpose.msra.mxu0 0.0
      %533 = vmatprep.subr.mxu0 0.0
      %534 = vmatpush1.xpose.msra.mxu0 0.0
      %535 = vmatprep.subr.mxu0 0.0
      %536 = vmatpush1.xpose.msra.mxu0 0.0
      %537 = vmatprep.subr.mxu0 0.0
      %538 = vmatpush1.xpose.msra.mxu0 0.0
      %539 = vmatprep.subr.mxu0 0.0
      %540 = vmatpush1.xpose.msra.mxu0 0.0
      %541 = vmatprep.subr.mxu0 0.0
      %542 = vmatpush1.xpose.msra.mxu0 0.0
      %543 = vmatprep.subr.mxu0 0.0
      %544 = vmatpush1.xpose.msra.mxu0 0.0
      %545 = vmatprep.subr.mxu0 0.0
      %546 = vmatpush1.xpose.msra.mxu0 0.0
      %547 = vmatprep.subr.mxu0 0.0
      %548 = vmatpush1.xpose.msra.mxu0 0.0
      %549 = vmatprep.mubr.f32.mxu0 0.0
      %550 = vmatmul.mubr.f32.gmra.mrb[0].mxu0 %v435
      %v551 = vpop.f32.mrb[0].mxu0
      %v552 = vadd.f32 0.0, %v551
      %v553 = vpop.f32.mrb[0].mxu0
      %554 = vdwg.mxu0
      %v556 = vsel %vm433, %v432, 0
      %558 = vmatprep.subr.mxu0 0.0
      %559 = vmatpush1.xpose.msra.mxu0 %v438
      %560 = vmatprep.subr.mxu0 0.0
      %561 = vmatpush1.xpose.msra.mxu0 %v441
      %562 = vmatprep.subr.mxu0 0.0
      %563 = vmatpush1.xpose.msra.mxu0 %v444
      %564 = vmatprep.subr.mxu0 0.0
      %565 = vmatpush1.xpose.msra.mxu0 %v447
      %566 = vmatprep.subr.mxu0 0.0
      %567 = vmatpush1.xpose.msra.mxu0 %v450
      %568 = vmatprep.subr.mxu0 0.0
      %569 = vmatpush1.xpose.msra.mxu0 %v453
      %570 = vmatprep.subr.mxu0 0.0
      %571 = vmatpush1.xpose.msra.mxu0 %v456
      %572 = vmatprep.subr.mxu0 0.0
      %573 = vmatpush1.xpose.msra.mxu0 %v459
      %574 = vmatprep.subr.mxu0 0.0
      %575 = vmatpush1.xpose.msra.mxu0 %v462
      %576 = vmatprep.subr.mxu0 0.0
      %577 = vmatpush1.xpose.msra.mxu0 %v465
      %578 = vmatprep.subr.mxu0 0.0
      %579 = vmatpush1.xpose.msra.mxu0 %v468
      %580 = vmatprep.subr.mxu0 0.0
      %581 = vmatpush1.xpose.msra.mxu0 %v471
      %582 = vmatprep.subr.mxu0 0.0
      %583 = vmatpush1.xpose.msra.mxu0 %v474
      %584 = vmatprep.subr.mxu0 0.0
      %585 = vmatpush1.xpose.msra.mxu0 %v477
      %586 = vmatprep.subr.mxu0 0.0
      %587 = vmatpush1.xpose.msra.mxu0 %v480
      %588 = vmatprep.subr.mxu0 0.0
      %589 = vmatpush1.xpose.msra.mxu0 %v483
      %590 = vmatprep.subr.mxu0 0.0
      %591 = vmatpush1.xpose.msra.mxu0 0.0
      %592 = vmatprep.subr.mxu0 0.0
      %593 = vmatpush1.xpose.msra.mxu0 0.0
      %594 = vmatprep.subr.mxu0 0.0
      %595 = vmatpush1.xpose.msra.mxu0 0.0
      %596 = vmatprep.subr.mxu0 0.0
      %597 = vmatpush1.xpose.msra.mxu0 0.0
      %598 = vmatprep.subr.mxu0 0.0
      %599 = vmatpush1.xpose.msra.mxu0 0.0
      %600 = vmatprep.subr.mxu0 0.0
      %601 = vmatpush1.xpose.msra.mxu0 0.0
      %602 = vmatprep.subr.mxu0 0.0
      %603 = vmatpush1.xpose.msra.mxu0 0.0
      %604 = vmatprep.subr.mxu0 0.0
      %605 = vmatpush1.xpose.msra.mxu0 0.0
      %606 = vmatprep.subr.mxu0 0.0
      %607 = vmatpush1.xpose.msra.mxu0 0.0
      %608 = vmatprep.subr.mxu0 0.0
      %609 = vmatpush1.xpose.msra.mxu0 0.0
      %610 = vmatprep.subr.mxu0 0.0
      %611 = vmatpush1.xpose.msra.mxu0 0.0
      %612 = vmatprep.subr.mxu0 0.0
      %613 = vmatpush1.xpose.msra.mxu0 0.0
      %614 = vmatprep.subr.mxu0 0.0
      %615 = vmatpush1.xpose.msra.mxu0 0.0
      %616 = vmatprep.subr.mxu0 0.0
      %617 = vmatpush1.xpose.msra.mxu0 0.0
      %618 = vmatprep.subr.mxu0 0.0
      %619 = vmatpush1.xpose.msra.mxu0 0.0
      %620 = vmatprep.subr.mxu0 0.0
      %621 = vmatpush1.xpose.msra.mxu0 0.0
      %622 = vmatprep.mubr.f32.mxu0 0.0
      %623 = vmatmul.mubr.f32.gmra.mrb[0].mxu0 %v556
      %v624 = vpop.f32.mrb[0].mxu0
      %v625 = vadd.f32 1e-06, %v624
      %v626 = vpop.f32.mrb[0].mxu0
      %627 = vdwg.mxu0
      %v628 = vrsqrt.pop %v625
      %v629 = vld [vmem:[%s1] sm:$0x1]
      %v630 = vmul.f32 %v629, %v628
      %v631 = vld [vmem:[%s2] sm:$0x1]
      %v632 = vmul.f32 %v552, %v630
      %v633 = vsub.f32 %v631, %v632
      %v635 = vlaneseq
      %v636 = vshrl.u32 %v635, 7
      %v637 = vsub.s32 0, %v636
      %v638 = vrot.slane %v630, %v637
      %v640 = vmul.f32 %v254, %v638
      %v641 = vmul.f32 %v255, %v638
      %v643 = vlaneseq
      %v644 = vshrl.u32 %v643, 7
      %v645 = vsub.s32 0, %v644
      %v646 = vrot.slane %v633, %v645
      %v648 = vadd.f32 %v640, %v646
      %v649 = vadd.f32 %v641, %v646
      %v650 = vxor.u32 %v648, 2147483648
      %v651 = vxor.u32 %v649, 2147483648
      %v652 = vmul.f32 %v650, 1.442695
      %v653 = vpow.pop %v652
      %v654 = vmul.f32 %v651, 1.442695
      %v655 = vpow.pop %v654
      %v656 = vadd.f32 %v653, 1.0
      %v657 = vadd.f32 %v655, 1.0
      %v658 = vrcp.pop %v656
      %v659 = vmul.f32 1.0, %v658
      %v660 = vrcp.pop %v657
      %v661 = vmul.f32 1.0, %v660
      %v662 = vmul.f32 %v648, %v659
      %v663 = vmul.f32 %v649, %v661
      %v664 = vrot.slane %v662, 7
      %v665 = vrot.slane %v663, 7
      %v666 = vlaneseq
      %v667 = vshrl.u32 %v666, 7
      %vm668 = vcmp.lt.s32.totalorder %v667, 1
      %v669 = vsel %vm668, %v664, %v665
      %v670 = vsel %vm668, %v665, %v664
      %v671 = vadd.s32 %v667, 8
      %vm672 = vcmp.eq.s32.totalorder %v667, 0
      %vm673 = vcmp.eq.s32.totalorder %v671, 0
      %v674 = vsel %vm672, 0.0, %v670
      %v675 = vsel %vm673, 0.0, %v669
      %v676 = vrot.slane %v662, 1
      %v677 = vrot.slane %v663, 1
      %vm678 = vcmp.lt.s32.totalorder %v667, 7
      %v679 = vsel %vm678, %v676, %v677
      %v680 = vsel %vm678, %v677, %v676
      %vm681 = vcmp.eq.s32.totalorder %v667, 15
      %vm682 = vcmp.eq.s32.totalorder %v671, 15
      %v683 = vsel %vm681, 0.0, %v679
      %v684 = vsel %vm682, 0.0, %v680
      %v685 = vld [vmem:[%s4] sm:$0xff]
      %v686 = vld [vmem:[%s4 + $0x8] sm:$0xff]
      %v687 = vld [vmem:[%s4 + $0x10] sm:$0xff]
      %v688 = vld [vmem:[%s4 + $0x18] sm:$0xff]
      %v689 = vld [vmem:[%s4 + $0x20] sm:$0xff]
      %v690 = vld [vmem:[%s4 + $0x28] sm:$0xff]
      %v691 = vld [vmem:[%s4 + $0x30] sm:$0xff]
      %v692 = vld [vmem:[%s4 + $0x38] sm:$0xff]
      %v693 = vld [vmem:[%s4 + $0x40] sm:$0xff]
      %v694 = vld [vmem:[%s4 + $0x48] sm:$0xff]
      %v695 = vld [vmem:[%s4 + $0x50] sm:$0xff]
      %v696 = vld [vmem:[%s4 + $0x58] sm:$0xff]
      %v697 = vld [vmem:[%s4 + $0x60] sm:$0xff]
      %v698 = vld [vmem:[%s4 + $0x68] sm:$0xff]
      %v699 = vld [vmem:[%s4 + $0x70] sm:$0xff]
      %v700 = vld [vmem:[%s4 + $0x78] sm:$0xff]
      %v701 = vld [vmem:[%s4 + $0x80] sm:$0xff]
      %v702 = vld [vmem:[%s4 + $0x88] sm:$0xff]
      %v703 = vld [vmem:[%s4 + $0x90] sm:$0xff]
      %v704 = vld [vmem:[%s4 + $0x98] sm:$0xff]
      %v705 = vld [vmem:[%s4 + $0xa0] sm:$0xff]
      %v706 = vld [vmem:[%s4 + $0xa8] sm:$0xff]
      %v707 = vld [vmem:[%s4 + $0xb0] sm:$0xff]
      %v708 = vld [vmem:[%s4 + $0xb8] sm:$0xff]
      %v709 = vld [vmem:[%s4 + $0xc0] sm:$0xff]
      %v710 = vld [vmem:[%s4 + $0xc8] sm:$0xff]
      %v711 = vld [vmem:[%s4 + $0xd0] sm:$0xff]
      %v712 = vld [vmem:[%s4 + $0xd8] sm:$0xff]
      %v713 = vld [vmem:[%s4 + $0xe0] sm:$0xff]
      %v714 = vld [vmem:[%s4 + $0xe8] sm:$0xff]
      %v715 = vld [vmem:[%s4 + $0xf0] sm:$0xff]
      %v716 = vld [vmem:[%s4 + $0xf8] sm:$0xff]
      %v717 = vld [vmem:[%s4 + $0x100] sm:$0xff]
      %v718 = vld [vmem:[%s4 + $0x108] sm:$0xff]
      %v719 = vld [vmem:[%s4 + $0x110] sm:$0xff]
      %v720 = vld [vmem:[%s4 + $0x118] sm:$0xff]
      %v721 = vld [vmem:[%s4 + $0x120] sm:$0xff]
      %v722 = vld [vmem:[%s4 + $0x128] sm:$0xff]
      %v723 = vld [vmem:[%s4 + $0x130] sm:$0xff]
      %v724 = vld [vmem:[%s4 + $0x138] sm:$0xff]
      %v725 = vld [vmem:[%s4 + $0x140] sm:$0xff]
      %v726 = vld [vmem:[%s4 + $0x148] sm:$0xff]
      %v727 = vld [vmem:[%s4 + $0x150] sm:$0xff]
      %v728 = vld [vmem:[%s4 + $0x158] sm:$0xff]
      %v729 = vld [vmem:[%s4 + $0x160] sm:$0xff]
      %v730 = vld [vmem:[%s4 + $0x168] sm:$0xff]
      %v731 = vld [vmem:[%s4 + $0x170] sm:$0xff]
      %v732 = vld [vmem:[%s4 + $0x178] sm:$0xff]
      %v733 = vld [vmem:[%s5] sm:$0x1]
      %v735 = vlaneseq
      %v736 = vshrl.u32 %v735, 7
      %v737 = vsub.s32 0, %v736
      %v738 = vrot.slane %v733, %v737
      %740 = vmatprep.subr.mxu0 0.0
      %741 = vmatpush1.msra.mxu0 %v685
      %742 = vmatprep.subr.mxu0 0.0
      %743 = vmatpush1.msra.mxu0 %v686
      %744 = vmatprep.subr.mxu0 0.0
      %745 = vmatpush1.msra.mxu0 %v687
      %746 = vmatprep.subr.mxu0 0.0
      %747 = vmatpush1.msra.mxu0 %v688
      %748 = vmatprep.subr.mxu0 0.0
      %749 = vmatpush1.msra.mxu0 %v689
      %750 = vmatprep.subr.mxu0 0.0
      %751 = vmatpush1.msra.mxu0 %v690
      %752 = vmatprep.subr.mxu0 0.0
      %753 = vmatpush1.msra.mxu0 %v691
      %754 = vmatprep.subr.mxu0 0.0
      %755 = vmatpush1.msra.mxu0 %v692
      %756 = vmatprep.subr.mxu0 0.0
      %757 = vmatpush1.msra.mxu0 %v693
      %758 = vmatprep.subr.mxu0 0.0
      %759 = vmatpush1.msra.mxu0 %v694
      %760 = vmatprep.subr.mxu0 0.0
      %761 = vmatpush1.msra.mxu0 %v695
      %762 = vmatprep.subr.mxu0 0.0
      %763 = vmatpush1.msra.mxu0 %v696
      %764 = vmatprep.subr.mxu0 0.0
      %765 = vmatpush1.msra.mxu0 %v697
      %766 = vmatprep.subr.mxu0 0.0
      %767 = vmatpush1.msra.mxu0 %v698
      %768 = vmatprep.subr.mxu0 0.0
      %769 = vmatpush1.msra.mxu0 %v699
      %770 = vmatprep.subr.mxu0 0.0
      %771 = vmatpush1.msra.mxu0 %v700
      %772 = vmatprep.subr.mxu0 0.0
      %773 = vmatpush1.msra.mxu0 %v701
      %774 = vmatprep.subr.mxu0 0.0
      %775 = vmatpush1.msra.mxu0 %v702
      %776 = vmatprep.subr.mxu0 0.0
      %777 = vmatpush1.msra.mxu0 %v703
      %778 = vmatprep.subr.mxu0 0.0
      %779 = vmatpush1.msra.mxu0 %v704
      %780 = vmatprep.subr.mxu0 0.0
      %781 = vmatpush1.msra.mxu0 %v705
      %782 = vmatprep.subr.mxu0 0.0
      %783 = vmatpush1.msra.mxu0 %v706
      %784 = vmatprep.subr.mxu0 0.0
      %785 = vmatpush1.msra.mxu0 %v707
      %786 = vmatprep.subr.mxu0 0.0
      %787 = vmatpush1.msra.mxu0 %v708
      %788 = vmatprep.subr.mxu0 0.0
      %789 = vmatpush1.msra.mxu0 %v709
      %790 = vmatprep.subr.mxu0 0.0
      %791 = vmatpush1.msra.mxu0 %v710
      %792 = vmatprep.subr.mxu0 0.0
      %793 = vmatpush1.msra.mxu0 %v711
      %794 = vmatprep.subr.mxu0 0.0
      %795 = vmatpush1.msra.mxu0 %v712
      %796 = vmatprep.subr.mxu0 0.0
      %797 = vmatpush1.msra.mxu0 %v713
      %798 = vmatprep.subr.mxu0 0.0
      %799 = vmatpush1.msra.mxu0 %v714
      %800 = vmatprep.subr.mxu0 0.0
      %801 = vmatpush1.msra.mxu0 %v715
      %802 = vmatprep.subr.mxu0 0.0
      %803 = vmatpush1.msra.mxu0 %v716
      %804 = vmatprep.mubr.f32.mxu0 %v662
      %805 = vmatmul.mubr.f32.gmra.mrb[0].mxu0 %v674
      %v806 = vpop.f32.mrb[0].mxu0
      %v807 = vadd.f32 %v738, %v806
      %v808 = vpop.f32.mrb[0].mxu0
      %809 = vmatprep.mubr.f32.mxu0 %v663
      %810 = vmatmul.mubr.f32.gmra.mrb[0].mxu0 %v675
      %v811 = vpop.f32.mrb[0].mxu0
      %v812 = vadd.f32 %v738, %v811
      %v813 = vpop.f32.mrb[0].mxu0
      %814 = vdwg.mxu0
      %815 = vmatprep.subr.mxu0 0.0
      %816 = vmatpush1.msra.mxu0 %v717
      %817 = vmatprep.subr.mxu0 0.0
      %818 = vmatpush1.msra.mxu0 %v718
      %819 = vmatprep.subr.mxu0 0.0
      %820 = vmatpush1.msra.mxu0 %v719
      %821 = vmatprep.subr.mxu0 0.0
      %822 = vmatpush1.msra.mxu0 %v720
      %823 = vmatprep.subr.mxu0 0.0
      %824 = vmatpush1.msra.mxu0 %v721
      %825 = vmatprep.subr.mxu0 0.0
      %826 = vmatpush1.msra.mxu0 %v722
      %827 = vmatprep.subr.mxu0 0.0
      %828 = vmatpush1.msra.mxu0 %v723
      %829 = vmatprep.subr.mxu0 0.0
      %830 = vmatpush1.msra.mxu0 %v724
      %831 = vmatprep.subr.mxu0 0.0
      %832 = vmatpush1.msra.mxu0 %v725
      %833 = vmatprep.subr.mxu0 0.0
      %834 = vmatpush1.msra.mxu0 %v726
      %835 = vmatprep.subr.mxu0 0.0
      %836 = vmatpush1.msra.mxu0 %v727
      %837 = vmatprep.subr.mxu0 0.0
      %838 = vmatpush1.msra.mxu0 %v728
      %839 = vmatprep.subr.mxu0 0.0
      %840 = vmatpush1.msra.mxu0 %v729
      %841 = vmatprep.subr.mxu0 0.0
      %842 = vmatpush1.msra.mxu0 %v730
      %843 = vmatprep.subr.mxu0 0.0
      %844 = vmatpush1.msra.mxu0 %v731
      %845 = vmatprep.subr.mxu0 0.0
      %846 = vmatpush1.msra.mxu0 %v732
      %847 = vmatprep.subr.mxu0 0.0
      %848 = vmatpush1.msra.mxu0 0.0
      %849 = vmatprep.subr.mxu0 0.0
      %850 = vmatpush1.msra.mxu0 0.0
      %851 = vmatprep.subr.mxu0 0.0
      %852 = vmatpush1.msra.mxu0 0.0
      %853 = vmatprep.subr.mxu0 0.0
      %854 = vmatpush1.msra.mxu0 0.0
      %855 = vmatprep.subr.mxu0 0.0
      %856 = vmatpush1.msra.mxu0 0.0
      %857 = vmatprep.subr.mxu0 0.0
      %858 = vmatpush1.msra.mxu0 0.0
      %859 = vmatprep.subr.mxu0 0.0
      %860 = vmatpush1.msra.mxu0 0.0
      %861 = vmatprep.subr.mxu0 0.0
      %862 = vmatpush1.msra.mxu0 0.0
      %863 = vmatprep.subr.mxu0 0.0
      %864 = vmatpush1.msra.mxu0 0.0
      %865 = vmatprep.subr.mxu0 0.0
      %866 = vmatpush1.msra.mxu0 0.0
      %867 = vmatprep.subr.mxu0 0.0
      %868 = vmatpush1.msra.mxu0 0.0
      %869 = vmatprep.subr.mxu0 0.0
      %870 = vmatpush1.msra.mxu0 0.0
      %871 = vmatprep.subr.mxu0 0.0
      %872 = vmatpush1.msra.mxu0 0.0
      %873 = vmatprep.subr.mxu0 0.0
      %874 = vmatpush1.msra.mxu0 0.0
      %875 = vmatprep.subr.mxu0 0.0
      %876 = vmatpush1.msra.mxu0 0.0
      %877 = vmatprep.subr.mxu0 0.0
      %878 = vmatpush1.msra.mxu0 0.0
      %879 = vmatprep.mubr.f32.mxu0 0.0
      %880 = vmatmul.mubr.f32.gmra.mrb[0].mxu0 %v683
      %v881 = vpop.f32.mrb[0].mxu0
      %v882 = vadd.f32 %v807, %v881
      %v883 = vpop.f32.mrb[0].mxu0
      %884 = vmatprep.mubr.f32.mxu0 0.0
      %885 = vmatmul.mubr.f32.gmra.mrb[0].mxu0 %v684
      %v886 = vpop.f32.mrb[0].mxu0
      %v887 = vadd.f32 %v812, %v886
      %v888 = vpop.f32.mrb[0].mxu0
      %889 = vdwg.mxu0
      %v890 = vpack.c.bf16 %v887, %v882
      %v892 = vunpack.c.l.b16 %v890
      %v893 = vunpack.c.h.b16 %v890
      %v894 = vpack.c.b16 %v892, %v892
      %v895 = vpack.c.b16 %v893, %v893
      %898 = vst [vmem:[%s251] sm:$0xf] %v894
      %899 = vst [vmem:[%s251 + $0x4] sm:$0xf] %v895
      %p900 = scmp.lt.s32.totalorder %s17, 1
      %s901 = scalar_select %p900, %s17, 1
      %s902 = smul.addr %s901, 2
      %s903 = smul.addr %s902, 4
      %s904 = scalar_lea.vmem %s6, %s903
      // Predicated region
      $region45: #{_lambda_.14} parent=43 // pred_check
        %p905 = pneg %p166
      $region46: #{_lambda_.14} parent=43 // pred_check_branch
        %907 = sbr.rel (%p905) target = $region48
      $region47: #{_lambda_.14} parent=43 // pred_region
        _
      $region48: #{_lambda_.14} parent=43 // pred_fallthru
        _
    $region44: #{_lambda_.14} parent=5 // pred_fallthru
      _
    %p908 = scmp.le.s32.totalorder 2, %s12
    // Predicated region
    $region49: #{_lambda_.14} parent=5 // pred_check
      %p909 = pneg %p908
    $region50: #{_lambda_.14} parent=5 // pred_check_branch
      %911 = sbr.rel (%p909) target = $region52
    $region51: #{_lambda_.14} parent=5 // pred_region
      %s912 = ssub.s32 %s12, 2
      // Predicated region
      $region53: #{_lambda_.14} parent=51 // pred_check
        %p913 = pneg %p172
      $region54: #{_lambda_.14} parent=51 // pred_check_branch
        %915 = sbr.rel (%p913) target = $region56
      $region55: #{_lambda_.14} parent=51 // pred_region
        %p916 = scmp.lt.s32.totalorder %s18, 1
        %s917 = scalar_select %p916, %s18, 1
        %s918 = smul.addr %s917, 2
        %s919 = smul.addr %s918, 4
        %s920 = scalar_lea.vmem %s6, %s919
      $region56: #{_lambda_.14} parent=51 // pred_fallthru
        _
    $region52: #{_lambda_.14} parent=5 // pred_fallthru
      _
  $region6: #{_lambda_.14} parent=0 // loop_footer
    %s16 = sadd.s32 1, %s12
  $region7: #{_lambda_.14} parent=0 // loop_footer_branch
    %11 = sbr.rel target = $region3
  $region8: #{_lambda_.14} parent=0 // loop_exit
    _

// kernel: _lambda_.16
$region0: #{_lambda_.16}
  #allocation0 [shape = 'u32[]', space=smem, size = 0x4, offset = 0x4, fixed_abs, tag = 'smem constant byte address 0x4 - core index']
  #allocation1 [shape = 'u32[144,128]{1,0:T(1,128)}', space=vmem, size = 0x12000, scoped, tag = 'internal scratch']
  %s0 = inlined_call_operand.vmem [shape: bf16[2,8,256], index: 0, kind: input, shape index: {}]
  %s1 = inlined_call_operand.vmem [shape: f32[256,128], index: 1, kind: input, shape index: {}]
  %s2 = inlined_call_operand.vmem [shape: f32[128,128], index: 2, kind: input, shape index: {}]
  %s3 = inlined_call_operand.vmem [shape: f32[1,128], index: 3, kind: input, shape index: {}]
  %s4 = inlined_call_operand.vmem [shape: bf16[2,8,128], index: 4, kind: output, shape index: {}]
  %s5 = sld [smem:[#allocation0]]
  $region49: #{_lambda_.16} parent=0
    _
  %s7 = ssub.s32 1, %s5
  %s8 = scalar_select 0, %s7, %s5
  loop: start=0, step=1, limit=4
  $region2: #{_lambda_.16} parent=0 // loop_pre_header
    _
  $region3: #{_lambda_.16} parent=0 // loop_header
    %s10 = sphi 0, %s14
    %p11 = scmp.ge.s32.totalorder %s10, 4
    %s20 = sphi 0, %s22
    %s23 = sphi 0, %s20
    %s24 = sphi 0, %s23
    %s40 = sphi 0, %s24
    %s44 = sphi 0, %s44
    %s46 = sphi 0, %s44
    %s47 = sphi 0, %s46
    %s61 = sphi 0, %s47
    %s65 = sphi 0, %s65
    %s67 = sphi 0, %s65
    %s68 = sphi 0, %s67
    %s82 = sphi 0, %s68
    %s86 = sphi 0, %s86
    %s88 = sphi 0, %s86
    %s89 = sphi 0, %s88
    %s103 = sphi 0, %s89
    %s109 = sphi 0, %s111
    %s112 = sphi 0, %s109
    %s113 = sphi 0, %s112
    %s129 = sphi 0, %s113
  $region4: #{_lambda_.16} parent=0 // loop_header_branch
    %13 = sbr.rel (%p11) target = $region8
  $region5: #{_lambda_.16} parent=0 // loop_body
    %s15 = ssub.s32 %s10, 1
    %s16 = ssub.s32 %s10, 2
    %s17 = sadd.s32 %s10, 1
    %s18 = ssub.s32 %s10, %s17
    %p19 = scmp.eq.s32.totalorder %s18, 0
    %s21 = sadd.s32 %s20, 1
    %s22 = scalar_select %p19, %s20, %s21
    %p25 = pneg %p19
    %p26 = scmp.eq.s32.totalorder %s10, 1
    %p27 = por %p25, %p26
    %p28 = scmp.ne.s32.totalorder %s20, %s23
    %p29 = scmp.eq.s32.totalorder %s10, 0
    %p30 = por %p28, %p29
    %p31 = scmp.ne.s32.totalorder %s20, %s23
    %p32 = scmp.eq.s32.totalorder %s15, 1
    %p33 = por %p31, %p32
    %p34 = scmp.ne.s32.totalorder %s23, %s24
    %p35 = scmp.eq.s32.totalorder %s15, 0
    %p36 = por %p34, %p35
    %p37 = scmp.ne.s32.totalorder %s23, %s24
    %p38 = scmp.eq.s32.totalorder %s16, 1
    %p39 = por %p37, %p38
    %p41 = scmp.ne.s32.totalorder %s24, %s40
    %p42 = scmp.eq.s32.totalorder %s16, 0
    %p43 = por %p41, %p42
    %s45 = sadd.s32 %s44, 1
    %p48 = scmp.eq.s32.totalorder %s10, 1
    %p49 = scmp.ne.s32.totalorder %s44, %s46
    %p50 = scmp.eq.s32.totalorder %s10, 0
    %p51 = por %p49, %p50
    %p52 = scmp.ne.s32.totalorder %s44, %s46
    %p53 = scmp.eq.s32.totalorder %s15, 1
    %p54 = por %p52, %p53
    %p55 = scmp.ne.s32.totalorder %s46, %s47
    %p56 = scmp.eq.s32.totalorder %s15, 0
    %p57 = por %p55, %p56
    %p58 = scmp.ne.s32.totalorder %s46, %s47
    %p59 = scmp.eq.s32.totalorder %s16, 1
    %p60 = por %p58, %p59
    %p62 = scmp.ne.s32.totalorder %s47, %s61
    %p63 = scmp.eq.s32.totalorder %s16, 0
    %p64 = por %p62, %p63
    %s66 = sadd.s32 %s65, 1
    %p69 = scmp.eq.s32.totalorder %s10, 1
    %p70 = scmp.ne.s32.totalorder %s65, %s67
    %p71 = scmp.eq.s32.totalorder %s10, 0
    %p72 = por %p70, %p71
    %p73 = scmp.ne.s32.totalorder %s65, %s67
    %p74 = scmp.eq.s32.totalorder %s15, 1
    %p75 = por %p73, %p74
    %p76 = scmp.ne.s32.totalorder %s67, %s68
    %p77 = scmp.eq.s32.totalorder %s15, 0
    %p78 = por %p76, %p77
    %p79 = scmp.ne.s32.totalorder %s67, %s68
    %p80 = scmp.eq.s32.totalorder %s16, 1
    %p81 = por %p79, %p80
    %p83 = scmp.ne.s32.totalorder %s68, %s82
    %p84 = scmp.eq.s32.totalorder %s16, 0
    %p85 = por %p83, %p84
    %s87 = sadd.s32 %s86, 1
    %p90 = scmp.eq.s32.totalorder %s10, 1
    %p91 = scmp.ne.s32.totalorder %s86, %s88
    %p92 = scmp.eq.s32.totalorder %s10, 0
    %p93 = por %p91, %p92
    %p94 = scmp.ne.s32.totalorder %s86, %s88
    %p95 = scmp.eq.s32.totalorder %s15, 1
    %p96 = por %p94, %p95
    %p97 = scmp.ne.s32.totalorder %s88, %s89
    %p98 = scmp.eq.s32.totalorder %s15, 0
    %p99 = por %p97, %p98
    %p100 = scmp.ne.s32.totalorder %s88, %s89
    %p101 = scmp.eq.s32.totalorder %s16, 1
    %p102 = por %p100, %p101
    %p104 = scmp.ne.s32.totalorder %s89, %s103
    %p105 = scmp.eq.s32.totalorder %s16, 0
    %p106 = por %p104, %p105
    %s107 = ssub.s32 %s10, %s17
    %p108 = scmp.eq.s32.totalorder %s107, 0
    %s110 = sadd.s32 %s109, 1
    %s111 = scalar_select %p108, %s109, %s110
    %p114 = pneg %p108
    %p115 = scmp.eq.s32.totalorder %s10, 1
    %p116 = por %p114, %p115
    %p117 = scmp.ne.s32.totalorder %s109, %s112
    %p118 = scmp.eq.s32.totalorder %s10, 0
    %p119 = por %p117, %p118
    %p120 = scmp.ne.s32.totalorder %s109, %s112
    %p121 = scmp.eq.s32.totalorder %s15, 1
    %p122 = por %p120, %p121
    %p123 = scmp.ne.s32.totalorder %s112, %s113
    %p124 = scmp.eq.s32.totalorder %s15, 0
    %p125 = por %p123, %p124
    %p126 = scmp.ne.s32.totalorder %s112, %s113
    %p127 = scmp.eq.s32.totalorder %s16, 1
    %p128 = por %p126, %p127
    %p130 = scmp.ne.s32.totalorder %s113, %s129
    %p131 = scmp.eq.s32.totalorder %s16, 0
    %p132 = por %p130, %p131
    %p133 = scmp.le.s32.totalorder 1, %s10
    %p134 = scmp.lt.s32.totalorder %s10, 3
    %p135 = pnand %p133, %p134
    %p136 = pneg %p135
    // Predicated region
    $region9: #{_lambda_.16} parent=5 // pred_check
      _
    $region10: #{_lambda_.16} parent=5 // pred_check_branch
      %138 = sbr.rel (%p135) target = $region12
    $region11: #{_lambda_.16} parent=5 // pred_region
      %s139 = ssub.s32 %s10, 1
      // Predicated region
      $region13: #{_lambda_.16} parent=11 // pred_check
        %p140 = pneg %p57
      $region14: #{_lambda_.16} parent=11 // pred_check_branch
        %142 = sbr.rel (%p140) target = $region16
      $region15: #{_lambda_.16} parent=11 // pred_region
        _
      $region16: #{_lambda_.16} parent=11 // pred_fallthru
        _
      // Predicated region
      $region17: #{_lambda_.16} parent=11 // pred_check
        %p143 = pneg %p78
      $region18: #{_lambda_.16} parent=11 // pred_check_branch
        %145 = sbr.rel (%p143) target = $region20
      $region19: #{_lambda_.16} parent=11 // pred_region
        _
      $region20: #{_lambda_.16} parent=11 // pred_fallthru
        _
      // Predicated region
      $region21: #{_lambda_.16} parent=11 // pred_check
        %p146 = pneg %p99
      $region22: #{_lambda_.16} parent=11 // pred_check_branch
        %148 = sbr.rel (%p146) target = $region24
      $region23: #{_lambda_.16} parent=11 // pred_region
        _
      $region24: #{_lambda_.16} parent=11 // pred_fallthru
        _
    $region12: #{_lambda_.16} parent=5 // pred_fallthru
      _
    %p149 = scmp.lt.s32.totalorder %s10, 2
    // Predicated region
    $region25: #{_lambda_.16} parent=5 // pred_check
      %p150 = pneg %p149
    $region26: #{_lambda_.16} parent=5 // pred_check_branch
      %152 = sbr.rel (%p150) target = $region28
    $region27: #{_lambda_.16} parent=5 // pred_region
      // Predicated region
      $region29: #{_lambda_.16} parent=27 // pred_check
        %p153 = pneg %p30
      $region30: #{_lambda_.16} parent=27 // pred_check_branch
        %155 = sbr.rel (%p153) target = $region32
      $region31: #{_lambda_.16} parent=27 // pred_region
        %p156 = scmp.lt.s32.totalorder %s10, 1
        %s157 = scalar_select %p156, %s10, 1
        %s158 = smul.addr %s157, 2
        %s159 = smul.addr %s158, 4
        %s160 = scalar_lea.vmem %s0, %s159
      $region32: #{_lambda_.16} parent=27 // pred_fallthru
        _
    $region28: #{_lambda_.16} parent=5 // pred_fallthru
      _
    %p161 = scmp.le.s32.totalorder 1, %s10
    %p162 = scmp.lt.s32.totalorder %s10, 3
    %p163 = pnand %p161, %p162
    %p164 = pneg %p163
    // Predicated region
    $region33: #{_lambda_.16} parent=5 // pred_check
      _
    $region34: #{_lambda_.16} parent=5 // pred_check_branch
      %166 = sbr.rel (%p163) target = $region36
    $region35: #{_lambda_.16} parent=5 // pred_region
      %s167 = ssub.s32 %s10, 1
      %p168 = scmp.lt.s32.totalorder %s15, 1
      %s169 = scalar_select %p168, %s15, 1
      %s170 = smul.addr %s169, 2
      %s171 = smul.addr %s170, 4
      %s172 = scalar_lea.vmem %s0, %s171
      %p173 = pneg %p36
      %p174 = pneg %p33
      %p175 = pneg %p57
      %p176 = pneg %p54
      %p177 = pneg %p78
      %p178 = pneg %p75
      %p179 = pneg %p99
      %p180 = pneg %p96
      %p181 = pneg %p125
      %p182 = pneg %p122
      %p183 = scmp.lt.s32.totalorder %s15, 1
      %s184 = scalar_select %p183, %s15, 1
      %s185 = smul.addr %s184, 4
      %s186 = scalar_lea.vmem %s4, %s185
      %p187 = scmp.lt.s32.totalorder %s15, 1
      %s188 = scalar_select %p187, %s15, 1
      %s189 = smul.addr %s188, 2
      %s190 = smul.addr %s189, 4
      %s191 = scalar_lea.vmem %s0, %s190
      %p192 = scmp.lt.s32.totalorder %s15, 1
      %s193 = scalar_select %p192, %s15, 1
      %s194 = smul.addr %s193, 4
      %s195 = scalar_lea.vmem %s4, %s194
      %v196 = vld [vmem:[%s191] sm:$0xff]
      %v197 = vunpack.c.l.bf16 %v196
      %v198 = vunpack.c.h.bf16 %v196
      %v199 = vrot.slane %v198, 7
      %v200 = vlaneseq
      %v201 = vshrl.u32 %v200, 7
      %vm202 = vcmp.eq.s32.totalorder %v201, 0
      %v203 = vsel %vm202, 0.0, %v199
      %v204 = vld [vmem:[%s1] sm:$0xff]
      %v205 = vld [vmem:[%s1 + $0x8] sm:$0xff]
      %v206 = vld [vmem:[%s1 + $0x10] sm:$0xff]
      %v207 = vld [vmem:[%s1 + $0x18] sm:$0xff]
      %v208 = vld [vmem:[%s1 + $0x20] sm:$0xff]
      %v209 = vld [vmem:[%s1 + $0x28] sm:$0xff]
      %v210 = vld [vmem:[%s1 + $0x30] sm:$0xff]
      %v211 = vld [vmem:[%s1 + $0x38] sm:$0xff]
      %v212 = vld [vmem:[%s1 + $0x40] sm:$0xff]
      %v213 = vld [vmem:[%s1 + $0x48] sm:$0xff]
      %v214 = vld [vmem:[%s1 + $0x50] sm:$0xff]
      %v215 = vld [vmem:[%s1 + $0x58] sm:$0xff]
      %v216 = vld [vmem:[%s1 + $0x60] sm:$0xff]
      %v217 = vld [vmem:[%s1 + $0x68] sm:$0xff]
      %v218 = vld [vmem:[%s1 + $0x70] sm:$0xff]
      %v219 = vld [vmem:[%s1 + $0x78] sm:$0xff]
      %v220 = vld [vmem:[%s1 + $0x80] sm:$0xff]
      %v221 = vld [vmem:[%s1 + $0x88] sm:$0xff]
      %v222 = vld [vmem:[%s1 + $0x90] sm:$0xff]
      %v223 = vld [vmem:[%s1 + $0x98] sm:$0xff]
      %v224 = vld [vmem:[%s1 + $0xa0] sm:$0xff]
      %v225 = vld [vmem:[%s1 + $0xa8] sm:$0xff]
      %v226 = vld [vmem:[%s1 + $0xb0] sm:$0xff]
      %v227 = vld [vmem:[%s1 + $0xb8] sm:$0xff]
      %v228 = vld [vmem:[%s1 + $0xc0] sm:$0xff]
      %v229 = vld [vmem:[%s1 + $0xc8] sm:$0xff]
      %v230 = vld [vmem:[%s1 + $0xd0] sm:$0xff]
      %v231 = vld [vmem:[%s1 + $0xd8] sm:$0xff]
      %v232 = vld [vmem:[%s1 + $0xe0] sm:$0xff]
      %v233 = vld [vmem:[%s1 + $0xe8] sm:$0xff]
      %v234 = vld [vmem:[%s1 + $0xf0] sm:$0xff]
      %v235 = vld [vmem:[%s1 + $0xf8] sm:$0xff]
      %v236 = vld [vmem:[%s2] sm:$0xff]
      %v237 = vld [vmem:[%s2 + $0x8] sm:$0xff]
      %v238 = vld [vmem:[%s2 + $0x10] sm:$0xff]
      %v239 = vld [vmem:[%s2 + $0x18] sm:$0xff]
      %v240 = vld [vmem:[%s2 + $0x20] sm:$0xff]
      %v241 = vld [vmem:[%s2 + $0x28] sm:$0xff]
      %v242 = vld [vmem:[%s2 + $0x30] sm:$0xff]
      %v243 = vld [vmem:[%s2 + $0x38] sm:$0xff]
      %v244 = vld [vmem:[%s2 + $0x40] sm:$0xff]
      %v245 = vld [vmem:[%s2 + $0x48] sm:$0xff]
      %v246 = vld [vmem:[%s2 + $0x50] sm:$0xff]
      %v247 = vld [vmem:[%s2 + $0x58] sm:$0xff]
      %v248 = vld [vmem:[%s2 + $0x60] sm:$0xff]
      %v249 = vld [vmem:[%s2 + $0x68] sm:$0xff]
      %v250 = vld [vmem:[%s2 + $0x70] sm:$0xff]
      %v251 = vld [vmem:[%s2 + $0x78] sm:$0xff]
      %252 = vmatprep.subr.mxu0 0.0
      %253 = vmatpush1.msra.mxu0 %v236
      %254 = vmatprep.subr.mxu0 0.0
      %255 = vmatpush1.msra.mxu0 %v237
      %256 = vmatprep.subr.mxu0 0.0
      %257 = vmatpush1.msra.mxu0 %v238
      %258 = vmatprep.subr.mxu0 0.0
      %259 = vmatpush1.msra.mxu0 %v239
      %260 = vmatprep.subr.mxu0 0.0
      %261 = vmatpush1.msra.mxu0 %v240
      %262 = vmatprep.subr.mxu0 0.0
      %263 = vmatpush1.msra.mxu0 %v241
      %264 = vmatprep.subr.mxu0 0.0
      %265 = vmatpush1.msra.mxu0 %v242
      %266 = vmatprep.subr.mxu0 0.0
      %267 = vmatpush1.msra.mxu0 %v243
      %268 = vmatprep.subr.mxu0 0.0
      %269 = vmatpush1.msra.mxu0 %v244
      %270 = vmatprep.subr.mxu0 0.0
      %271 = vmatpush1.msra.mxu0 %v245
      %272 = vmatprep.subr.mxu0 0.0
      %273 = vmatpush1.msra.mxu0 %v246
      %274 = vmatprep.subr.mxu0 0.0
      %275 = vmatpush1.msra.mxu0 %v247
      %276 = vmatprep.subr.mxu0 0.0
      %277 = vmatpush1.msra.mxu0 %v248
      %278 = vmatprep.subr.mxu0 0.0
      %279 = vmatpush1.msra.mxu0 %v249
      %280 = vmatprep.subr.mxu0 0.0
      %281 = vmatpush1.msra.mxu0 %v250
      %282 = vmatprep.subr.mxu0 0.0
      %283 = vmatpush1.msra.mxu0 %v251
      %284 = vmatprep.subr.mxu0 0.0
      %285 = vmatpush1.msra.mxu0 0.0
      %286 = vmatprep.subr.mxu0 0.0
      %287 = vmatpush1.msra.mxu0 0.0
      %288 = vmatprep.subr.mxu0 0.0
      %289 = vmatpush1.msra.mxu0 0.0
      %290 = vmatprep.subr.mxu0 0.0
      %291 = vmatpush1.msra.mxu0 0.0
      %292 = vmatprep.subr.mxu0 0.0
      %293 = vmatpush1.msra.mxu0 0.0
      %294 = vmatprep.subr.mxu0 0.0
      %295 = vmatpush1.msra.mxu0 0.0
      %296 = vmatprep.subr.mxu0 0.0
      %297 = vmatpush1.msra.mxu0 0.0
      %298 = vmatprep.subr.mxu0 0.0
      %299 = vmatpush1.msra.mxu0 0.0
      %300 = vmatprep.subr.mxu0 0.0
      %301 = vmatpush1.msra.mxu0 0.0
      %302 = vmatprep.subr.mxu0 0.0
      %303 = vmatpush1.msra.mxu0 0.0
      %304 = vmatprep.subr.mxu0 0.0
      %305 = vmatpush1.msra.mxu0 0.0
      %306 = vmatprep.subr.mxu0 0.0
      %307 = vmatpush1.msra.mxu0 0.0
      %308 = vmatprep.subr.mxu0 0.0
      %309 = vmatpush1.msra.mxu0 0.0
      %310 = vmatprep.subr.mxu0 0.0
      %311 = vmatpush1.msra.mxu0 0.0
      %312 = vmatprep.subr.mxu0 0.0
      %313 = vmatpush1.msra.mxu0 0.0
      %314 = vmatprep.subr.mxu0 0.0
      %315 = vmatpush1.msra.mxu0 0.0
      %316 = vmatprep.mubr.f32.mxu0 0.0
      %317 = vmatmul.mubr.f32.gmra.mrb[0].mxu0 %v203
      %v318 = vpop.f32.mrb[0].mxu0
      %v319 = vadd.f32 0.0, %v318
      %v320 = vpop.f32.mrb[0].mxu0
      %321 = vdwg.mxu0
      %322 = vmatprep.subr.mxu0 0.0
      %323 = vmatpush1.msra.mxu0 %v204
      %324 = vmatprep.subr.mxu0 0.0
      %325 = vmatpush1.msra.mxu0 %v205
      %326 = vmatprep.subr.mxu0 0.0
      %327 = vmatpush1.msra.mxu0 %v206
      %328 = vmatprep.subr.mxu0 0.0
      %329 = vmatpush1.msra.mxu0 %v207
      %330 = vmatprep.subr.mxu0 0.0
      %331 = vmatpush1.msra.mxu0 %v208
      %332 = vmatprep.subr.mxu0 0.0
      %333 = vmatpush1.msra.mxu0 %v209
      %334 = vmatprep.subr.mxu0 0.0
      %335 = vmatpush1.msra.mxu0 %v210
      %336 = vmatprep.subr.mxu0 0.0
      %337 = vmatpush1.msra.mxu0 %v211
      %338 = vmatprep.subr.mxu0 0.0
      %339 = vmatpush1.msra.mxu0 %v212
      %340 = vmatprep.subr.mxu0 0.0
      %341 = vmatpush1.msra.mxu0 %v213
      %342 = vmatprep.subr.mxu0 0.0
      %343 = vmatpush1.msra.mxu0 %v214
      %344 = vmatprep.subr.mxu0 0.0
      %345 = vmatpush1.msra.mxu0 %v215
      %346 = vmatprep.subr.mxu0 0.0
      %347 = vmatpush1.msra.mxu0 %v216
      %348 = vmatprep.subr.mxu0 0.0
      %349 = vmatpush1.msra.mxu0 %v217
      %350 = vmatprep.subr.mxu0 0.0
      %351 = vmatpush1.msra.mxu0 %v218
      %352 = vmatprep.subr.mxu0 0.0
      %353 = vmatpush1.msra.mxu0 %v219
      %354 = vmatprep.subr.mxu0 0.0
      %355 = vmatpush1.msra.mxu0 %v220
      %356 = vmatprep.subr.mxu0 0.0
      %357 = vmatpush1.msra.mxu0 %v221
      %358 = vmatprep.subr.mxu0 0.0
      %359 = vmatpush1.msra.mxu0 %v222
      %360 = vmatprep.subr.mxu0 0.0
      %361 = vmatpush1.msra.mxu0 %v223
      %362 = vmatprep.subr.mxu0 0.0
      %363 = vmatpush1.msra.mxu0 %v224
      %364 = vmatprep.subr.mxu0 0.0
      %365 = vmatpush1.msra.mxu0 %v225
      %366 = vmatprep.subr.mxu0 0.0
      %367 = vmatpush1.msra.mxu0 %v226
      %368 = vmatprep.subr.mxu0 0.0
      %369 = vmatpush1.msra.mxu0 %v227
      %370 = vmatprep.subr.mxu0 0.0
      %371 = vmatpush1.msra.mxu0 %v228
      %372 = vmatprep.subr.mxu0 0.0
      %373 = vmatpush1.msra.mxu0 %v229
      %374 = vmatprep.subr.mxu0 0.0
      %375 = vmatpush1.msra.mxu0 %v230
      %376 = vmatprep.subr.mxu0 0.0
      %377 = vmatpush1.msra.mxu0 %v231
      %378 = vmatprep.subr.mxu0 0.0
      %379 = vmatpush1.msra.mxu0 %v232
      %380 = vmatprep.subr.mxu0 0.0
      %381 = vmatpush1.msra.mxu0 %v233
      %382 = vmatprep.subr.mxu0 0.0
      %383 = vmatpush1.msra.mxu0 %v234
      %384 = vmatprep.subr.mxu0 0.0
      %385 = vmatpush1.msra.mxu0 %v235
      %386 = vmatprep.mubr.f32.mxu0 %v198
      %387 = vmatmul.mubr.f32.gmra.mrb[0].mxu0 %v197
      %v388 = vpop.f32.mrb[0].mxu0
      %v389 = vadd.f32 %v319, %v388
      %v390 = vpop.f32.mrb[0].mxu0
      %391 = vdwg.mxu0
      %v392 = vld [vmem:[%s3] sm:$0x1]
      %v394 = vlaneseq
      %v395 = vshrl.u32 %v394, 7
      %v396 = vsub.s32 0, %v395
      %v397 = vrot.slane %v392, %v396
      %v399 = vadd.f32 %v389, %v397
      %v400 = vpack.c.bf16 %v399, %v399
      %401 = vst [vmem:[%s195] sm:$0xf] %v400
      %p402 = scmp.lt.s32.totalorder %s15, 1
      %s403 = scalar_select %p402, %s15, 1
      %s404 = smul.addr %s403, 4
      %s405 = scalar_lea.vmem %s4, %s404
      // Predicated region
      $region37: #{_lambda_.16} parent=35 // pred_check
        %p406 = pneg %p122
      $region38: #{_lambda_.16} parent=35 // pred_check_branch
        %408 = sbr.rel (%p406) target = $region40
      $region39: #{_lambda_.16} parent=35 // pred_region
        _
      $region40: #{_lambda_.16} parent=35 // pred_fallthru
        _
    $region36: #{_lambda_.16} parent=5 // pred_fallthru
      _
    %p409 = scmp.le.s32.totalorder 2, %s10
    // Predicated region
    $region41: #{_lambda_.16} parent=5 // pred_check
      %p410 = pneg %p409
    $region42: #{_lambda_.16} parent=5 // pred_check_branch
      %412 = sbr.rel (%p410) target = $region44
    $region43: #{_lambda_.16} parent=5 // pred_region
      %s413 = ssub.s32 %s10, 2
      // Predicated region
      $region45: #{_lambda_.16} parent=43 // pred_check
        %p414 = pneg %p128
      $region46: #{_lambda_.16} parent=43 // pred_check_branch
        %416 = sbr.rel (%p414) target = $region48
      $region47: #{_lambda_.16} parent=43 // pred_region
        %p417 = scmp.lt.s32.totalorder %s16, 1
        %s418 = scalar_select %p417, %s16, 1
        %s419 = smul.addr %s418, 4
        %s420 = scalar_lea.vmem %s4, %s419
      $region48: #{_lambda_.16} parent=43 // pred_fallthru
        _
    $region44: #{_lambda_.16} parent=5 // pred_fallthru
      _
  $region6: #{_lambda_.16} parent=0 // loop_footer
    %s14 = sadd.s32 1, %s10
  $region7: #{_lambda_.16} parent=0 // loop_footer_branch
    %9 = sbr.rel target = $region3
  $region8: #{_lambda_.16} parent=0 // loop_exit
    _

// kernel: _lambda_.15
$region0: #{_lambda_.15}
  #allocation0 [shape = 'u32[]', space=smem, size = 0x4, offset = 0x4, fixed_abs, tag = 'smem constant byte address 0x4 - core index']
  #allocation1 [shape = 'u32[144,128]{1,0:T(1,128)}', space=vmem, size = 0x12000, scoped, tag = 'internal scratch']
  %s0 = inlined_call_operand.vmem [shape: bf16[2,16,128], index: 0, kind: input, shape index: {}]
  %s1 = inlined_call_operand.vmem [shape: f32[1,128], index: 1, kind: input, shape index: {}]
  %s2 = inlined_call_operand.vmem [shape: f32[1,128], index: 2, kind: input, shape index: {}]
  %s3 = inlined_call_operand.vmem [shape: f32[128,32], index: 3, kind: input, shape index: {}]
  %s4 = inlined_call_operand.vmem [shape: f32[384,128], index: 4, kind: input, shape index: {}]
  %s5 = inlined_call_operand.vmem [shape: f32[1,128], index: 5, kind: input, shape index: {}]
  %s6 = inlined_call_operand.vmem [shape: bf16[2,16,128], index: 6, kind: input, shape index: {}]
  %s7 = inlined_call_operand.vmem [shape: bf16[2,16,128], index: 7, kind: output, shape index: {}]
  %s8 = sld [smem:[#allocation0]]
  $region61: #{_lambda_.15} parent=0
    _
  %s10 = ssub.s32 1, %s8
  %s11 = scalar_select 0, %s10, %s8
  loop: start=0, step=1, limit=4
  $region2: #{_lambda_.15} parent=0 // loop_pre_header
    _
  $region3: #{_lambda_.15} parent=0 // loop_header
    %s13 = sphi 0, %s17
    %p14 = scmp.ge.s32.totalorder %s13, 4
    %s23 = sphi 0, %s25
    %s26 = sphi 0, %s23
    %s27 = sphi 0, %s26
    %s43 = sphi 0, %s27
    %s47 = sphi 0, %s47
    %s49 = sphi 0, %s47
    %s50 = sphi 0, %s49
    %s64 = sphi 0, %s50
    %s68 = sphi 0, %s68
    %s70 = sphi 0, %s68
    %s71 = sphi 0, %s70
    %s85 = sphi 0, %s71
    %s89 = sphi 0, %s89
    %s91 = sphi 0, %s89
    %s92 = sphi 0, %s91
    %s106 = sphi 0, %s92
    %s110 = sphi 0, %s110
    %s112 = sphi 0, %s110
    %s113 = sphi 0, %s112
    %s127 = sphi 0, %s113
    %s131 = sphi 0, %s131
    %s133 = sphi 0, %s131
    %s134 = sphi 0, %s133
    %s148 = sphi 0, %s134
    %s154 = sphi 0, %s156
    %s157 = sphi 0, %s154
    %s158 = sphi 0, %s157
    %s174 = sphi 0, %s158
    %s180 = sphi 0, %s182
    %s183 = sphi 0, %s180
    %s184 = sphi 0, %s183
    %s200 = sphi 0, %s184
  $region4: #{_lambda_.15} parent=0 // loop_header_branch
    %16 = sbr.rel (%p14) target = $region8
  $region5: #{_lambda_.15} parent=0 // loop_body
    %s18 = ssub.s32 %s13, 1
    %s19 = ssub.s32 %s13, 2
    %s20 = sadd.s32 %s13, 1
    %s21 = ssub.s32 %s13, %s20
    %p22 = scmp.eq.s32.totalorder %s21, 0
    %s24 = sadd.s32 %s23, 1
    %s25 = scalar_select %p22, %s23, %s24
    %p28 = pneg %p22
    %p29 = scmp.eq.s32.totalorder %s13, 1
    %p30 = por %p28, %p29
    %p31 = scmp.ne.s32.totalorder %s23, %s26
    %p32 = scmp.eq.s32.totalorder %s13, 0
    %p33 = por %p31, %p32
    %p34 = scmp.ne.s32.totalorder %s23, %s26
    %p35 = scmp.eq.s32.totalorder %s18, 1
    %p36 = por %p34, %p35
    %p37 = scmp.ne.s32.totalorder %s26, %s27
    %p38 = scmp.eq.s32.totalorder %s18, 0
    %p39 = por %p37, %p38
    %p40 = scmp.ne.s32.totalorder %s26, %s27
    %p41 = scmp.eq.s32.totalorder %s19, 1
    %p42 = por %p40, %p41
    %p44 = scmp.ne.s32.totalorder %s27, %s43
    %p45 = scmp.eq.s32.totalorder %s19, 0
    %p46 = por %p44, %p45
    %s48 = sadd.s32 %s47, 1
    %p51 = scmp.eq.s32.totalorder %s13, 1
    %p52 = scmp.ne.s32.totalorder %s47, %s49
    %p53 = scmp.eq.s32.totalorder %s13, 0
    %p54 = por %p52, %p53
    %p55 = scmp.ne.s32.totalorder %s47, %s49
    %p56 = scmp.eq.s32.totalorder %s18, 1
    %p57 = por %p55, %p56
    %p58 = scmp.ne.s32.totalorder %s49, %s50
    %p59 = scmp.eq.s32.totalorder %s18, 0
    %p60 = por %p58, %p59
    %p61 = scmp.ne.s32.totalorder %s49, %s50
    %p62 = scmp.eq.s32.totalorder %s19, 1
    %p63 = por %p61, %p62
    %p65 = scmp.ne.s32.totalorder %s50, %s64
    %p66 = scmp.eq.s32.totalorder %s19, 0
    %p67 = por %p65, %p66
    %s69 = sadd.s32 %s68, 1
    %p72 = scmp.eq.s32.totalorder %s13, 1
    %p73 = scmp.ne.s32.totalorder %s68, %s70
    %p74 = scmp.eq.s32.totalorder %s13, 0
    %p75 = por %p73, %p74
    %p76 = scmp.ne.s32.totalorder %s68, %s70
    %p77 = scmp.eq.s32.totalorder %s18, 1
    %p78 = por %p76, %p77
    %p79 = scmp.ne.s32.totalorder %s70, %s71
    %p80 = scmp.eq.s32.totalorder %s18, 0
    %p81 = por %p79, %p80
    %p82 = scmp.ne.s32.totalorder %s70, %s71
    %p83 = scmp.eq.s32.totalorder %s19, 1
    %p84 = por %p82, %p83
    %p86 = scmp.ne.s32.totalorder %s71, %s85
    %p87 = scmp.eq.s32.totalorder %s19, 0
    %p88 = por %p86, %p87
    %s90 = sadd.s32 %s89, 1
    %p93 = scmp.eq.s32.totalorder %s13, 1
    %p94 = scmp.ne.s32.totalorder %s89, %s91
    %p95 = scmp.eq.s32.totalorder %s13, 0
    %p96 = por %p94, %p95
    %p97 = scmp.ne.s32.totalorder %s89, %s91
    %p98 = scmp.eq.s32.totalorder %s18, 1
    %p99 = por %p97, %p98
    %p100 = scmp.ne.s32.totalorder %s91, %s92
    %p101 = scmp.eq.s32.totalorder %s18, 0
    %p102 = por %p100, %p101
    %p103 = scmp.ne.s32.totalorder %s91, %s92
    %p104 = scmp.eq.s32.totalorder %s19, 1
    %p105 = por %p103, %p104
    %p107 = scmp.ne.s32.totalorder %s92, %s106
    %p108 = scmp.eq.s32.totalorder %s19, 0
    %p109 = por %p107, %p108
    %s111 = sadd.s32 %s110, 1
    %p114 = scmp.eq.s32.totalorder %s13, 1
    %p115 = scmp.ne.s32.totalorder %s110, %s112
    %p116 = scmp.eq.s32.totalorder %s13, 0
    %p117 = por %p115, %p116
    %p118 = scmp.ne.s32.totalorder %s110, %s112
    %p119 = scmp.eq.s32.totalorder %s18, 1
    %p120 = por %p118, %p119
    %p121 = scmp.ne.s32.totalorder %s112, %s113
    %p122 = scmp.eq.s32.totalorder %s18, 0
    %p123 = por %p121, %p122
    %p124 = scmp.ne.s32.totalorder %s112, %s113
    %p125 = scmp.eq.s32.totalorder %s19, 1
    %p126 = por %p124, %p125
    %p128 = scmp.ne.s32.totalorder %s113, %s127
    %p129 = scmp.eq.s32.totalorder %s19, 0
    %p130 = por %p128, %p129
    %s132 = sadd.s32 %s131, 1
    %p135 = scmp.eq.s32.totalorder %s13, 1
    %p136 = scmp.ne.s32.totalorder %s131, %s133
    %p137 = scmp.eq.s32.totalorder %s13, 0
    %p138 = por %p136, %p137
    %p139 = scmp.ne.s32.totalorder %s131, %s133
    %p140 = scmp.eq.s32.totalorder %s18, 1
    %p141 = por %p139, %p140
    %p142 = scmp.ne.s32.totalorder %s133, %s134
    %p143 = scmp.eq.s32.totalorder %s18, 0
    %p144 = por %p142, %p143
    %p145 = scmp.ne.s32.totalorder %s133, %s134
    %p146 = scmp.eq.s32.totalorder %s19, 1
    %p147 = por %p145, %p146
    %p149 = scmp.ne.s32.totalorder %s134, %s148
    %p150 = scmp.eq.s32.totalorder %s19, 0
    %p151 = por %p149, %p150
    %s152 = ssub.s32 %s13, %s20
    %p153 = scmp.eq.s32.totalorder %s152, 0
    %s155 = sadd.s32 %s154, 1
    %s156 = scalar_select %p153, %s154, %s155
    %p159 = pneg %p153
    %p160 = scmp.eq.s32.totalorder %s13, 1
    %p161 = por %p159, %p160
    %p162 = scmp.ne.s32.totalorder %s154, %s157
    %p163 = scmp.eq.s32.totalorder %s13, 0
    %p164 = por %p162, %p163
    %p165 = scmp.ne.s32.totalorder %s154, %s157
    %p166 = scmp.eq.s32.totalorder %s18, 1
    %p167 = por %p165, %p166
    %p168 = scmp.ne.s32.totalorder %s157, %s158
    %p169 = scmp.eq.s32.totalorder %s18, 0
    %p170 = por %p168, %p169
    %p171 = scmp.ne.s32.totalorder %s157, %s158
    %p172 = scmp.eq.s32.totalorder %s19, 1
    %p173 = por %p171, %p172
    %p175 = scmp.ne.s32.totalorder %s158, %s174
    %p176 = scmp.eq.s32.totalorder %s19, 0
    %p177 = por %p175, %p176
    %s178 = ssub.s32 %s13, %s20
    %p179 = scmp.eq.s32.totalorder %s178, 0
    %s181 = sadd.s32 %s180, 1
    %s182 = scalar_select %p179, %s180, %s181
    %p185 = pneg %p179
    %p186 = scmp.eq.s32.totalorder %s13, 1
    %p187 = por %p185, %p186
    %p188 = scmp.ne.s32.totalorder %s180, %s183
    %p189 = scmp.eq.s32.totalorder %s13, 0
    %p190 = por %p188, %p189
    %p191 = scmp.ne.s32.totalorder %s180, %s183
    %p192 = scmp.eq.s32.totalorder %s18, 1
    %p193 = por %p191, %p192
    %p194 = scmp.ne.s32.totalorder %s183, %s184
    %p195 = scmp.eq.s32.totalorder %s18, 0
    %p196 = por %p194, %p195
    %p197 = scmp.ne.s32.totalorder %s183, %s184
    %p198 = scmp.eq.s32.totalorder %s19, 1
    %p199 = por %p197, %p198
    %p201 = scmp.ne.s32.totalorder %s184, %s200
    %p202 = scmp.eq.s32.totalorder %s19, 0
    %p203 = por %p201, %p202
    %p204 = scmp.le.s32.totalorder 1, %s13
    %p205 = scmp.lt.s32.totalorder %s13, 3
    %p206 = pnand %p204, %p205
    %p207 = pneg %p206
    // Predicated region
    $region9: #{_lambda_.15} parent=5 // pred_check
      _
    $region10: #{_lambda_.15} parent=5 // pred_check_branch
      %209 = sbr.rel (%p206) target = $region12
    $region11: #{_lambda_.15} parent=5 // pred_region
      %s210 = ssub.s32 %s13, 1
      // Predicated region
      $region13: #{_lambda_.15} parent=11 // pred_check
        %p211 = pneg %p60
      $region14: #{_lambda_.15} parent=11 // pred_check_branch
        %213 = sbr.rel (%p211) target = $region16
      $region15: #{_lambda_.15} parent=11 // pred_region
        _
      $region16: #{_lambda_.15} parent=11 // pred_fallthru
        _
      // Predicated region
      $region17: #{_lambda_.15} parent=11 // pred_check
        %p214 = pneg %p81
      $region18: #{_lambda_.15} parent=11 // pred_check_branch
        %216 = sbr.rel (%p214) target = $region20
      $region19: #{_lambda_.15} parent=11 // pred_region
        _
      $region20: #{_lambda_.15} parent=11 // pred_fallthru
        _
      // Predicated region
      $region21: #{_lambda_.15} parent=11 // pred_check
        %p217 = pneg %p102
      $region22: #{_lambda_.15} parent=11 // pred_check_branch
        %219 = sbr.rel (%p217) target = $region24
      $region23: #{_lambda_.15} parent=11 // pred_region
        _
      $region24: #{_lambda_.15} parent=11 // pred_fallthru
        _
      // Predicated region
      $region25: #{_lambda_.15} parent=11 // pred_check
        %p220 = pneg %p123
      $region26: #{_lambda_.15} parent=11 // pred_check_branch
        %222 = sbr.rel (%p220) target = $region28
      $region27: #{_lambda_.15} parent=11 // pred_region
        _
      $region28: #{_lambda_.15} parent=11 // pred_fallthru
        _
      // Predicated region
      $region29: #{_lambda_.15} parent=11 // pred_check
        %p223 = pneg %p144
      $region30: #{_lambda_.15} parent=11 // pred_check_branch
        %225 = sbr.rel (%p223) target = $region32
      $region31: #{_lambda_.15} parent=11 // pred_region
        _
      $region32: #{_lambda_.15} parent=11 // pred_fallthru
        _
    $region12: #{_lambda_.15} parent=5 // pred_fallthru
      _
    %p226 = scmp.lt.s32.totalorder %s13, 2
    // Predicated region
    $region33: #{_lambda_.15} parent=5 // pred_check
      %p227 = pneg %p226
    $region34: #{_lambda_.15} parent=5 // pred_check_branch
      %229 = sbr.rel (%p227) target = $region36
    $region35: #{_lambda_.15} parent=5 // pred_region
      // Predicated region
      $region37: #{_lambda_.15} parent=35 // pred_check
        %p230 = pneg %p33
      $region38: #{_lambda_.15} parent=35 // pred_check_branch
        %232 = sbr.rel (%p230) target = $region40
      $region39: #{_lambda_.15} parent=35 // pred_region
        %p233 = scmp.lt.s32.totalorder %s13, 1
        %s234 = scalar_select %p233, %s13, 1
        %s235 = smul.addr %s234, 2
        %s236 = smul.addr %s235, 4
        %s237 = scalar_lea.vmem %s0, %s236
      $region40: #{_lambda_.15} parent=35 // pred_fallthru
        _
      // Predicated region
      $region41: #{_lambda_.15} parent=35 // pred_check
        %p238 = pneg %p164
      $region42: #{_lambda_.15} parent=35 // pred_check_branch
        %240 = sbr.rel (%p238) target = $region44
      $region43: #{_lambda_.15} parent=35 // pred_region
        %p241 = scmp.lt.s32.totalorder %s13, 1
        %s242 = scalar_select %p241, %s13, 1
        %s243 = smul.addr %s242, 2
        %s244 = smul.addr %s243, 4
        %s245 = scalar_lea.vmem %s6, %s244
      $region44: #{_lambda_.15} parent=35 // pred_fallthru
        _
    $region36: #{_lambda_.15} parent=5 // pred_fallthru
      _
    %p246 = scmp.le.s32.totalorder 1, %s13
    %p247 = scmp.lt.s32.totalorder %s13, 3
    %p248 = pnand %p246, %p247
    %p249 = pneg %p248
    // Predicated region
    $region45: #{_lambda_.15} parent=5 // pred_check
      _
    $region46: #{_lambda_.15} parent=5 // pred_check_branch
      %251 = sbr.rel (%p248) target = $region48
    $region47: #{_lambda_.15} parent=5 // pred_region
      %s252 = ssub.s32 %s13, 1
      %p253 = scmp.lt.s32.totalorder %s18, 1
      %s254 = scalar_select %p253, %s18, 1
      %s255 = smul.addr %s254, 2
      %s256 = smul.addr %s255, 4
      %s257 = scalar_lea.vmem %s0, %s256
      %p258 = pneg %p39
      %p259 = pneg %p36
      %p260 = pneg %p60
      %p261 = pneg %p57
      %p262 = pneg %p81
      %p263 = pneg %p78
      %p264 = pneg %p102
      %p265 = pneg %p99
      %p266 = pneg %p123
      %p267 = pneg %p120
      %p268 = pneg %p144
      %p269 = pneg %p141
      %p270 = scmp.lt.s32.totalorder %s18, 1
      %s271 = scalar_select %p270, %s18, 1
      %s272 = smul.addr %s271, 2
      %s273 = smul.addr %s272, 4
      %s274 = scalar_lea.vmem %s6, %s273
      %p275 = pneg %p170
      %p276 = pneg %p167
      %p277 = pneg %p196
      %p278 = pneg %p193
      %p279 = scmp.lt.s32.totalorder %s18, 1
      %s280 = scalar_select %p279, %s18, 1
      %s281 = smul.addr %s280, 2
      %s282 = smul.addr %s281, 4
      %s283 = scalar_lea.vmem %s7, %s282
      %p284 = scmp.lt.s32.totalorder %s18, 1
      %s285 = scalar_select %p284, %s18, 1
      %s286 = smul.addr %s285, 2
      %s287 = smul.addr %s286, 4
      %s288 = scalar_lea.vmem %s0, %s287
      %p289 = scmp.lt.s32.totalorder %s18, 1
      %s290 = scalar_select %p289, %s18, 1
      %s291 = smul.addr %s290, 2
      %s292 = smul.addr %s291, 4
      %s293 = scalar_lea.vmem %s6, %s292
      %p294 = scmp.lt.s32.totalorder %s18, 1
      %s295 = scalar_select %p294, %s18, 1
      %s296 = smul.addr %s295, 2
      %s297 = smul.addr %s296, 4
      %s298 = scalar_lea.vmem %s7, %s297
      %v299 = vld [vmem:[%s288] sm:$0xf]
      %v300 = vld [vmem:[%s288 + $0x4] sm:$0xf]
      %v301 = vunpack.c.l.bf16 %v299
      %v302 = vunpack.c.l.bf16 %v300
      %v303 = vld [vmem:[%s3] sm:$0xff]
      %v304 = vld [vmem:[%s3 + $0x8] sm:$0xff]
      %v305 = vld [vmem:[%s3 + $0x10] sm:$0xff]
      %v306 = vld [vmem:[%s3 + $0x18] sm:$0xff]
      %v307 = vld [vmem:[%s3 + $0x20] sm:$0xff]
      %v308 = vld [vmem:[%s3 + $0x28] sm:$0xff]
      %v309 = vld [vmem:[%s3 + $0x30] sm:$0xff]
      %v310 = vld [vmem:[%s3 + $0x38] sm:$0xff]
      %v311 = vld [vmem:[%s3 + $0x40] sm:$0xff]
      %v312 = vld [vmem:[%s3 + $0x48] sm:$0xff]
      %v313 = vld [vmem:[%s3 + $0x50] sm:$0xff]
      %v314 = vld [vmem:[%s3 + $0x58] sm:$0xff]
      %v315 = vld [vmem:[%s3 + $0x60] sm:$0xff]
      %v316 = vld [vmem:[%s3 + $0x68] sm:$0xff]
      %v317 = vld [vmem:[%s3 + $0x70] sm:$0xff]
      %v318 = vld [vmem:[%s3 + $0x78] sm:$0xff]
      %v319 = vadd.f32 %v301, %v302
      %v320 = vrot.slane %v319, 4
      %v321 = vadd.f32 %v319, %v320
      %v322 = vrot.slane %v321, 2
      %v323 = vadd.f32 %v321, %v322
      %v324 = vrot.slane %v323, 1
      %v325 = vadd.f32 %v323, %v324
      %v326 = vmul.f32 %v301, %v301
      %v327 = vmul.f32 %v302, %v302
      %v328 = vadd.f32 %v326, %v327
      %v329 = vrot.slane %v328, 4
      %v330 = vadd.f32 %v328, %v329
      %v331 = vrot.slane %v330, 2
      %v332 = vadd.f32 %v330, %v331
      %v333 = vrot.slane %v332, 1
      %v334 = vadd.f32 %v332, %v333
      %335 = vmatprep.subr.mxu0 0.0
      %336 = vmatpush1.msra.mxu0 %v303
      %337 = vmatprep.subr.mxu0 0.0
      %338 = vmatpush1.msra.mxu0 %v304
      %339 = vmatprep.subr.mxu0 0.0
      %340 = vmatpush1.msra.mxu0 %v305
      %341 = vmatprep.subr.mxu0 0.0
      %342 = vmatpush1.msra.mxu0 %v306
      %343 = vmatprep.subr.mxu0 0.0
      %344 = vmatpush1.msra.mxu0 %v307
      %345 = vmatprep.subr.mxu0 0.0
      %346 = vmatpush1.msra.mxu0 %v308
      %347 = vmatprep.subr.mxu0 0.0
      %348 = vmatpush1.msra.mxu0 %v309
      %349 = vmatprep.subr.mxu0 0.0
      %350 = vmatpush1.msra.mxu0 %v310
      %351 = vmatprep.subr.mxu0 0.0
      %352 = vmatpush1.msra.mxu0 %v311
      %353 = vmatprep.subr.mxu0 0.0
      %354 = vmatpush1.msra.mxu0 %v312
      %355 = vmatprep.subr.mxu0 0.0
      %356 = vmatpush1.msra.mxu0 %v313
      %357 = vmatprep.subr.mxu0 0.0
      %358 = vmatpush1.msra.mxu0 %v314
      %359 = vmatprep.subr.mxu0 0.0
      %360 = vmatpush1.msra.mxu0 %v315
      %361 = vmatprep.subr.mxu0 0.0
      %362 = vmatpush1.msra.mxu0 %v316
      %363 = vmatprep.subr.mxu0 0.0
      %364 = vmatpush1.msra.mxu0 %v317
      %365 = vmatprep.subr.mxu0 0.0
      %366 = vmatpush1.msra.mxu0 %v318
      %367 = vmatprep.subr.mxu0 0.0
      %368 = vmatpush1.msra.mxu0 0.0
      %369 = vmatprep.subr.mxu0 0.0
      %370 = vmatpush1.msra.mxu0 0.0
      %371 = vmatprep.subr.mxu0 0.0
      %372 = vmatpush1.msra.mxu0 0.0
      %373 = vmatprep.subr.mxu0 0.0
      %374 = vmatpush1.msra.mxu0 0.0
      %375 = vmatprep.subr.mxu0 0.0
      %376 = vmatpush1.msra.mxu0 0.0
      %377 = vmatprep.subr.mxu0 0.0
      %378 = vmatpush1.msra.mxu0 0.0
      %379 = vmatprep.subr.mxu0 0.0
      %380 = vmatpush1.msra.mxu0 0.0
      %381 = vmatprep.subr.mxu0 0.0
      %382 = vmatpush1.msra.mxu0 0.0
      %383 = vmatprep.subr.mxu0 0.0
      %384 = vmatpush1.msra.mxu0 0.0
      %385 = vmatprep.subr.mxu0 0.0
      %386 = vmatpush1.msra.mxu0 0.0
      %387 = vmatprep.subr.mxu0 0.0
      %388 = vmatpush1.msra.mxu0 0.0
      %389 = vmatprep.subr.mxu0 0.0
      %390 = vmatpush1.msra.mxu0 0.0
      %391 = vmatprep.subr.mxu0 0.0
      %392 = vmatpush1.msra.mxu0 0.0
      %393 = vmatprep.subr.mxu0 0.0
      %394 = vmatpush1.msra.mxu0 0.0
      %395 = vmatprep.subr.mxu0 0.0
      %396 = vmatpush1.msra.mxu0 0.0
      %397 = vmatprep.subr.mxu0 0.0
      %398 = vmatpush1.msra.mxu0 0.0
      %399 = vmatprep.mubr.f32.mxu0 0.0
      %400 = vmatmul.mubr.f32.gmra.mrb[0].mxu0 %v325
      %v401 = vpop.f32.mrb[0].mxu0
      %v402 = vadd.f32 0.0, %v401
      %v403 = vpop.f32.mrb[0].mxu0
      %404 = vdwg.mxu0
      %v405 = vmul.f32 %v402, 0.0625
      %406 = vmatprep.subr.mxu0 0.0
      %407 = vmatpush1.msra.mxu0 %v303
      %408 = vmatprep.subr.mxu0 0.0
      %409 = vmatpush1.msra.mxu0 %v304
      %410 = vmatprep.subr.mxu0 0.0
      %411 = vmatpush1.msra.mxu0 %v305
      %412 = vmatprep.subr.mxu0 0.0
      %413 = vmatpush1.msra.mxu0 %v306
      %414 = vmatprep.subr.mxu0 0.0
      %415 = vmatpush1.msra.mxu0 %v307
      %416 = vmatprep.subr.mxu0 0.0
      %417 = vmatpush1.msra.mxu0 %v308
      %418 = vmatprep.subr.mxu0 0.0
      %419 = vmatpush1.msra.mxu0 %v309
      %420 = vmatprep.subr.mxu0 0.0
      %421 = vmatpush1.msra.mxu0 %v310
      %422 = vmatprep.subr.mxu0 0.0
      %423 = vmatpush1.msra.mxu0 %v311
      %424 = vmatprep.subr.mxu0 0.0
      %425 = vmatpush1.msra.mxu0 %v312
      %426 = vmatprep.subr.mxu0 0.0
      %427 = vmatpush1.msra.mxu0 %v313
      %428 = vmatprep.subr.mxu0 0.0
      %429 = vmatpush1.msra.mxu0 %v314
      %430 = vmatprep.subr.mxu0 0.0
      %431 = vmatpush1.msra.mxu0 %v315
      %432 = vmatprep.subr.mxu0 0.0
      %433 = vmatpush1.msra.mxu0 %v316
      %434 = vmatprep.subr.mxu0 0.0
      %435 = vmatpush1.msra.mxu0 %v317
      %436 = vmatprep.subr.mxu0 0.0
      %437 = vmatpush1.msra.mxu0 %v318
      %438 = vmatprep.subr.mxu0 0.0
      %439 = vmatpush1.msra.mxu0 0.0
      %440 = vmatprep.subr.mxu0 0.0
      %441 = vmatpush1.msra.mxu0 0.0
      %442 = vmatprep.subr.mxu0 0.0
      %443 = vmatpush1.msra.mxu0 0.0
      %444 = vmatprep.subr.mxu0 0.0
      %445 = vmatpush1.msra.mxu0 0.0
      %446 = vmatprep.subr.mxu0 0.0
      %447 = vmatpush1.msra.mxu0 0.0
      %448 = vmatprep.subr.mxu0 0.0
      %449 = vmatpush1.msra.mxu0 0.0
      %450 = vmatprep.subr.mxu0 0.0
      %451 = vmatpush1.msra.mxu0 0.0
      %452 = vmatprep.subr.mxu0 0.0
      %453 = vmatpush1.msra.mxu0 0.0
      %454 = vmatprep.subr.mxu0 0.0
      %455 = vmatpush1.msra.mxu0 0.0
      %456 = vmatprep.subr.mxu0 0.0
      %457 = vmatpush1.msra.mxu0 0.0
      %458 = vmatprep.subr.mxu0 0.0
      %459 = vmatpush1.msra.mxu0 0.0
      %460 = vmatprep.subr.mxu0 0.0
      %461 = vmatpush1.msra.mxu0 0.0
      %462 = vmatprep.subr.mxu0 0.0
      %463 = vmatpush1.msra.mxu0 0.0
      %464 = vmatprep.subr.mxu0 0.0
      %465 = vmatpush1.msra.mxu0 0.0
      %466 = vmatprep.subr.mxu0 0.0
      %467 = vmatpush1.msra.mxu0 0.0
      %468 = vmatprep.subr.mxu0 0.0
      %469 = vmatpush1.msra.mxu0 0.0
      %470 = vmatprep.mubr.f32.mxu0 0.0
      %471 = vmatmul.mubr.f32.gmra.mrb[0].mxu0 %v334
      %v472 = vpop.f32.mrb[0].mxu0
      %v473 = vadd.f32 0.0, %v472
      %v474 = vpop.f32.mrb[0].mxu0
      %475 = vdwg.mxu0
      %v476 = vmul.f32 %v473, 0.0625
      %v477 = vmul.f32 %v405, %v405
      %v478 = vsub.f32 %v476, %v477
      %v479 = vmax.f32 %v478, 0.0
      %vm480 = vcmask 261120
      %v482 = vsel %vm480, %v405, 0
      %v485 = vsel %vm480, %v303, 0
      %v488 = vsel %vm480, %v304, 0
      %v491 = vsel %vm480, %v305, 0
      %v494 = vsel %vm480, %v306, 0
      %v497 = vsel %vm480, %v307, 0
      %v500 = vsel %vm480, %v308, 0
      %v503 = vsel %vm480, %v309, 0
      %v506 = vsel %vm480, %v310, 0
      %v509 = vsel %vm480, %v311, 0
      %v512 = vsel %vm480, %v312, 0
      %v515 = vsel %vm480, %v313, 0
      %v518 = vsel %vm480, %v314, 0
      %v521 = vsel %vm480, %v315, 0
      %v524 = vsel %vm480, %v316, 0
      %v527 = vsel %vm480, %v317, 0
      %v530 = vsel %vm480, %v318, 0
      %532 = vmatprep.subr.mxu0 0.0
      %533 = vmatpush1.xpose.msra.mxu0 %v485
      %534 = vmatprep.subr.mxu0 0.0
      %535 = vmatpush1.xpose.msra.mxu0 %v488
      %536 = vmatprep.subr.mxu0 0.0
      %537 = vmatpush1.xpose.msra.mxu0 %v491
      %538 = vmatprep.subr.mxu0 0.0
      %539 = vmatpush1.xpose.msra.mxu0 %v494
      %540 = vmatprep.subr.mxu0 0.0
      %541 = vmatpush1.xpose.msra.mxu0 %v497
      %542 = vmatprep.subr.mxu0 0.0
      %543 = vmatpush1.xpose.msra.mxu0 %v500
      %544 = vmatprep.subr.mxu0 0.0
      %545 = vmatpush1.xpose.msra.mxu0 %v503
      %546 = vmatprep.subr.mxu0 0.0
      %547 = vmatpush1.xpose.msra.mxu0 %v506
      %548 = vmatprep.subr.mxu0 0.0
      %549 = vmatpush1.xpose.msra.mxu0 %v509
      %550 = vmatprep.subr.mxu0 0.0
      %551 = vmatpush1.xpose.msra.mxu0 %v512
      %552 = vmatprep.subr.mxu0 0.0
      %553 = vmatpush1.xpose.msra.mxu0 %v515
      %554 = vmatprep.subr.mxu0 0.0
      %555 = vmatpush1.xpose.msra.mxu0 %v518
      %556 = vmatprep.subr.mxu0 0.0
      %557 = vmatpush1.xpose.msra.mxu0 %v521
      %558 = vmatprep.subr.mxu0 0.0
      %559 = vmatpush1.xpose.msra.mxu0 %v524
      %560 = vmatprep.subr.mxu0 0.0
      %561 = vmatpush1.xpose.msra.mxu0 %v527
      %562 = vmatprep.subr.mxu0 0.0
      %563 = vmatpush1.xpose.msra.mxu0 %v530
      %564 = vmatprep.subr.mxu0 0.0
      %565 = vmatpush1.xpose.msra.mxu0 0.0
      %566 = vmatprep.subr.mxu0 0.0
      %567 = vmatpush1.xpose.msra.mxu0 0.0
      %568 = vmatprep.subr.mxu0 0.0
      %569 = vmatpush1.xpose.msra.mxu0 0.0
      %570 = vmatprep.subr.mxu0 0.0
      %571 = vmatpush1.xpose.msra.mxu0 0.0
      %572 = vmatprep.subr.mxu0 0.0
      %573 = vmatpush1.xpose.msra.mxu0 0.0
      %574 = vmatprep.subr.mxu0 0.0
      %575 = vmatpush1.xpose.msra.mxu0 0.0
      %576 = vmatprep.subr.mxu0 0.0
      %577 = vmatpush1.xpose.msra.mxu0 0.0
      %578 = vmatprep.subr.mxu0 0.0
      %579 = vmatpush1.xpose.msra.mxu0 0.0
      %580 = vmatprep.subr.mxu0 0.0
      %581 = vmatpush1.xpose.msra.mxu0 0.0
      %582 = vmatprep.subr.mxu0 0.0
      %583 = vmatpush1.xpose.msra.mxu0 0.0
      %584 = vmatprep.subr.mxu0 0.0
      %585 = vmatpush1.xpose.msra.mxu0 0.0
      %586 = vmatprep.subr.mxu0 0.0
      %587 = vmatpush1.xpose.msra.mxu0 0.0
      %588 = vmatprep.subr.mxu0 0.0
      %589 = vmatpush1.xpose.msra.mxu0 0.0
      %590 = vmatprep.subr.mxu0 0.0
      %591 = vmatpush1.xpose.msra.mxu0 0.0
      %592 = vmatprep.subr.mxu0 0.0
      %593 = vmatpush1.xpose.msra.mxu0 0.0
      %594 = vmatprep.subr.mxu0 0.0
      %595 = vmatpush1.xpose.msra.mxu0 0.0
      %596 = vmatprep.mubr.f32.mxu0 0.0
      %597 = vmatmul.mubr.f32.gmra.mrb[0].mxu0 %v482
      %v598 = vpop.f32.mrb[0].mxu0
      %v599 = vadd.f32 0.0, %v598
      %v600 = vpop.f32.mrb[0].mxu0
      %601 = vdwg.mxu0
      %v603 = vsel %vm480, %v479, 0
      %605 = vmatprep.subr.mxu0 0.0
      %606 = vmatpush1.xpose.msra.mxu0 %v485
      %607 = vmatprep.subr.mxu0 0.0
      %608 = vmatpush1.xpose.msra.mxu0 %v488
      %609 = vmatprep.subr.mxu0 0.0
      %610 = vmatpush1.xpose.msra.mxu0 %v491
      %611 = vmatprep.subr.mxu0 0.0
      %612 = vmatpush1.xpose.msra.mxu0 %v494
      %613 = vmatprep.subr.mxu0 0.0
      %614 = vmatpush1.xpose.msra.mxu0 %v497
      %615 = vmatprep.subr.mxu0 0.0
      %616 = vmatpush1.xpose.msra.mxu0 %v500
      %617 = vmatprep.subr.mxu0 0.0
      %618 = vmatpush1.xpose.msra.mxu0 %v503
      %619 = vmatprep.subr.mxu0 0.0
      %620 = vmatpush1.xpose.msra.mxu0 %v506
      %621 = vmatprep.subr.mxu0 0.0
      %622 = vmatpush1.xpose.msra.mxu0 %v509
      %623 = vmatprep.subr.mxu0 0.0
      %624 = vmatpush1.xpose.msra.mxu0 %v512
      %625 = vmatprep.subr.mxu0 0.0
      %626 = vmatpush1.xpose.msra.mxu0 %v515
      %627 = vmatprep.subr.mxu0 0.0
      %628 = vmatpush1.xpose.msra.mxu0 %v518
      %629 = vmatprep.subr.mxu0 0.0
      %630 = vmatpush1.xpose.msra.mxu0 %v521
      %631 = vmatprep.subr.mxu0 0.0
      %632 = vmatpush1.xpose.msra.mxu0 %v524
      %633 = vmatprep.subr.mxu0 0.0
      %634 = vmatpush1.xpose.msra.mxu0 %v527
      %635 = vmatprep.subr.mxu0 0.0
      %636 = vmatpush1.xpose.msra.mxu0 %v530
      %637 = vmatprep.subr.mxu0 0.0
      %638 = vmatpush1.xpose.msra.mxu0 0.0
      %639 = vmatprep.subr.mxu0 0.0
      %640 = vmatpush1.xpose.msra.mxu0 0.0
      %641 = vmatprep.subr.mxu0 0.0
      %642 = vmatpush1.xpose.msra.mxu0 0.0
      %643 = vmatprep.subr.mxu0 0.0
      %644 = vmatpush1.xpose.msra.mxu0 0.0
      %645 = vmatprep.subr.mxu0 0.0
      %646 = vmatpush1.xpose.msra.mxu0 0.0
      %647 = vmatprep.subr.mxu0 0.0
      %648 = vmatpush1.xpose.msra.mxu0 0.0
      %649 = vmatprep.subr.mxu0 0.0
      %650 = vmatpush1.xpose.msra.mxu0 0.0
      %651 = vmatprep.subr.mxu0 0.0
      %652 = vmatpush1.xpose.msra.mxu0 0.0
      %653 = vmatprep.subr.mxu0 0.0
      %654 = vmatpush1.xpose.msra.mxu0 0.0
      %655 = vmatprep.subr.mxu0 0.0
      %656 = vmatpush1.xpose.msra.mxu0 0.0
      %657 = vmatprep.subr.mxu0 0.0
      %658 = vmatpush1.xpose.msra.mxu0 0.0
      %659 = vmatprep.subr.mxu0 0.0
      %660 = vmatpush1.xpose.msra.mxu0 0.0
      %661 = vmatprep.subr.mxu0 0.0
      %662 = vmatpush1.xpose.msra.mxu0 0.0
      %663 = vmatprep.subr.mxu0 0.0
      %664 = vmatpush1.xpose.msra.mxu0 0.0
      %665 = vmatprep.subr.mxu0 0.0
      %666 = vmatpush1.xpose.msra.mxu0 0.0
      %667 = vmatprep.subr.mxu0 0.0
      %668 = vmatpush1.xpose.msra.mxu0 0.0
      %669 = vmatprep.mubr.f32.mxu0 0.0
      %670 = vmatmul.mubr.f32.gmra.mrb[0].mxu0 %v603
      %v671 = vpop.f32.mrb[0].mxu0
      %v672 = vadd.f32 1e-06, %v671
      %v673 = vpop.f32.mrb[0].mxu0
      %674 = vdwg.mxu0
      %v675 = vrsqrt.pop %v672
      %v676 = vld [vmem:[%s1] sm:$0x1]
      %v677 = vmul.f32 %v676, %v675
      %v678 = vld [vmem:[%s2] sm:$0x1]
      %v679 = vmul.f32 %v599, %v677
      %v680 = vsub.f32 %v678, %v679
      %v682 = vlaneseq
      %v683 = vshrl.u32 %v682, 7
      %v684 = vsub.s32 0, %v683
      %v685 = vrot.slane %v677, %v684
      %v687 = vmul.f32 %v301, %v685
      %v688 = vmul.f32 %v302, %v685
      %v690 = vlaneseq
      %v691 = vshrl.u32 %v690, 7
      %v692 = vsub.s32 0, %v691
      %v693 = vrot.slane %v680, %v692
      %v695 = vadd.f32 %v687, %v693
      %v696 = vadd.f32 %v688, %v693
      %v697 = vxor.u32 %v695, 2147483648
      %v698 = vxor.u32 %v696, 2147483648
      %v699 = vmul.f32 %v697, 1.442695
      %v700 = vpow.pop %v699
      %v701 = vmul.f32 %v698, 1.442695
      %v702 = vpow.pop %v701
      %v703 = vadd.f32 %v700, 1.0
      %v704 = vadd.f32 %v702, 1.0
      %v705 = vrcp.pop %v703
      %v706 = vmul.f32 1.0, %v705
      %v707 = vrcp.pop %v704
      %v708 = vmul.f32 1.0, %v707
      %v709 = vmul.f32 %v695, %v706
      %v710 = vmul.f32 %v696, %v708
      %v711 = vrot.slane %v709, 7
      %v712 = vrot.slane %v710, 7
      %v713 = vlaneseq
      %v714 = vshrl.u32 %v713, 7
      %vm715 = vcmp.lt.s32.totalorder %v714, 1
      %v716 = vsel %vm715, %v711, %v712
      %v717 = vsel %vm715, %v712, %v711
      %v718 = vadd.s32 %v714, 8
      %vm719 = vcmp.eq.s32.totalorder %v714, 0
      %vm720 = vcmp.eq.s32.totalorder %v718, 0
      %v721 = vsel %vm719, 0.0, %v717
      %v722 = vsel %vm720, 0.0, %v716
      %v723 = vrot.slane %v709, 1
      %v724 = vrot.slane %v710, 1
      %vm725 = vcmp.lt.s32.totalorder %v714, 7
      %v726 = vsel %vm725, %v723, %v724
      %v727 = vsel %vm725, %v724, %v723
      %vm728 = vcmp.eq.s32.totalorder %v714, 15
      %vm729 = vcmp.eq.s32.totalorder %v718, 15
      %v730 = vsel %vm728, 0.0, %v726
      %v731 = vsel %vm729, 0.0, %v727
      %v732 = vld [vmem:[%s4] sm:$0xff]
      %v733 = vld [vmem:[%s4 + $0x8] sm:$0xff]
      %v734 = vld [vmem:[%s4 + $0x10] sm:$0xff]
      %v735 = vld [vmem:[%s4 + $0x18] sm:$0xff]
      %v736 = vld [vmem:[%s4 + $0x20] sm:$0xff]
      %v737 = vld [vmem:[%s4 + $0x28] sm:$0xff]
      %v738 = vld [vmem:[%s4 + $0x30] sm:$0xff]
      %v739 = vld [vmem:[%s4 + $0x38] sm:$0xff]
      %v740 = vld [vmem:[%s4 + $0x40] sm:$0xff]
      %v741 = vld [vmem:[%s4 + $0x48] sm:$0xff]
      %v742 = vld [vmem:[%s4 + $0x50] sm:$0xff]
      %v743 = vld [vmem:[%s4 + $0x58] sm:$0xff]
      %v744 = vld [vmem:[%s4 + $0x60] sm:$0xff]
      %v745 = vld [vmem:[%s4 + $0x68] sm:$0xff]
      %v746 = vld [vmem:[%s4 + $0x70] sm:$0xff]
      %v747 = vld [vmem:[%s4 + $0x78] sm:$0xff]
      %v748 = vld [vmem:[%s4 + $0x80] sm:$0xff]
      %v749 = vld [vmem:[%s4 + $0x88] sm:$0xff]
      %v750 = vld [vmem:[%s4 + $0x90] sm:$0xff]
      %v751 = vld [vmem:[%s4 + $0x98] sm:$0xff]
      %v752 = vld [vmem:[%s4 + $0xa0] sm:$0xff]
      %v753 = vld [vmem:[%s4 + $0xa8] sm:$0xff]
      %v754 = vld [vmem:[%s4 + $0xb0] sm:$0xff]
      %v755 = vld [vmem:[%s4 + $0xb8] sm:$0xff]
      %v756 = vld [vmem:[%s4 + $0xc0] sm:$0xff]
      %v757 = vld [vmem:[%s4 + $0xc8] sm:$0xff]
      %v758 = vld [vmem:[%s4 + $0xd0] sm:$0xff]
      %v759 = vld [vmem:[%s4 + $0xd8] sm:$0xff]
      %v760 = vld [vmem:[%s4 + $0xe0] sm:$0xff]
      %v761 = vld [vmem:[%s4 + $0xe8] sm:$0xff]
      %v762 = vld [vmem:[%s4 + $0xf0] sm:$0xff]
      %v763 = vld [vmem:[%s4 + $0xf8] sm:$0xff]
      %v764 = vld [vmem:[%s4 + $0x100] sm:$0xff]
      %v765 = vld [vmem:[%s4 + $0x108] sm:$0xff]
      %v766 = vld [vmem:[%s4 + $0x110] sm:$0xff]
      %v767 = vld [vmem:[%s4 + $0x118] sm:$0xff]
      %v768 = vld [vmem:[%s4 + $0x120] sm:$0xff]
      %v769 = vld [vmem:[%s4 + $0x128] sm:$0xff]
      %v770 = vld [vmem:[%s4 + $0x130] sm:$0xff]
      %v771 = vld [vmem:[%s4 + $0x138] sm:$0xff]
      %v772 = vld [vmem:[%s4 + $0x140] sm:$0xff]
      %v773 = vld [vmem:[%s4 + $0x148] sm:$0xff]
      %v774 = vld [vmem:[%s4 + $0x150] sm:$0xff]
      %v775 = vld [vmem:[%s4 + $0x158] sm:$0xff]
      %v776 = vld [vmem:[%s4 + $0x160] sm:$0xff]
      %v777 = vld [vmem:[%s4 + $0x168] sm:$0xff]
      %v778 = vld [vmem:[%s4 + $0x170] sm:$0xff]
      %v779 = vld [vmem:[%s4 + $0x178] sm:$0xff]
      %v780 = vld [vmem:[%s5] sm:$0x1]
      %v782 = vlaneseq
      %v783 = vshrl.u32 %v782, 7
      %v784 = vsub.s32 0, %v783
      %v785 = vrot.slane %v780, %v784
      %787 = vmatprep.subr.mxu0 0.0
      %788 = vmatpush1.msra.mxu0 %v732
      %789 = vmatprep.subr.mxu0 0.0
      %790 = vmatpush1.msra.mxu0 %v733
      %791 = vmatprep.subr.mxu0 0.0
      %792 = vmatpush1.msra.mxu0 %v734
      %793 = vmatprep.subr.mxu0 0.0
      %794 = vmatpush1.msra.mxu0 %v735
      %795 = vmatprep.subr.mxu0 0.0
      %796 = vmatpush1.msra.mxu0 %v736
      %797 = vmatprep.subr.mxu0 0.0
      %798 = vmatpush1.msra.mxu0 %v737
      %799 = vmatprep.subr.mxu0 0.0
      %800 = vmatpush1.msra.mxu0 %v738
      %801 = vmatprep.subr.mxu0 0.0
      %802 = vmatpush1.msra.mxu0 %v739
      %803 = vmatprep.subr.mxu0 0.0
      %804 = vmatpush1.msra.mxu0 %v740
      %805 = vmatprep.subr.mxu0 0.0
      %806 = vmatpush1.msra.mxu0 %v741
      %807 = vmatprep.subr.mxu0 0.0
      %808 = vmatpush1.msra.mxu0 %v742
      %809 = vmatprep.subr.mxu0 0.0
      %810 = vmatpush1.msra.mxu0 %v743
      %811 = vmatprep.subr.mxu0 0.0
      %812 = vmatpush1.msra.mxu0 %v744
      %813 = vmatprep.subr.mxu0 0.0
      %814 = vmatpush1.msra.mxu0 %v745
      %815 = vmatprep.subr.mxu0 0.0
      %816 = vmatpush1.msra.mxu0 %v746
      %817 = vmatprep.subr.mxu0 0.0
      %818 = vmatpush1.msra.mxu0 %v747
      %819 = vmatprep.subr.mxu0 0.0
      %820 = vmatpush1.msra.mxu0 %v748
      %821 = vmatprep.subr.mxu0 0.0
      %822 = vmatpush1.msra.mxu0 %v749
      %823 = vmatprep.subr.mxu0 0.0
      %824 = vmatpush1.msra.mxu0 %v750
      %825 = vmatprep.subr.mxu0 0.0
      %826 = vmatpush1.msra.mxu0 %v751
      %827 = vmatprep.subr.mxu0 0.0
      %828 = vmatpush1.msra.mxu0 %v752
      %829 = vmatprep.subr.mxu0 0.0
      %830 = vmatpush1.msra.mxu0 %v753
      %831 = vmatprep.subr.mxu0 0.0
      %832 = vmatpush1.msra.mxu0 %v754
      %833 = vmatprep.subr.mxu0 0.0
      %834 = vmatpush1.msra.mxu0 %v755
      %835 = vmatprep.subr.mxu0 0.0
      %836 = vmatpush1.msra.mxu0 %v756
      %837 = vmatprep.subr.mxu0 0.0
      %838 = vmatpush1.msra.mxu0 %v757
      %839 = vmatprep.subr.mxu0 0.0
      %840 = vmatpush1.msra.mxu0 %v758
      %841 = vmatprep.subr.mxu0 0.0
      %842 = vmatpush1.msra.mxu0 %v759
      %843 = vmatprep.subr.mxu0 0.0
      %844 = vmatpush1.msra.mxu0 %v760
      %845 = vmatprep.subr.mxu0 0.0
      %846 = vmatpush1.msra.mxu0 %v761
      %847 = vmatprep.subr.mxu0 0.0
      %848 = vmatpush1.msra.mxu0 %v762
      %849 = vmatprep.subr.mxu0 0.0
      %850 = vmatpush1.msra.mxu0 %v763
      %851 = vmatprep.mubr.f32.mxu0 %v709
      %852 = vmatmul.mubr.f32.gmra.mrb[0].mxu0 %v721
      %v853 = vpop.f32.mrb[0].mxu0
      %v854 = vadd.f32 %v785, %v853
      %v855 = vpop.f32.mrb[0].mxu0
      %856 = vmatprep.mubr.f32.mxu0 %v710
      %857 = vmatmul.mubr.f32.gmra.mrb[0].mxu0 %v722
      %v858 = vpop.f32.mrb[0].mxu0
      %v859 = vadd.f32 %v785, %v858
      %v860 = vpop.f32.mrb[0].mxu0
      %861 = vdwg.mxu0
      %862 = vmatprep.subr.mxu0 0.0
      %863 = vmatpush1.msra.mxu0 %v764
      %864 = vmatprep.subr.mxu0 0.0
      %865 = vmatpush1.msra.mxu0 %v765
      %866 = vmatprep.subr.mxu0 0.0
      %867 = vmatpush1.msra.mxu0 %v766
      %868 = vmatprep.subr.mxu0 0.0
      %869 = vmatpush1.msra.mxu0 %v767
      %870 = vmatprep.subr.mxu0 0.0
      %871 = vmatpush1.msra.mxu0 %v768
      %872 = vmatprep.subr.mxu0 0.0
      %873 = vmatpush1.msra.mxu0 %v769
      %874 = vmatprep.subr.mxu0 0.0
      %875 = vmatpush1.msra.mxu0 %v770
      %876 = vmatprep.subr.mxu0 0.0
      %877 = vmatpush1.msra.mxu0 %v771
      %878 = vmatprep.subr.mxu0 0.0
      %879 = vmatpush1.msra.mxu0 %v772
      %880 = vmatprep.subr.mxu0 0.0
      %881 = vmatpush1.msra.mxu0 %v773
      %882 = vmatprep.subr.mxu0 0.0
      %883 = vmatpush1.msra.mxu0 %v774
      %884 = vmatprep.subr.mxu0 0.0
      %885 = vmatpush1.msra.mxu0 %v775
      %886 = vmatprep.subr.mxu0 0.0
      %887 = vmatpush1.msra.mxu0 %v776
      %888 = vmatprep.subr.mxu0 0.0
      %889 = vmatpush1.msra.mxu0 %v777
      %890 = vmatprep.subr.mxu0 0.0
      %891 = vmatpush1.msra.mxu0 %v778
      %892 = vmatprep.subr.mxu0 0.0
      %893 = vmatpush1.msra.mxu0 %v779
      %894 = vmatprep.subr.mxu0 0.0
      %895 = vmatpush1.msra.mxu0 0.0
      %896 = vmatprep.subr.mxu0 0.0
      %897 = vmatpush1.msra.mxu0 0.0
      %898 = vmatprep.subr.mxu0 0.0
      %899 = vmatpush1.msra.mxu0 0.0
      %900 = vmatprep.subr.mxu0 0.0
      %901 = vmatpush1.msra.mxu0 0.0
      %902 = vmatprep.subr.mxu0 0.0
      %903 = vmatpush1.msra.mxu0 0.0
      %904 = vmatprep.subr.mxu0 0.0
      %905 = vmatpush1.msra.mxu0 0.0
      %906 = vmatprep.subr.mxu0 0.0
      %907 = vmatpush1.msra.mxu0 0.0
      %908 = vmatprep.subr.mxu0 0.0
      %909 = vmatpush1.msra.mxu0 0.0
      %910 = vmatprep.subr.mxu0 0.0
      %911 = vmatpush1.msra.mxu0 0.0
      %912 = vmatprep.subr.mxu0 0.0
      %913 = vmatpush1.msra.mxu0 0.0
      %914 = vmatprep.subr.mxu0 0.0
      %915 = vmatpush1.msra.mxu0 0.0
      %916 = vmatprep.subr.mxu0 0.0
      %917 = vmatpush1.msra.mxu0 0.0
      %918 = vmatprep.subr.mxu0 0.0
      %919 = vmatpush1.msra.mxu0 0.0
      %920 = vmatprep.subr.mxu0 0.0
      %921 = vmatpush1.msra.mxu0 0.0
      %922 = vmatprep.subr.mxu0 0.0
      %923 = vmatpush1.msra.mxu0 0.0
      %924 = vmatprep.subr.mxu0 0.0
      %925 = vmatpush1.msra.mxu0 0.0
      %926 = vmatprep.mubr.f32.mxu0 0.0
      %927 = vmatmul.mubr.f32.gmra.mrb[0].mxu0 %v730
      %v928 = vpop.f32.mrb[0].mxu0
      %v929 = vadd.f32 %v854, %v928
      %v930 = vpop.f32.mrb[0].mxu0
      %931 = vmatprep.mubr.f32.mxu0 0.0
      %932 = vmatmul.mubr.f32.gmra.mrb[0].mxu0 %v731
      %v933 = vpop.f32.mrb[0].mxu0
      %v934 = vadd.f32 %v859, %v933
      %v935 = vpop.f32.mrb[0].mxu0
      %936 = vdwg.mxu0
      %v937 = vld [vmem:[%s293] sm:$0xf]
      %v938 = vld [vmem:[%s293 + $0x4] sm:$0xf]
      %v939 = vunpack.c.l.bf16 %v937
      %v940 = vunpack.c.l.bf16 %v938
      %v941 = vadd.f32 %v929, %v939
      %v942 = vadd.f32 %v934, %v940
      %v943 = vpack.c.bf16 %v942, %v941
      %v945 = vunpack.c.l.b16 %v943
      %v946 = vunpack.c.h.b16 %v943
      %v947 = vpack.c.b16 %v945, %v945
      %v948 = vpack.c.b16 %v946, %v946
      %951 = vst [vmem:[%s298] sm:$0xf] %v947
      %952 = vst [vmem:[%s298 + $0x4] sm:$0xf] %v948
      %p953 = scmp.lt.s32.totalorder %s18, 1
      %s954 = scalar_select %p953, %s18, 1
      %s955 = smul.addr %s954, 2
      %s956 = smul.addr %s955, 4
      %s957 = scalar_lea.vmem %s7, %s956
      // Predicated region
      $region49: #{_lambda_.15} parent=47 // pred_check
        %p958 = pneg %p193
      $region50: #{_lambda_.15} parent=47 // pred_check_branch
        %960 = sbr.rel (%p958) target = $region52
      $region51: #{_lambda_.15} parent=47 // pred_region
        _
      $region52: #{_lambda_.15} parent=47 // pred_fallthru
        _
    $region48: #{_lambda_.15} parent=5 // pred_fallthru
      _
    %p961 = scmp.le.s32.totalorder 2, %s13
    // Predicated region
    $region53: #{_lambda_.15} parent=5 // pred_check
      %p962 = pneg %p961
    $region54: #{_lambda_.15} parent=5 // pred_check_branch
      %964 = sbr.rel (%p962) target = $region56
    $region55: #{_lambda_.15} parent=5 // pred_region
      %s965 = ssub.s32 %s13, 2
      // Predicated region
      $region57: #{_lambda_.15} parent=55 // pred_check
        %p966 = pneg %p199
      $region58: #{_lambda_.15} parent=55 // pred_check_branch
        %968 = sbr.rel (%p966) target = $region60
      $region59: #{_lambda_.15} parent=55 // pred_region
        %p969 = scmp.lt.s32.totalorder %s19, 1
        %s970 = scalar_select %p969, %s19, 1
        %s971 = smul.addr %s970, 2
        %s972 = smul.addr %s971, 4
        %s973 = scalar_lea.vmem %s7, %s972
      $region60: #{_lambda_.15} parent=55 // pred_fallthru
        _
    $region56: #{_lambda_.15} parent=5 // pred_fallthru
      _
  $region6: #{_lambda_.15} parent=0 // loop_footer
    %s17 = sadd.s32 1, %s13
  $region7: #{_lambda_.15} parent=0 // loop_footer_branch
    %12 = sbr.rel target = $region3
  $region8: #{_lambda_.15} parent=0 // loop_exit
    _

// kernel: _lambda_.17
$region0: #{_lambda_.17}
  #allocation0 [shape = 'u32[]', space=smem, size = 0x4, offset = 0x4, fixed_abs, tag = 'smem constant byte address 0x4 - core index']
  #allocation1 [shape = 'u32[144,128]{1,0:T(1,128)}', space=vmem, size = 0x12000, scoped, tag = 'internal scratch']
  %s0 = inlined_call_operand.vmem [shape: bf16[2,8,128], index: 0, kind: input, shape index: {}]
  %s1 = inlined_call_operand.vmem [shape: f32[1,128], index: 1, kind: input, shape index: {}]
  %s2 = inlined_call_operand.vmem [shape: f32[1,128], index: 2, kind: input, shape index: {}]
  %s3 = inlined_call_operand.vmem [shape: f32[128,32], index: 3, kind: input, shape index: {}]
  %s4 = inlined_call_operand.vmem [shape: f32[384,128], index: 4, kind: input, shape index: {}]
  %s5 = inlined_call_operand.vmem [shape: f32[1,128], index: 5, kind: input, shape index: {}]
  %s6 = inlined_call_operand.vmem [shape: bf16[2,8,128], index: 6, kind: output, shape index: {}]
  %s7 = sld [smem:[#allocation0]]
  $region57: #{_lambda_.17} parent=0
    _
  %s9 = ssub.s32 1, %s7
  %s10 = scalar_select 0, %s9, %s7
  loop: start=0, step=1, limit=4
  $region2: #{_lambda_.17} parent=0 // loop_pre_header
    _
  $region3: #{_lambda_.17} parent=0 // loop_header
    %s12 = sphi 0, %s16
    %p13 = scmp.ge.s32.totalorder %s12, 4
    %s22 = sphi 0, %s24
    %s25 = sphi 0, %s22
    %s26 = sphi 0, %s25
    %s42 = sphi 0, %s26
    %s46 = sphi 0, %s46
    %s48 = sphi 0, %s46
    %s49 = sphi 0, %s48
    %s63 = sphi 0, %s49
    %s67 = sphi 0, %s67
    %s69 = sphi 0, %s67
    %s70 = sphi 0, %s69
    %s84 = sphi 0, %s70
    %s88 = sphi 0, %s88
    %s90 = sphi 0, %s88
    %s91 = sphi 0, %s90
    %s105 = sphi 0, %s91
    %s109 = sphi 0, %s109
    %s111 = sphi 0, %s109
    %s112 = sphi 0, %s111
    %s126 = sphi 0, %s112
    %s130 = sphi 0, %s130
    %s132 = sphi 0, %s130
    %s133 = sphi 0, %s132
    %s147 = sphi 0, %s133
    %s153 = sphi 0, %s155
    %s156 = sphi 0, %s153
    %s157 = sphi 0, %s156
    %s173 = sphi 0, %s157
  $region4: #{_lambda_.17} parent=0 // loop_header_branch
    %15 = sbr.rel (%p13) target = $region8
  $region5: #{_lambda_.17} parent=0 // loop_body
    %s17 = ssub.s32 %s12, 1
    %s18 = ssub.s32 %s12, 2
    %s19 = sadd.s32 %s12, 1
    %s20 = ssub.s32 %s12, %s19
    %p21 = scmp.eq.s32.totalorder %s20, 0
    %s23 = sadd.s32 %s22, 1
    %s24 = scalar_select %p21, %s22, %s23
    %p27 = pneg %p21
    %p28 = scmp.eq.s32.totalorder %s12, 1
    %p29 = por %p27, %p28
    %p30 = scmp.ne.s32.totalorder %s22, %s25
    %p31 = scmp.eq.s32.totalorder %s12, 0
    %p32 = por %p30, %p31
    %p33 = scmp.ne.s32.totalorder %s22, %s25
    %p34 = scmp.eq.s32.totalorder %s17, 1
    %p35 = por %p33, %p34
    %p36 = scmp.ne.s32.totalorder %s25, %s26
    %p37 = scmp.eq.s32.totalorder %s17, 0
    %p38 = por %p36, %p37
    %p39 = scmp.ne.s32.totalorder %s25, %s26
    %p40 = scmp.eq.s32.totalorder %s18, 1
    %p41 = por %p39, %p40
    %p43 = scmp.ne.s32.totalorder %s26, %s42
    %p44 = scmp.eq.s32.totalorder %s18, 0
    %p45 = por %p43, %p44
    %s47 = sadd.s32 %s46, 1
    %p50 = scmp.eq.s32.totalorder %s12, 1
    %p51 = scmp.ne.s32.totalorder %s46, %s48
    %p52 = scmp.eq.s32.totalorder %s12, 0
    %p53 = por %p51, %p52
    %p54 = scmp.ne.s32.totalorder %s46, %s48
    %p55 = scmp.eq.s32.totalorder %s17, 1
    %p56 = por %p54, %p55
    %p57 = scmp.ne.s32.totalorder %s48, %s49
    %p58 = scmp.eq.s32.totalorder %s17, 0
    %p59 = por %p57, %p58
    %p60 = scmp.ne.s32.totalorder %s48, %s49
    %p61 = scmp.eq.s32.totalorder %s18, 1
    %p62 = por %p60, %p61
    %p64 = scmp.ne.s32.totalorder %s49, %s63
    %p65 = scmp.eq.s32.totalorder %s18, 0
    %p66 = por %p64, %p65
    %s68 = sadd.s32 %s67, 1
    %p71 = scmp.eq.s32.totalorder %s12, 1
    %p72 = scmp.ne.s32.totalorder %s67, %s69
    %p73 = scmp.eq.s32.totalorder %s12, 0
    %p74 = por %p72, %p73
    %p75 = scmp.ne.s32.totalorder %s67, %s69
    %p76 = scmp.eq.s32.totalorder %s17, 1
    %p77 = por %p75, %p76
    %p78 = scmp.ne.s32.totalorder %s69, %s70
    %p79 = scmp.eq.s32.totalorder %s17, 0
    %p80 = por %p78, %p79
    %p81 = scmp.ne.s32.totalorder %s69, %s70
    %p82 = scmp.eq.s32.totalorder %s18, 1
    %p83 = por %p81, %p82
    %p85 = scmp.ne.s32.totalorder %s70, %s84
    %p86 = scmp.eq.s32.totalorder %s18, 0
    %p87 = por %p85, %p86
    %s89 = sadd.s32 %s88, 1
    %p92 = scmp.eq.s32.totalorder %s12, 1
    %p93 = scmp.ne.s32.totalorder %s88, %s90
    %p94 = scmp.eq.s32.totalorder %s12, 0
    %p95 = por %p93, %p94
    %p96 = scmp.ne.s32.totalorder %s88, %s90
    %p97 = scmp.eq.s32.totalorder %s17, 1
    %p98 = por %p96, %p97
    %p99 = scmp.ne.s32.totalorder %s90, %s91
    %p100 = scmp.eq.s32.totalorder %s17, 0
    %p101 = por %p99, %p100
    %p102 = scmp.ne.s32.totalorder %s90, %s91
    %p103 = scmp.eq.s32.totalorder %s18, 1
    %p104 = por %p102, %p103
    %p106 = scmp.ne.s32.totalorder %s91, %s105
    %p107 = scmp.eq.s32.totalorder %s18, 0
    %p108 = por %p106, %p107
    %s110 = sadd.s32 %s109, 1
    %p113 = scmp.eq.s32.totalorder %s12, 1
    %p114 = scmp.ne.s32.totalorder %s109, %s111
    %p115 = scmp.eq.s32.totalorder %s12, 0
    %p116 = por %p114, %p115
    %p117 = scmp.ne.s32.totalorder %s109, %s111
    %p118 = scmp.eq.s32.totalorder %s17, 1
    %p119 = por %p117, %p118
    %p120 = scmp.ne.s32.totalorder %s111, %s112
    %p121 = scmp.eq.s32.totalorder %s17, 0
    %p122 = por %p120, %p121
    %p123 = scmp.ne.s32.totalorder %s111, %s112
    %p124 = scmp.eq.s32.totalorder %s18, 1
    %p125 = por %p123, %p124
    %p127 = scmp.ne.s32.totalorder %s112, %s126
    %p128 = scmp.eq.s32.totalorder %s18, 0
    %p129 = por %p127, %p128
    %s131 = sadd.s32 %s130, 1
    %p134 = scmp.eq.s32.totalorder %s12, 1
    %p135 = scmp.ne.s32.totalorder %s130, %s132
    %p136 = scmp.eq.s32.totalorder %s12, 0
    %p137 = por %p135, %p136
    %p138 = scmp.ne.s32.totalorder %s130, %s132
    %p139 = scmp.eq.s32.totalorder %s17, 1
    %p140 = por %p138, %p139
    %p141 = scmp.ne.s32.totalorder %s132, %s133
    %p142 = scmp.eq.s32.totalorder %s17, 0
    %p143 = por %p141, %p142
    %p144 = scmp.ne.s32.totalorder %s132, %s133
    %p145 = scmp.eq.s32.totalorder %s18, 1
    %p146 = por %p144, %p145
    %p148 = scmp.ne.s32.totalorder %s133, %s147
    %p149 = scmp.eq.s32.totalorder %s18, 0
    %p150 = por %p148, %p149
    %s151 = ssub.s32 %s12, %s19
    %p152 = scmp.eq.s32.totalorder %s151, 0
    %s154 = sadd.s32 %s153, 1
    %s155 = scalar_select %p152, %s153, %s154
    %p158 = pneg %p152
    %p159 = scmp.eq.s32.totalorder %s12, 1
    %p160 = por %p158, %p159
    %p161 = scmp.ne.s32.totalorder %s153, %s156
    %p162 = scmp.eq.s32.totalorder %s12, 0
    %p163 = por %p161, %p162
    %p164 = scmp.ne.s32.totalorder %s153, %s156
    %p165 = scmp.eq.s32.totalorder %s17, 1
    %p166 = por %p164, %p165
    %p167 = scmp.ne.s32.totalorder %s156, %s157
    %p168 = scmp.eq.s32.totalorder %s17, 0
    %p169 = por %p167, %p168
    %p170 = scmp.ne.s32.totalorder %s156, %s157
    %p171 = scmp.eq.s32.totalorder %s18, 1
    %p172 = por %p170, %p171
    %p174 = scmp.ne.s32.totalorder %s157, %s173
    %p175 = scmp.eq.s32.totalorder %s18, 0
    %p176 = por %p174, %p175
    %p177 = scmp.le.s32.totalorder 1, %s12
    %p178 = scmp.lt.s32.totalorder %s12, 3
    %p179 = pnand %p177, %p178
    %p180 = pneg %p179
    // Predicated region
    $region9: #{_lambda_.17} parent=5 // pred_check
      _
    $region10: #{_lambda_.17} parent=5 // pred_check_branch
      %182 = sbr.rel (%p179) target = $region12
    $region11: #{_lambda_.17} parent=5 // pred_region
      %s183 = ssub.s32 %s12, 1
      // Predicated region
      $region13: #{_lambda_.17} parent=11 // pred_check
        %p184 = pneg %p59
      $region14: #{_lambda_.17} parent=11 // pred_check_branch
        %186 = sbr.rel (%p184) target = $region16
      $region15: #{_lambda_.17} parent=11 // pred_region
        _
      $region16: #{_lambda_.17} parent=11 // pred_fallthru
        _
      // Predicated region
      $region17: #{_lambda_.17} parent=11 // pred_check
        %p187 = pneg %p80
      $region18: #{_lambda_.17} parent=11 // pred_check_branch
        %189 = sbr.rel (%p187) target = $region20
      $region19: #{_lambda_.17} parent=11 // pred_region
        _
      $region20: #{_lambda_.17} parent=11 // pred_fallthru
        _
      // Predicated region
      $region21: #{_lambda_.17} parent=11 // pred_check
        %p190 = pneg %p101
      $region22: #{_lambda_.17} parent=11 // pred_check_branch
        %192 = sbr.rel (%p190) target = $region24
      $region23: #{_lambda_.17} parent=11 // pred_region
        _
      $region24: #{_lambda_.17} parent=11 // pred_fallthru
        _
      // Predicated region
      $region25: #{_lambda_.17} parent=11 // pred_check
        %p193 = pneg %p122
      $region26: #{_lambda_.17} parent=11 // pred_check_branch
        %195 = sbr.rel (%p193) target = $region28
      $region27: #{_lambda_.17} parent=11 // pred_region
        _
      $region28: #{_lambda_.17} parent=11 // pred_fallthru
        _
      // Predicated region
      $region29: #{_lambda_.17} parent=11 // pred_check
        %p196 = pneg %p143
      $region30: #{_lambda_.17} parent=11 // pred_check_branch
        %198 = sbr.rel (%p196) target = $region32
      $region31: #{_lambda_.17} parent=11 // pred_region
        _
      $region32: #{_lambda_.17} parent=11 // pred_fallthru
        _
    $region12: #{_lambda_.17} parent=5 // pred_fallthru
      _
    %p199 = scmp.lt.s32.totalorder %s12, 2
    // Predicated region
    $region33: #{_lambda_.17} parent=5 // pred_check
      %p200 = pneg %p199
    $region34: #{_lambda_.17} parent=5 // pred_check_branch
      %202 = sbr.rel (%p200) target = $region36
    $region35: #{_lambda_.17} parent=5 // pred_region
      // Predicated region
      $region37: #{_lambda_.17} parent=35 // pred_check
        %p203 = pneg %p32
      $region38: #{_lambda_.17} parent=35 // pred_check_branch
        %205 = sbr.rel (%p203) target = $region40
      $region39: #{_lambda_.17} parent=35 // pred_region
        %p206 = scmp.lt.s32.totalorder %s12, 1
        %s207 = scalar_select %p206, %s12, 1
        %s208 = smul.addr %s207, 4
        %s209 = scalar_lea.vmem %s0, %s208
      $region40: #{_lambda_.17} parent=35 // pred_fallthru
        _
    $region36: #{_lambda_.17} parent=5 // pred_fallthru
      _
    %p210 = scmp.le.s32.totalorder 1, %s12
    %p211 = scmp.lt.s32.totalorder %s12, 3
    %p212 = pnand %p210, %p211
    %p213 = pneg %p212
    // Predicated region
    $region41: #{_lambda_.17} parent=5 // pred_check
      _
    $region42: #{_lambda_.17} parent=5 // pred_check_branch
      %215 = sbr.rel (%p212) target = $region44
    $region43: #{_lambda_.17} parent=5 // pred_region
      %s216 = ssub.s32 %s12, 1
      %p217 = scmp.lt.s32.totalorder %s17, 1
      %s218 = scalar_select %p217, %s17, 1
      %s219 = smul.addr %s218, 4
      %s220 = scalar_lea.vmem %s0, %s219
      %p221 = pneg %p38
      %p222 = pneg %p35
      %p223 = pneg %p59
      %p224 = pneg %p56
      %p225 = pneg %p80
      %p226 = pneg %p77
      %p227 = pneg %p101
      %p228 = pneg %p98
      %p229 = pneg %p122
      %p230 = pneg %p119
      %p231 = pneg %p143
      %p232 = pneg %p140
      %p233 = pneg %p169
      %p234 = pneg %p166
      %p235 = scmp.lt.s32.totalorder %s17, 1
      %s236 = scalar_select %p235, %s17, 1
      %s237 = smul.addr %s236, 4
      %s238 = scalar_lea.vmem %s6, %s237
      %p239 = scmp.lt.s32.totalorder %s17, 1
      %s240 = scalar_select %p239, %s17, 1
      %s241 = smul.addr %s240, 4
      %s242 = scalar_lea.vmem %s0, %s241
      %p243 = scmp.lt.s32.totalorder %s17, 1
      %s244 = scalar_select %p243, %s17, 1
      %s245 = smul.addr %s244, 4
      %s246 = scalar_lea.vmem %s6, %s245
      %v247 = vld [vmem:[%s242] sm:$0xf]
      %v248 = vunpack.c.l.bf16 %v247
      %v249 = vld [vmem:[%s3] sm:$0xff]
      %v250 = vld [vmem:[%s3 + $0x8] sm:$0xff]
      %v251 = vld [vmem:[%s3 + $0x10] sm:$0xff]
      %v252 = vld [vmem:[%s3 + $0x18] sm:$0xff]
      %v253 = vld [vmem:[%s3 + $0x20] sm:$0xff]
      %v254 = vld [vmem:[%s3 + $0x28] sm:$0xff]
      %v255 = vld [vmem:[%s3 + $0x30] sm:$0xff]
      %v256 = vld [vmem:[%s3 + $0x38] sm:$0xff]
      %v257 = vld [vmem:[%s3 + $0x40] sm:$0xff]
      %v258 = vld [vmem:[%s3 + $0x48] sm:$0xff]
      %v259 = vld [vmem:[%s3 + $0x50] sm:$0xff]
      %v260 = vld [vmem:[%s3 + $0x58] sm:$0xff]
      %v261 = vld [vmem:[%s3 + $0x60] sm:$0xff]
      %v262 = vld [vmem:[%s3 + $0x68] sm:$0xff]
      %v263 = vld [vmem:[%s3 + $0x70] sm:$0xff]
      %v264 = vld [vmem:[%s3 + $0x78] sm:$0xff]
      %v265 = vrot.slane %v248, 4
      %v266 = vadd.f32 %v248, %v265
      %v267 = vrot.slane %v266, 2
      %v268 = vadd.f32 %v266, %v267
      %v269 = vrot.slane %v268, 1
      %v270 = vadd.f32 %v268, %v269
      %v271 = vmul.f32 %v248, %v248
      %v272 = vrot.slane %v271, 4
      %v273 = vadd.f32 %v271, %v272
      %v274 = vrot.slane %v273, 2
      %v275 = vadd.f32 %v273, %v274
      %v276 = vrot.slane %v275, 1
      %v277 = vadd.f32 %v275, %v276
      %278 = vmatprep.subr.mxu0 0.0
      %279 = vmatpush1.msra.mxu0 %v249
      %280 = vmatprep.subr.mxu0 0.0
      %281 = vmatpush1.msra.mxu0 %v250
      %282 = vmatprep.subr.mxu0 0.0
      %283 = vmatpush1.msra.mxu0 %v251
      %284 = vmatprep.subr.mxu0 0.0
      %285 = vmatpush1.msra.mxu0 %v252
      %286 = vmatprep.subr.mxu0 0.0
      %287 = vmatpush1.msra.mxu0 %v253
      %288 = vmatprep.subr.mxu0 0.0
      %289 = vmatpush1.msra.mxu0 %v254
      %290 = vmatprep.subr.mxu0 0.0
      %291 = vmatpush1.msra.mxu0 %v255
      %292 = vmatprep.subr.mxu0 0.0
      %293 = vmatpush1.msra.mxu0 %v256
      %294 = vmatprep.subr.mxu0 0.0
      %295 = vmatpush1.msra.mxu0 %v257
      %296 = vmatprep.subr.mxu0 0.0
      %297 = vmatpush1.msra.mxu0 %v258
      %298 = vmatprep.subr.mxu0 0.0
      %299 = vmatpush1.msra.mxu0 %v259
      %300 = vmatprep.subr.mxu0 0.0
      %301 = vmatpush1.msra.mxu0 %v260
      %302 = vmatprep.subr.mxu0 0.0
      %303 = vmatpush1.msra.mxu0 %v261
      %304 = vmatprep.subr.mxu0 0.0
      %305 = vmatpush1.msra.mxu0 %v262
      %306 = vmatprep.subr.mxu0 0.0
      %307 = vmatpush1.msra.mxu0 %v263
      %308 = vmatprep.subr.mxu0 0.0
      %309 = vmatpush1.msra.mxu0 %v264
      %310 = vmatprep.subr.mxu0 0.0
      %311 = vmatpush1.msra.mxu0 0.0
      %312 = vmatprep.subr.mxu0 0.0
      %313 = vmatpush1.msra.mxu0 0.0
      %314 = vmatprep.subr.mxu0 0.0
      %315 = vmatpush1.msra.mxu0 0.0
      %316 = vmatprep.subr.mxu0 0.0
      %317 = vmatpush1.msra.mxu0 0.0
      %318 = vmatprep.subr.mxu0 0.0
      %319 = vmatpush1.msra.mxu0 0.0
      %320 = vmatprep.subr.mxu0 0.0
      %321 = vmatpush1.msra.mxu0 0.0
      %322 = vmatprep.subr.mxu0 0.0
      %323 = vmatpush1.msra.mxu0 0.0
      %324 = vmatprep.subr.mxu0 0.0
      %325 = vmatpush1.msra.mxu0 0.0
      %326 = vmatprep.subr.mxu0 0.0
      %327 = vmatpush1.msra.mxu0 0.0
      %328 = vmatprep.subr.mxu0 0.0
      %329 = vmatpush1.msra.mxu0 0.0
      %330 = vmatprep.subr.mxu0 0.0
      %331 = vmatpush1.msra.mxu0 0.0
      %332 = vmatprep.subr.mxu0 0.0
      %333 = vmatpush1.msra.mxu0 0.0
      %334 = vmatprep.subr.mxu0 0.0
      %335 = vmatpush1.msra.mxu0 0.0
      %336 = vmatprep.subr.mxu0 0.0
      %337 = vmatpush1.msra.mxu0 0.0
      %338 = vmatprep.subr.mxu0 0.0
      %339 = vmatpush1.msra.mxu0 0.0
      %340 = vmatprep.subr.mxu0 0.0
      %341 = vmatpush1.msra.mxu0 0.0
      %342 = vmatprep.mubr.f32.mxu0 0.0
      %343 = vmatmul.mubr.f32.gmra.mrb[0].mxu0 %v270
      %v344 = vpop.f32.mrb[0].mxu0
      %v345 = vadd.f32 0.0, %v344
      %v346 = vpop.f32.mrb[0].mxu0
      %347 = vdwg.mxu0
      %v348 = vmul.f32 %v345, 0.125
      %349 = vmatprep.subr.mxu0 0.0
      %350 = vmatpush1.msra.mxu0 %v249
      %351 = vmatprep.subr.mxu0 0.0
      %352 = vmatpush1.msra.mxu0 %v250
      %353 = vmatprep.subr.mxu0 0.0
      %354 = vmatpush1.msra.mxu0 %v251
      %355 = vmatprep.subr.mxu0 0.0
      %356 = vmatpush1.msra.mxu0 %v252
      %357 = vmatprep.subr.mxu0 0.0
      %358 = vmatpush1.msra.mxu0 %v253
      %359 = vmatprep.subr.mxu0 0.0
      %360 = vmatpush1.msra.mxu0 %v254
      %361 = vmatprep.subr.mxu0 0.0
      %362 = vmatpush1.msra.mxu0 %v255
      %363 = vmatprep.subr.mxu0 0.0
      %364 = vmatpush1.msra.mxu0 %v256
      %365 = vmatprep.subr.mxu0 0.0
      %366 = vmatpush1.msra.mxu0 %v257
      %367 = vmatprep.subr.mxu0 0.0
      %368 = vmatpush1.msra.mxu0 %v258
      %369 = vmatprep.subr.mxu0 0.0
      %370 = vmatpush1.msra.mxu0 %v259
      %371 = vmatprep.subr.mxu0 0.0
      %372 = vmatpush1.msra.mxu0 %v260
      %373 = vmatprep.subr.mxu0 0.0
      %374 = vmatpush1.msra.mxu0 %v261
      %375 = vmatprep.subr.mxu0 0.0
      %376 = vmatpush1.msra.mxu0 %v262
      %377 = vmatprep.subr.mxu0 0.0
      %378 = vmatpush1.msra.mxu0 %v263
      %379 = vmatprep.subr.mxu0 0.0
      %380 = vmatpush1.msra.mxu0 %v264
      %381 = vmatprep.subr.mxu0 0.0
      %382 = vmatpush1.msra.mxu0 0.0
      %383 = vmatprep.subr.mxu0 0.0
      %384 = vmatpush1.msra.mxu0 0.0
      %385 = vmatprep.subr.mxu0 0.0
      %386 = vmatpush1.msra.mxu0 0.0
      %387 = vmatprep.subr.mxu0 0.0
      %388 = vmatpush1.msra.mxu0 0.0
      %389 = vmatprep.subr.mxu0 0.0
      %390 = vmatpush1.msra.mxu0 0.0
      %391 = vmatprep.subr.mxu0 0.0
      %392 = vmatpush1.msra.mxu0 0.0
      %393 = vmatprep.subr.mxu0 0.0
      %394 = vmatpush1.msra.mxu0 0.0
      %395 = vmatprep.subr.mxu0 0.0
      %396 = vmatpush1.msra.mxu0 0.0
      %397 = vmatprep.subr.mxu0 0.0
      %398 = vmatpush1.msra.mxu0 0.0
      %399 = vmatprep.subr.mxu0 0.0
      %400 = vmatpush1.msra.mxu0 0.0
      %401 = vmatprep.subr.mxu0 0.0
      %402 = vmatpush1.msra.mxu0 0.0
      %403 = vmatprep.subr.mxu0 0.0
      %404 = vmatpush1.msra.mxu0 0.0
      %405 = vmatprep.subr.mxu0 0.0
      %406 = vmatpush1.msra.mxu0 0.0
      %407 = vmatprep.subr.mxu0 0.0
      %408 = vmatpush1.msra.mxu0 0.0
      %409 = vmatprep.subr.mxu0 0.0
      %410 = vmatpush1.msra.mxu0 0.0
      %411 = vmatprep.subr.mxu0 0.0
      %412 = vmatpush1.msra.mxu0 0.0
      %413 = vmatprep.mubr.f32.mxu0 0.0
      %414 = vmatmul.mubr.f32.gmra.mrb[0].mxu0 %v277
      %v415 = vpop.f32.mrb[0].mxu0
      %v416 = vadd.f32 0.0, %v415
      %v417 = vpop.f32.mrb[0].mxu0
      %418 = vdwg.mxu0
      %v419 = vmul.f32 %v416, 0.125
      %v420 = vmul.f32 %v348, %v348
      %v421 = vsub.f32 %v419, %v420
      %v422 = vmax.f32 %v421, 0.0
      %vm423 = vcmask 261120
      %v425 = vsel %vm423, %v348, 0
      %v428 = vsel %vm423, %v249, 0
      %v431 = vsel %vm423, %v250, 0
      %v434 = vsel %vm423, %v251, 0
      %v437 = vsel %vm423, %v252, 0
      %v440 = vsel %vm423, %v253, 0
      %v443 = vsel %vm423, %v254, 0
      %v446 = vsel %vm423, %v255, 0
      %v449 = vsel %vm423, %v256, 0
      %v452 = vsel %vm423, %v257, 0
      %v455 = vsel %vm423, %v258, 0
      %v458 = vsel %vm423, %v259, 0
      %v461 = vsel %vm423, %v260, 0
      %v464 = vsel %vm423, %v261, 0
      %v467 = vsel %vm423, %v262, 0
      %v470 = vsel %vm423, %v263, 0
      %v473 = vsel %vm423, %v264, 0
      %475 = vmatprep.subr.mxu0 0.0
      %476 = vmatpush1.xpose.msra.mxu0 %v428
      %477 = vmatprep.subr.mxu0 0.0
      %478 = vmatpush1.xpose.msra.mxu0 %v431
      %479 = vmatprep.subr.mxu0 0.0
      %480 = vmatpush1.xpose.msra.mxu0 %v434
      %481 = vmatprep.subr.mxu0 0.0
      %482 = vmatpush1.xpose.msra.mxu0 %v437
      %483 = vmatprep.subr.mxu0 0.0
      %484 = vmatpush1.xpose.msra.mxu0 %v440
      %485 = vmatprep.subr.mxu0 0.0
      %486 = vmatpush1.xpose.msra.mxu0 %v443
      %487 = vmatprep.subr.mxu0 0.0
      %488 = vmatpush1.xpose.msra.mxu0 %v446
      %489 = vmatprep.subr.mxu0 0.0
      %490 = vmatpush1.xpose.msra.mxu0 %v449
      %491 = vmatprep.subr.mxu0 0.0
      %492 = vmatpush1.xpose.msra.mxu0 %v452
      %493 = vmatprep.subr.mxu0 0.0
      %494 = vmatpush1.xpose.msra.mxu0 %v455
      %495 = vmatprep.subr.mxu0 0.0
      %496 = vmatpush1.xpose.msra.mxu0 %v458
      %497 = vmatprep.subr.mxu0 0.0
      %498 = vmatpush1.xpose.msra.mxu0 %v461
      %499 = vmatprep.subr.mxu0 0.0
      %500 = vmatpush1.xpose.msra.mxu0 %v464
      %501 = vmatprep.subr.mxu0 0.0
      %502 = vmatpush1.xpose.msra.mxu0 %v467
      %503 = vmatprep.subr.mxu0 0.0
      %504 = vmatpush1.xpose.msra.mxu0 %v470
      %505 = vmatprep.subr.mxu0 0.0
      %506 = vmatpush1.xpose.msra.mxu0 %v473
      %507 = vmatprep.subr.mxu0 0.0
      %508 = vmatpush1.xpose.msra.mxu0 0.0
      %509 = vmatprep.subr.mxu0 0.0
      %510 = vmatpush1.xpose.msra.mxu0 0.0
      %511 = vmatprep.subr.mxu0 0.0
      %512 = vmatpush1.xpose.msra.mxu0 0.0
      %513 = vmatprep.subr.mxu0 0.0
      %514 = vmatpush1.xpose.msra.mxu0 0.0
      %515 = vmatprep.subr.mxu0 0.0
      %516 = vmatpush1.xpose.msra.mxu0 0.0
      %517 = vmatprep.subr.mxu0 0.0
      %518 = vmatpush1.xpose.msra.mxu0 0.0
      %519 = vmatprep.subr.mxu0 0.0
      %520 = vmatpush1.xpose.msra.mxu0 0.0
      %521 = vmatprep.subr.mxu0 0.0
      %522 = vmatpush1.xpose.msra.mxu0 0.0
      %523 = vmatprep.subr.mxu0 0.0
      %524 = vmatpush1.xpose.msra.mxu0 0.0
      %525 = vmatprep.subr.mxu0 0.0
      %526 = vmatpush1.xpose.msra.mxu0 0.0
      %527 = vmatprep.subr.mxu0 0.0
      %528 = vmatpush1.xpose.msra.mxu0 0.0
      %529 = vmatprep.subr.mxu0 0.0
      %530 = vmatpush1.xpose.msra.mxu0 0.0
      %531 = vmatprep.subr.mxu0 0.0
      %532 = vmatpush1.xpose.msra.mxu0 0.0
      %533 = vmatprep.subr.mxu0 0.0
      %534 = vmatpush1.xpose.msra.mxu0 0.0
      %535 = vmatprep.subr.mxu0 0.0
      %536 = vmatpush1.xpose.msra.mxu0 0.0
      %537 = vmatprep.subr.mxu0 0.0
      %538 = vmatpush1.xpose.msra.mxu0 0.0
      %539 = vmatprep.mubr.f32.mxu0 0.0
      %540 = vmatmul.mubr.f32.gmra.mrb[0].mxu0 %v425
      %v541 = vpop.f32.mrb[0].mxu0
      %v542 = vadd.f32 0.0, %v541
      %v543 = vpop.f32.mrb[0].mxu0
      %544 = vdwg.mxu0
      %v546 = vsel %vm423, %v422, 0
      %548 = vmatprep.subr.mxu0 0.0
      %549 = vmatpush1.xpose.msra.mxu0 %v428
      %550 = vmatprep.subr.mxu0 0.0
      %551 = vmatpush1.xpose.msra.mxu0 %v431
      %552 = vmatprep.subr.mxu0 0.0
      %553 = vmatpush1.xpose.msra.mxu0 %v434
      %554 = vmatprep.subr.mxu0 0.0
      %555 = vmatpush1.xpose.msra.mxu0 %v437
      %556 = vmatprep.subr.mxu0 0.0
      %557 = vmatpush1.xpose.msra.mxu0 %v440
      %558 = vmatprep.subr.mxu0 0.0
      %559 = vmatpush1.xpose.msra.mxu0 %v443
      %560 = vmatprep.subr.mxu0 0.0
      %561 = vmatpush1.xpose.msra.mxu0 %v446
      %562 = vmatprep.subr.mxu0 0.0
      %563 = vmatpush1.xpose.msra.mxu0 %v449
      %564 = vmatprep.subr.mxu0 0.0
      %565 = vmatpush1.xpose.msra.mxu0 %v452
      %566 = vmatprep.subr.mxu0 0.0
      %567 = vmatpush1.xpose.msra.mxu0 %v455
      %568 = vmatprep.subr.mxu0 0.0
      %569 = vmatpush1.xpose.msra.mxu0 %v458
      %570 = vmatprep.subr.mxu0 0.0
      %571 = vmatpush1.xpose.msra.mxu0 %v461
      %572 = vmatprep.subr.mxu0 0.0
      %573 = vmatpush1.xpose.msra.mxu0 %v464
      %574 = vmatprep.subr.mxu0 0.0
      %575 = vmatpush1.xpose.msra.mxu0 %v467
      %576 = vmatprep.subr.mxu0 0.0
      %577 = vmatpush1.xpose.msra.mxu0 %v470
      %578 = vmatprep.subr.mxu0 0.0
      %579 = vmatpush1.xpose.msra.mxu0 %v473
      %580 = vmatprep.subr.mxu0 0.0
      %581 = vmatpush1.xpose.msra.mxu0 0.0
      %582 = vmatprep.subr.mxu0 0.0
      %583 = vmatpush1.xpose.msra.mxu0 0.0
      %584 = vmatprep.subr.mxu0 0.0
      %585 = vmatpush1.xpose.msra.mxu0 0.0
      %586 = vmatprep.subr.mxu0 0.0
      %587 = vmatpush1.xpose.msra.mxu0 0.0
      %588 = vmatprep.subr.mxu0 0.0
      %589 = vmatpush1.xpose.msra.mxu0 0.0
      %590 = vmatprep.subr.mxu0 0.0
      %591 = vmatpush1.xpose.msra.mxu0 0.0
      %592 = vmatprep.subr.mxu0 0.0
      %593 = vmatpush1.xpose.msra.mxu0 0.0
      %594 = vmatprep.subr.mxu0 0.0
      %595 = vmatpush1.xpose.msra.mxu0 0.0
      %596 = vmatprep.subr.mxu0 0.0
      %597 = vmatpush1.xpose.msra.mxu0 0.0
      %598 = vmatprep.subr.mxu0 0.0
      %599 = vmatpush1.xpose.msra.mxu0 0.0
      %600 = vmatprep.subr.mxu0 0.0
      %601 = vmatpush1.xpose.msra.mxu0 0.0
      %602 = vmatprep.subr.mxu0 0.0
      %603 = vmatpush1.xpose.msra.mxu0 0.0
      %604 = vmatprep.subr.mxu0 0.0
      %605 = vmatpush1.xpose.msra.mxu0 0.0
      %606 = vmatprep.subr.mxu0 0.0
      %607 = vmatpush1.xpose.msra.mxu0 0.0
      %608 = vmatprep.subr.mxu0 0.0
      %609 = vmatpush1.xpose.msra.mxu0 0.0
      %610 = vmatprep.subr.mxu0 0.0
      %611 = vmatpush1.xpose.msra.mxu0 0.0
      %612 = vmatprep.mubr.f32.mxu0 0.0
      %613 = vmatmul.mubr.f32.gmra.mrb[0].mxu0 %v546
      %v614 = vpop.f32.mrb[0].mxu0
      %v615 = vadd.f32 1e-06, %v614
      %v616 = vpop.f32.mrb[0].mxu0
      %617 = vdwg.mxu0
      %v618 = vrsqrt.pop %v615
      %v619 = vld [vmem:[%s1] sm:$0x1]
      %v620 = vmul.f32 %v619, %v618
      %v621 = vld [vmem:[%s2] sm:$0x1]
      %v622 = vmul.f32 %v542, %v620
      %v623 = vsub.f32 %v621, %v622
      %v625 = vlaneseq
      %v626 = vshrl.u32 %v625, 7
      %v627 = vsub.s32 0, %v626
      %v628 = vrot.slane %v620, %v627
      %v630 = vmul.f32 %v248, %v628
      %v632 = vlaneseq
      %v633 = vshrl.u32 %v632, 7
      %v634 = vsub.s32 0, %v633
      %v635 = vrot.slane %v623, %v634
      %v637 = vadd.f32 %v630, %v635
      %v638 = vxor.u32 %v637, 2147483648
      %v639 = vmul.f32 %v638, 1.442695
      %v640 = vpow.pop %v639
      %v641 = vadd.f32 %v640, 1.0
      %v642 = vrcp.pop %v641
      %v643 = vmul.f32 1.0, %v642
      %v644 = vmul.f32 %v637, %v643
      %v645 = vrot.slane %v644, 7
      %v646 = vlaneseq
      %v647 = vshrl.u32 %v646, 7
      %vm648 = vcmp.eq.s32.totalorder %v647, 0
      %v649 = vsel %vm648, 0.0, %v645
      %v650 = vrot.slane %v644, 1
      %vm651 = vcmp.eq.s32.totalorder %v647, 7
      %v652 = vsel %vm651, 0.0, %v650
      %v653 = vld [vmem:[%s4] sm:$0xff]
      %v654 = vld [vmem:[%s4 + $0x8] sm:$0xff]
      %v655 = vld [vmem:[%s4 + $0x10] sm:$0xff]
      %v656 = vld [vmem:[%s4 + $0x18] sm:$0xff]
      %v657 = vld [vmem:[%s4 + $0x20] sm:$0xff]
      %v658 = vld [vmem:[%s4 + $0x28] sm:$0xff]
      %v659 = vld [vmem:[%s4 + $0x30] sm:$0xff]
      %v660 = vld [vmem:[%s4 + $0x38] sm:$0xff]
      %v661 = vld [vmem:[%s4 + $0x40] sm:$0xff]
      %v662 = vld [vmem:[%s4 + $0x48] sm:$0xff]
      %v663 = vld [vmem:[%s4 + $0x50] sm:$0xff]
      %v664 = vld [vmem:[%s4 + $0x58] sm:$0xff]
      %v665 = vld [vmem:[%s4 + $0x60] sm:$0xff]
      %v666 = vld [vmem:[%s4 + $0x68] sm:$0xff]
      %v667 = vld [vmem:[%s4 + $0x70] sm:$0xff]
      %v668 = vld [vmem:[%s4 + $0x78] sm:$0xff]
      %v669 = vld [vmem:[%s4 + $0x80] sm:$0xff]
      %v670 = vld [vmem:[%s4 + $0x88] sm:$0xff]
      %v671 = vld [vmem:[%s4 + $0x90] sm:$0xff]
      %v672 = vld [vmem:[%s4 + $0x98] sm:$0xff]
      %v673 = vld [vmem:[%s4 + $0xa0] sm:$0xff]
      %v674 = vld [vmem:[%s4 + $0xa8] sm:$0xff]
      %v675 = vld [vmem:[%s4 + $0xb0] sm:$0xff]
      %v676 = vld [vmem:[%s4 + $0xb8] sm:$0xff]
      %v677 = vld [vmem:[%s4 + $0xc0] sm:$0xff]
      %v678 = vld [vmem:[%s4 + $0xc8] sm:$0xff]
      %v679 = vld [vmem:[%s4 + $0xd0] sm:$0xff]
      %v680 = vld [vmem:[%s4 + $0xd8] sm:$0xff]
      %v681 = vld [vmem:[%s4 + $0xe0] sm:$0xff]
      %v682 = vld [vmem:[%s4 + $0xe8] sm:$0xff]
      %v683 = vld [vmem:[%s4 + $0xf0] sm:$0xff]
      %v684 = vld [vmem:[%s4 + $0xf8] sm:$0xff]
      %v685 = vld [vmem:[%s4 + $0x100] sm:$0xff]
      %v686 = vld [vmem:[%s4 + $0x108] sm:$0xff]
      %v687 = vld [vmem:[%s4 + $0x110] sm:$0xff]
      %v688 = vld [vmem:[%s4 + $0x118] sm:$0xff]
      %v689 = vld [vmem:[%s4 + $0x120] sm:$0xff]
      %v690 = vld [vmem:[%s4 + $0x128] sm:$0xff]
      %v691 = vld [vmem:[%s4 + $0x130] sm:$0xff]
      %v692 = vld [vmem:[%s4 + $0x138] sm:$0xff]
      %v693 = vld [vmem:[%s4 + $0x140] sm:$0xff]
      %v694 = vld [vmem:[%s4 + $0x148] sm:$0xff]
      %v695 = vld [vmem:[%s4 + $0x150] sm:$0xff]
      %v696 = vld [vmem:[%s4 + $0x158] sm:$0xff]
      %v697 = vld [vmem:[%s4 + $0x160] sm:$0xff]
      %v698 = vld [vmem:[%s4 + $0x168] sm:$0xff]
      %v699 = vld [vmem:[%s4 + $0x170] sm:$0xff]
      %v700 = vld [vmem:[%s4 + $0x178] sm:$0xff]
      %v701 = vld [vmem:[%s5] sm:$0x1]
      %v703 = vlaneseq
      %v704 = vshrl.u32 %v703, 7
      %v705 = vsub.s32 0, %v704
      %v706 = vrot.slane %v701, %v705
      %708 = vmatprep.subr.mxu0 0.0
      %709 = vmatpush1.msra.mxu0 %v653
      %710 = vmatprep.subr.mxu0 0.0
      %711 = vmatpush1.msra.mxu0 %v654
      %712 = vmatprep.subr.mxu0 0.0
      %713 = vmatpush1.msra.mxu0 %v655
      %714 = vmatprep.subr.mxu0 0.0
      %715 = vmatpush1.msra.mxu0 %v656
      %716 = vmatprep.subr.mxu0 0.0
      %717 = vmatpush1.msra.mxu0 %v657
      %718 = vmatprep.subr.mxu0 0.0
      %719 = vmatpush1.msra.mxu0 %v658
      %720 = vmatprep.subr.mxu0 0.0
      %721 = vmatpush1.msra.mxu0 %v659
      %722 = vmatprep.subr.mxu0 0.0
      %723 = vmatpush1.msra.mxu0 %v660
      %724 = vmatprep.subr.mxu0 0.0
      %725 = vmatpush1.msra.mxu0 %v661
      %726 = vmatprep.subr.mxu0 0.0
      %727 = vmatpush1.msra.mxu0 %v662
      %728 = vmatprep.subr.mxu0 0.0
      %729 = vmatpush1.msra.mxu0 %v663
      %730 = vmatprep.subr.mxu0 0.0
      %731 = vmatpush1.msra.mxu0 %v664
      %732 = vmatprep.subr.mxu0 0.0
      %733 = vmatpush1.msra.mxu0 %v665
      %734 = vmatprep.subr.mxu0 0.0
      %735 = vmatpush1.msra.mxu0 %v666
      %736 = vmatprep.subr.mxu0 0.0
      %737 = vmatpush1.msra.mxu0 %v667
      %738 = vmatprep.subr.mxu0 0.0
      %739 = vmatpush1.msra.mxu0 %v668
      %740 = vmatprep.subr.mxu0 0.0
      %741 = vmatpush1.msra.mxu0 %v669
      %742 = vmatprep.subr.mxu0 0.0
      %743 = vmatpush1.msra.mxu0 %v670
      %744 = vmatprep.subr.mxu0 0.0
      %745 = vmatpush1.msra.mxu0 %v671
      %746 = vmatprep.subr.mxu0 0.0
      %747 = vmatpush1.msra.mxu0 %v672
      %748 = vmatprep.subr.mxu0 0.0
      %749 = vmatpush1.msra.mxu0 %v673
      %750 = vmatprep.subr.mxu0 0.0
      %751 = vmatpush1.msra.mxu0 %v674
      %752 = vmatprep.subr.mxu0 0.0
      %753 = vmatpush1.msra.mxu0 %v675
      %754 = vmatprep.subr.mxu0 0.0
      %755 = vmatpush1.msra.mxu0 %v676
      %756 = vmatprep.subr.mxu0 0.0
      %757 = vmatpush1.msra.mxu0 %v677
      %758 = vmatprep.subr.mxu0 0.0
      %759 = vmatpush1.msra.mxu0 %v678
      %760 = vmatprep.subr.mxu0 0.0
      %761 = vmatpush1.msra.mxu0 %v679
      %762 = vmatprep.subr.mxu0 0.0
      %763 = vmatpush1.msra.mxu0 %v680
      %764 = vmatprep.subr.mxu0 0.0
      %765 = vmatpush1.msra.mxu0 %v681
      %766 = vmatprep.subr.mxu0 0.0
      %767 = vmatpush1.msra.mxu0 %v682
      %768 = vmatprep.subr.mxu0 0.0
      %769 = vmatpush1.msra.mxu0 %v683
      %770 = vmatprep.subr.mxu0 0.0
      %771 = vmatpush1.msra.mxu0 %v684
      %772 = vmatprep.mubr.f32.mxu0 %v644
      %773 = vmatmul.mubr.f32.gmra.mrb[0].mxu0 %v649
      %v774 = vpop.f32.mrb[0].mxu0
      %v775 = vadd.f32 %v706, %v774
      %v776 = vpop.f32.mrb[0].mxu0
      %777 = vdwg.mxu0
      %778 = vmatprep.subr.mxu0 0.0
      %779 = vmatpush1.msra.mxu0 %v685
      %780 = vmatprep.subr.mxu0 0.0
      %781 = vmatpush1.msra.mxu0 %v686
      %782 = vmatprep.subr.mxu0 0.0
      %783 = vmatpush1.msra.mxu0 %v687
      %784 = vmatprep.subr.mxu0 0.0
      %785 = vmatpush1.msra.mxu0 %v688
      %786 = vmatprep.subr.mxu0 0.0
      %787 = vmatpush1.msra.mxu0 %v689
      %788 = vmatprep.subr.mxu0 0.0
      %789 = vmatpush1.msra.mxu0 %v690
      %790 = vmatprep.subr.mxu0 0.0
      %791 = vmatpush1.msra.mxu0 %v691
      %792 = vmatprep.subr.mxu0 0.0
      %793 = vmatpush1.msra.mxu0 %v692
      %794 = vmatprep.subr.mxu0 0.0
      %795 = vmatpush1.msra.mxu0 %v693
      %796 = vmatprep.subr.mxu0 0.0
      %797 = vmatpush1.msra.mxu0 %v694
      %798 = vmatprep.subr.mxu0 0.0
      %799 = vmatpush1.msra.mxu0 %v695
      %800 = vmatprep.subr.mxu0 0.0
      %801 = vmatpush1.msra.mxu0 %v696
      %802 = vmatprep.subr.mxu0 0.0
      %803 = vmatpush1.msra.mxu0 %v697
      %804 = vmatprep.subr.mxu0 0.0
      %805 = vmatpush1.msra.mxu0 %v698
      %806 = vmatprep.subr.mxu0 0.0
      %807 = vmatpush1.msra.mxu0 %v699
      %808 = vmatprep.subr.mxu0 0.0
      %809 = vmatpush1.msra.mxu0 %v700
      %810 = vmatprep.subr.mxu0 0.0
      %811 = vmatpush1.msra.mxu0 0.0
      %812 = vmatprep.subr.mxu0 0.0
      %813 = vmatpush1.msra.mxu0 0.0
      %814 = vmatprep.subr.mxu0 0.0
      %815 = vmatpush1.msra.mxu0 0.0
      %816 = vmatprep.subr.mxu0 0.0
      %817 = vmatpush1.msra.mxu0 0.0
      %818 = vmatprep.subr.mxu0 0.0
      %819 = vmatpush1.msra.mxu0 0.0
      %820 = vmatprep.subr.mxu0 0.0
      %821 = vmatpush1.msra.mxu0 0.0
      %822 = vmatprep.subr.mxu0 0.0
      %823 = vmatpush1.msra.mxu0 0.0
      %824 = vmatprep.subr.mxu0 0.0
      %825 = vmatpush1.msra.mxu0 0.0
      %826 = vmatprep.subr.mxu0 0.0
      %827 = vmatpush1.msra.mxu0 0.0
      %828 = vmatprep.subr.mxu0 0.0
      %829 = vmatpush1.msra.mxu0 0.0
      %830 = vmatprep.subr.mxu0 0.0
      %831 = vmatpush1.msra.mxu0 0.0
      %832 = vmatprep.subr.mxu0 0.0
      %833 = vmatpush1.msra.mxu0 0.0
      %834 = vmatprep.subr.mxu0 0.0
      %835 = vmatpush1.msra.mxu0 0.0
      %836 = vmatprep.subr.mxu0 0.0
      %837 = vmatpush1.msra.mxu0 0.0
      %838 = vmatprep.subr.mxu0 0.0
      %839 = vmatpush1.msra.mxu0 0.0
      %840 = vmatprep.subr.mxu0 0.0
      %841 = vmatpush1.msra.mxu0 0.0
      %842 = vmatprep.mubr.f32.mxu0 0.0
      %843 = vmatmul.mubr.f32.gmra.mrb[0].mxu0 %v652
      %v844 = vpop.f32.mrb[0].mxu0
      %v845 = vadd.f32 %v775, %v844
      %v846 = vpop.f32.mrb[0].mxu0
      %847 = vdwg.mxu0
      %v848 = vpack.c.bf16 %v845, %v845
      %849 = vst [vmem:[%s246] sm:$0xf] %v848
      %p850 = scmp.lt.s32.totalorder %s17, 1
      %s851 = scalar_select %p850, %s17, 1
      %s852 = smul.addr %s851, 4
      %s853 = scalar_lea.vmem %s6, %s852
      // Predicated region
      $region45: #{_lambda_.17} parent=43 // pred_check
        %p854 = pneg %p166
      $region46: #{_lambda_.17} parent=43 // pred_check_branch
        %856 = sbr.rel (%p854) target = $region48
      $region47: #{_lambda_.17} parent=43 // pred_region
        _
      $region48: #{_lambda_.17} parent=43 // pred_fallthru
        _
    $region44: #{_lambda_.17} parent=5 // pred_fallthru
      _
    %p857 = scmp.le.s32.totalorder 2, %s12
    // Predicated region
    $region49: #{_lambda_.17} parent=5 // pred_check
      %p858 = pneg %p857
    $region50: #{_lambda_.17} parent=5 // pred_check_branch
      %860 = sbr.rel (%p858) target = $region52
    $region51: #{_lambda_.17} parent=5 // pred_region
      %s861 = ssub.s32 %s12, 2
      // Predicated region
      $region53: #{_lambda_.17} parent=51 // pred_check
        %p862 = pneg %p172
      $region54: #{_lambda_.17} parent=51 // pred_check_branch
        %864 = sbr.rel (%p862) target = $region56
      $region55: #{_lambda_.17} parent=51 // pred_region
        %p865 = scmp.lt.s32.totalorder %s18, 1
        %s866 = scalar_select %p865, %s18, 1
        %s867 = smul.addr %s866, 4
        %s868 = scalar_lea.vmem %s6, %s867
      $region56: #{_lambda_.17} parent=51 // pred_fallthru
        _
    $region52: #{_lambda_.17} parent=5 // pred_fallthru
      _
  $region6: #{_lambda_.17} parent=0 // loop_footer
    %s16 = sadd.s32 1, %s12
  $region7: #{_lambda_.17} parent=0 // loop_footer_branch
    %11 = sbr.rel target = $region3
  $region8: #{_lambda_.17} parent=0 // loop_exit
    _

// kernel: _lambda_.21
$region0: #{_lambda_.21}
  #allocation0 [shape = 'u32[]', space=smem, size = 0x4, offset = 0x4, fixed_abs, tag = 'smem constant byte address 0x4 - core index']
  #allocation1 [shape = 'u32[144,128]{1,0:T(1,128)}', space=vmem, size = 0x12000, scoped, tag = 'internal scratch']
  %s0 = inlined_call_operand.vmem [shape: bf16[2,8,128], index: 0, kind: input, shape index: {}]
  %s1 = inlined_call_operand.vmem [shape: f32[1,128], index: 1, kind: input, shape index: {}]
  %s2 = inlined_call_operand.vmem [shape: f32[1,128], index: 2, kind: input, shape index: {}]
  %s3 = inlined_call_operand.vmem [shape: f32[128,32], index: 3, kind: input, shape index: {}]
  %s4 = inlined_call_operand.vmem [shape: f32[384,128], index: 4, kind: input, shape index: {}]
  %s5 = inlined_call_operand.vmem [shape: f32[1,128], index: 5, kind: input, shape index: {}]
  %s6 = inlined_call_operand.vmem [shape: bf16[2,8,128], index: 6, kind: input, shape index: {}]
  %s7 = inlined_call_operand.vmem [shape: bf16[2,8,128], index: 7, kind: output, shape index: {}]
  %s8 = sld [smem:[#allocation0]]
  $region61: #{_lambda_.21} parent=0
    _
  %s10 = ssub.s32 1, %s8
  %s11 = scalar_select 0, %s10, %s8
  loop: start=0, step=1, limit=4
  $region2: #{_lambda_.21} parent=0 // loop_pre_header
    _
  $region3: #{_lambda_.21} parent=0 // loop_header
    %s13 = sphi 0, %s17
    %p14 = scmp.ge.s32.totalorder %s13, 4
    %s23 = sphi 0, %s25
    %s26 = sphi 0, %s23
    %s27 = sphi 0, %s26
    %s43 = sphi 0, %s27
    %s47 = sphi 0, %s47
    %s49 = sphi 0, %s47
    %s50 = sphi 0, %s49
    %s64 = sphi 0, %s50
    %s68 = sphi 0, %s68
    %s70 = sphi 0, %s68
    %s71 = sphi 0, %s70
    %s85 = sphi 0, %s71
    %s89 = sphi 0, %s89
    %s91 = sphi 0, %s89
    %s92 = sphi 0, %s91
    %s106 = sphi 0, %s92
    %s110 = sphi 0, %s110
    %s112 = sphi 0, %s110
    %s113 = sphi 0, %s112
    %s127 = sphi 0, %s113
    %s131 = sphi 0, %s131
    %s133 = sphi 0, %s131
    %s134 = sphi 0, %s133
    %s148 = sphi 0, %s134
    %s154 = sphi 0, %s156
    %s157 = sphi 0, %s154
    %s158 = sphi 0, %s157
    %s174 = sphi 0, %s158
    %s180 = sphi 0, %s182
    %s183 = sphi 0, %s180
    %s184 = sphi 0, %s183
    %s200 = sphi 0, %s184
  $region4: #{_lambda_.21} parent=0 // loop_header_branch
    %16 = sbr.rel (%p14) target = $region8
  $region5: #{_lambda_.21} parent=0 // loop_body
    %s18 = ssub.s32 %s13, 1
    %s19 = ssub.s32 %s13, 2
    %s20 = sadd.s32 %s13, 1
    %s21 = ssub.s32 %s13, %s20
    %p22 = scmp.eq.s32.totalorder %s21, 0
    %s24 = sadd.s32 %s23, 1
    %s25 = scalar_select %p22, %s23, %s24
    %p28 = pneg %p22
    %p29 = scmp.eq.s32.totalorder %s13, 1
    %p30 = por %p28, %p29
    %p31 = scmp.ne.s32.totalorder %s23, %s26
    %p32 = scmp.eq.s32.totalorder %s13, 0
    %p33 = por %p31, %p32
    %p34 = scmp.ne.s32.totalorder %s23, %s26
    %p35 = scmp.eq.s32.totalorder %s18, 1
    %p36 = por %p34, %p35
    %p37 = scmp.ne.s32.totalorder %s26, %s27
    %p38 = scmp.eq.s32.totalorder %s18, 0
    %p39 = por %p37, %p38
    %p40 = scmp.ne.s32.totalorder %s26, %s27
    %p41 = scmp.eq.s32.totalorder %s19, 1
    %p42 = por %p40, %p41
    %p44 = scmp.ne.s32.totalorder %s27, %s43
    %p45 = scmp.eq.s32.totalorder %s19, 0
    %p46 = por %p44, %p45
    %s48 = sadd.s32 %s47, 1
    %p51 = scmp.eq.s32.totalorder %s13, 1
    %p52 = scmp.ne.s32.totalorder %s47, %s49
    %p53 = scmp.eq.s32.totalorder %s13, 0
    %p54 = por %p52, %p53
    %p55 = scmp.ne.s32.totalorder %s47, %s49
    %p56 = scmp.eq.s32.totalorder %s18, 1
    %p57 = por %p55, %p56
    %p58 = scmp.ne.s32.totalorder %s49, %s50
    %p59 = scmp.eq.s32.totalorder %s18, 0
    %p60 = por %p58, %p59
    %p61 = scmp.ne.s32.totalorder %s49, %s50
    %p62 = scmp.eq.s32.totalorder %s19, 1
    %p63 = por %p61, %p62
    %p65 = scmp.ne.s32.totalorder %s50, %s64
    %p66 = scmp.eq.s32.totalorder %s19, 0
    %p67 = por %p65, %p66
    %s69 = sadd.s32 %s68, 1
    %p72 = scmp.eq.s32.totalorder %s13, 1
    %p73 = scmp.ne.s32.totalorder %s68, %s70
    %p74 = scmp.eq.s32.totalorder %s13, 0
    %p75 = por %p73, %p74
    %p76 = scmp.ne.s32.totalorder %s68, %s70
    %p77 = scmp.eq.s32.totalorder %s18, 1
    %p78 = por %p76, %p77
    %p79 = scmp.ne.s32.totalorder %s70, %s71
    %p80 = scmp.eq.s32.totalorder %s18, 0
    %p81 = por %p79, %p80
    %p82 = scmp.ne.s32.totalorder %s70, %s71
    %p83 = scmp.eq.s32.totalorder %s19, 1
    %p84 = por %p82, %p83
    %p86 = scmp.ne.s32.totalorder %s71, %s85
    %p87 = scmp.eq.s32.totalorder %s19, 0
    %p88 = por %p86, %p87
    %s90 = sadd.s32 %s89, 1
    %p93 = scmp.eq.s32.totalorder %s13, 1
    %p94 = scmp.ne.s32.totalorder %s89, %s91
    %p95 = scmp.eq.s32.totalorder %s13, 0
    %p96 = por %p94, %p95
    %p97 = scmp.ne.s32.totalorder %s89, %s91
    %p98 = scmp.eq.s32.totalorder %s18, 1
    %p99 = por %p97, %p98
    %p100 = scmp.ne.s32.totalorder %s91, %s92
    %p101 = scmp.eq.s32.totalorder %s18, 0
    %p102 = por %p100, %p101
    %p103 = scmp.ne.s32.totalorder %s91, %s92
    %p104 = scmp.eq.s32.totalorder %s19, 1
    %p105 = por %p103, %p104
    %p107 = scmp.ne.s32.totalorder %s92, %s106
    %p108 = scmp.eq.s32.totalorder %s19, 0
    %p109 = por %p107, %p108
    %s111 = sadd.s32 %s110, 1
    %p114 = scmp.eq.s32.totalorder %s13, 1
    %p115 = scmp.ne.s32.totalorder %s110, %s112
    %p116 = scmp.eq.s32.totalorder %s13, 0
    %p117 = por %p115, %p116
    %p118 = scmp.ne.s32.totalorder %s110, %s112
    %p119 = scmp.eq.s32.totalorder %s18, 1
    %p120 = por %p118, %p119
    %p121 = scmp.ne.s32.totalorder %s112, %s113
    %p122 = scmp.eq.s32.totalorder %s18, 0
    %p123 = por %p121, %p122
    %p124 = scmp.ne.s32.totalorder %s112, %s113
    %p125 = scmp.eq.s32.totalorder %s19, 1
    %p126 = por %p124, %p125
    %p128 = scmp.ne.s32.totalorder %s113, %s127
    %p129 = scmp.eq.s32.totalorder %s19, 0
    %p130 = por %p128, %p129
    %s132 = sadd.s32 %s131, 1
    %p135 = scmp.eq.s32.totalorder %s13, 1
    %p136 = scmp.ne.s32.totalorder %s131, %s133
    %p137 = scmp.eq.s32.totalorder %s13, 0
    %p138 = por %p136, %p137
    %p139 = scmp.ne.s32.totalorder %s131, %s133
    %p140 = scmp.eq.s32.totalorder %s18, 1
    %p141 = por %p139, %p140
    %p142 = scmp.ne.s32.totalorder %s133, %s134
    %p143 = scmp.eq.s32.totalorder %s18, 0
    %p144 = por %p142, %p143
    %p145 = scmp.ne.s32.totalorder %s133, %s134
    %p146 = scmp.eq.s32.totalorder %s19, 1
    %p147 = por %p145, %p146
    %p149 = scmp.ne.s32.totalorder %s134, %s148
    %p150 = scmp.eq.s32.totalorder %s19, 0
    %p151 = por %p149, %p150
    %s152 = ssub.s32 %s13, %s20
    %p153 = scmp.eq.s32.totalorder %s152, 0
    %s155 = sadd.s32 %s154, 1
    %s156 = scalar_select %p153, %s154, %s155
    %p159 = pneg %p153
    %p160 = scmp.eq.s32.totalorder %s13, 1
    %p161 = por %p159, %p160
    %p162 = scmp.ne.s32.totalorder %s154, %s157
    %p163 = scmp.eq.s32.totalorder %s13, 0
    %p164 = por %p162, %p163
    %p165 = scmp.ne.s32.totalorder %s154, %s157
    %p166 = scmp.eq.s32.totalorder %s18, 1
    %p167 = por %p165, %p166
    %p168 = scmp.ne.s32.totalorder %s157, %s158
    %p169 = scmp.eq.s32.totalorder %s18, 0
    %p170 = por %p168, %p169
    %p171 = scmp.ne.s32.totalorder %s157, %s158
    %p172 = scmp.eq.s32.totalorder %s19, 1
    %p173 = por %p171, %p172
    %p175 = scmp.ne.s32.totalorder %s158, %s174
    %p176 = scmp.eq.s32.totalorder %s19, 0
    %p177 = por %p175, %p176
    %s178 = ssub.s32 %s13, %s20
    %p179 = scmp.eq.s32.totalorder %s178, 0
    %s181 = sadd.s32 %s180, 1
    %s182 = scalar_select %p179, %s180, %s181
    %p185 = pneg %p179
    %p186 = scmp.eq.s32.totalorder %s13, 1
    %p187 = por %p185, %p186
    %p188 = scmp.ne.s32.totalorder %s180, %s183
    %p189 = scmp.eq.s32.totalorder %s13, 0
    %p190 = por %p188, %p189
    %p191 = scmp.ne.s32.totalorder %s180, %s183
    %p192 = scmp.eq.s32.totalorder %s18, 1
    %p193 = por %p191, %p192
    %p194 = scmp.ne.s32.totalorder %s183, %s184
    %p195 = scmp.eq.s32.totalorder %s18, 0
    %p196 = por %p194, %p195
    %p197 = scmp.ne.s32.totalorder %s183, %s184
    %p198 = scmp.eq.s32.totalorder %s19, 1
    %p199 = por %p197, %p198
    %p201 = scmp.ne.s32.totalorder %s184, %s200
    %p202 = scmp.eq.s32.totalorder %s19, 0
    %p203 = por %p201, %p202
    %p204 = scmp.le.s32.totalorder 1, %s13
    %p205 = scmp.lt.s32.totalorder %s13, 3
    %p206 = pnand %p204, %p205
    %p207 = pneg %p206
    // Predicated region
    $region9: #{_lambda_.21} parent=5 // pred_check
      _
    $region10: #{_lambda_.21} parent=5 // pred_check_branch
      %209 = sbr.rel (%p206) target = $region12
    $region11: #{_lambda_.21} parent=5 // pred_region
      %s210 = ssub.s32 %s13, 1
      // Predicated region
      $region13: #{_lambda_.21} parent=11 // pred_check
        %p211 = pneg %p60
      $region14: #{_lambda_.21} parent=11 // pred_check_branch
        %213 = sbr.rel (%p211) target = $region16
      $region15: #{_lambda_.21} parent=11 // pred_region
        _
      $region16: #{_lambda_.21} parent=11 // pred_fallthru
        _
      // Predicated region
      $region17: #{_lambda_.21} parent=11 // pred_check
        %p214 = pneg %p81
      $region18: #{_lambda_.21} parent=11 // pred_check_branch
        %216 = sbr.rel (%p214) target = $region20
      $region19: #{_lambda_.21} parent=11 // pred_region
        _
      $region20: #{_lambda_.21} parent=11 // pred_fallthru
        _
      // Predicated region
      $region21: #{_lambda_.21} parent=11 // pred_check
        %p217 = pneg %p102
      $region22: #{_lambda_.21} parent=11 // pred_check_branch
        %219 = sbr.rel (%p217) target = $region24
      $region23: #{_lambda_.21} parent=11 // pred_region
        _
      $region24: #{_lambda_.21} parent=11 // pred_fallthru
        _
      // Predicated region
      $region25: #{_lambda_.21} parent=11 // pred_check
        %p220 = pneg %p123
      $region26: #{_lambda_.21} parent=11 // pred_check_branch
        %222 = sbr.rel (%p220) target = $region28
      $region27: #{_lambda_.21} parent=11 // pred_region
        _
      $region28: #{_lambda_.21} parent=11 // pred_fallthru
        _
      // Predicated region
      $region29: #{_lambda_.21} parent=11 // pred_check
        %p223 = pneg %p144
      $region30: #{_lambda_.21} parent=11 // pred_check_branch
        %225 = sbr.rel (%p223) target = $region32
      $region31: #{_lambda_.21} parent=11 // pred_region
        _
      $region32: #{_lambda_.21} parent=11 // pred_fallthru
        _
    $region12: #{_lambda_.21} parent=5 // pred_fallthru
      _
    %p226 = scmp.lt.s32.totalorder %s13, 2
    // Predicated region
    $region33: #{_lambda_.21} parent=5 // pred_check
      %p227 = pneg %p226
    $region34: #{_lambda_.21} parent=5 // pred_check_branch
      %229 = sbr.rel (%p227) target = $region36
    $region35: #{_lambda_.21} parent=5 // pred_region
      // Predicated region
      $region37: #{_lambda_.21} parent=35 // pred_check
        %p230 = pneg %p33
      $region38: #{_lambda_.21} parent=35 // pred_check_branch
        %232 = sbr.rel (%p230) target = $region40
      $region39: #{_lambda_.21} parent=35 // pred_region
        %p233 = scmp.lt.s32.totalorder %s13, 1
        %s234 = scalar_select %p233, %s13, 1
        %s235 = smul.addr %s234, 4
        %s236 = scalar_lea.vmem %s0, %s235
      $region40: #{_lambda_.21} parent=35 // pred_fallthru
        _
      // Predicated region
      $region41: #{_lambda_.21} parent=35 // pred_check
        %p237 = pneg %p164
      $region42: #{_lambda_.21} parent=35 // pred_check_branch
        %239 = sbr.rel (%p237) target = $region44
      $region43: #{_lambda_.21} parent=35 // pred_region
        %p240 = scmp.lt.s32.totalorder %s13, 1
        %s241 = scalar_select %p240, %s13, 1
        %s242 = smul.addr %s241, 4
        %s243 = scalar_lea.vmem %s6, %s242
      $region44: #{_lambda_.21} parent=35 // pred_fallthru
        _
    $region36: #{_lambda_.21} parent=5 // pred_fallthru
      _
    %p244 = scmp.le.s32.totalorder 1, %s13
    %p245 = scmp.lt.s32.totalorder %s13, 3
    %p246 = pnand %p244, %p245
    %p247 = pneg %p246
    // Predicated region
    $region45: #{_lambda_.21} parent=5 // pred_check
      _
    $region46: #{_lambda_.21} parent=5 // pred_check_branch
      %249 = sbr.rel (%p246) target = $region48
    $region47: #{_lambda_.21} parent=5 // pred_region
      %s250 = ssub.s32 %s13, 1
      %p251 = scmp.lt.s32.totalorder %s18, 1
      %s252 = scalar_select %p251, %s18, 1
      %s253 = smul.addr %s252, 4
      %s254 = scalar_lea.vmem %s0, %s253
      %p255 = pneg %p39
      %p256 = pneg %p36
      %p257 = pneg %p60
      %p258 = pneg %p57
      %p259 = pneg %p81
      %p260 = pneg %p78
      %p261 = pneg %p102
      %p262 = pneg %p99
      %p263 = pneg %p123
      %p264 = pneg %p120
      %p265 = pneg %p144
      %p266 = pneg %p141
      %p267 = scmp.lt.s32.totalorder %s18, 1
      %s268 = scalar_select %p267, %s18, 1
      %s269 = smul.addr %s268, 4
      %s270 = scalar_lea.vmem %s6, %s269
      %p271 = pneg %p170
      %p272 = pneg %p167
      %p273 = pneg %p196
      %p274 = pneg %p193
      %p275 = scmp.lt.s32.totalorder %s18, 1
      %s276 = scalar_select %p275, %s18, 1
      %s277 = smul.addr %s276, 4
      %s278 = scalar_lea.vmem %s7, %s277
      %p279 = scmp.lt.s32.totalorder %s18, 1
      %s280 = scalar_select %p279, %s18, 1
      %s281 = smul.addr %s280, 4
      %s282 = scalar_lea.vmem %s0, %s281
      %p283 = scmp.lt.s32.totalorder %s18, 1
      %s284 = scalar_select %p283, %s18, 1
      %s285 = smul.addr %s284, 4
      %s286 = scalar_lea.vmem %s6, %s285
      %p287 = scmp.lt.s32.totalorder %s18, 1
      %s288 = scalar_select %p287, %s18, 1
      %s289 = smul.addr %s288, 4
      %s290 = scalar_lea.vmem %s7, %s289
      %v291 = vld [vmem:[%s282] sm:$0xf]
      %v292 = vunpack.c.l.bf16 %v291
      %v293 = vld [vmem:[%s3] sm:$0xff]
      %v294 = vld [vmem:[%s3 + $0x8] sm:$0xff]
      %v295 = vld [vmem:[%s3 + $0x10] sm:$0xff]
      %v296 = vld [vmem:[%s3 + $0x18] sm:$0xff]
      %v297 = vld [vmem:[%s3 + $0x20] sm:$0xff]
      %v298 = vld [vmem:[%s3 + $0x28] sm:$0xff]
      %v299 = vld [vmem:[%s3 + $0x30] sm:$0xff]
      %v300 = vld [vmem:[%s3 + $0x38] sm:$0xff]
      %v301 = vld [vmem:[%s3 + $0x40] sm:$0xff]
      %v302 = vld [vmem:[%s3 + $0x48] sm:$0xff]
      %v303 = vld [vmem:[%s3 + $0x50] sm:$0xff]
      %v304 = vld [vmem:[%s3 + $0x58] sm:$0xff]
      %v305 = vld [vmem:[%s3 + $0x60] sm:$0xff]
      %v306 = vld [vmem:[%s3 + $0x68] sm:$0xff]
      %v307 = vld [vmem:[%s3 + $0x70] sm:$0xff]
      %v308 = vld [vmem:[%s3 + $0x78] sm:$0xff]
      %v309 = vrot.slane %v292, 4
      %v310 = vadd.f32 %v292, %v309
      %v311 = vrot.slane %v310, 2
      %v312 = vadd.f32 %v310, %v311
      %v313 = vrot.slane %v312, 1
      %v314 = vadd.f32 %v312, %v313
      %v315 = vmul.f32 %v292, %v292
      %v316 = vrot.slane %v315, 4
      %v317 = vadd.f32 %v315, %v316
      %v318 = vrot.slane %v317, 2
      %v319 = vadd.f32 %v317, %v318
      %v320 = vrot.slane %v319, 1
      %v321 = vadd.f32 %v319, %v320
      %322 = vmatprep.subr.mxu0 0.0
      %323 = vmatpush1.msra.mxu0 %v293
      %324 = vmatprep.subr.mxu0 0.0
      %325 = vmatpush1.msra.mxu0 %v294
      %326 = vmatprep.subr.mxu0 0.0
      %327 = vmatpush1.msra.mxu0 %v295
      %328 = vmatprep.subr.mxu0 0.0
      %329 = vmatpush1.msra.mxu0 %v296
      %330 = vmatprep.subr.mxu0 0.0
      %331 = vmatpush1.msra.mxu0 %v297
      %332 = vmatprep.subr.mxu0 0.0
      %333 = vmatpush1.msra.mxu0 %v298
      %334 = vmatprep.subr.mxu0 0.0
      %335 = vmatpush1.msra.mxu0 %v299
      %336 = vmatprep.subr.mxu0 0.0
      %337 = vmatpush1.msra.mxu0 %v300
      %338 = vmatprep.subr.mxu0 0.0
      %339 = vmatpush1.msra.mxu0 %v301
      %340 = vmatprep.subr.mxu0 0.0
      %341 = vmatpush1.msra.mxu0 %v302
      %342 = vmatprep.subr.mxu0 0.0
      %343 = vmatpush1.msra.mxu0 %v303
      %344 = vmatprep.subr.mxu0 0.0
      %345 = vmatpush1.msra.mxu0 %v304
      %346 = vmatprep.subr.mxu0 0.0
      %347 = vmatpush1.msra.mxu0 %v305
      %348 = vmatprep.subr.mxu0 0.0
      %349 = vmatpush1.msra.mxu0 %v306
      %350 = vmatprep.subr.mxu0 0.0
      %351 = vmatpush1.msra.mxu0 %v307
      %352 = vmatprep.subr.mxu0 0.0
      %353 = vmatpush1.msra.mxu0 %v308
      %354 = vmatprep.subr.mxu0 0.0
      %355 = vmatpush1.msra.mxu0 0.0
      %356 = vmatprep.subr.mxu0 0.0
      %357 = vmatpush1.msra.mxu0 0.0
      %358 = vmatprep.subr.mxu0 0.0
      %359 = vmatpush1.msra.mxu0 0.0
      %360 = vmatprep.subr.mxu0 0.0
      %361 = vmatpush1.msra.mxu0 0.0
      %362 = vmatprep.subr.mxu0 0.0
      %363 = vmatpush1.msra.mxu0 0.0
      %364 = vmatprep.subr.mxu0 0.0
      %365 = vmatpush1.msra.mxu0 0.0
      %366 = vmatprep.subr.mxu0 0.0
      %367 = vmatpush1.msra.mxu0 0.0
      %368 = vmatprep.subr.mxu0 0.0
      %369 = vmatpush1.msra.mxu0 0.0
      %370 = vmatprep.subr.mxu0 0.0
      %371 = vmatpush1.msra.mxu0 0.0
      %372 = vmatprep.subr.mxu0 0.0
      %373 = vmatpush1.msra.mxu0 0.0
      %374 = vmatprep.subr.mxu0 0.0
      %375 = vmatpush1.msra.mxu0 0.0
      %376 = vmatprep.subr.mxu0 0.0
      %377 = vmatpush1.msra.mxu0 0.0
      %378 = vmatprep.subr.mxu0 0.0
      %379 = vmatpush1.msra.mxu0 0.0
      %380 = vmatprep.subr.mxu0 0.0
      %381 = vmatpush1.msra.mxu0 0.0
      %382 = vmatprep.subr.mxu0 0.0
      %383 = vmatpush1.msra.mxu0 0.0
      %384 = vmatprep.subr.mxu0 0.0
      %385 = vmatpush1.msra.mxu0 0.0
      %386 = vmatprep.mubr.f32.mxu0 0.0
      %387 = vmatmul.mubr.f32.gmra.mrb[0].mxu0 %v314
      %v388 = vpop.f32.mrb[0].mxu0
      %v389 = vadd.f32 0.0, %v388
      %v390 = vpop.f32.mrb[0].mxu0
      %391 = vdwg.mxu0
      %v392 = vmul.f32 %v389, 0.0625
      %393 = vmatprep.subr.mxu0 0.0
      %394 = vmatpush1.msra.mxu0 %v293
      %395 = vmatprep.subr.mxu0 0.0
      %396 = vmatpush1.msra.mxu0 %v294
      %397 = vmatprep.subr.mxu0 0.0
      %398 = vmatpush1.msra.mxu0 %v295
      %399 = vmatprep.subr.mxu0 0.0
      %400 = vmatpush1.msra.mxu0 %v296
      %401 = vmatprep.subr.mxu0 0.0
      %402 = vmatpush1.msra.mxu0 %v297
      %403 = vmatprep.subr.mxu0 0.0
      %404 = vmatpush1.msra.mxu0 %v298
      %405 = vmatprep.subr.mxu0 0.0
      %406 = vmatpush1.msra.mxu0 %v299
      %407 = vmatprep.subr.mxu0 0.0
      %408 = vmatpush1.msra.mxu0 %v300
      %409 = vmatprep.subr.mxu0 0.0
      %410 = vmatpush1.msra.mxu0 %v301
      %411 = vmatprep.subr.mxu0 0.0
      %412 = vmatpush1.msra.mxu0 %v302
      %413 = vmatprep.subr.mxu0 0.0
      %414 = vmatpush1.msra.mxu0 %v303
      %415 = vmatprep.subr.mxu0 0.0
      %416 = vmatpush1.msra.mxu0 %v304
      %417 = vmatprep.subr.mxu0 0.0
      %418 = vmatpush1.msra.mxu0 %v305
      %419 = vmatprep.subr.mxu0 0.0
      %420 = vmatpush1.msra.mxu0 %v306
      %421 = vmatprep.subr.mxu0 0.0
      %422 = vmatpush1.msra.mxu0 %v307
      %423 = vmatprep.subr.mxu0 0.0
      %424 = vmatpush1.msra.mxu0 %v308
      %425 = vmatprep.subr.mxu0 0.0
      %426 = vmatpush1.msra.mxu0 0.0
      %427 = vmatprep.subr.mxu0 0.0
      %428 = vmatpush1.msra.mxu0 0.0
      %429 = vmatprep.subr.mxu0 0.0
      %430 = vmatpush1.msra.mxu0 0.0
      %431 = vmatprep.subr.mxu0 0.0
      %432 = vmatpush1.msra.mxu0 0.0
      %433 = vmatprep.subr.mxu0 0.0
      %434 = vmatpush1.msra.mxu0 0.0
      %435 = vmatprep.subr.mxu0 0.0
      %436 = vmatpush1.msra.mxu0 0.0
      %437 = vmatprep.subr.mxu0 0.0
      %438 = vmatpush1.msra.mxu0 0.0
      %439 = vmatprep.subr.mxu0 0.0
      %440 = vmatpush1.msra.mxu0 0.0
      %441 = vmatprep.subr.mxu0 0.0
      %442 = vmatpush1.msra.mxu0 0.0
      %443 = vmatprep.subr.mxu0 0.0
      %444 = vmatpush1.msra.mxu0 0.0
      %445 = vmatprep.subr.mxu0 0.0
      %446 = vmatpush1.msra.mxu0 0.0
      %447 = vmatprep.subr.mxu0 0.0
      %448 = vmatpush1.msra.mxu0 0.0
      %449 = vmatprep.subr.mxu0 0.0
      %450 = vmatpush1.msra.mxu0 0.0
      %451 = vmatprep.subr.mxu0 0.0
      %452 = vmatpush1.msra.mxu0 0.0
      %453 = vmatprep.subr.mxu0 0.0
      %454 = vmatpush1.msra.mxu0 0.0
      %455 = vmatprep.subr.mxu0 0.0
      %456 = vmatpush1.msra.mxu0 0.0
      %457 = vmatprep.mubr.f32.mxu0 0.0
      %458 = vmatmul.mubr.f32.gmra.mrb[0].mxu0 %v321
      %v459 = vpop.f32.mrb[0].mxu0
      %v460 = vadd.f32 0.0, %v459
      %v461 = vpop.f32.mrb[0].mxu0
      %462 = vdwg.mxu0
      %v463 = vmul.f32 %v460, 0.0625
      %v464 = vmul.f32 %v392, %v392
      %v465 = vsub.f32 %v463, %v464
      %v466 = vmax.f32 %v465, 0.0
      %vm467 = vcmask 261120
      %v469 = vsel %vm467, %v392, 0
      %v472 = vsel %vm467, %v293, 0
      %v475 = vsel %vm467, %v294, 0
      %v478 = vsel %vm467, %v295, 0
      %v481 = vsel %vm467, %v296, 0
      %v484 = vsel %vm467, %v297, 0
      %v487 = vsel %vm467, %v298, 0
      %v490 = vsel %vm467, %v299, 0
      %v493 = vsel %vm467, %v300, 0
      %v496 = vsel %vm467, %v301, 0
      %v499 = vsel %vm467, %v302, 0
      %v502 = vsel %vm467, %v303, 0
      %v505 = vsel %vm467, %v304, 0
      %v508 = vsel %vm467, %v305, 0
      %v511 = vsel %vm467, %v306, 0
      %v514 = vsel %vm467, %v307, 0
      %v517 = vsel %vm467, %v308, 0
      %519 = vmatprep.subr.mxu0 0.0
      %520 = vmatpush1.xpose.msra.mxu0 %v472
      %521 = vmatprep.subr.mxu0 0.0
      %522 = vmatpush1.xpose.msra.mxu0 %v475
      %523 = vmatprep.subr.mxu0 0.0
      %524 = vmatpush1.xpose.msra.mxu0 %v478
      %525 = vmatprep.subr.mxu0 0.0
      %526 = vmatpush1.xpose.msra.mxu0 %v481
      %527 = vmatprep.subr.mxu0 0.0
      %528 = vmatpush1.xpose.msra.mxu0 %v484
      %529 = vmatprep.subr.mxu0 0.0
      %530 = vmatpush1.xpose.msra.mxu0 %v487
      %531 = vmatprep.subr.mxu0 0.0
      %532 = vmatpush1.xpose.msra.mxu0 %v490
      %533 = vmatprep.subr.mxu0 0.0
      %534 = vmatpush1.xpose.msra.mxu0 %v493
      %535 = vmatprep.subr.mxu0 0.0
      %536 = vmatpush1.xpose.msra.mxu0 %v496
      %537 = vmatprep.subr.mxu0 0.0
      %538 = vmatpush1.xpose.msra.mxu0 %v499
      %539 = vmatprep.subr.mxu0 0.0
      %540 = vmatpush1.xpose.msra.mxu0 %v502
      %541 = vmatprep.subr.mxu0 0.0
      %542 = vmatpush1.xpose.msra.mxu0 %v505
      %543 = vmatprep.subr.mxu0 0.0
      %544 = vmatpush1.xpose.msra.mxu0 %v508
      %545 = vmatprep.subr.mxu0 0.0
      %546 = vmatpush1.xpose.msra.mxu0 %v511
      %547 = vmatprep.subr.mxu0 0.0
      %548 = vmatpush1.xpose.msra.mxu0 %v514
      %549 = vmatprep.subr.mxu0 0.0
      %550 = vmatpush1.xpose.msra.mxu0 %v517
      %551 = vmatprep.subr.mxu0 0.0
      %552 = vmatpush1.xpose.msra.mxu0 0.0
      %553 = vmatprep.subr.mxu0 0.0
      %554 = vmatpush1.xpose.msra.mxu0 0.0
      %555 = vmatprep.subr.mxu0 0.0
      %556 = vmatpush1.xpose.msra.mxu0 0.0
      %557 = vmatprep.subr.mxu0 0.0
      %558 = vmatpush1.xpose.msra.mxu0 0.0
      %559 = vmatprep.subr.mxu0 0.0
      %560 = vmatpush1.xpose.msra.mxu0 0.0
      %561 = vmatprep.subr.mxu0 0.0
      %562 = vmatpush1.xpose.msra.mxu0 0.0
      %563 = vmatprep.subr.mxu0 0.0
      %564 = vmatpush1.xpose.msra.mxu0 0.0
      %565 = vmatprep.subr.mxu0 0.0
      %566 = vmatpush1.xpose.msra.mxu0 0.0
      %567 = vmatprep.subr.mxu0 0.0
      %568 = vmatpush1.xpose.msra.mxu0 0.0
      %569 = vmatprep.subr.mxu0 0.0
      %570 = vmatpush1.xpose.msra.mxu0 0.0
      %571 = vmatprep.subr.mxu0 0.0
      %572 = vmatpush1.xpose.msra.mxu0 0.0
      %573 = vmatprep.subr.mxu0 0.0
      %574 = vmatpush1.xpose.msra.mxu0 0.0
      %575 = vmatprep.subr.mxu0 0.0
      %576 = vmatpush1.xpose.msra.mxu0 0.0
      %577 = vmatprep.subr.mxu0 0.0
      %578 = vmatpush1.xpose.msra.mxu0 0.0
      %579 = vmatprep.subr.mxu0 0.0
      %580 = vmatpush1.xpose.msra.mxu0 0.0
      %581 = vmatprep.subr.mxu0 0.0
      %582 = vmatpush1.xpose.msra.mxu0 0.0
      %583 = vmatprep.mubr.f32.mxu0 0.0
      %584 = vmatmul.mubr.f32.gmra.mrb[0].mxu0 %v469
      %v585 = vpop.f32.mrb[0].mxu0
      %v586 = vadd.f32 0.0, %v585
      %v587 = vpop.f32.mrb[0].mxu0
      %588 = vdwg.mxu0
      %v590 = vsel %vm467, %v466, 0
      %592 = vmatprep.subr.mxu0 0.0
      %593 = vmatpush1.xpose.msra.mxu0 %v472
      %594 = vmatprep.subr.mxu0 0.0
      %595 = vmatpush1.xpose.msra.mxu0 %v475
      %596 = vmatprep.subr.mxu0 0.0
      %597 = vmatpush1.xpose.msra.mxu0 %v478
      %598 = vmatprep.subr.mxu0 0.0
      %599 = vmatpush1.xpose.msra.mxu0 %v481
      %600 = vmatprep.subr.mxu0 0.0
      %601 = vmatpush1.xpose.msra.mxu0 %v484
      %602 = vmatprep.subr.mxu0 0.0
      %603 = vmatpush1.xpose.msra.mxu0 %v487
      %604 = vmatprep.subr.mxu0 0.0
      %605 = vmatpush1.xpose.msra.mxu0 %v490
      %606 = vmatprep.subr.mxu0 0.0
      %607 = vmatpush1.xpose.msra.mxu0 %v493
      %608 = vmatprep.subr.mxu0 0.0
      %609 = vmatpush1.xpose.msra.mxu0 %v496
      %610 = vmatprep.subr.mxu0 0.0
      %611 = vmatpush1.xpose.msra.mxu0 %v499
      %612 = vmatprep.subr.mxu0 0.0
      %613 = vmatpush1.xpose.msra.mxu0 %v502
      %614 = vmatprep.subr.mxu0 0.0
      %615 = vmatpush1.xpose.msra.mxu0 %v505
      %616 = vmatprep.subr.mxu0 0.0
      %617 = vmatpush1.xpose.msra.mxu0 %v508
      %618 = vmatprep.subr.mxu0 0.0
      %619 = vmatpush1.xpose.msra.mxu0 %v511
      %620 = vmatprep.subr.mxu0 0.0
      %621 = vmatpush1.xpose.msra.mxu0 %v514
      %622 = vmatprep.subr.mxu0 0.0
      %623 = vmatpush1.xpose.msra.mxu0 %v517
      %624 = vmatprep.subr.mxu0 0.0
      %625 = vmatpush1.xpose.msra.mxu0 0.0
      %626 = vmatprep.subr.mxu0 0.0
      %627 = vmatpush1.xpose.msra.mxu0 0.0
      %628 = vmatprep.subr.mxu0 0.0
      %629 = vmatpush1.xpose.msra.mxu0 0.0
      %630 = vmatprep.subr.mxu0 0.0
      %631 = vmatpush1.xpose.msra.mxu0 0.0
      %632 = vmatprep.subr.mxu0 0.0
      %633 = vmatpush1.xpose.msra.mxu0 0.0
      %634 = vmatprep.subr.mxu0 0.0
      %635 = vmatpush1.xpose.msra.mxu0 0.0
      %636 = vmatprep.subr.mxu0 0.0
      %637 = vmatpush1.xpose.msra.mxu0 0.0
      %638 = vmatprep.subr.mxu0 0.0
      %639 = vmatpush1.xpose.msra.mxu0 0.0
      %640 = vmatprep.subr.mxu0 0.0
      %641 = vmatpush1.xpose.msra.mxu0 0.0
      %642 = vmatprep.subr.mxu0 0.0
      %643 = vmatpush1.xpose.msra.mxu0 0.0
      %644 = vmatprep.subr.mxu0 0.0
      %645 = vmatpush1.xpose.msra.mxu0 0.0
      %646 = vmatprep.subr.mxu0 0.0
      %647 = vmatpush1.xpose.msra.mxu0 0.0
      %648 = vmatprep.subr.mxu0 0.0
      %649 = vmatpush1.xpose.msra.mxu0 0.0
      %650 = vmatprep.subr.mxu0 0.0
      %651 = vmatpush1.xpose.msra.mxu0 0.0
      %652 = vmatprep.subr.mxu0 0.0
      %653 = vmatpush1.xpose.msra.mxu0 0.0
      %654 = vmatprep.subr.mxu0 0.0
      %655 = vmatpush1.xpose.msra.mxu0 0.0
      %656 = vmatprep.mubr.f32.mxu0 0.0
      %657 = vmatmul.mubr.f32.gmra.mrb[0].mxu0 %v590
      %v658 = vpop.f32.mrb[0].mxu0
      %v659 = vadd.f32 1e-06, %v658
      %v660 = vpop.f32.mrb[0].mxu0
      %661 = vdwg.mxu0
      %v662 = vrsqrt.pop %v659
      %v663 = vld [vmem:[%s1] sm:$0x1]
      %v664 = vmul.f32 %v663, %v662
      %v665 = vld [vmem:[%s2] sm:$0x1]
      %v666 = vmul.f32 %v586, %v664
      %v667 = vsub.f32 %v665, %v666
      %v669 = vlaneseq
      %v670 = vshrl.u32 %v669, 7
      %v671 = vsub.s32 0, %v670
      %v672 = vrot.slane %v664, %v671
      %v674 = vmul.f32 %v292, %v672
      %v676 = vlaneseq
      %v677 = vshrl.u32 %v676, 7
      %v678 = vsub.s32 0, %v677
      %v679 = vrot.slane %v667, %v678
      %v681 = vadd.f32 %v674, %v679
      %v682 = vxor.u32 %v681, 2147483648
      %v683 = vmul.f32 %v682, 1.442695
      %v684 = vpow.pop %v683
      %v685 = vadd.f32 %v684, 1.0
      %v686 = vrcp.pop %v685
      %v687 = vmul.f32 1.0, %v686
      %v688 = vmul.f32 %v681, %v687
      %v689 = vrot.slane %v688, 7
      %v690 = vlaneseq
      %v691 = vshrl.u32 %v690, 7
      %vm692 = vcmp.eq.s32.totalorder %v691, 0
      %v693 = vsel %vm692, 0.0, %v689
      %v694 = vrot.slane %v688, 1
      %vm695 = vcmp.eq.s32.totalorder %v691, 7
      %v696 = vsel %vm695, 0.0, %v694
      %v697 = vld [vmem:[%s4] sm:$0xff]
      %v698 = vld [vmem:[%s4 + $0x8] sm:$0xff]
      %v699 = vld [vmem:[%s4 + $0x10] sm:$0xff]
      %v700 = vld [vmem:[%s4 + $0x18] sm:$0xff]
      %v701 = vld [vmem:[%s4 + $0x20] sm:$0xff]
      %v702 = vld [vmem:[%s4 + $0x28] sm:$0xff]
      %v703 = vld [vmem:[%s4 + $0x30] sm:$0xff]
      %v704 = vld [vmem:[%s4 + $0x38] sm:$0xff]
      %v705 = vld [vmem:[%s4 + $0x40] sm:$0xff]
      %v706 = vld [vmem:[%s4 + $0x48] sm:$0xff]
      %v707 = vld [vmem:[%s4 + $0x50] sm:$0xff]
      %v708 = vld [vmem:[%s4 + $0x58] sm:$0xff]
      %v709 = vld [vmem:[%s4 + $0x60] sm:$0xff]
      %v710 = vld [vmem:[%s4 + $0x68] sm:$0xff]
      %v711 = vld [vmem:[%s4 + $0x70] sm:$0xff]
      %v712 = vld [vmem:[%s4 + $0x78] sm:$0xff]
      %v713 = vld [vmem:[%s4 + $0x80] sm:$0xff]
      %v714 = vld [vmem:[%s4 + $0x88] sm:$0xff]
      %v715 = vld [vmem:[%s4 + $0x90] sm:$0xff]
      %v716 = vld [vmem:[%s4 + $0x98] sm:$0xff]
      %v717 = vld [vmem:[%s4 + $0xa0] sm:$0xff]
      %v718 = vld [vmem:[%s4 + $0xa8] sm:$0xff]
      %v719 = vld [vmem:[%s4 + $0xb0] sm:$0xff]
      %v720 = vld [vmem:[%s4 + $0xb8] sm:$0xff]
      %v721 = vld [vmem:[%s4 + $0xc0] sm:$0xff]
      %v722 = vld [vmem:[%s4 + $0xc8] sm:$0xff]
      %v723 = vld [vmem:[%s4 + $0xd0] sm:$0xff]
      %v724 = vld [vmem:[%s4 + $0xd8] sm:$0xff]
      %v725 = vld [vmem:[%s4 + $0xe0] sm:$0xff]
      %v726 = vld [vmem:[%s4 + $0xe8] sm:$0xff]
      %v727 = vld [vmem:[%s4 + $0xf0] sm:$0xff]
      %v728 = vld [vmem:[%s4 + $0xf8] sm:$0xff]
      %v729 = vld [vmem:[%s4 + $0x100] sm:$0xff]
      %v730 = vld [vmem:[%s4 + $0x108] sm:$0xff]
      %v731 = vld [vmem:[%s4 + $0x110] sm:$0xff]
      %v732 = vld [vmem:[%s4 + $0x118] sm:$0xff]
      %v733 = vld [vmem:[%s4 + $0x120] sm:$0xff]
      %v734 = vld [vmem:[%s4 + $0x128] sm:$0xff]
      %v735 = vld [vmem:[%s4 + $0x130] sm:$0xff]
      %v736 = vld [vmem:[%s4 + $0x138] sm:$0xff]
      %v737 = vld [vmem:[%s4 + $0x140] sm:$0xff]
      %v738 = vld [vmem:[%s4 + $0x148] sm:$0xff]
      %v739 = vld [vmem:[%s4 + $0x150] sm:$0xff]
      %v740 = vld [vmem:[%s4 + $0x158] sm:$0xff]
      %v741 = vld [vmem:[%s4 + $0x160] sm:$0xff]
      %v742 = vld [vmem:[%s4 + $0x168] sm:$0xff]
      %v743 = vld [vmem:[%s4 + $0x170] sm:$0xff]
      %v744 = vld [vmem:[%s4 + $0x178] sm:$0xff]
      %v745 = vld [vmem:[%s5] sm:$0x1]
      %v747 = vlaneseq
      %v748 = vshrl.u32 %v747, 7
      %v749 = vsub.s32 0, %v748
      %v750 = vrot.slane %v745, %v749
      %752 = vmatprep.subr.mxu0 0.0
      %753 = vmatpush1.msra.mxu0 %v697
      %754 = vmatprep.subr.mxu0 0.0
      %755 = vmatpush1.msra.mxu0 %v698
      %756 = vmatprep.subr.mxu0 0.0
      %757 = vmatpush1.msra.mxu0 %v699
      %758 = vmatprep.subr.mxu0 0.0
      %759 = vmatpush1.msra.mxu0 %v700
      %760 = vmatprep.subr.mxu0 0.0
      %761 = vmatpush1.msra.mxu0 %v701
      %762 = vmatprep.subr.mxu0 0.0
      %763 = vmatpush1.msra.mxu0 %v702
      %764 = vmatprep.subr.mxu0 0.0
      %765 = vmatpush1.msra.mxu0 %v703
      %766 = vmatprep.subr.mxu0 0.0
      %767 = vmatpush1.msra.mxu0 %v704
      %768 = vmatprep.subr.mxu0 0.0
      %769 = vmatpush1.msra.mxu0 %v705
      %770 = vmatprep.subr.mxu0 0.0
      %771 = vmatpush1.msra.mxu0 %v706
      %772 = vmatprep.subr.mxu0 0.0
      %773 = vmatpush1.msra.mxu0 %v707
      %774 = vmatprep.subr.mxu0 0.0
      %775 = vmatpush1.msra.mxu0 %v708
      %776 = vmatprep.subr.mxu0 0.0
      %777 = vmatpush1.msra.mxu0 %v709
      %778 = vmatprep.subr.mxu0 0.0
      %779 = vmatpush1.msra.mxu0 %v710
      %780 = vmatprep.subr.mxu0 0.0
      %781 = vmatpush1.msra.mxu0 %v711
      %782 = vmatprep.subr.mxu0 0.0
      %783 = vmatpush1.msra.mxu0 %v712
      %784 = vmatprep.subr.mxu0 0.0
      %785 = vmatpush1.msra.mxu0 %v713
      %786 = vmatprep.subr.mxu0 0.0
      %787 = vmatpush1.msra.mxu0 %v714
      %788 = vmatprep.subr.mxu0 0.0
      %789 = vmatpush1.msra.mxu0 %v715
      %790 = vmatprep.subr.mxu0 0.0
      %791 = vmatpush1.msra.mxu0 %v716
      %792 = vmatprep.subr.mxu0 0.0
      %793 = vmatpush1.msra.mxu0 %v717
      %794 = vmatprep.subr.mxu0 0.0
      %795 = vmatpush1.msra.mxu0 %v718
      %796 = vmatprep.subr.mxu0 0.0
      %797 = vmatpush1.msra.mxu0 %v719
      %798 = vmatprep.subr.mxu0 0.0
      %799 = vmatpush1.msra.mxu0 %v720
      %800 = vmatprep.subr.mxu0 0.0
      %801 = vmatpush1.msra.mxu0 %v721
      %802 = vmatprep.subr.mxu0 0.0
      %803 = vmatpush1.msra.mxu0 %v722
      %804 = vmatprep.subr.mxu0 0.0
      %805 = vmatpush1.msra.mxu0 %v723
      %806 = vmatprep.subr.mxu0 0.0
      %807 = vmatpush1.msra.mxu0 %v724
      %808 = vmatprep.subr.mxu0 0.0
      %809 = vmatpush1.msra.mxu0 %v725
      %810 = vmatprep.subr.mxu0 0.0
      %811 = vmatpush1.msra.mxu0 %v726
      %812 = vmatprep.subr.mxu0 0.0
      %813 = vmatpush1.msra.mxu0 %v727
      %814 = vmatprep.subr.mxu0 0.0
      %815 = vmatpush1.msra.mxu0 %v728
      %816 = vmatprep.mubr.f32.mxu0 %v688
      %817 = vmatmul.mubr.f32.gmra.mrb[0].mxu0 %v693
      %v818 = vpop.f32.mrb[0].mxu0
      %v819 = vadd.f32 %v750, %v818
      %v820 = vpop.f32.mrb[0].mxu0
      %821 = vdwg.mxu0
      %822 = vmatprep.subr.mxu0 0.0
      %823 = vmatpush1.msra.mxu0 %v729
      %824 = vmatprep.subr.mxu0 0.0
      %825 = vmatpush1.msra.mxu0 %v730
      %826 = vmatprep.subr.mxu0 0.0
      %827 = vmatpush1.msra.mxu0 %v731
      %828 = vmatprep.subr.mxu0 0.0
      %829 = vmatpush1.msra.mxu0 %v732
      %830 = vmatprep.subr.mxu0 0.0
      %831 = vmatpush1.msra.mxu0 %v733
      %832 = vmatprep.subr.mxu0 0.0
      %833 = vmatpush1.msra.mxu0 %v734
      %834 = vmatprep.subr.mxu0 0.0
      %835 = vmatpush1.msra.mxu0 %v735
      %836 = vmatprep.subr.mxu0 0.0
      %837 = vmatpush1.msra.mxu0 %v736
      %838 = vmatprep.subr.mxu0 0.0
      %839 = vmatpush1.msra.mxu0 %v737
      %840 = vmatprep.subr.mxu0 0.0
      %841 = vmatpush1.msra.mxu0 %v738
      %842 = vmatprep.subr.mxu0 0.0
      %843 = vmatpush1.msra.mxu0 %v739
      %844 = vmatprep.subr.mxu0 0.0
      %845 = vmatpush1.msra.mxu0 %v740
      %846 = vmatprep.subr.mxu0 0.0
      %847 = vmatpush1.msra.mxu0 %v741
      %848 = vmatprep.subr.mxu0 0.0
      %849 = vmatpush1.msra.mxu0 %v742
      %850 = vmatprep.subr.mxu0 0.0
      %851 = vmatpush1.msra.mxu0 %v743
      %852 = vmatprep.subr.mxu0 0.0
      %853 = vmatpush1.msra.mxu0 %v744
      %854 = vmatprep.subr.mxu0 0.0
      %855 = vmatpush1.msra.mxu0 0.0
      %856 = vmatprep.subr.mxu0 0.0
      %857 = vmatpush1.msra.mxu0 0.0
      %858 = vmatprep.subr.mxu0 0.0
      %859 = vmatpush1.msra.mxu0 0.0
      %860 = vmatprep.subr.mxu0 0.0
      %861 = vmatpush1.msra.mxu0 0.0
      %862 = vmatprep.subr.mxu0 0.0
      %863 = vmatpush1.msra.mxu0 0.0
      %864 = vmatprep.subr.mxu0 0.0
      %865 = vmatpush1.msra.mxu0 0.0
      %866 = vmatprep.subr.mxu0 0.0
      %867 = vmatpush1.msra.mxu0 0.0
      %868 = vmatprep.subr.mxu0 0.0
      %869 = vmatpush1.msra.mxu0 0.0
      %870 = vmatprep.subr.mxu0 0.0
      %871 = vmatpush1.msra.mxu0 0.0
      %872 = vmatprep.subr.mxu0 0.0
      %873 = vmatpush1.msra.mxu0 0.0
      %874 = vmatprep.subr.mxu0 0.0
      %875 = vmatpush1.msra.mxu0 0.0
      %876 = vmatprep.subr.mxu0 0.0
      %877 = vmatpush1.msra.mxu0 0.0
      %878 = vmatprep.subr.mxu0 0.0
      %879 = vmatpush1.msra.mxu0 0.0
      %880 = vmatprep.subr.mxu0 0.0
      %881 = vmatpush1.msra.mxu0 0.0
      %882 = vmatprep.subr.mxu0 0.0
      %883 = vmatpush1.msra.mxu0 0.0
      %884 = vmatprep.subr.mxu0 0.0
      %885 = vmatpush1.msra.mxu0 0.0
      %886 = vmatprep.mubr.f32.mxu0 0.0
      %887 = vmatmul.mubr.f32.gmra.mrb[0].mxu0 %v696
      %v888 = vpop.f32.mrb[0].mxu0
      %v889 = vadd.f32 %v819, %v888
      %v890 = vpop.f32.mrb[0].mxu0
      %891 = vdwg.mxu0
      %v892 = vld [vmem:[%s286] sm:$0xf]
      %v893 = vunpack.c.l.bf16 %v892
      %v894 = vadd.f32 %v889, %v893
      %v895 = vpack.c.bf16 %v894, %v894
      %896 = vst [vmem:[%s290] sm:$0xf] %v895
      %p897 = scmp.lt.s32.totalorder %s18, 1
      %s898 = scalar_select %p897, %s18, 1
      %s899 = smul.addr %s898, 4
      %s900 = scalar_lea.vmem %s7, %s899
      // Predicated region
      $region49: #{_lambda_.21} parent=47 // pred_check
        %p901 = pneg %p193
      $region50: #{_lambda_.21} parent=47 // pred_check_branch
        %903 = sbr.rel (%p901) target = $region52
      $region51: #{_lambda_.21} parent=47 // pred_region
        _
      $region52: #{_lambda_.21} parent=47 // pred_fallthru
        _
    $region48: #{_lambda_.21} parent=5 // pred_fallthru
      _
    %p904 = scmp.le.s32.totalorder 2, %s13
    // Predicated region
    $region53: #{_lambda_.21} parent=5 // pred_check
      %p905 = pneg %p904
    $region54: #{_lambda_.21} parent=5 // pred_check_branch
      %907 = sbr.rel (%p905) target = $region56
    $region55: #{_lambda_.21} parent=5 // pred_region
      %s908 = ssub.s32 %s13, 2
      // Predicated region
      $region57: #{_lambda_.21} parent=55 // pred_check
        %p909 = pneg %p199
      $region58: #{_lambda_.21} parent=55 // pred_check_branch
        %911 = sbr.rel (%p909) target = $region60
      $region59: #{_lambda_.21} parent=55 // pred_region
        %p912 = scmp.lt.s32.totalorder %s19, 1
        %s913 = scalar_select %p912, %s19, 1
        %s914 = smul.addr %s913, 4
        %s915 = scalar_lea.vmem %s7, %s914
      $region60: #{_lambda_.21} parent=55 // pred_fallthru
        _
    $region56: #{_lambda_.21} parent=5 // pred_fallthru
      _
  $region6: #{_lambda_.21} parent=0 // loop_footer
    %s17 = sadd.s32 1, %s13
  $region7: #{_lambda_.21} parent=0 // loop_footer_branch
    %12 = sbr.rel target = $region3
  $region8: #{_lambda_.21} parent=0 // loop_exit
    _

// kernel: _lambda_.18
$region0: #{_lambda_.18}
  #allocation0 [shape = 'u32[]', space=smem, size = 0x4, offset = 0x4, fixed_abs, tag = 'smem constant byte address 0x4 - core index']
  #allocation1 [shape = 'u32[144,128]{1,0:T(1,128)}', space=vmem, size = 0x12000, scoped, tag = 'internal scratch']
  %s0 = inlined_call_operand.vmem [shape: bf16[2,8,128], index: 0, kind: input, shape index: {}]
  %s1 = inlined_call_operand.vmem [shape: f32[1,128], index: 1, kind: input, shape index: {}]
  %s2 = inlined_call_operand.vmem [shape: f32[1,128], index: 2, kind: input, shape index: {}]
  %s3 = inlined_call_operand.vmem [shape: f32[128,32], index: 3, kind: input, shape index: {}]
  %s4 = inlined_call_operand.vmem [shape: f32[384,128], index: 4, kind: input, shape index: {}]
  %s5 = inlined_call_operand.vmem [shape: f32[1,128], index: 5, kind: input, shape index: {}]
  %s6 = inlined_call_operand.vmem [shape: bf16[2,8,128], index: 6, kind: input, shape index: {}]
  %s7 = inlined_call_operand.vmem [shape: f32[128,128], index: 7, kind: input, shape index: {}]
  %s8 = inlined_call_operand.vmem [shape: f32[1,128], index: 8, kind: input, shape index: {}]
  %s9 = inlined_call_operand.vmem [shape: bf16[2,8,128], index: 9, kind: output, shape index: {}]
  %s10 = sld [smem:[#allocation0]]
  $region69: #{_lambda_.18} parent=0
    _
  %s12 = ssub.s32 1, %s10
  %s13 = scalar_select 0, %s12, %s10
  loop: start=0, step=1, limit=4
  $region2: #{_lambda_.18} parent=0 // loop_pre_header
    _
  $region3: #{_lambda_.18} parent=0 // loop_header
    %s15 = sphi 0, %s19
    %p16 = scmp.ge.s32.totalorder %s15, 4
    %s25 = sphi 0, %s27
    %s28 = sphi 0, %s25
    %s29 = sphi 0, %s28
    %s45 = sphi 0, %s29
    %s49 = sphi 0, %s49
    %s51 = sphi 0, %s49
    %s52 = sphi 0, %s51
    %s66 = sphi 0, %s52
    %s70 = sphi 0, %s70
    %s72 = sphi 0, %s70
    %s73 = sphi 0, %s72
    %s87 = sphi 0, %s73
    %s91 = sphi 0, %s91
    %s93 = sphi 0, %s91
    %s94 = sphi 0, %s93
    %s108 = sphi 0, %s94
    %s112 = sphi 0, %s112
    %s114 = sphi 0, %s112
    %s115 = sphi 0, %s114
    %s129 = sphi 0, %s115
    %s133 = sphi 0, %s133
    %s135 = sphi 0, %s133
    %s136 = sphi 0, %s135
    %s150 = sphi 0, %s136
    %s156 = sphi 0, %s158
    %s159 = sphi 0, %s156
    %s160 = sphi 0, %s159
    %s176 = sphi 0, %s160
    %s180 = sphi 0, %s180
    %s182 = sphi 0, %s180
    %s183 = sphi 0, %s182
    %s197 = sphi 0, %s183
    %s201 = sphi 0, %s201
    %s203 = sphi 0, %s201
    %s204 = sphi 0, %s203
    %s218 = sphi 0, %s204
    %s224 = sphi 0, %s226
    %s227 = sphi 0, %s224
    %s228 = sphi 0, %s227
    %s244 = sphi 0, %s228
  $region4: #{_lambda_.18} parent=0 // loop_header_branch
    %18 = sbr.rel (%p16) target = $region8
  $region5: #{_lambda_.18} parent=0 // loop_body
    %s20 = ssub.s32 %s15, 1
    %s21 = ssub.s32 %s15, 2
    %s22 = sadd.s32 %s15, 1
    %s23 = ssub.s32 %s15, %s22
    %p24 = scmp.eq.s32.totalorder %s23, 0
    %s26 = sadd.s32 %s25, 1
    %s27 = scalar_select %p24, %s25, %s26
    %p30 = pneg %p24
    %p31 = scmp.eq.s32.totalorder %s15, 1
    %p32 = por %p30, %p31
    %p33 = scmp.ne.s32.totalorder %s25, %s28
    %p34 = scmp.eq.s32.totalorder %s15, 0
    %p35 = por %p33, %p34
    %p36 = scmp.ne.s32.totalorder %s25, %s28
    %p37 = scmp.eq.s32.totalorder %s20, 1
    %p38 = por %p36, %p37
    %p39 = scmp.ne.s32.totalorder %s28, %s29
    %p40 = scmp.eq.s32.totalorder %s20, 0
    %p41 = por %p39, %p40
    %p42 = scmp.ne.s32.totalorder %s28, %s29
    %p43 = scmp.eq.s32.totalorder %s21, 1
    %p44 = por %p42, %p43
    %p46 = scmp.ne.s32.totalorder %s29, %s45
    %p47 = scmp.eq.s32.totalorder %s21, 0
    %p48 = por %p46, %p47
    %s50 = sadd.s32 %s49, 1
    %p53 = scmp.eq.s32.totalorder %s15, 1
    %p54 = scmp.ne.s32.totalorder %s49, %s51
    %p55 = scmp.eq.s32.totalorder %s15, 0
    %p56 = por %p54, %p55
    %p57 = scmp.ne.s32.totalorder %s49, %s51
    %p58 = scmp.eq.s32.totalorder %s20, 1
    %p59 = por %p57, %p58
    %p60 = scmp.ne.s32.totalorder %s51, %s52
    %p61 = scmp.eq.s32.totalorder %s20, 0
    %p62 = por %p60, %p61
    %p63 = scmp.ne.s32.totalorder %s51, %s52
    %p64 = scmp.eq.s32.totalorder %s21, 1
    %p65 = por %p63, %p64
    %p67 = scmp.ne.s32.totalorder %s52, %s66
    %p68 = scmp.eq.s32.totalorder %s21, 0
    %p69 = por %p67, %p68
    %s71 = sadd.s32 %s70, 1
    %p74 = scmp.eq.s32.totalorder %s15, 1
    %p75 = scmp.ne.s32.totalorder %s70, %s72
    %p76 = scmp.eq.s32.totalorder %s15, 0
    %p77 = por %p75, %p76
    %p78 = scmp.ne.s32.totalorder %s70, %s72
    %p79 = scmp.eq.s32.totalorder %s20, 1
    %p80 = por %p78, %p79
    %p81 = scmp.ne.s32.totalorder %s72, %s73
    %p82 = scmp.eq.s32.totalorder %s20, 0
    %p83 = por %p81, %p82
    %p84 = scmp.ne.s32.totalorder %s72, %s73
    %p85 = scmp.eq.s32.totalorder %s21, 1
    %p86 = por %p84, %p85
    %p88 = scmp.ne.s32.totalorder %s73, %s87
    %p89 = scmp.eq.s32.totalorder %s21, 0
    %p90 = por %p88, %p89
    %s92 = sadd.s32 %s91, 1
    %p95 = scmp.eq.s32.totalorder %s15, 1
    %p96 = scmp.ne.s32.totalorder %s91, %s93
    %p97 = scmp.eq.s32.totalorder %s15, 0
    %p98 = por %p96, %p97
    %p99 = scmp.ne.s32.totalorder %s91, %s93
    %p100 = scmp.eq.s32.totalorder %s20, 1
    %p101 = por %p99, %p100
    %p102 = scmp.ne.s32.totalorder %s93, %s94
    %p103 = scmp.eq.s32.totalorder %s20, 0
    %p104 = por %p102, %p103
    %p105 = scmp.ne.s32.totalorder %s93, %s94
    %p106 = scmp.eq.s32.totalorder %s21, 1
    %p107 = por %p105, %p106
    %p109 = scmp.ne.s32.totalorder %s94, %s108
    %p110 = scmp.eq.s32.totalorder %s21, 0
    %p111 = por %p109, %p110
    %s113 = sadd.s32 %s112, 1
    %p116 = scmp.eq.s32.totalorder %s15, 1
    %p117 = scmp.ne.s32.totalorder %s112, %s114
    %p118 = scmp.eq.s32.totalorder %s15, 0
    %p119 = por %p117, %p118
    %p120 = scmp.ne.s32.totalorder %s112, %s114
    %p121 = scmp.eq.s32.totalorder %s20, 1
    %p122 = por %p120, %p121
    %p123 = scmp.ne.s32.totalorder %s114, %s115
    %p124 = scmp.eq.s32.totalorder %s20, 0
    %p125 = por %p123, %p124
    %p126 = scmp.ne.s32.totalorder %s114, %s115
    %p127 = scmp.eq.s32.totalorder %s21, 1
    %p128 = por %p126, %p127
    %p130 = scmp.ne.s32.totalorder %s115, %s129
    %p131 = scmp.eq.s32.totalorder %s21, 0
    %p132 = por %p130, %p131
    %s134 = sadd.s32 %s133, 1
    %p137 = scmp.eq.s32.totalorder %s15, 1
    %p138 = scmp.ne.s32.totalorder %s133, %s135
    %p139 = scmp.eq.s32.totalorder %s15, 0
    %p140 = por %p138, %p139
    %p141 = scmp.ne.s32.totalorder %s133, %s135
    %p142 = scmp.eq.s32.totalorder %s20, 1
    %p143 = por %p141, %p142
    %p144 = scmp.ne.s32.totalorder %s135, %s136
    %p145 = scmp.eq.s32.totalorder %s20, 0
    %p146 = por %p144, %p145
    %p147 = scmp.ne.s32.totalorder %s135, %s136
    %p148 = scmp.eq.s32.totalorder %s21, 1
    %p149 = por %p147, %p148
    %p151 = scmp.ne.s32.totalorder %s136, %s150
    %p152 = scmp.eq.s32.totalorder %s21, 0
    %p153 = por %p151, %p152
    %s154 = ssub.s32 %s15, %s22
    %p155 = scmp.eq.s32.totalorder %s154, 0
    %s157 = sadd.s32 %s156, 1
    %s158 = scalar_select %p155, %s156, %s157
    %p161 = pneg %p155
    %p162 = scmp.eq.s32.totalorder %s15, 1
    %p163 = por %p161, %p162
    %p164 = scmp.ne.s32.totalorder %s156, %s159
    %p165 = scmp.eq.s32.totalorder %s15, 0
    %p166 = por %p164, %p165
    %p167 = scmp.ne.s32.totalorder %s156, %s159
    %p168 = scmp.eq.s32.totalorder %s20, 1
    %p169 = por %p167, %p168
    %p170 = scmp.ne.s32.totalorder %s159, %s160
    %p171 = scmp.eq.s32.totalorder %s20, 0
    %p172 = por %p170, %p171
    %p173 = scmp.ne.s32.totalorder %s159, %s160
    %p174 = scmp.eq.s32.totalorder %s21, 1
    %p175 = por %p173, %p174
    %p177 = scmp.ne.s32.totalorder %s160, %s176
    %p178 = scmp.eq.s32.totalorder %s21, 0
    %p179 = por %p177, %p178
    %s181 = sadd.s32 %s180, 1
    %p184 = scmp.eq.s32.totalorder %s15, 1
    %p185 = scmp.ne.s32.totalorder %s180, %s182
    %p186 = scmp.eq.s32.totalorder %s15, 0
    %p187 = por %p185, %p186
    %p188 = scmp.ne.s32.totalorder %s180, %s182
    %p189 = scmp.eq.s32.totalorder %s20, 1
    %p190 = por %p188, %p189
    %p191 = scmp.ne.s32.totalorder %s182, %s183
    %p192 = scmp.eq.s32.totalorder %s20, 0
    %p193 = por %p191, %p192
    %p194 = scmp.ne.s32.totalorder %s182, %s183
    %p195 = scmp.eq.s32.totalorder %s21, 1
    %p196 = por %p194, %p195
    %p198 = scmp.ne.s32.totalorder %s183, %s197
    %p199 = scmp.eq.s32.totalorder %s21, 0
    %p200 = por %p198, %p199
    %s202 = sadd.s32 %s201, 1
    %p205 = scmp.eq.s32.totalorder %s15, 1
    %p206 = scmp.ne.s32.totalorder %s201, %s203
    %p207 = scmp.eq.s32.totalorder %s15, 0
    %p208 = por %p206, %p207
    %p209 = scmp.ne.s32.totalorder %s201, %s203
    %p210 = scmp.eq.s32.totalorder %s20, 1
    %p211 = por %p209, %p210
    %p212 = scmp.ne.s32.totalorder %s203, %s204
    %p213 = scmp.eq.s32.totalorder %s20, 0
    %p214 = por %p212, %p213
    %p215 = scmp.ne.s32.totalorder %s203, %s204
    %p216 = scmp.eq.s32.totalorder %s21, 1
    %p217 = por %p215, %p216
    %p219 = scmp.ne.s32.totalorder %s204, %s218
    %p220 = scmp.eq.s32.totalorder %s21, 0
    %p221 = por %p219, %p220
    %s222 = ssub.s32 %s15, %s22
    %p223 = scmp.eq.s32.totalorder %s222, 0
    %s225 = sadd.s32 %s224, 1
    %s226 = scalar_select %p223, %s224, %s225
    %p229 = pneg %p223
    %p230 = scmp.eq.s32.totalorder %s15, 1
    %p231 = por %p229, %p230
    %p232 = scmp.ne.s32.totalorder %s224, %s227
    %p233 = scmp.eq.s32.totalorder %s15, 0
    %p234 = por %p232, %p233
    %p235 = scmp.ne.s32.totalorder %s224, %s227
    %p236 = scmp.eq.s32.totalorder %s20, 1
    %p237 = por %p235, %p236
    %p238 = scmp.ne.s32.totalorder %s227, %s228
    %p239 = scmp.eq.s32.totalorder %s20, 0
    %p240 = por %p238, %p239
    %p241 = scmp.ne.s32.totalorder %s227, %s228
    %p242 = scmp.eq.s32.totalorder %s21, 1
    %p243 = por %p241, %p242
    %p245 = scmp.ne.s32.totalorder %s228, %s244
    %p246 = scmp.eq.s32.totalorder %s21, 0
    %p247 = por %p245, %p246
    %p248 = scmp.le.s32.totalorder 1, %s15
    %p249 = scmp.lt.s32.totalorder %s15, 3
    %p250 = pnand %p248, %p249
    %p251 = pneg %p250
    // Predicated region
    $region9: #{_lambda_.18} parent=5 // pred_check
      _
    $region10: #{_lambda_.18} parent=5 // pred_check_branch
      %253 = sbr.rel (%p250) target = $region12
    $region11: #{_lambda_.18} parent=5 // pred_region
      %s254 = ssub.s32 %s15, 1
      // Predicated region
      $region13: #{_lambda_.18} parent=11 // pred_check
        %p255 = pneg %p62
      $region14: #{_lambda_.18} parent=11 // pred_check_branch
        %257 = sbr.rel (%p255) target = $region16
      $region15: #{_lambda_.18} parent=11 // pred_region
        _
      $region16: #{_lambda_.18} parent=11 // pred_fallthru
        _
      // Predicated region
      $region17: #{_lambda_.18} parent=11 // pred_check
        %p258 = pneg %p83
      $region18: #{_lambda_.18} parent=11 // pred_check_branch
        %260 = sbr.rel (%p258) target = $region20
      $region19: #{_lambda_.18} parent=11 // pred_region
        _
      $region20: #{_lambda_.18} parent=11 // pred_fallthru
        _
      // Predicated region
      $region21: #{_lambda_.18} parent=11 // pred_check
        %p261 = pneg %p104
      $region22: #{_lambda_.18} parent=11 // pred_check_branch
        %263 = sbr.rel (%p261) target = $region24
      $region23: #{_lambda_.18} parent=11 // pred_region
        _
      $region24: #{_lambda_.18} parent=11 // pred_fallthru
        _
      // Predicated region
      $region25: #{_lambda_.18} parent=11 // pred_check
        %p264 = pneg %p125
      $region26: #{_lambda_.18} parent=11 // pred_check_branch
        %266 = sbr.rel (%p264) target = $region28
      $region27: #{_lambda_.18} parent=11 // pred_region
        _
      $region28: #{_lambda_.18} parent=11 // pred_fallthru
        _
      // Predicated region
      $region29: #{_lambda_.18} parent=11 // pred_check
        %p267 = pneg %p146
      $region30: #{_lambda_.18} parent=11 // pred_check_branch
        %269 = sbr.rel (%p267) target = $region32
      $region31: #{_lambda_.18} parent=11 // pred_region
        _
      $region32: #{_lambda_.18} parent=11 // pred_fallthru
        _
      // Predicated region
      $region33: #{_lambda_.18} parent=11 // pred_check
        %p270 = pneg %p193
      $region34: #{_lambda_.18} parent=11 // pred_check_branch
        %272 = sbr.rel (%p270) target = $region36
      $region35: #{_lambda_.18} parent=11 // pred_region
        _
      $region36: #{_lambda_.18} parent=11 // pred_fallthru
        _
      // Predicated region
      $region37: #{_lambda_.18} parent=11 // pred_check
        %p273 = pneg %p214
      $region38: #{_lambda_.18} parent=11 // pred_check_branch
        %275 = sbr.rel (%p273) target = $region40
      $region39: #{_lambda_.18} parent=11 // pred_region
        _
      $region40: #{_lambda_.18} parent=11 // pred_fallthru
        _
    $region12: #{_lambda_.18} parent=5 // pred_fallthru
      _
    %p276 = scmp.lt.s32.totalorder %s15, 2
    // Predicated region
    $region41: #{_lambda_.18} parent=5 // pred_check
      %p277 = pneg %p276
    $region42: #{_lambda_.18} parent=5 // pred_check_branch
      %279 = sbr.rel (%p277) target = $region44
    $region43: #{_lambda_.18} parent=5 // pred_region
      // Predicated region
      $region45: #{_lambda_.18} parent=43 // pred_check
        %p280 = pneg %p35
      $region46: #{_lambda_.18} parent=43 // pred_check_branch
        %282 = sbr.rel (%p280) target = $region48
      $region47: #{_lambda_.18} parent=43 // pred_region
        %p283 = scmp.lt.s32.totalorder %s15, 1
        %s284 = scalar_select %p283, %s15, 1
        %s285 = smul.addr %s284, 4
        %s286 = scalar_lea.vmem %s0, %s285
      $region48: #{_lambda_.18} parent=43 // pred_fallthru
        _
      // Predicated region
      $region49: #{_lambda_.18} parent=43 // pred_check
        %p287 = pneg %p166
      $region50: #{_lambda_.18} parent=43 // pred_check_branch
        %289 = sbr.rel (%p287) target = $region52
      $region51: #{_lambda_.18} parent=43 // pred_region
        %p290 = scmp.lt.s32.totalorder %s15, 1
        %s291 = scalar_select %p290, %s15, 1
        %s292 = smul.addr %s291, 4
        %s293 = scalar_lea.vmem %s6, %s292
      $region52: #{_lambda_.18} parent=43 // pred_fallthru
        _
    $region44: #{_lambda_.18} parent=5 // pred_fallthru
      _
    %p294 = scmp.le.s32.totalorder 1, %s15
    %p295 = scmp.lt.s32.totalorder %s15, 3
    %p296 = pnand %p294, %p295
    %p297 = pneg %p296
    // Predicated region
    $region53: #{_lambda_.18} parent=5 // pred_check
      _
    $region54: #{_lambda_.18} parent=5 // pred_check_branch
      %299 = sbr.rel (%p296) target = $region56
    $region55: #{_lambda_.18} parent=5 // pred_region
      %s300 = ssub.s32 %s15, 1
      %p301 = scmp.lt.s32.totalorder %s20, 1
      %s302 = scalar_select %p301, %s20, 1
      %s303 = smul.addr %s302, 4
      %s304 = scalar_lea.vmem %s0, %s303
      %p305 = pneg %p41
      %p306 = pneg %p38
      %p307 = pneg %p62
      %p308 = pneg %p59
      %p309 = pneg %p83
      %p310 = pneg %p80
      %p311 = pneg %p104
      %p312 = pneg %p101
      %p313 = pneg %p125
      %p314 = pneg %p122
      %p315 = pneg %p146
      %p316 = pneg %p143
      %p317 = scmp.lt.s32.totalorder %s20, 1
      %s318 = scalar_select %p317, %s20, 1
      %s319 = smul.addr %s318, 4
      %s320 = scalar_lea.vmem %s6, %s319
      %p321 = pneg %p172
      %p322 = pneg %p169
      %p323 = pneg %p193
      %p324 = pneg %p190
      %p325 = pneg %p214
      %p326 = pneg %p211
      %p327 = pneg %p240
      %p328 = pneg %p237
      %p329 = scmp.lt.s32.totalorder %s20, 1
      %s330 = scalar_select %p329, %s20, 1
      %s331 = smul.addr %s330, 4
      %s332 = scalar_lea.vmem %s9, %s331
      %p333 = scmp.lt.s32.totalorder %s20, 1
      %s334 = scalar_select %p333, %s20, 1
      %s335 = smul.addr %s334, 4
      %s336 = scalar_lea.vmem %s0, %s335
      %p337 = scmp.lt.s32.totalorder %s20, 1
      %s338 = scalar_select %p337, %s20, 1
      %s339 = smul.addr %s338, 4
      %s340 = scalar_lea.vmem %s6, %s339
      %p341 = scmp.lt.s32.totalorder %s20, 1
      %s342 = scalar_select %p341, %s20, 1
      %s343 = smul.addr %s342, 4
      %s344 = scalar_lea.vmem %s9, %s343
      %v345 = vld [vmem:[%s336] sm:$0xf]
      %v346 = vunpack.c.l.bf16 %v345
      %v347 = vld [vmem:[%s3] sm:$0xff]
      %v348 = vld [vmem:[%s3 + $0x8] sm:$0xff]
      %v349 = vld [vmem:[%s3 + $0x10] sm:$0xff]
      %v350 = vld [vmem:[%s3 + $0x18] sm:$0xff]
      %v351 = vld [vmem:[%s3 + $0x20] sm:$0xff]
      %v352 = vld [vmem:[%s3 + $0x28] sm:$0xff]
      %v353 = vld [vmem:[%s3 + $0x30] sm:$0xff]
      %v354 = vld [vmem:[%s3 + $0x38] sm:$0xff]
      %v355 = vld [vmem:[%s3 + $0x40] sm:$0xff]
      %v356 = vld [vmem:[%s3 + $0x48] sm:$0xff]
      %v357 = vld [vmem:[%s3 + $0x50] sm:$0xff]
      %v358 = vld [vmem:[%s3 + $0x58] sm:$0xff]
      %v359 = vld [vmem:[%s3 + $0x60] sm:$0xff]
      %v360 = vld [vmem:[%s3 + $0x68] sm:$0xff]
      %v361 = vld [vmem:[%s3 + $0x70] sm:$0xff]
      %v362 = vld [vmem:[%s3 + $0x78] sm:$0xff]
      %v363 = vrot.slane %v346, 4
      %v364 = vadd.f32 %v346, %v363
      %v365 = vrot.slane %v364, 2
      %v366 = vadd.f32 %v364, %v365
      %v367 = vrot.slane %v366, 1
      %v368 = vadd.f32 %v366, %v367
      %v369 = vmul.f32 %v346, %v346
      %v370 = vrot.slane %v369, 4
      %v371 = vadd.f32 %v369, %v370
      %v372 = vrot.slane %v371, 2
      %v373 = vadd.f32 %v371, %v372
      %v374 = vrot.slane %v373, 1
      %v375 = vadd.f32 %v373, %v374
      %376 = vmatprep.subr.mxu0 0.0
      %377 = vmatpush1.msra.mxu0 %v347
      %378 = vmatprep.subr.mxu0 0.0
      %379 = vmatpush1.msra.mxu0 %v348
      %380 = vmatprep.subr.mxu0 0.0
      %381 = vmatpush1.msra.mxu0 %v349
      %382 = vmatprep.subr.mxu0 0.0
      %383 = vmatpush1.msra.mxu0 %v350
      %384 = vmatprep.subr.mxu0 0.0
      %385 = vmatpush1.msra.mxu0 %v351
      %386 = vmatprep.subr.mxu0 0.0
      %387 = vmatpush1.msra.mxu0 %v352
      %388 = vmatprep.subr.mxu0 0.0
      %389 = vmatpush1.msra.mxu0 %v353
      %390 = vmatprep.subr.mxu0 0.0
      %391 = vmatpush1.msra.mxu0 %v354
      %392 = vmatprep.subr.mxu0 0.0
      %393 = vmatpush1.msra.mxu0 %v355
      %394 = vmatprep.subr.mxu0 0.0
      %395 = vmatpush1.msra.mxu0 %v356
      %396 = vmatprep.subr.mxu0 0.0
      %397 = vmatpush1.msra.mxu0 %v357
      %398 = vmatprep.subr.mxu0 0.0
      %399 = vmatpush1.msra.mxu0 %v358
      %400 = vmatprep.subr.mxu0 0.0
      %401 = vmatpush1.msra.mxu0 %v359
      %402 = vmatprep.subr.mxu0 0.0
      %403 = vmatpush1.msra.mxu0 %v360
      %404 = vmatprep.subr.mxu0 0.0
      %405 = vmatpush1.msra.mxu0 %v361
      %406 = vmatprep.subr.mxu0 0.0
      %407 = vmatpush1.msra.mxu0 %v362
      %408 = vmatprep.subr.mxu0 0.0
      %409 = vmatpush1.msra.mxu0 0.0
      %410 = vmatprep.subr.mxu0 0.0
      %411 = vmatpush1.msra.mxu0 0.0
      %412 = vmatprep.subr.mxu0 0.0
      %413 = vmatpush1.msra.mxu0 0.0
      %414 = vmatprep.subr.mxu0 0.0
      %415 = vmatpush1.msra.mxu0 0.0
      %416 = vmatprep.subr.mxu0 0.0
      %417 = vmatpush1.msra.mxu0 0.0
      %418 = vmatprep.subr.mxu0 0.0
      %419 = vmatpush1.msra.mxu0 0.0
      %420 = vmatprep.subr.mxu0 0.0
      %421 = vmatpush1.msra.mxu0 0.0
      %422 = vmatprep.subr.mxu0 0.0
      %423 = vmatpush1.msra.mxu0 0.0
      %424 = vmatprep.subr.mxu0 0.0
      %425 = vmatpush1.msra.mxu0 0.0
      %426 = vmatprep.subr.mxu0 0.0
      %427 = vmatpush1.msra.mxu0 0.0
      %428 = vmatprep.subr.mxu0 0.0
      %429 = vmatpush1.msra.mxu0 0.0
      %430 = vmatprep.subr.mxu0 0.0
      %431 = vmatpush1.msra.mxu0 0.0
      %432 = vmatprep.subr.mxu0 0.0
      %433 = vmatpush1.msra.mxu0 0.0
      %434 = vmatprep.subr.mxu0 0.0
      %435 = vmatpush1.msra.mxu0 0.0
      %436 = vmatprep.subr.mxu0 0.0
      %437 = vmatpush1.msra.mxu0 0.0
      %438 = vmatprep.subr.mxu0 0.0
      %439 = vmatpush1.msra.mxu0 0.0
      %440 = vmatprep.mubr.f32.mxu0 0.0
      %441 = vmatmul.mubr.f32.gmra.mrb[0].mxu0 %v368
      %v442 = vpop.f32.mrb[0].mxu0
      %v443 = vadd.f32 0.0, %v442
      %v444 = vpop.f32.mrb[0].mxu0
      %445 = vdwg.mxu0
      %v446 = vmul.f32 %v443, 0.0625
      %447 = vmatprep.subr.mxu0 0.0
      %448 = vmatpush1.msra.mxu0 %v347
      %449 = vmatprep.subr.mxu0 0.0
      %450 = vmatpush1.msra.mxu0 %v348
      %451 = vmatprep.subr.mxu0 0.0
      %452 = vmatpush1.msra.mxu0 %v349
      %453 = vmatprep.subr.mxu0 0.0
      %454 = vmatpush1.msra.mxu0 %v350
      %455 = vmatprep.subr.mxu0 0.0
      %456 = vmatpush1.msra.mxu0 %v351
      %457 = vmatprep.subr.mxu0 0.0
      %458 = vmatpush1.msra.mxu0 %v352
      %459 = vmatprep.subr.mxu0 0.0
      %460 = vmatpush1.msra.mxu0 %v353
      %461 = vmatprep.subr.mxu0 0.0
      %462 = vmatpush1.msra.mxu0 %v354
      %463 = vmatprep.subr.mxu0 0.0
      %464 = vmatpush1.msra.mxu0 %v355
      %465 = vmatprep.subr.mxu0 0.0
      %466 = vmatpush1.msra.mxu0 %v356
      %467 = vmatprep.subr.mxu0 0.0
      %468 = vmatpush1.msra.mxu0 %v357
      %469 = vmatprep.subr.mxu0 0.0
      %470 = vmatpush1.msra.mxu0 %v358
      %471 = vmatprep.subr.mxu0 0.0
      %472 = vmatpush1.msra.mxu0 %v359
      %473 = vmatprep.subr.mxu0 0.0
      %474 = vmatpush1.msra.mxu0 %v360
      %475 = vmatprep.subr.mxu0 0.0
      %476 = vmatpush1.msra.mxu0 %v361
      %477 = vmatprep.subr.mxu0 0.0
      %478 = vmatpush1.msra.mxu0 %v362
      %479 = vmatprep.subr.mxu0 0.0
      %480 = vmatpush1.msra.mxu0 0.0
      %481 = vmatprep.subr.mxu0 0.0
      %482 = vmatpush1.msra.mxu0 0.0
      %483 = vmatprep.subr.mxu0 0.0
      %484 = vmatpush1.msra.mxu0 0.0
      %485 = vmatprep.subr.mxu0 0.0
      %486 = vmatpush1.msra.mxu0 0.0
      %487 = vmatprep.subr.mxu0 0.0
      %488 = vmatpush1.msra.mxu0 0.0
      %489 = vmatprep.subr.mxu0 0.0
      %490 = vmatpush1.msra.mxu0 0.0
      %491 = vmatprep.subr.mxu0 0.0
      %492 = vmatpush1.msra.mxu0 0.0
      %493 = vmatprep.subr.mxu0 0.0
      %494 = vmatpush1.msra.mxu0 0.0
      %495 = vmatprep.subr.mxu0 0.0
      %496 = vmatpush1.msra.mxu0 0.0
      %497 = vmatprep.subr.mxu0 0.0
      %498 = vmatpush1.msra.mxu0 0.0
      %499 = vmatprep.subr.mxu0 0.0
      %500 = vmatpush1.msra.mxu0 0.0
      %501 = vmatprep.subr.mxu0 0.0
      %502 = vmatpush1.msra.mxu0 0.0
      %503 = vmatprep.subr.mxu0 0.0
      %504 = vmatpush1.msra.mxu0 0.0
      %505 = vmatprep.subr.mxu0 0.0
      %506 = vmatpush1.msra.mxu0 0.0
      %507 = vmatprep.subr.mxu0 0.0
      %508 = vmatpush1.msra.mxu0 0.0
      %509 = vmatprep.subr.mxu0 0.0
      %510 = vmatpush1.msra.mxu0 0.0
      %511 = vmatprep.mubr.f32.mxu0 0.0
      %512 = vmatmul.mubr.f32.gmra.mrb[0].mxu0 %v375
      %v513 = vpop.f32.mrb[0].mxu0
      %v514 = vadd.f32 0.0, %v513
      %v515 = vpop.f32.mrb[0].mxu0
      %516 = vdwg.mxu0
      %v517 = vmul.f32 %v514, 0.0625
      %v518 = vmul.f32 %v446, %v446
      %v519 = vsub.f32 %v517, %v518
      %v520 = vmax.f32 %v519, 0.0
      %vm521 = vcmask 261120
      %v523 = vsel %vm521, %v446, 0
      %v526 = vsel %vm521, %v347, 0
      %v529 = vsel %vm521, %v348, 0
      %v532 = vsel %vm521, %v349, 0
      %v535 = vsel %vm521, %v350, 0
      %v538 = vsel %vm521, %v351, 0
      %v541 = vsel %vm521, %v352, 0
      %v544 = vsel %vm521, %v353, 0
      %v547 = vsel %vm521, %v354, 0
      %v550 = vsel %vm521, %v355, 0
      %v553 = vsel %vm521, %v356, 0
      %v556 = vsel %vm521, %v357, 0
      %v559 = vsel %vm521, %v358, 0
      %v562 = vsel %vm521, %v359, 0
      %v565 = vsel %vm521, %v360, 0
      %v568 = vsel %vm521, %v361, 0
      %v571 = vsel %vm521, %v362, 0
      %573 = vmatprep.subr.mxu0 0.0
      %574 = vmatpush1.xpose.msra.mxu0 %v526
      %575 = vmatprep.subr.mxu0 0.0
      %576 = vmatpush1.xpose.msra.mxu0 %v529
      %577 = vmatprep.subr.mxu0 0.0
      %578 = vmatpush1.xpose.msra.mxu0 %v532
      %579 = vmatprep.subr.mxu0 0.0
      %580 = vmatpush1.xpose.msra.mxu0 %v535
      %581 = vmatprep.subr.mxu0 0.0
      %582 = vmatpush1.xpose.msra.mxu0 %v538
      %583 = vmatprep.subr.mxu0 0.0
      %584 = vmatpush1.xpose.msra.mxu0 %v541
      %585 = vmatprep.subr.mxu0 0.0
      %586 = vmatpush1.xpose.msra.mxu0 %v544
      %587 = vmatprep.subr.mxu0 0.0
      %588 = vmatpush1.xpose.msra.mxu0 %v547
      %589 = vmatprep.subr.mxu0 0.0
      %590 = vmatpush1.xpose.msra.mxu0 %v550
      %591 = vmatprep.subr.mxu0 0.0
      %592 = vmatpush1.xpose.msra.mxu0 %v553
      %593 = vmatprep.subr.mxu0 0.0
      %594 = vmatpush1.xpose.msra.mxu0 %v556
      %595 = vmatprep.subr.mxu0 0.0
      %596 = vmatpush1.xpose.msra.mxu0 %v559
      %597 = vmatprep.subr.mxu0 0.0
      %598 = vmatpush1.xpose.msra.mxu0 %v562
      %599 = vmatprep.subr.mxu0 0.0
      %600 = vmatpush1.xpose.msra.mxu0 %v565
      %601 = vmatprep.subr.mxu0 0.0
      %602 = vmatpush1.xpose.msra.mxu0 %v568
      %603 = vmatprep.subr.mxu0 0.0
      %604 = vmatpush1.xpose.msra.mxu0 %v571
      %605 = vmatprep.subr.mxu0 0.0
      %606 = vmatpush1.xpose.msra.mxu0 0.0
      %607 = vmatprep.subr.mxu0 0.0
      %608 = vmatpush1.xpose.msra.mxu0 0.0
      %609 = vmatprep.subr.mxu0 0.0
      %610 = vmatpush1.xpose.msra.mxu0 0.0
      %611 = vmatprep.subr.mxu0 0.0
      %612 = vmatpush1.xpose.msra.mxu0 0.0
      %613 = vmatprep.subr.mxu0 0.0
      %614 = vmatpush1.xpose.msra.mxu0 0.0
      %615 = vmatprep.subr.mxu0 0.0
      %616 = vmatpush1.xpose.msra.mxu0 0.0
      %617 = vmatprep.subr.mxu0 0.0
      %618 = vmatpush1.xpose.msra.mxu0 0.0
      %619 = vmatprep.subr.mxu0 0.0
      %620 = vmatpush1.xpose.msra.mxu0 0.0
      %621 = vmatprep.subr.mxu0 0.0
      %622 = vmatpush1.xpose.msra.mxu0 0.0
      %623 = vmatprep.subr.mxu0 0.0
      %624 = vmatpush1.xpose.msra.mxu0 0.0
      %625 = vmatprep.subr.mxu0 0.0
      %626 = vmatpush1.xpose.msra.mxu0 0.0
      %627 = vmatprep.subr.mxu0 0.0
      %628 = vmatpush1.xpose.msra.mxu0 0.0
      %629 = vmatprep.subr.mxu0 0.0
      %630 = vmatpush1.xpose.msra.mxu0 0.0
      %631 = vmatprep.subr.mxu0 0.0
      %632 = vmatpush1.xpose.msra.mxu0 0.0
      %633 = vmatprep.subr.mxu0 0.0
      %634 = vmatpush1.xpose.msra.mxu0 0.0
      %635 = vmatprep.subr.mxu0 0.0
      %636 = vmatpush1.xpose.msra.mxu0 0.0
      %637 = vmatprep.mubr.f32.mxu0 0.0
      %638 = vmatmul.mubr.f32.gmra.mrb[0].mxu0 %v523
      %v639 = vpop.f32.mrb[0].mxu0
      %v640 = vadd.f32 0.0, %v639
      %v641 = vpop.f32.mrb[0].mxu0
      %642 = vdwg.mxu0
      %v644 = vsel %vm521, %v520, 0
      %646 = vmatprep.subr.mxu0 0.0
      %647 = vmatpush1.xpose.msra.mxu0 %v526
      %648 = vmatprep.subr.mxu0 0.0
      %649 = vmatpush1.xpose.msra.mxu0 %v529
      %650 = vmatprep.subr.mxu0 0.0
      %651 = vmatpush1.xpose.msra.mxu0 %v532
      %652 = vmatprep.subr.mxu0 0.0
      %653 = vmatpush1.xpose.msra.mxu0 %v535
      %654 = vmatprep.subr.mxu0 0.0
      %655 = vmatpush1.xpose.msra.mxu0 %v538
      %656 = vmatprep.subr.mxu0 0.0
      %657 = vmatpush1.xpose.msra.mxu0 %v541
      %658 = vmatprep.subr.mxu0 0.0
      %659 = vmatpush1.xpose.msra.mxu0 %v544
      %660 = vmatprep.subr.mxu0 0.0
      %661 = vmatpush1.xpose.msra.mxu0 %v547
      %662 = vmatprep.subr.mxu0 0.0
      %663 = vmatpush1.xpose.msra.mxu0 %v550
      %664 = vmatprep.subr.mxu0 0.0
      %665 = vmatpush1.xpose.msra.mxu0 %v553
      %666 = vmatprep.subr.mxu0 0.0
      %667 = vmatpush1.xpose.msra.mxu0 %v556
      %668 = vmatprep.subr.mxu0 0.0
      %669 = vmatpush1.xpose.msra.mxu0 %v559
      %670 = vmatprep.subr.mxu0 0.0
      %671 = vmatpush1.xpose.msra.mxu0 %v562
      %672 = vmatprep.subr.mxu0 0.0
      %673 = vmatpush1.xpose.msra.mxu0 %v565
      %674 = vmatprep.subr.mxu0 0.0
      %675 = vmatpush1.xpose.msra.mxu0 %v568
      %676 = vmatprep.subr.mxu0 0.0
      %677 = vmatpush1.xpose.msra.mxu0 %v571
      %678 = vmatprep.subr.mxu0 0.0
      %679 = vmatpush1.xpose.msra.mxu0 0.0
      %680 = vmatprep.subr.mxu0 0.0
      %681 = vmatpush1.xpose.msra.mxu0 0.0
      %682 = vmatprep.subr.mxu0 0.0
      %683 = vmatpush1.xpose.msra.mxu0 0.0
      %684 = vmatprep.subr.mxu0 0.0
      %685 = vmatpush1.xpose.msra.mxu0 0.0
      %686 = vmatprep.subr.mxu0 0.0
      %687 = vmatpush1.xpose.msra.mxu0 0.0
      %688 = vmatprep.subr.mxu0 0.0
      %689 = vmatpush1.xpose.msra.mxu0 0.0
      %690 = vmatprep.subr.mxu0 0.0
      %691 = vmatpush1.xpose.msra.mxu0 0.0
      %692 = vmatprep.subr.mxu0 0.0
      %693 = vmatpush1.xpose.msra.mxu0 0.0
      %694 = vmatprep.subr.mxu0 0.0
      %695 = vmatpush1.xpose.msra.mxu0 0.0
      %696 = vmatprep.subr.mxu0 0.0
      %697 = vmatpush1.xpose.msra.mxu0 0.0
      %698 = vmatprep.subr.mxu0 0.0
      %699 = vmatpush1.xpose.msra.mxu0 0.0
      %700 = vmatprep.subr.mxu0 0.0
      %701 = vmatpush1.xpose.msra.mxu0 0.0
      %702 = vmatprep.subr.mxu0 0.0
      %703 = vmatpush1.xpose.msra.mxu0 0.0
      %704 = vmatprep.subr.mxu0 0.0
      %705 = vmatpush1.xpose.msra.mxu0 0.0
      %706 = vmatprep.subr.mxu0 0.0
      %707 = vmatpush1.xpose.msra.mxu0 0.0
      %708 = vmatprep.subr.mxu0 0.0
      %709 = vmatpush1.xpose.msra.mxu0 0.0
      %710 = vmatprep.mubr.f32.mxu0 0.0
      %711 = vmatmul.mubr.f32.gmra.mrb[0].mxu0 %v644
      %v712 = vpop.f32.mrb[0].mxu0
      %v713 = vadd.f32 1e-06, %v712
      %v714 = vpop.f32.mrb[0].mxu0
      %715 = vdwg.mxu0
      %v716 = vrsqrt.pop %v713
      %v717 = vld [vmem:[%s1] sm:$0x1]
      %v718 = vmul.f32 %v717, %v716
      %v719 = vld [vmem:[%s2] sm:$0x1]
      %v720 = vmul.f32 %v640, %v718
      %v721 = vsub.f32 %v719, %v720
      %v723 = vlaneseq
      %v724 = vshrl.u32 %v723, 7
      %v725 = vsub.s32 0, %v724
      %v726 = vrot.slane %v718, %v725
      %v728 = vmul.f32 %v346, %v726
      %v730 = vlaneseq
      %v731 = vshrl.u32 %v730, 7
      %v732 = vsub.s32 0, %v731
      %v733 = vrot.slane %v721, %v732
      %v735 = vadd.f32 %v728, %v733
      %v736 = vxor.u32 %v735, 2147483648
      %v737 = vmul.f32 %v736, 1.442695
      %v738 = vpow.pop %v737
      %v739 = vadd.f32 %v738, 1.0
      %v740 = vrcp.pop %v739
      %v741 = vmul.f32 1.0, %v740
      %v742 = vmul.f32 %v735, %v741
      %v743 = vld [vmem:[%s340] sm:$0xf]
      %v744 = vunpack.c.l.bf16 %v743
      %v745 = vld [vmem:[%s7] sm:$0xff]
      %v746 = vld [vmem:[%s7 + $0x8] sm:$0xff]
      %v747 = vld [vmem:[%s7 + $0x10] sm:$0xff]
      %v748 = vld [vmem:[%s7 + $0x18] sm:$0xff]
      %v749 = vld [vmem:[%s7 + $0x20] sm:$0xff]
      %v750 = vld [vmem:[%s7 + $0x28] sm:$0xff]
      %v751 = vld [vmem:[%s7 + $0x30] sm:$0xff]
      %v752 = vld [vmem:[%s7 + $0x38] sm:$0xff]
      %v753 = vld [vmem:[%s7 + $0x40] sm:$0xff]
      %v754 = vld [vmem:[%s7 + $0x48] sm:$0xff]
      %v755 = vld [vmem:[%s7 + $0x50] sm:$0xff]
      %v756 = vld [vmem:[%s7 + $0x58] sm:$0xff]
      %v757 = vld [vmem:[%s7 + $0x60] sm:$0xff]
      %v758 = vld [vmem:[%s7 + $0x68] sm:$0xff]
      %v759 = vld [vmem:[%s7 + $0x70] sm:$0xff]
      %v760 = vld [vmem:[%s7 + $0x78] sm:$0xff]
      %v761 = vld [vmem:[%s8] sm:$0x1]
      %v763 = vlaneseq
      %v764 = vshrl.u32 %v763, 7
      %v765 = vsub.s32 0, %v764
      %v766 = vrot.slane %v761, %v765
      %768 = vmatprep.subr.mxu0 0.0
      %769 = vmatpush1.msra.mxu0 %v745
      %770 = vmatprep.subr.mxu0 0.0
      %771 = vmatpush1.msra.mxu0 %v746
      %772 = vmatprep.subr.mxu0 0.0
      %773 = vmatpush1.msra.mxu0 %v747
      %774 = vmatprep.subr.mxu0 0.0
      %775 = vmatpush1.msra.mxu0 %v748
      %776 = vmatprep.subr.mxu0 0.0
      %777 = vmatpush1.msra.mxu0 %v749
      %778 = vmatprep.subr.mxu0 0.0
      %779 = vmatpush1.msra.mxu0 %v750
      %780 = vmatprep.subr.mxu0 0.0
      %781 = vmatpush1.msra.mxu0 %v751
      %782 = vmatprep.subr.mxu0 0.0
      %783 = vmatpush1.msra.mxu0 %v752
      %784 = vmatprep.subr.mxu0 0.0
      %785 = vmatpush1.msra.mxu0 %v753
      %786 = vmatprep.subr.mxu0 0.0
      %787 = vmatpush1.msra.mxu0 %v754
      %788 = vmatprep.subr.mxu0 0.0
      %789 = vmatpush1.msra.mxu0 %v755
      %790 = vmatprep.subr.mxu0 0.0
      %791 = vmatpush1.msra.mxu0 %v756
      %792 = vmatprep.subr.mxu0 0.0
      %793 = vmatpush1.msra.mxu0 %v757
      %794 = vmatprep.subr.mxu0 0.0
      %795 = vmatpush1.msra.mxu0 %v758
      %796 = vmatprep.subr.mxu0 0.0
      %797 = vmatpush1.msra.mxu0 %v759
      %798 = vmatprep.subr.mxu0 0.0
      %799 = vmatpush1.msra.mxu0 %v760
      %800 = vmatprep.subr.mxu0 0.0
      %801 = vmatpush1.msra.mxu0 0.0
      %802 = vmatprep.subr.mxu0 0.0
      %803 = vmatpush1.msra.mxu0 0.0
      %804 = vmatprep.subr.mxu0 0.0
      %805 = vmatpush1.msra.mxu0 0.0
      %806 = vmatprep.subr.mxu0 0.0
      %807 = vmatpush1.msra.mxu0 0.0
      %808 = vmatprep.subr.mxu0 0.0
      %809 = vmatpush1.msra.mxu0 0.0
      %810 = vmatprep.subr.mxu0 0.0
      %811 = vmatpush1.msra.mxu0 0.0
      %812 = vmatprep.subr.mxu0 0.0
      %813 = vmatpush1.msra.mxu0 0.0
      %814 = vmatprep.subr.mxu0 0.0
      %815 = vmatpush1.msra.mxu0 0.0
      %816 = vmatprep.subr.mxu0 0.0
      %817 = vmatpush1.msra.mxu0 0.0
      %818 = vmatprep.subr.mxu0 0.0
      %819 = vmatpush1.msra.mxu0 0.0
      %820 = vmatprep.subr.mxu0 0.0
      %821 = vmatpush1.msra.mxu0 0.0
      %822 = vmatprep.subr.mxu0 0.0
      %823 = vmatpush1.msra.mxu0 0.0
      %824 = vmatprep.subr.mxu0 0.0
      %825 = vmatpush1.msra.mxu0 0.0
      %826 = vmatprep.subr.mxu0 0.0
      %827 = vmatpush1.msra.mxu0 0.0
      %828 = vmatprep.subr.mxu0 0.0
      %829 = vmatpush1.msra.mxu0 0.0
      %830 = vmatprep.subr.mxu0 0.0
      %831 = vmatpush1.msra.mxu0 0.0
      %832 = vmatprep.mubr.f32.mxu0 0.0
      %833 = vmatmul.mubr.f32.gmra.mrb[0].mxu0 %v744
      %v834 = vpop.f32.mrb[0].mxu0
      %v835 = vadd.f32 %v766, %v834
      %v836 = vpop.f32.mrb[0].mxu0
      %837 = vdwg.mxu0
      %v838 = vrot.slane %v742, 7
      %v839 = vlaneseq
      %v840 = vshrl.u32 %v839, 7
      %vm841 = vcmp.eq.s32.totalorder %v840, 0
      %v842 = vsel %vm841, 0.0, %v838
      %v843 = vrot.slane %v742, 1
      %vm844 = vcmp.eq.s32.totalorder %v840, 7
      %v845 = vsel %vm844, 0.0, %v843
      %v846 = vld [vmem:[%s4] sm:$0xff]
      %v847 = vld [vmem:[%s4 + $0x8] sm:$0xff]
      %v848 = vld [vmem:[%s4 + $0x10] sm:$0xff]
      %v849 = vld [vmem:[%s4 + $0x18] sm:$0xff]
      %v850 = vld [vmem:[%s4 + $0x20] sm:$0xff]
      %v851 = vld [vmem:[%s4 + $0x28] sm:$0xff]
      %v852 = vld [vmem:[%s4 + $0x30] sm:$0xff]
      %v853 = vld [vmem:[%s4 + $0x38] sm:$0xff]
      %v854 = vld [vmem:[%s4 + $0x40] sm:$0xff]
      %v855 = vld [vmem:[%s4 + $0x48] sm:$0xff]
      %v856 = vld [vmem:[%s4 + $0x50] sm:$0xff]
      %v857 = vld [vmem:[%s4 + $0x58] sm:$0xff]
      %v858 = vld [vmem:[%s4 + $0x60] sm:$0xff]
      %v859 = vld [vmem:[%s4 + $0x68] sm:$0xff]
      %v860 = vld [vmem:[%s4 + $0x70] sm:$0xff]
      %v861 = vld [vmem:[%s4 + $0x78] sm:$0xff]
      %v862 = vld [vmem:[%s4 + $0x80] sm:$0xff]
      %v863 = vld [vmem:[%s4 + $0x88] sm:$0xff]
      %v864 = vld [vmem:[%s4 + $0x90] sm:$0xff]
      %v865 = vld [vmem:[%s4 + $0x98] sm:$0xff]
      %v866 = vld [vmem:[%s4 + $0xa0] sm:$0xff]
      %v867 = vld [vmem:[%s4 + $0xa8] sm:$0xff]
      %v868 = vld [vmem:[%s4 + $0xb0] sm:$0xff]
      %v869 = vld [vmem:[%s4 + $0xb8] sm:$0xff]
      %v870 = vld [vmem:[%s4 + $0xc0] sm:$0xff]
      %v871 = vld [vmem:[%s4 + $0xc8] sm:$0xff]
      %v872 = vld [vmem:[%s4 + $0xd0] sm:$0xff]
      %v873 = vld [vmem:[%s4 + $0xd8] sm:$0xff]
      %v874 = vld [vmem:[%s4 + $0xe0] sm:$0xff]
      %v875 = vld [vmem:[%s4 + $0xe8] sm:$0xff]
      %v876 = vld [vmem:[%s4 + $0xf0] sm:$0xff]
      %v877 = vld [vmem:[%s4 + $0xf8] sm:$0xff]
      %v878 = vld [vmem:[%s4 + $0x100] sm:$0xff]
      %v879 = vld [vmem:[%s4 + $0x108] sm:$0xff]
      %v880 = vld [vmem:[%s4 + $0x110] sm:$0xff]
      %v881 = vld [vmem:[%s4 + $0x118] sm:$0xff]
      %v882 = vld [vmem:[%s4 + $0x120] sm:$0xff]
      %v883 = vld [vmem:[%s4 + $0x128] sm:$0xff]
      %v884 = vld [vmem:[%s4 + $0x130] sm:$0xff]
      %v885 = vld [vmem:[%s4 + $0x138] sm:$0xff]
      %v886 = vld [vmem:[%s4 + $0x140] sm:$0xff]
      %v887 = vld [vmem:[%s4 + $0x148] sm:$0xff]
      %v888 = vld [vmem:[%s4 + $0x150] sm:$0xff]
      %v889 = vld [vmem:[%s4 + $0x158] sm:$0xff]
      %v890 = vld [vmem:[%s4 + $0x160] sm:$0xff]
      %v891 = vld [vmem:[%s4 + $0x168] sm:$0xff]
      %v892 = vld [vmem:[%s4 + $0x170] sm:$0xff]
      %v893 = vld [vmem:[%s4 + $0x178] sm:$0xff]
      %v894 = vld [vmem:[%s5] sm:$0x1]
      %v896 = vlaneseq
      %v897 = vshrl.u32 %v896, 7
      %v898 = vsub.s32 0, %v897
      %v899 = vrot.slane %v894, %v898
      %901 = vmatprep.subr.mxu0 0.0
      %902 = vmatpush1.msra.mxu0 %v846
      %903 = vmatprep.subr.mxu0 0.0
      %904 = vmatpush1.msra.mxu0 %v847
      %905 = vmatprep.subr.mxu0 0.0
      %906 = vmatpush1.msra.mxu0 %v848
      %907 = vmatprep.subr.mxu0 0.0
      %908 = vmatpush1.msra.mxu0 %v849
      %909 = vmatprep.subr.mxu0 0.0
      %910 = vmatpush1.msra.mxu0 %v850
      %911 = vmatprep.subr.mxu0 0.0
      %912 = vmatpush1.msra.mxu0 %v851
      %913 = vmatprep.subr.mxu0 0.0
      %914 = vmatpush1.msra.mxu0 %v852
      %915 = vmatprep.subr.mxu0 0.0
      %916 = vmatpush1.msra.mxu0 %v853
      %917 = vmatprep.subr.mxu0 0.0
      %918 = vmatpush1.msra.mxu0 %v854
      %919 = vmatprep.subr.mxu0 0.0
      %920 = vmatpush1.msra.mxu0 %v855
      %921 = vmatprep.subr.mxu0 0.0
      %922 = vmatpush1.msra.mxu0 %v856
      %923 = vmatprep.subr.mxu0 0.0
      %924 = vmatpush1.msra.mxu0 %v857
      %925 = vmatprep.subr.mxu0 0.0
      %926 = vmatpush1.msra.mxu0 %v858
      %927 = vmatprep.subr.mxu0 0.0
      %928 = vmatpush1.msra.mxu0 %v859
      %929 = vmatprep.subr.mxu0 0.0
      %930 = vmatpush1.msra.mxu0 %v860
      %931 = vmatprep.subr.mxu0 0.0
      %932 = vmatpush1.msra.mxu0 %v861
      %933 = vmatprep.subr.mxu0 0.0
      %934 = vmatpush1.msra.mxu0 %v862
      %935 = vmatprep.subr.mxu0 0.0
      %936 = vmatpush1.msra.mxu0 %v863
      %937 = vmatprep.subr.mxu0 0.0
      %938 = vmatpush1.msra.mxu0 %v864
      %939 = vmatprep.subr.mxu0 0.0
      %940 = vmatpush1.msra.mxu0 %v865
      %941 = vmatprep.subr.mxu0 0.0
      %942 = vmatpush1.msra.mxu0 %v866
      %943 = vmatprep.subr.mxu0 0.0
      %944 = vmatpush1.msra.mxu0 %v867
      %945 = vmatprep.subr.mxu0 0.0
      %946 = vmatpush1.msra.mxu0 %v868
      %947 = vmatprep.subr.mxu0 0.0
      %948 = vmatpush1.msra.mxu0 %v869
      %949 = vmatprep.subr.mxu0 0.0
      %950 = vmatpush1.msra.mxu0 %v870
      %951 = vmatprep.subr.mxu0 0.0
      %952 = vmatpush1.msra.mxu0 %v871
      %953 = vmatprep.subr.mxu0 0.0
      %954 = vmatpush1.msra.mxu0 %v872
      %955 = vmatprep.subr.mxu0 0.0
      %956 = vmatpush1.msra.mxu0 %v873
      %957 = vmatprep.subr.mxu0 0.0
      %958 = vmatpush1.msra.mxu0 %v874
      %959 = vmatprep.subr.mxu0 0.0
      %960 = vmatpush1.msra.mxu0 %v875
      %961 = vmatprep.subr.mxu0 0.0
      %962 = vmatpush1.msra.mxu0 %v876
      %963 = vmatprep.subr.mxu0 0.0
      %964 = vmatpush1.msra.mxu0 %v877
      %965 = vmatprep.mubr.f32.mxu0 %v742
      %966 = vmatmul.mubr.f32.gmra.mrb[0].mxu0 %v842
      %v967 = vpop.f32.mrb[0].mxu0
      %v968 = vadd.f32 %v899, %v967
      %v969 = vpop.f32.mrb[0].mxu0
      %970 = vdwg.mxu0
      %971 = vmatprep.subr.mxu0 0.0
      %972 = vmatpush1.msra.mxu0 %v878
      %973 = vmatprep.subr.mxu0 0.0
      %974 = vmatpush1.msra.mxu0 %v879
      %975 = vmatprep.subr.mxu0 0.0
      %976 = vmatpush1.msra.mxu0 %v880
      %977 = vmatprep.subr.mxu0 0.0
      %978 = vmatpush1.msra.mxu0 %v881
      %979 = vmatprep.subr.mxu0 0.0
      %980 = vmatpush1.msra.mxu0 %v882
      %981 = vmatprep.subr.mxu0 0.0
      %982 = vmatpush1.msra.mxu0 %v883
      %983 = vmatprep.subr.mxu0 0.0
      %984 = vmatpush1.msra.mxu0 %v884
      %985 = vmatprep.subr.mxu0 0.0
      %986 = vmatpush1.msra.mxu0 %v885
      %987 = vmatprep.subr.mxu0 0.0
      %988 = vmatpush1.msra.mxu0 %v886
      %989 = vmatprep.subr.mxu0 0.0
      %990 = vmatpush1.msra.mxu0 %v887
      %991 = vmatprep.subr.mxu0 0.0
      %992 = vmatpush1.msra.mxu0 %v888
      %993 = vmatprep.subr.mxu0 0.0
      %994 = vmatpush1.msra.mxu0 %v889
      %995 = vmatprep.subr.mxu0 0.0
      %996 = vmatpush1.msra.mxu0 %v890
      %997 = vmatprep.subr.mxu0 0.0
      %998 = vmatpush1.msra.mxu0 %v891
      %999 = vmatprep.subr.mxu0 0.0
      %1000 = vmatpush1.msra.mxu0 %v892
      %1001 = vmatprep.subr.mxu0 0.0
      %1002 = vmatpush1.msra.mxu0 %v893
      %1003 = vmatprep.subr.mxu0 0.0
      %1004 = vmatpush1.msra.mxu0 0.0
      %1005 = vmatprep.subr.mxu0 0.0
      %1006 = vmatpush1.msra.mxu0 0.0
      %1007 = vmatprep.subr.mxu0 0.0
      %1008 = vmatpush1.msra.mxu0 0.0
      %1009 = vmatprep.subr.mxu0 0.0
      %1010 = vmatpush1.msra.mxu0 0.0
      %1011 = vmatprep.subr.mxu0 0.0
      %1012 = vmatpush1.msra.mxu0 0.0
      %1013 = vmatprep.subr.mxu0 0.0
      %1014 = vmatpush1.msra.mxu0 0.0
      %1015 = vmatprep.subr.mxu0 0.0
      %1016 = vmatpush1.msra.mxu0 0.0
      %1017 = vmatprep.subr.mxu0 0.0
      %1018 = vmatpush1.msra.mxu0 0.0
      %1019 = vmatprep.subr.mxu0 0.0
      %1020 = vmatpush1.msra.mxu0 0.0
      %1021 = vmatprep.subr.mxu0 0.0
      %1022 = vmatpush1.msra.mxu0 0.0
      %1023 = vmatprep.subr.mxu0 0.0
      %1024 = vmatpush1.msra.mxu0 0.0
      %1025 = vmatprep.subr.mxu0 0.0
      %1026 = vmatpush1.msra.mxu0 0.0
      %1027 = vmatprep.subr.mxu0 0.0
      %1028 = vmatpush1.msra.mxu0 0.0
      %1029 = vmatprep.subr.mxu0 0.0
      %1030 = vmatpush1.msra.mxu0 0.0
      %1031 = vmatprep.subr.mxu0 0.0
      %1032 = vmatpush1.msra.mxu0 0.0
      %1033 = vmatprep.subr.mxu0 0.0
      %1034 = vmatpush1.msra.mxu0 0.0
      %1035 = vmatprep.mubr.f32.mxu0 0.0
      %1036 = vmatmul.mubr.f32.gmra.mrb[0].mxu0 %v845
      %v1037 = vpop.f32.mrb[0].mxu0
      %v1038 = vadd.f32 %v968, %v1037
      %v1039 = vpop.f32.mrb[0].mxu0
      %1040 = vdwg.mxu0
      %v1041 = vadd.f32 %v1038, %v835
      %v1042 = vpack.c.bf16 %v1041, %v1041
      %1043 = vst [vmem:[%s344] sm:$0xf] %v1042
      %p1044 = scmp.lt.s32.totalorder %s20, 1
      %s1045 = scalar_select %p1044, %s20, 1
      %s1046 = smul.addr %s1045, 4
      %s1047 = scalar_lea.vmem %s9, %s1046
      // Predicated region
      $region57: #{_lambda_.18} parent=55 // pred_check
        %p1048 = pneg %p237
      $region58: #{_lambda_.18} parent=55 // pred_check_branch
        %1050 = sbr.rel (%p1048) target = $region60
      $region59: #{_lambda_.18} parent=55 // pred_region
        _
      $region60: #{_lambda_.18} parent=55 // pred_fallthru
        _
    $region56: #{_lambda_.18} parent=5 // pred_fallthru
      _
    %p1051 = scmp.le.s32.totalorder 2, %s15
    // Predicated region
    $region61: #{_lambda_.18} parent=5 // pred_check
      %p1052 = pneg %p1051
    $region62: #{_lambda_.18} parent=5 // pred_check_branch
      %1054 = sbr.rel (%p1052) target = $region64
    $region63: #{_lambda_.18} parent=5 // pred_region
      %s1055 = ssub.s32 %s15, 2
      // Predicated region
      $region65: #{_lambda_.18} parent=63 // pred_check
        %p1056 = pneg %p243
      $region66: #{_lambda_.18} parent=63 // pred_check_branch
        %1058 = sbr.rel (%p1056) target = $region68
      $region67: #{_lambda_.18} parent=63 // pred_region
        %p1059 = scmp.lt.s32.totalorder %s21, 1
        %s1060 = scalar_select %p1059, %s21, 1
        %s1061 = smul.addr %s1060, 4
        %s1062 = scalar_lea.vmem %s9, %s1061
      $region68: #{_lambda_.18} parent=63 // pred_fallthru
        _
    $region64: #{_lambda_.18} parent=5 // pred_fallthru
      _
  $region6: #{_lambda_.18} parent=0 // loop_footer
    %s19 = sadd.s32 1, %s15
  $region7: #{_lambda_.18} parent=0 // loop_footer_branch
    %14 = sbr.rel target = $region3
  $region8: #{_lambda_.18} parent=0 // loop_exit
    _

// kernel: _lambda_.19
$region0: #{_lambda_.19}
  #allocation0 [shape = 'u32[]', space=smem, size = 0x4, offset = 0x4, fixed_abs, tag = 'smem constant byte address 0x4 - core index']
  #allocation1 [shape = 'u32[144,128]{1,0:T(1,128)}', space=vmem, size = 0x12000, scoped, tag = 'internal scratch']
  %s0 = inlined_call_operand.vmem [shape: bf16[2,8,128], index: 0, kind: input, shape index: {}]
  %s1 = inlined_call_operand.vmem [shape: f32[1,128], index: 1, kind: input, shape index: {}]
  %s2 = inlined_call_operand.vmem [shape: f32[1,128], index: 2, kind: input, shape index: {}]
  %s3 = inlined_call_operand.vmem [shape: f32[128,32], index: 3, kind: input, shape index: {}]
  %s4 = inlined_call_operand.vmem [shape: f32[128,128], index: 4, kind: input, shape index: {}]
  %s5 = inlined_call_operand.vmem [shape: f32[1,128], index: 5, kind: input, shape index: {}]
  %s6 = inlined_call_operand.vmem [shape: f32[128,128], index: 6, kind: input, shape index: {}]
  %s7 = inlined_call_operand.vmem [shape: f32[1,128], index: 7, kind: input, shape index: {}]
  %s8 = inlined_call_operand.vmem [shape: f32[128,128], index: 8, kind: input, shape index: {}]
  %s9 = inlined_call_operand.vmem [shape: f32[1,128], index: 9, kind: input, shape index: {}]
  %s10 = inlined_call_operand.vmem [shape: f32[128,128], index: 10, kind: input, shape index: {}]
  %s11 = inlined_call_operand.vmem [shape: f32[1,128], index: 11, kind: input, shape index: {}]
  %s12 = inlined_call_operand.vmem [shape: bf16[2,8,128], index: 12, kind: output, shape index: {}]
  %s13 = sld [smem:[#allocation0]]
  $region81: #{_lambda_.19} parent=0
    _
  %s15 = ssub.s32 1, %s13
  %s16 = scalar_select 0, %s15, %s13
  loop: start=0, step=1, limit=4
  $region2: #{_lambda_.19} parent=0 // loop_pre_header
    _
  $region3: #{_lambda_.19} parent=0 // loop_header
    %s18 = sphi 0, %s22
    %p19 = scmp.ge.s32.totalorder %s18, 4
    %s28 = sphi 0, %s30
    %s31 = sphi 0, %s28
    %s32 = sphi 0, %s31
    %s48 = sphi 0, %s32
    %s52 = sphi 0, %s52
    %s54 = sphi 0, %s52
    %s55 = sphi 0, %s54
    %s69 = sphi 0, %s55
    %s73 = sphi 0, %s73
    %s75 = sphi 0, %s73
    %s76 = sphi 0, %s75
    %s90 = sphi 0, %s76
    %s94 = sphi 0, %s94
    %s96 = sphi 0, %s94
    %s97 = sphi 0, %s96
    %s111 = sphi 0, %s97
    %s115 = sphi 0, %s115
    %s117 = sphi 0, %s115
    %s118 = sphi 0, %s117
    %s132 = sphi 0, %s118
    %s136 = sphi 0, %s136
    %s138 = sphi 0, %s136
    %s139 = sphi 0, %s138
    %s153 = sphi 0, %s139
    %s157 = sphi 0, %s157
    %s159 = sphi 0, %s157
    %s160 = sphi 0, %s159
    %s174 = sphi 0, %s160
    %s178 = sphi 0, %s178
    %s180 = sphi 0, %s178
    %s181 = sphi 0, %s180
    %s195 = sphi 0, %s181
    %s199 = sphi 0, %s199
    %s201 = sphi 0, %s199
    %s202 = sphi 0, %s201
    %s216 = sphi 0, %s202
    %s220 = sphi 0, %s220
    %s222 = sphi 0, %s220
    %s223 = sphi 0, %s222
    %s237 = sphi 0, %s223
    %s241 = sphi 0, %s241
    %s243 = sphi 0, %s241
    %s244 = sphi 0, %s243
    %s258 = sphi 0, %s244
    %s262 = sphi 0, %s262
    %s264 = sphi 0, %s262
    %s265 = sphi 0, %s264
    %s279 = sphi 0, %s265
    %s285 = sphi 0, %s287
    %s288 = sphi 0, %s285
    %s289 = sphi 0, %s288
    %s305 = sphi 0, %s289
  $region4: #{_lambda_.19} parent=0 // loop_header_branch
    %21 = sbr.rel (%p19) target = $region8
  $region5: #{_lambda_.19} parent=0 // loop_body
    %s23 = ssub.s32 %s18, 1
    %s24 = ssub.s32 %s18, 2
    %s25 = sadd.s32 %s18, 1
    %s26 = ssub.s32 %s18, %s25
    %p27 = scmp.eq.s32.totalorder %s26, 0
    %s29 = sadd.s32 %s28, 1
    %s30 = scalar_select %p27, %s28, %s29
    %p33 = pneg %p27
    %p34 = scmp.eq.s32.totalorder %s18, 1
    %p35 = por %p33, %p34
    %p36 = scmp.ne.s32.totalorder %s28, %s31
    %p37 = scmp.eq.s32.totalorder %s18, 0
    %p38 = por %p36, %p37
    %p39 = scmp.ne.s32.totalorder %s28, %s31
    %p40 = scmp.eq.s32.totalorder %s23, 1
    %p41 = por %p39, %p40
    %p42 = scmp.ne.s32.totalorder %s31, %s32
    %p43 = scmp.eq.s32.totalorder %s23, 0
    %p44 = por %p42, %p43
    %p45 = scmp.ne.s32.totalorder %s31, %s32
    %p46 = scmp.eq.s32.totalorder %s24, 1
    %p47 = por %p45, %p46
    %p49 = scmp.ne.s32.totalorder %s32, %s48
    %p50 = scmp.eq.s32.totalorder %s24, 0
    %p51 = por %p49, %p50
    %s53 = sadd.s32 %s52, 1
    %p56 = scmp.eq.s32.totalorder %s18, 1
    %p57 = scmp.ne.s32.totalorder %s52, %s54
    %p58 = scmp.eq.s32.totalorder %s18, 0
    %p59 = por %p57, %p58
    %p60 = scmp.ne.s32.totalorder %s52, %s54
    %p61 = scmp.eq.s32.totalorder %s23, 1
    %p62 = por %p60, %p61
    %p63 = scmp.ne.s32.totalorder %s54, %s55
    %p64 = scmp.eq.s32.totalorder %s23, 0
    %p65 = por %p63, %p64
    %p66 = scmp.ne.s32.totalorder %s54, %s55
    %p67 = scmp.eq.s32.totalorder %s24, 1
    %p68 = por %p66, %p67
    %p70 = scmp.ne.s32.totalorder %s55, %s69
    %p71 = scmp.eq.s32.totalorder %s24, 0
    %p72 = por %p70, %p71
    %s74 = sadd.s32 %s73, 1
    %p77 = scmp.eq.s32.totalorder %s18, 1
    %p78 = scmp.ne.s32.totalorder %s73, %s75
    %p79 = scmp.eq.s32.totalorder %s18, 0
    %p80 = por %p78, %p79
    %p81 = scmp.ne.s32.totalorder %s73, %s75
    %p82 = scmp.eq.s32.totalorder %s23, 1
    %p83 = por %p81, %p82
    %p84 = scmp.ne.s32.totalorder %s75, %s76
    %p85 = scmp.eq.s32.totalorder %s23, 0
    %p86 = por %p84, %p85
    %p87 = scmp.ne.s32.totalorder %s75, %s76
    %p88 = scmp.eq.s32.totalorder %s24, 1
    %p89 = por %p87, %p88
    %p91 = scmp.ne.s32.totalorder %s76, %s90
    %p92 = scmp.eq.s32.totalorder %s24, 0
    %p93 = por %p91, %p92
    %s95 = sadd.s32 %s94, 1
    %p98 = scmp.eq.s32.totalorder %s18, 1
    %p99 = scmp.ne.s32.totalorder %s94, %s96
    %p100 = scmp.eq.s32.totalorder %s18, 0
    %p101 = por %p99, %p100
    %p102 = scmp.ne.s32.totalorder %s94, %s96
    %p103 = scmp.eq.s32.totalorder %s23, 1
    %p104 = por %p102, %p103
    %p105 = scmp.ne.s32.totalorder %s96, %s97
    %p106 = scmp.eq.s32.totalorder %s23, 0
    %p107 = por %p105, %p106
    %p108 = scmp.ne.s32.totalorder %s96, %s97
    %p109 = scmp.eq.s32.totalorder %s24, 1
    %p110 = por %p108, %p109
    %p112 = scmp.ne.s32.totalorder %s97, %s111
    %p113 = scmp.eq.s32.totalorder %s24, 0
    %p114 = por %p112, %p113
    %s116 = sadd.s32 %s115, 1
    %p119 = scmp.eq.s32.totalorder %s18, 1
    %p120 = scmp.ne.s32.totalorder %s115, %s117
    %p121 = scmp.eq.s32.totalorder %s18, 0
    %p122 = por %p120, %p121
    %p123 = scmp.ne.s32.totalorder %s115, %s117
    %p124 = scmp.eq.s32.totalorder %s23, 1
    %p125 = por %p123, %p124
    %p126 = scmp.ne.s32.totalorder %s117, %s118
    %p127 = scmp.eq.s32.totalorder %s23, 0
    %p128 = por %p126, %p127
    %p129 = scmp.ne.s32.totalorder %s117, %s118
    %p130 = scmp.eq.s32.totalorder %s24, 1
    %p131 = por %p129, %p130
    %p133 = scmp.ne.s32.totalorder %s118, %s132
    %p134 = scmp.eq.s32.totalorder %s24, 0
    %p135 = por %p133, %p134
    %s137 = sadd.s32 %s136, 1
    %p140 = scmp.eq.s32.totalorder %s18, 1
    %p141 = scmp.ne.s32.totalorder %s136, %s138
    %p142 = scmp.eq.s32.totalorder %s18, 0
    %p143 = por %p141, %p142
    %p144 = scmp.ne.s32.totalorder %s136, %s138
    %p145 = scmp.eq.s32.totalorder %s23, 1
    %p146 = por %p144, %p145
    %p147 = scmp.ne.s32.totalorder %s138, %s139
    %p148 = scmp.eq.s32.totalorder %s23, 0
    %p149 = por %p147, %p148
    %p150 = scmp.ne.s32.totalorder %s138, %s139
    %p151 = scmp.eq.s32.totalorder %s24, 1
    %p152 = por %p150, %p151
    %p154 = scmp.ne.s32.totalorder %s139, %s153
    %p155 = scmp.eq.s32.totalorder %s24, 0
    %p156 = por %p154, %p155
    %s158 = sadd.s32 %s157, 1
    %p161 = scmp.eq.s32.totalorder %s18, 1
    %p162 = scmp.ne.s32.totalorder %s157, %s159
    %p163 = scmp.eq.s32.totalorder %s18, 0
    %p164 = por %p162, %p163
    %p165 = scmp.ne.s32.totalorder %s157, %s159
    %p166 = scmp.eq.s32.totalorder %s23, 1
    %p167 = por %p165, %p166
    %p168 = scmp.ne.s32.totalorder %s159, %s160
    %p169 = scmp.eq.s32.totalorder %s23, 0
    %p170 = por %p168, %p169
    %p171 = scmp.ne.s32.totalorder %s159, %s160
    %p172 = scmp.eq.s32.totalorder %s24, 1
    %p173 = por %p171, %p172
    %p175 = scmp.ne.s32.totalorder %s160, %s174
    %p176 = scmp.eq.s32.totalorder %s24, 0
    %p177 = por %p175, %p176
    %s179 = sadd.s32 %s178, 1
    %p182 = scmp.eq.s32.totalorder %s18, 1
    %p183 = scmp.ne.s32.totalorder %s178, %s180
    %p184 = scmp.eq.s32.totalorder %s18, 0
    %p185 = por %p183, %p184
    %p186 = scmp.ne.s32.totalorder %s178, %s180
    %p187 = scmp.eq.s32.totalorder %s23, 1
    %p188 = por %p186, %p187
    %p189 = scmp.ne.s32.totalorder %s180, %s181
    %p190 = scmp.eq.s32.totalorder %s23, 0
    %p191 = por %p189, %p190
    %p192 = scmp.ne.s32.totalorder %s180, %s181
    %p193 = scmp.eq.s32.totalorder %s24, 1
    %p194 = por %p192, %p193
    %p196 = scmp.ne.s32.totalorder %s181, %s195
    %p197 = scmp.eq.s32.totalorder %s24, 0
    %p198 = por %p196, %p197
    %s200 = sadd.s32 %s199, 1
    %p203 = scmp.eq.s32.totalorder %s18, 1
    %p204 = scmp.ne.s32.totalorder %s199, %s201
    %p205 = scmp.eq.s32.totalorder %s18, 0
    %p206 = por %p204, %p205
    %p207 = scmp.ne.s32.totalorder %s199, %s201
    %p208 = scmp.eq.s32.totalorder %s23, 1
    %p209 = por %p207, %p208
    %p210 = scmp.ne.s32.totalorder %s201, %s202
    %p211 = scmp.eq.s32.totalorder %s23, 0
    %p212 = por %p210, %p211
    %p213 = scmp.ne.s32.totalorder %s201, %s202
    %p214 = scmp.eq.s32.totalorder %s24, 1
    %p215 = por %p213, %p214
    %p217 = scmp.ne.s32.totalorder %s202, %s216
    %p218 = scmp.eq.s32.totalorder %s24, 0
    %p219 = por %p217, %p218
    %s221 = sadd.s32 %s220, 1
    %p224 = scmp.eq.s32.totalorder %s18, 1
    %p225 = scmp.ne.s32.totalorder %s220, %s222
    %p226 = scmp.eq.s32.totalorder %s18, 0
    %p227 = por %p225, %p226
    %p228 = scmp.ne.s32.totalorder %s220, %s222
    %p229 = scmp.eq.s32.totalorder %s23, 1
    %p230 = por %p228, %p229
    %p231 = scmp.ne.s32.totalorder %s222, %s223
    %p232 = scmp.eq.s32.totalorder %s23, 0
    %p233 = por %p231, %p232
    %p234 = scmp.ne.s32.totalorder %s222, %s223
    %p235 = scmp.eq.s32.totalorder %s24, 1
    %p236 = por %p234, %p235
    %p238 = scmp.ne.s32.totalorder %s223, %s237
    %p239 = scmp.eq.s32.totalorder %s24, 0
    %p240 = por %p238, %p239
    %s242 = sadd.s32 %s241, 1
    %p245 = scmp.eq.s32.totalorder %s18, 1
    %p246 = scmp.ne.s32.totalorder %s241, %s243
    %p247 = scmp.eq.s32.totalorder %s18, 0
    %p248 = por %p246, %p247
    %p249 = scmp.ne.s32.totalorder %s241, %s243
    %p250 = scmp.eq.s32.totalorder %s23, 1
    %p251 = por %p249, %p250
    %p252 = scmp.ne.s32.totalorder %s243, %s244
    %p253 = scmp.eq.s32.totalorder %s23, 0
    %p254 = por %p252, %p253
    %p255 = scmp.ne.s32.totalorder %s243, %s244
    %p256 = scmp.eq.s32.totalorder %s24, 1
    %p257 = por %p255, %p256
    %p259 = scmp.ne.s32.totalorder %s244, %s258
    %p260 = scmp.eq.s32.totalorder %s24, 0
    %p261 = por %p259, %p260
    %s263 = sadd.s32 %s262, 1
    %p266 = scmp.eq.s32.totalorder %s18, 1
    %p267 = scmp.ne.s32.totalorder %s262, %s264
    %p268 = scmp.eq.s32.totalorder %s18, 0
    %p269 = por %p267, %p268
    %p270 = scmp.ne.s32.totalorder %s262, %s264
    %p271 = scmp.eq.s32.totalorder %s23, 1
    %p272 = por %p270, %p271
    %p273 = scmp.ne.s32.totalorder %s264, %s265
    %p274 = scmp.eq.s32.totalorder %s23, 0
    %p275 = por %p273, %p274
    %p276 = scmp.ne.s32.totalorder %s264, %s265
    %p277 = scmp.eq.s32.totalorder %s24, 1
    %p278 = por %p276, %p277
    %p280 = scmp.ne.s32.totalorder %s265, %s279
    %p281 = scmp.eq.s32.totalorder %s24, 0
    %p282 = por %p280, %p281
    %s283 = ssub.s32 %s18, %s25
    %p284 = scmp.eq.s32.totalorder %s283, 0
    %s286 = sadd.s32 %s285, 1
    %s287 = scalar_select %p284, %s285, %s286
    %p290 = pneg %p284
    %p291 = scmp.eq.s32.totalorder %s18, 1
    %p292 = por %p290, %p291
    %p293 = scmp.ne.s32.totalorder %s285, %s288
    %p294 = scmp.eq.s32.totalorder %s18, 0
    %p295 = por %p293, %p294
    %p296 = scmp.ne.s32.totalorder %s285, %s288
    %p297 = scmp.eq.s32.totalorder %s23, 1
    %p298 = por %p296, %p297
    %p299 = scmp.ne.s32.totalorder %s288, %s289
    %p300 = scmp.eq.s32.totalorder %s23, 0
    %p301 = por %p299, %p300
    %p302 = scmp.ne.s32.totalorder %s288, %s289
    %p303 = scmp.eq.s32.totalorder %s24, 1
    %p304 = por %p302, %p303
    %p306 = scmp.ne.s32.totalorder %s289, %s305
    %p307 = scmp.eq.s32.totalorder %s24, 0
    %p308 = por %p306, %p307
    %p309 = scmp.le.s32.totalorder 1, %s18
    %p310 = scmp.lt.s32.totalorder %s18, 3
    %p311 = pnand %p309, %p310
    %p312 = pneg %p311
    // Predicated region
    $region9: #{_lambda_.19} parent=5 // pred_check
      _
    $region10: #{_lambda_.19} parent=5 // pred_check_branch
      %314 = sbr.rel (%p311) target = $region12
    $region11: #{_lambda_.19} parent=5 // pred_region
      %s315 = ssub.s32 %s18, 1
      // Predicated region
      $region13: #{_lambda_.19} parent=11 // pred_check
        %p316 = pneg %p65
      $region14: #{_lambda_.19} parent=11 // pred_check_branch
        %318 = sbr.rel (%p316) target = $region16
      $region15: #{_lambda_.19} parent=11 // pred_region
        _
      $region16: #{_lambda_.19} parent=11 // pred_fallthru
        _
      // Predicated region
      $region17: #{_lambda_.19} parent=11 // pred_check
        %p319 = pneg %p86
      $region18: #{_lambda_.19} parent=11 // pred_check_branch
        %321 = sbr.rel (%p319) target = $region20
      $region19: #{_lambda_.19} parent=11 // pred_region
        _
      $region20: #{_lambda_.19} parent=11 // pred_fallthru
        _
      // Predicated region
      $region21: #{_lambda_.19} parent=11 // pred_check
        %p322 = pneg %p107
      $region22: #{_lambda_.19} parent=11 // pred_check_branch
        %324 = sbr.rel (%p322) target = $region24
      $region23: #{_lambda_.19} parent=11 // pred_region
        _
      $region24: #{_lambda_.19} parent=11 // pred_fallthru
        _
      // Predicated region
      $region25: #{_lambda_.19} parent=11 // pred_check
        %p325 = pneg %p128
      $region26: #{_lambda_.19} parent=11 // pred_check_branch
        %327 = sbr.rel (%p325) target = $region28
      $region27: #{_lambda_.19} parent=11 // pred_region
        _
      $region28: #{_lambda_.19} parent=11 // pred_fallthru
        _
      // Predicated region
      $region29: #{_lambda_.19} parent=11 // pred_check
        %p328 = pneg %p149
      $region30: #{_lambda_.19} parent=11 // pred_check_branch
        %330 = sbr.rel (%p328) target = $region32
      $region31: #{_lambda_.19} parent=11 // pred_region
        _
      $region32: #{_lambda_.19} parent=11 // pred_fallthru
        _
      // Predicated region
      $region33: #{_lambda_.19} parent=11 // pred_check
        %p331 = pneg %p170
      $region34: #{_lambda_.19} parent=11 // pred_check_branch
        %333 = sbr.rel (%p331) target = $region36
      $region35: #{_lambda_.19} parent=11 // pred_region
        _
      $region36: #{_lambda_.19} parent=11 // pred_fallthru
        _
      // Predicated region
      $region37: #{_lambda_.19} parent=11 // pred_check
        %p334 = pneg %p191
      $region38: #{_lambda_.19} parent=11 // pred_check_branch
        %336 = sbr.rel (%p334) target = $region40
      $region39: #{_lambda_.19} parent=11 // pred_region
        _
      $region40: #{_lambda_.19} parent=11 // pred_fallthru
        _
      // Predicated region
      $region41: #{_lambda_.19} parent=11 // pred_check
        %p337 = pneg %p212
      $region42: #{_lambda_.19} parent=11 // pred_check_branch
        %339 = sbr.rel (%p337) target = $region44
      $region43: #{_lambda_.19} parent=11 // pred_region
        _
      $region44: #{_lambda_.19} parent=11 // pred_fallthru
        _
      // Predicated region
      $region45: #{_lambda_.19} parent=11 // pred_check
        %p340 = pneg %p233
      $region46: #{_lambda_.19} parent=11 // pred_check_branch
        %342 = sbr.rel (%p340) target = $region48
      $region47: #{_lambda_.19} parent=11 // pred_region
        _
      $region48: #{_lambda_.19} parent=11 // pred_fallthru
        _
      // Predicated region
      $region49: #{_lambda_.19} parent=11 // pred_check
        %p343 = pneg %p254
      $region50: #{_lambda_.19} parent=11 // pred_check_branch
        %345 = sbr.rel (%p343) target = $region52
      $region51: #{_lambda_.19} parent=11 // pred_region
        _
      $region52: #{_lambda_.19} parent=11 // pred_fallthru
        _
      // Predicated region
      $region53: #{_lambda_.19} parent=11 // pred_check
        %p346 = pneg %p275
      $region54: #{_lambda_.19} parent=11 // pred_check_branch
        %348 = sbr.rel (%p346) target = $region56
      $region55: #{_lambda_.19} parent=11 // pred_region
        _
      $region56: #{_lambda_.19} parent=11 // pred_fallthru
        _
    $region12: #{_lambda_.19} parent=5 // pred_fallthru
      _
    %p349 = scmp.lt.s32.totalorder %s18, 2
    // Predicated region
    $region57: #{_lambda_.19} parent=5 // pred_check
      %p350 = pneg %p349
    $region58: #{_lambda_.19} parent=5 // pred_check_branch
      %352 = sbr.rel (%p350) target = $region60
    $region59: #{_lambda_.19} parent=5 // pred_region
      // Predicated region
      $region61: #{_lambda_.19} parent=59 // pred_check
        %p353 = pneg %p38
      $region62: #{_lambda_.19} parent=59 // pred_check_branch
        %355 = sbr.rel (%p353) target = $region64
      $region63: #{_lambda_.19} parent=59 // pred_region
        %p356 = scmp.lt.s32.totalorder %s18, 1
        %s357 = scalar_select %p356, %s18, 1
        %s358 = smul.addr %s357, 4
        %s359 = scalar_lea.vmem %s0, %s358
      $region64: #{_lambda_.19} parent=59 // pred_fallthru
        _
    $region60: #{_lambda_.19} parent=5 // pred_fallthru
      _
    %p360 = scmp.le.s32.totalorder 1, %s18
    %p361 = scmp.lt.s32.totalorder %s18, 3
    %p362 = pnand %p360, %p361
    %p363 = pneg %p362
    // Predicated region
    $region65: #{_lambda_.19} parent=5 // pred_check
      _
    $region66: #{_lambda_.19} parent=5 // pred_check_branch
      %365 = sbr.rel (%p362) target = $region68
    $region67: #{_lambda_.19} parent=5 // pred_region
      %s366 = ssub.s32 %s18, 1
      %p367 = scmp.lt.s32.totalorder %s23, 1
      %s368 = scalar_select %p367, %s23, 1
      %s369 = smul.addr %s368, 4
      %s370 = scalar_lea.vmem %s0, %s369
      %p371 = pneg %p44
      %p372 = pneg %p41
      %p373 = pneg %p65
      %p374 = pneg %p62
      %p375 = pneg %p86
      %p376 = pneg %p83
      %p377 = pneg %p107
      %p378 = pneg %p104
      %p379 = pneg %p128
      %p380 = pneg %p125
      %p381 = pneg %p149
      %p382 = pneg %p146
      %p383 = pneg %p170
      %p384 = pneg %p167
      %p385 = pneg %p191
      %p386 = pneg %p188
      %p387 = pneg %p212
      %p388 = pneg %p209
      %p389 = pneg %p233
      %p390 = pneg %p230
      %p391 = pneg %p254
      %p392 = pneg %p251
      %p393 = pneg %p275
      %p394 = pneg %p272
      %p395 = pneg %p301
      %p396 = pneg %p298
      %p397 = scmp.lt.s32.totalorder %s23, 1
      %s398 = scalar_select %p397, %s23, 1
      %s399 = smul.addr %s398, 4
      %s400 = scalar_lea.vmem %s12, %s399
      %p401 = scmp.lt.s32.totalorder %s23, 1
      %s402 = scalar_select %p401, %s23, 1
      %s403 = smul.addr %s402, 4
      %s404 = scalar_lea.vmem %s0, %s403
      %p405 = scmp.lt.s32.totalorder %s23, 1
      %s406 = scalar_select %p405, %s23, 1
      %s407 = smul.addr %s406, 4
      %s408 = scalar_lea.vmem %s12, %s407
      %v409 = vld [vmem:[%s404] sm:$0xf]
      %v410 = vunpack.c.l.bf16 %v409
      %v411 = vld [vmem:[%s3] sm:$0xff]
      %v412 = vld [vmem:[%s3 + $0x8] sm:$0xff]
      %v413 = vld [vmem:[%s3 + $0x10] sm:$0xff]
      %v414 = vld [vmem:[%s3 + $0x18] sm:$0xff]
      %v415 = vld [vmem:[%s3 + $0x20] sm:$0xff]
      %v416 = vld [vmem:[%s3 + $0x28] sm:$0xff]
      %v417 = vld [vmem:[%s3 + $0x30] sm:$0xff]
      %v418 = vld [vmem:[%s3 + $0x38] sm:$0xff]
      %v419 = vld [vmem:[%s3 + $0x40] sm:$0xff]
      %v420 = vld [vmem:[%s3 + $0x48] sm:$0xff]
      %v421 = vld [vmem:[%s3 + $0x50] sm:$0xff]
      %v422 = vld [vmem:[%s3 + $0x58] sm:$0xff]
      %v423 = vld [vmem:[%s3 + $0x60] sm:$0xff]
      %v424 = vld [vmem:[%s3 + $0x68] sm:$0xff]
      %v425 = vld [vmem:[%s3 + $0x70] sm:$0xff]
      %v426 = vld [vmem:[%s3 + $0x78] sm:$0xff]
      %v427 = vrot.slane %v410, 4
      %v428 = vadd.f32 %v410, %v427
      %v429 = vrot.slane %v428, 2
      %v430 = vadd.f32 %v428, %v429
      %v431 = vrot.slane %v430, 1
      %v432 = vadd.f32 %v430, %v431
      %v433 = vmul.f32 %v410, %v410
      %v434 = vrot.slane %v433, 4
      %v435 = vadd.f32 %v433, %v434
      %v436 = vrot.slane %v435, 2
      %v437 = vadd.f32 %v435, %v436
      %v438 = vrot.slane %v437, 1
      %v439 = vadd.f32 %v437, %v438
      %440 = vmatprep.subr.mxu0 0.0
      %441 = vmatpush1.msra.mxu0 %v411
      %442 = vmatprep.subr.mxu0 0.0
      %443 = vmatpush1.msra.mxu0 %v412
      %444 = vmatprep.subr.mxu0 0.0
      %445 = vmatpush1.msra.mxu0 %v413
      %446 = vmatprep.subr.mxu0 0.0
      %447 = vmatpush1.msra.mxu0 %v414
      %448 = vmatprep.subr.mxu0 0.0
      %449 = vmatpush1.msra.mxu0 %v415
      %450 = vmatprep.subr.mxu0 0.0
      %451 = vmatpush1.msra.mxu0 %v416
      %452 = vmatprep.subr.mxu0 0.0
      %453 = vmatpush1.msra.mxu0 %v417
      %454 = vmatprep.subr.mxu0 0.0
      %455 = vmatpush1.msra.mxu0 %v418
      %456 = vmatprep.subr.mxu0 0.0
      %457 = vmatpush1.msra.mxu0 %v419
      %458 = vmatprep.subr.mxu0 0.0
      %459 = vmatpush1.msra.mxu0 %v420
      %460 = vmatprep.subr.mxu0 0.0
      %461 = vmatpush1.msra.mxu0 %v421
      %462 = vmatprep.subr.mxu0 0.0
      %463 = vmatpush1.msra.mxu0 %v422
      %464 = vmatprep.subr.mxu0 0.0
      %465 = vmatpush1.msra.mxu0 %v423
      %466 = vmatprep.subr.mxu0 0.0
      %467 = vmatpush1.msra.mxu0 %v424
      %468 = vmatprep.subr.mxu0 0.0
      %469 = vmatpush1.msra.mxu0 %v425
      %470 = vmatprep.subr.mxu0 0.0
      %471 = vmatpush1.msra.mxu0 %v426
      %472 = vmatprep.subr.mxu0 0.0
      %473 = vmatpush1.msra.mxu0 0.0
      %474 = vmatprep.subr.mxu0 0.0
      %475 = vmatpush1.msra.mxu0 0.0
      %476 = vmatprep.subr.mxu0 0.0
      %477 = vmatpush1.msra.mxu0 0.0
      %478 = vmatprep.subr.mxu0 0.0
      %479 = vmatpush1.msra.mxu0 0.0
      %480 = vmatprep.subr.mxu0 0.0
      %481 = vmatpush1.msra.mxu0 0.0
      %482 = vmatprep.subr.mxu0 0.0
      %483 = vmatpush1.msra.mxu0 0.0
      %484 = vmatprep.subr.mxu0 0.0
      %485 = vmatpush1.msra.mxu0 0.0
      %486 = vmatprep.subr.mxu0 0.0
      %487 = vmatpush1.msra.mxu0 0.0
      %488 = vmatprep.subr.mxu0 0.0
      %489 = vmatpush1.msra.mxu0 0.0
      %490 = vmatprep.subr.mxu0 0.0
      %491 = vmatpush1.msra.mxu0 0.0
      %492 = vmatprep.subr.mxu0 0.0
      %493 = vmatpush1.msra.mxu0 0.0
      %494 = vmatprep.subr.mxu0 0.0
      %495 = vmatpush1.msra.mxu0 0.0
      %496 = vmatprep.subr.mxu0 0.0
      %497 = vmatpush1.msra.mxu0 0.0
      %498 = vmatprep.subr.mxu0 0.0
      %499 = vmatpush1.msra.mxu0 0.0
      %500 = vmatprep.subr.mxu0 0.0
      %501 = vmatpush1.msra.mxu0 0.0
      %502 = vmatprep.subr.mxu0 0.0
      %503 = vmatpush1.msra.mxu0 0.0
      %504 = vmatprep.mubr.f32.mxu0 0.0
      %505 = vmatmul.mubr.f32.gmra.mrb[0].mxu0 %v432
      %v506 = vpop.f32.mrb[0].mxu0
      %v507 = vadd.f32 0.0, %v506
      %v508 = vpop.f32.mrb[0].mxu0
      %509 = vdwg.mxu0
      %v510 = vmul.f32 %v507, 0.0625
      %511 = vmatprep.subr.mxu0 0.0
      %512 = vmatpush1.msra.mxu0 %v411
      %513 = vmatprep.subr.mxu0 0.0
      %514 = vmatpush1.msra.mxu0 %v412
      %515 = vmatprep.subr.mxu0 0.0
      %516 = vmatpush1.msra.mxu0 %v413
      %517 = vmatprep.subr.mxu0 0.0
      %518 = vmatpush1.msra.mxu0 %v414
      %519 = vmatprep.subr.mxu0 0.0
      %520 = vmatpush1.msra.mxu0 %v415
      %521 = vmatprep.subr.mxu0 0.0
      %522 = vmatpush1.msra.mxu0 %v416
      %523 = vmatprep.subr.mxu0 0.0
      %524 = vmatpush1.msra.mxu0 %v417
      %525 = vmatprep.subr.mxu0 0.0
      %526 = vmatpush1.msra.mxu0 %v418
      %527 = vmatprep.subr.mxu0 0.0
      %528 = vmatpush1.msra.mxu0 %v419
      %529 = vmatprep.subr.mxu0 0.0
      %530 = vmatpush1.msra.mxu0 %v420
      %531 = vmatprep.subr.mxu0 0.0
      %532 = vmatpush1.msra.mxu0 %v421
      %533 = vmatprep.subr.mxu0 0.0
      %534 = vmatpush1.msra.mxu0 %v422
      %535 = vmatprep.subr.mxu0 0.0
      %536 = vmatpush1.msra.mxu0 %v423
      %537 = vmatprep.subr.mxu0 0.0
      %538 = vmatpush1.msra.mxu0 %v424
      %539 = vmatprep.subr.mxu0 0.0
      %540 = vmatpush1.msra.mxu0 %v425
      %541 = vmatprep.subr.mxu0 0.0
      %542 = vmatpush1.msra.mxu0 %v426
      %543 = vmatprep.subr.mxu0 0.0
      %544 = vmatpush1.msra.mxu0 0.0
      %545 = vmatprep.subr.mxu0 0.0
      %546 = vmatpush1.msra.mxu0 0.0
      %547 = vmatprep.subr.mxu0 0.0
      %548 = vmatpush1.msra.mxu0 0.0
      %549 = vmatprep.subr.mxu0 0.0
      %550 = vmatpush1.msra.mxu0 0.0
      %551 = vmatprep.subr.mxu0 0.0
      %552 = vmatpush1.msra.mxu0 0.0
      %553 = vmatprep.subr.mxu0 0.0
      %554 = vmatpush1.msra.mxu0 0.0
      %555 = vmatprep.subr.mxu0 0.0
      %556 = vmatpush1.msra.mxu0 0.0
      %557 = vmatprep.subr.mxu0 0.0
      %558 = vmatpush1.msra.mxu0 0.0
      %559 = vmatprep.subr.mxu0 0.0
      %560 = vmatpush1.msra.mxu0 0.0
      %561 = vmatprep.subr.mxu0 0.0
      %562 = vmatpush1.msra.mxu0 0.0
      %563 = vmatprep.subr.mxu0 0.0
      %564 = vmatpush1.msra.mxu0 0.0
      %565 = vmatprep.subr.mxu0 0.0
      %566 = vmatpush1.msra.mxu0 0.0
      %567 = vmatprep.subr.mxu0 0.0
      %568 = vmatpush1.msra.mxu0 0.0
      %569 = vmatprep.subr.mxu0 0.0
      %570 = vmatpush1.msra.mxu0 0.0
      %571 = vmatprep.subr.mxu0 0.0
      %572 = vmatpush1.msra.mxu0 0.0
      %573 = vmatprep.subr.mxu0 0.0
      %574 = vmatpush1.msra.mxu0 0.0
      %575 = vmatprep.mubr.f32.mxu0 0.0
      %576 = vmatmul.mubr.f32.gmra.mrb[0].mxu0 %v439
      %v577 = vpop.f32.mrb[0].mxu0
      %v578 = vadd.f32 0.0, %v577
      %v579 = vpop.f32.mrb[0].mxu0
      %580 = vdwg.mxu0
      %v581 = vmul.f32 %v578, 0.0625
      %v582 = vmul.f32 %v510, %v510
      %v583 = vsub.f32 %v581, %v582
      %v584 = vmax.f32 %v583, 0.0
      %vm585 = vcmask 261120
      %v587 = vsel %vm585, %v510, 0
      %v590 = vsel %vm585, %v411, 0
      %v593 = vsel %vm585, %v412, 0
      %v596 = vsel %vm585, %v413, 0
      %v599 = vsel %vm585, %v414, 0
      %v602 = vsel %vm585, %v415, 0
      %v605 = vsel %vm585, %v416, 0
      %v608 = vsel %vm585, %v417, 0
      %v611 = vsel %vm585, %v418, 0
      %v614 = vsel %vm585, %v419, 0
      %v617 = vsel %vm585, %v420, 0
      %v620 = vsel %vm585, %v421, 0
      %v623 = vsel %vm585, %v422, 0
      %v626 = vsel %vm585, %v423, 0
      %v629 = vsel %vm585, %v424, 0
      %v632 = vsel %vm585, %v425, 0
      %v635 = vsel %vm585, %v426, 0
      %637 = vmatprep.subr.mxu0 0.0
      %638 = vmatpush1.xpose.msra.mxu0 %v590
      %639 = vmatprep.subr.mxu0 0.0
      %640 = vmatpush1.xpose.msra.mxu0 %v593
      %641 = vmatprep.subr.mxu0 0.0
      %642 = vmatpush1.xpose.msra.mxu0 %v596
      %643 = vmatprep.subr.mxu0 0.0
      %644 = vmatpush1.xpose.msra.mxu0 %v599
      %645 = vmatprep.subr.mxu0 0.0
      %646 = vmatpush1.xpose.msra.mxu0 %v602
      %647 = vmatprep.subr.mxu0 0.0
      %648 = vmatpush1.xpose.msra.mxu0 %v605
      %649 = vmatprep.subr.mxu0 0.0
      %650 = vmatpush1.xpose.msra.mxu0 %v608
      %651 = vmatprep.subr.mxu0 0.0
      %652 = vmatpush1.xpose.msra.mxu0 %v611
      %653 = vmatprep.subr.mxu0 0.0
      %654 = vmatpush1.xpose.msra.mxu0 %v614
      %655 = vmatprep.subr.mxu0 0.0
      %656 = vmatpush1.xpose.msra.mxu0 %v617
      %657 = vmatprep.subr.mxu0 0.0
      %658 = vmatpush1.xpose.msra.mxu0 %v620
      %659 = vmatprep.subr.mxu0 0.0
      %660 = vmatpush1.xpose.msra.mxu0 %v623
      %661 = vmatprep.subr.mxu0 0.0
      %662 = vmatpush1.xpose.msra.mxu0 %v626
      %663 = vmatprep.subr.mxu0 0.0
      %664 = vmatpush1.xpose.msra.mxu0 %v629
      %665 = vmatprep.subr.mxu0 0.0
      %666 = vmatpush1.xpose.msra.mxu0 %v632
      %667 = vmatprep.subr.mxu0 0.0
      %668 = vmatpush1.xpose.msra.mxu0 %v635
      %669 = vmatprep.subr.mxu0 0.0
      %670 = vmatpush1.xpose.msra.mxu0 0.0
      %671 = vmatprep.subr.mxu0 0.0
      %672 = vmatpush1.xpose.msra.mxu0 0.0
      %673 = vmatprep.subr.mxu0 0.0
      %674 = vmatpush1.xpose.msra.mxu0 0.0
      %675 = vmatprep.subr.mxu0 0.0
      %676 = vmatpush1.xpose.msra.mxu0 0.0
      %677 = vmatprep.subr.mxu0 0.0
      %678 = vmatpush1.xpose.msra.mxu0 0.0
      %679 = vmatprep.subr.mxu0 0.0
      %680 = vmatpush1.xpose.msra.mxu0 0.0
      %681 = vmatprep.subr.mxu0 0.0
      %682 = vmatpush1.xpose.msra.mxu0 0.0
      %683 = vmatprep.subr.mxu0 0.0
      %684 = vmatpush1.xpose.msra.mxu0 0.0
      %685 = vmatprep.subr.mxu0 0.0
      %686 = vmatpush1.xpose.msra.mxu0 0.0
      %687 = vmatprep.subr.mxu0 0.0
      %688 = vmatpush1.xpose.msra.mxu0 0.0
      %689 = vmatprep.subr.mxu0 0.0
      %690 = vmatpush1.xpose.msra.mxu0 0.0
      %691 = vmatprep.subr.mxu0 0.0
      %692 = vmatpush1.xpose.msra.mxu0 0.0
      %693 = vmatprep.subr.mxu0 0.0
      %694 = vmatpush1.xpose.msra.mxu0 0.0
      %695 = vmatprep.subr.mxu0 0.0
      %696 = vmatpush1.xpose.msra.mxu0 0.0
      %697 = vmatprep.subr.mxu0 0.0
      %698 = vmatpush1.xpose.msra.mxu0 0.0
      %699 = vmatprep.subr.mxu0 0.0
      %700 = vmatpush1.xpose.msra.mxu0 0.0
      %701 = vmatprep.mubr.f32.mxu0 0.0
      %702 = vmatmul.mubr.f32.gmra.mrb[0].mxu0 %v587
      %v703 = vpop.f32.mrb[0].mxu0
      %v704 = vadd.f32 0.0, %v703
      %v705 = vpop.f32.mrb[0].mxu0
      %706 = vdwg.mxu0
      %v708 = vsel %vm585, %v584, 0
      %710 = vmatprep.subr.mxu0 0.0
      %711 = vmatpush1.xpose.msra.mxu0 %v590
      %712 = vmatprep.subr.mxu0 0.0
      %713 = vmatpush1.xpose.msra.mxu0 %v593
      %714 = vmatprep.subr.mxu0 0.0
      %715 = vmatpush1.xpose.msra.mxu0 %v596
      %716 = vmatprep.subr.mxu0 0.0
      %717 = vmatpush1.xpose.msra.mxu0 %v599
      %718 = vmatprep.subr.mxu0 0.0
      %719 = vmatpush1.xpose.msra.mxu0 %v602
      %720 = vmatprep.subr.mxu0 0.0
      %721 = vmatpush1.xpose.msra.mxu0 %v605
      %722 = vmatprep.subr.mxu0 0.0
      %723 = vmatpush1.xpose.msra.mxu0 %v608
      %724 = vmatprep.subr.mxu0 0.0
      %725 = vmatpush1.xpose.msra.mxu0 %v611
      %726 = vmatprep.subr.mxu0 0.0
      %727 = vmatpush1.xpose.msra.mxu0 %v614
      %728 = vmatprep.subr.mxu0 0.0
      %729 = vmatpush1.xpose.msra.mxu0 %v617
      %730 = vmatprep.subr.mxu0 0.0
      %731 = vmatpush1.xpose.msra.mxu0 %v620
      %732 = vmatprep.subr.mxu0 0.0
      %733 = vmatpush1.xpose.msra.mxu0 %v623
      %734 = vmatprep.subr.mxu0 0.0
      %735 = vmatpush1.xpose.msra.mxu0 %v626
      %736 = vmatprep.subr.mxu0 0.0
      %737 = vmatpush1.xpose.msra.mxu0 %v629
      %738 = vmatprep.subr.mxu0 0.0
      %739 = vmatpush1.xpose.msra.mxu0 %v632
      %740 = vmatprep.subr.mxu0 0.0
      %741 = vmatpush1.xpose.msra.mxu0 %v635
      %742 = vmatprep.subr.mxu0 0.0
      %743 = vmatpush1.xpose.msra.mxu0 0.0
      %744 = vmatprep.subr.mxu0 0.0
      %745 = vmatpush1.xpose.msra.mxu0 0.0
      %746 = vmatprep.subr.mxu0 0.0
      %747 = vmatpush1.xpose.msra.mxu0 0.0
      %748 = vmatprep.subr.mxu0 0.0
      %749 = vmatpush1.xpose.msra.mxu0 0.0
      %750 = vmatprep.subr.mxu0 0.0
      %751 = vmatpush1.xpose.msra.mxu0 0.0
      %752 = vmatprep.subr.mxu0 0.0
      %753 = vmatpush1.xpose.msra.mxu0 0.0
      %754 = vmatprep.subr.mxu0 0.0
      %755 = vmatpush1.xpose.msra.mxu0 0.0
      %756 = vmatprep.subr.mxu0 0.0
      %757 = vmatpush1.xpose.msra.mxu0 0.0
      %758 = vmatprep.subr.mxu0 0.0
      %759 = vmatpush1.xpose.msra.mxu0 0.0
      %760 = vmatprep.subr.mxu0 0.0
      %761 = vmatpush1.xpose.msra.mxu0 0.0
      %762 = vmatprep.subr.mxu0 0.0
      %763 = vmatpush1.xpose.msra.mxu0 0.0
      %764 = vmatprep.subr.mxu0 0.0
      %765 = vmatpush1.xpose.msra.mxu0 0.0
      %766 = vmatprep.subr.mxu0 0.0
      %767 = vmatpush1.xpose.msra.mxu0 0.0
      %768 = vmatprep.subr.mxu0 0.0
      %769 = vmatpush1.xpose.msra.mxu0 0.0
      %770 = vmatprep.subr.mxu0 0.0
      %771 = vmatpush1.xpose.msra.mxu0 0.0
      %772 = vmatprep.subr.mxu0 0.0
      %773 = vmatpush1.xpose.msra.mxu0 0.0
      %774 = vmatprep.mubr.f32.mxu0 0.0
      %775 = vmatmul.mubr.f32.gmra.mrb[0].mxu0 %v708
      %v776 = vpop.f32.mrb[0].mxu0
      %v777 = vadd.f32 1e-06, %v776
      %v778 = vpop.f32.mrb[0].mxu0
      %779 = vdwg.mxu0
      %v780 = vrsqrt.pop %v777
      %v781 = vld [vmem:[%s1] sm:$0x1]
      %v782 = vmul.f32 %v781, %v780
      %v783 = vld [vmem:[%s2] sm:$0x1]
      %v784 = vmul.f32 %v704, %v782
      %v785 = vsub.f32 %v783, %v784
      %v787 = vlaneseq
      %v788 = vshrl.u32 %v787, 7
      %v789 = vsub.s32 0, %v788
      %v790 = vrot.slane %v782, %v789
      %v792 = vmul.f32 %v410, %v790
      %v794 = vlaneseq
      %v795 = vshrl.u32 %v794, 7
      %v796 = vsub.s32 0, %v795
      %v797 = vrot.slane %v785, %v796
      %v799 = vadd.f32 %v792, %v797
      %v800 = vld [vmem:[%s4] sm:$0xff]
      %v801 = vld [vmem:[%s4 + $0x8] sm:$0xff]
      %v802 = vld [vmem:[%s4 + $0x10] sm:$0xff]
      %v803 = vld [vmem:[%s4 + $0x18] sm:$0xff]
      %v804 = vld [vmem:[%s4 + $0x20] sm:$0xff]
      %v805 = vld [vmem:[%s4 + $0x28] sm:$0xff]
      %v806 = vld [vmem:[%s4 + $0x30] sm:$0xff]
      %v807 = vld [vmem:[%s4 + $0x38] sm:$0xff]
      %v808 = vld [vmem:[%s4 + $0x40] sm:$0xff]
      %v809 = vld [vmem:[%s4 + $0x48] sm:$0xff]
      %v810 = vld [vmem:[%s4 + $0x50] sm:$0xff]
      %v811 = vld [vmem:[%s4 + $0x58] sm:$0xff]
      %v812 = vld [vmem:[%s4 + $0x60] sm:$0xff]
      %v813 = vld [vmem:[%s4 + $0x68] sm:$0xff]
      %v814 = vld [vmem:[%s4 + $0x70] sm:$0xff]
      %v815 = vld [vmem:[%s4 + $0x78] sm:$0xff]
      %v816 = vld [vmem:[%s5] sm:$0x1]
      %v818 = vlaneseq
      %v819 = vshrl.u32 %v818, 7
      %v820 = vsub.s32 0, %v819
      %v821 = vrot.slane %v816, %v820
      %823 = vmatprep.subr.mxu0 0.0
      %824 = vmatpush1.msra.mxu0 %v800
      %825 = vmatprep.subr.mxu0 0.0
      %826 = vmatpush1.msra.mxu0 %v801
      %827 = vmatprep.subr.mxu0 0.0
      %828 = vmatpush1.msra.mxu0 %v802
      %829 = vmatprep.subr.mxu0 0.0
      %830 = vmatpush1.msra.mxu0 %v803
      %831 = vmatprep.subr.mxu0 0.0
      %832 = vmatpush1.msra.mxu0 %v804
      %833 = vmatprep.subr.mxu0 0.0
      %834 = vmatpush1.msra.mxu0 %v805
      %835 = vmatprep.subr.mxu0 0.0
      %836 = vmatpush1.msra.mxu0 %v806
      %837 = vmatprep.subr.mxu0 0.0
      %838 = vmatpush1.msra.mxu0 %v807
      %839 = vmatprep.subr.mxu0 0.0
      %840 = vmatpush1.msra.mxu0 %v808
      %841 = vmatprep.subr.mxu0 0.0
      %842 = vmatpush1.msra.mxu0 %v809
      %843 = vmatprep.subr.mxu0 0.0
      %844 = vmatpush1.msra.mxu0 %v810
      %845 = vmatprep.subr.mxu0 0.0
      %846 = vmatpush1.msra.mxu0 %v811
      %847 = vmatprep.subr.mxu0 0.0
      %848 = vmatpush1.msra.mxu0 %v812
      %849 = vmatprep.subr.mxu0 0.0
      %850 = vmatpush1.msra.mxu0 %v813
      %851 = vmatprep.subr.mxu0 0.0
      %852 = vmatpush1.msra.mxu0 %v814
      %853 = vmatprep.subr.mxu0 0.0
      %854 = vmatpush1.msra.mxu0 %v815
      %855 = vmatprep.subr.mxu0 0.0
      %856 = vmatpush1.msra.mxu0 0.0
      %857 = vmatprep.subr.mxu0 0.0
      %858 = vmatpush1.msra.mxu0 0.0
      %859 = vmatprep.subr.mxu0 0.0
      %860 = vmatpush1.msra.mxu0 0.0
      %861 = vmatprep.subr.mxu0 0.0
      %862 = vmatpush1.msra.mxu0 0.0
      %863 = vmatprep.subr.mxu0 0.0
      %864 = vmatpush1.msra.mxu0 0.0
      %865 = vmatprep.subr.mxu0 0.0
      %866 = vmatpush1.msra.mxu0 0.0
      %867 = vmatprep.subr.mxu0 0.0
      %868 = vmatpush1.msra.mxu0 0.0
      %869 = vmatprep.subr.mxu0 0.0
      %870 = vmatpush1.msra.mxu0 0.0
      %871 = vmatprep.subr.mxu0 0.0
      %872 = vmatpush1.msra.mxu0 0.0
      %873 = vmatprep.subr.mxu0 0.0
      %874 = vmatpush1.msra.mxu0 0.0
      %875 = vmatprep.subr.mxu0 0.0
      %876 = vmatpush1.msra.mxu0 0.0
      %877 = vmatprep.subr.mxu0 0.0
      %878 = vmatpush1.msra.mxu0 0.0
      %879 = vmatprep.subr.mxu0 0.0
      %880 = vmatpush1.msra.mxu0 0.0
      %881 = vmatprep.subr.mxu0 0.0
      %882 = vmatpush1.msra.mxu0 0.0
      %883 = vmatprep.subr.mxu0 0.0
      %884 = vmatpush1.msra.mxu0 0.0
      %885 = vmatprep.subr.mxu0 0.0
      %886 = vmatpush1.msra.mxu0 0.0
      %887 = vmatprep.mubr.f32.mxu0 0.0
      %888 = vmatmul.mubr.f32.gmra.mrb[0].mxu0 %v799
      %v889 = vpop.f32.mrb[0].mxu0
      %v890 = vadd.f32 %v821, %v889
      %v891 = vpop.f32.mrb[0].mxu0
      %892 = vdwg.mxu0
      %v893 = vld [vmem:[%s6] sm:$0xff]
      %v894 = vld [vmem:[%s6 + $0x8] sm:$0xff]
      %v895 = vld [vmem:[%s6 + $0x10] sm:$0xff]
      %v896 = vld [vmem:[%s6 + $0x18] sm:$0xff]
      %v897 = vld [vmem:[%s6 + $0x20] sm:$0xff]
      %v898 = vld [vmem:[%s6 + $0x28] sm:$0xff]
      %v899 = vld [vmem:[%s6 + $0x30] sm:$0xff]
      %v900 = vld [vmem:[%s6 + $0x38] sm:$0xff]
      %v901 = vld [vmem:[%s6 + $0x40] sm:$0xff]
      %v902 = vld [vmem:[%s6 + $0x48] sm:$0xff]
      %v903 = vld [vmem:[%s6 + $0x50] sm:$0xff]
      %v904 = vld [vmem:[%s6 + $0x58] sm:$0xff]
      %v905 = vld [vmem:[%s6 + $0x60] sm:$0xff]
      %v906 = vld [vmem:[%s6 + $0x68] sm:$0xff]
      %v907 = vld [vmem:[%s6 + $0x70] sm:$0xff]
      %v908 = vld [vmem:[%s6 + $0x78] sm:$0xff]
      %v909 = vld [vmem:[%s7] sm:$0x1]
      %v911 = vlaneseq
      %v912 = vshrl.u32 %v911, 7
      %v913 = vsub.s32 0, %v912
      %v914 = vrot.slane %v909, %v913
      %916 = vmatprep.subr.mxu0 0.0
      %917 = vmatpush1.msra.mxu0 %v893
      %918 = vmatprep.subr.mxu0 0.0
      %919 = vmatpush1.msra.mxu0 %v894
      %920 = vmatprep.subr.mxu0 0.0
      %921 = vmatpush1.msra.mxu0 %v895
      %922 = vmatprep.subr.mxu0 0.0
      %923 = vmatpush1.msra.mxu0 %v896
      %924 = vmatprep.subr.mxu0 0.0
      %925 = vmatpush1.msra.mxu0 %v897
      %926 = vmatprep.subr.mxu0 0.0
      %927 = vmatpush1.msra.mxu0 %v898
      %928 = vmatprep.subr.mxu0 0.0
      %929 = vmatpush1.msra.mxu0 %v899
      %930 = vmatprep.subr.mxu0 0.0
      %931 = vmatpush1.msra.mxu0 %v900
      %932 = vmatprep.subr.mxu0 0.0
      %933 = vmatpush1.msra.mxu0 %v901
      %934 = vmatprep.subr.mxu0 0.0
      %935 = vmatpush1.msra.mxu0 %v902
      %936 = vmatprep.subr.mxu0 0.0
      %937 = vmatpush1.msra.mxu0 %v903
      %938 = vmatprep.subr.mxu0 0.0
      %939 = vmatpush1.msra.mxu0 %v904
      %940 = vmatprep.subr.mxu0 0.0
      %941 = vmatpush1.msra.mxu0 %v905
      %942 = vmatprep.subr.mxu0 0.0
      %943 = vmatpush1.msra.mxu0 %v906
      %944 = vmatprep.subr.mxu0 0.0
      %945 = vmatpush1.msra.mxu0 %v907
      %946 = vmatprep.subr.mxu0 0.0
      %947 = vmatpush1.msra.mxu0 %v908
      %948 = vmatprep.subr.mxu0 0.0
      %949 = vmatpush1.msra.mxu0 0.0
      %950 = vmatprep.subr.mxu0 0.0
      %951 = vmatpush1.msra.mxu0 0.0
      %952 = vmatprep.subr.mxu0 0.0
      %953 = vmatpush1.msra.mxu0 0.0
      %954 = vmatprep.subr.mxu0 0.0
      %955 = vmatpush1.msra.mxu0 0.0
      %956 = vmatprep.subr.mxu0 0.0
      %957 = vmatpush1.msra.mxu0 0.0
      %958 = vmatprep.subr.mxu0 0.0
      %959 = vmatpush1.msra.mxu0 0.0
      %960 = vmatprep.subr.mxu0 0.0
      %961 = vmatpush1.msra.mxu0 0.0
      %962 = vmatprep.subr.mxu0 0.0
      %963 = vmatpush1.msra.mxu0 0.0
      %964 = vmatprep.subr.mxu0 0.0
      %965 = vmatpush1.msra.mxu0 0.0
      %966 = vmatprep.subr.mxu0 0.0
      %967 = vmatpush1.msra.mxu0 0.0
      %968 = vmatprep.subr.mxu0 0.0
      %969 = vmatpush1.msra.mxu0 0.0
      %970 = vmatprep.subr.mxu0 0.0
      %971 = vmatpush1.msra.mxu0 0.0
      %972 = vmatprep.subr.mxu0 0.0
      %973 = vmatpush1.msra.mxu0 0.0
      %974 = vmatprep.subr.mxu0 0.0
      %975 = vmatpush1.msra.mxu0 0.0
      %976 = vmatprep.subr.mxu0 0.0
      %977 = vmatpush1.msra.mxu0 0.0
      %978 = vmatprep.subr.mxu0 0.0
      %979 = vmatpush1.msra.mxu0 0.0
      %980 = vmatprep.mubr.f32.mxu0 0.0
      %981 = vmatmul.mubr.f32.gmra.mrb[0].mxu0 %v799
      %v982 = vpop.f32.mrb[0].mxu0
      %v983 = vadd.f32 %v914, %v982
      %v984 = vpop.f32.mrb[0].mxu0
      %985 = vdwg.mxu0
      %v986 = vld [vmem:[%s8] sm:$0xff]
      %v987 = vld [vmem:[%s8 + $0x8] sm:$0xff]
      %v988 = vld [vmem:[%s8 + $0x10] sm:$0xff]
      %v989 = vld [vmem:[%s8 + $0x18] sm:$0xff]
      %v990 = vld [vmem:[%s8 + $0x20] sm:$0xff]
      %v991 = vld [vmem:[%s8 + $0x28] sm:$0xff]
      %v992 = vld [vmem:[%s8 + $0x30] sm:$0xff]
      %v993 = vld [vmem:[%s8 + $0x38] sm:$0xff]
      %v994 = vld [vmem:[%s8 + $0x40] sm:$0xff]
      %v995 = vld [vmem:[%s8 + $0x48] sm:$0xff]
      %v996 = vld [vmem:[%s8 + $0x50] sm:$0xff]
      %v997 = vld [vmem:[%s8 + $0x58] sm:$0xff]
      %v998 = vld [vmem:[%s8 + $0x60] sm:$0xff]
      %v999 = vld [vmem:[%s8 + $0x68] sm:$0xff]
      %v1000 = vld [vmem:[%s8 + $0x70] sm:$0xff]
      %v1001 = vld [vmem:[%s8 + $0x78] sm:$0xff]
      %v1002 = vld [vmem:[%s9] sm:$0x1]
      %v1004 = vlaneseq
      %v1005 = vshrl.u32 %v1004, 7
      %v1006 = vsub.s32 0, %v1005
      %v1007 = vrot.slane %v1002, %v1006
      %1009 = vmatprep.subr.mxu0 0.0
      %1010 = vmatpush1.msra.mxu0 %v986
      %1011 = vmatprep.subr.mxu0 0.0
      %1012 = vmatpush1.msra.mxu0 %v987
      %1013 = vmatprep.subr.mxu0 0.0
      %1014 = vmatpush1.msra.mxu0 %v988
      %1015 = vmatprep.subr.mxu0 0.0
      %1016 = vmatpush1.msra.mxu0 %v989
      %1017 = vmatprep.subr.mxu0 0.0
      %1018 = vmatpush1.msra.mxu0 %v990
      %1019 = vmatprep.subr.mxu0 0.0
      %1020 = vmatpush1.msra.mxu0 %v991
      %1021 = vmatprep.subr.mxu0 0.0
      %1022 = vmatpush1.msra.mxu0 %v992
      %1023 = vmatprep.subr.mxu0 0.0
      %1024 = vmatpush1.msra.mxu0 %v993
      %1025 = vmatprep.subr.mxu0 0.0
      %1026 = vmatpush1.msra.mxu0 %v994
      %1027 = vmatprep.subr.mxu0 0.0
      %1028 = vmatpush1.msra.mxu0 %v995
      %1029 = vmatprep.subr.mxu0 0.0
      %1030 = vmatpush1.msra.mxu0 %v996
      %1031 = vmatprep.subr.mxu0 0.0
      %1032 = vmatpush1.msra.mxu0 %v997
      %1033 = vmatprep.subr.mxu0 0.0
      %1034 = vmatpush1.msra.mxu0 %v998
      %1035 = vmatprep.subr.mxu0 0.0
      %1036 = vmatpush1.msra.mxu0 %v999
      %1037 = vmatprep.subr.mxu0 0.0
      %1038 = vmatpush1.msra.mxu0 %v1000
      %1039 = vmatprep.subr.mxu0 0.0
      %1040 = vmatpush1.msra.mxu0 %v1001
      %1041 = vmatprep.subr.mxu0 0.0
      %1042 = vmatpush1.msra.mxu0 0.0
      %1043 = vmatprep.subr.mxu0 0.0
      %1044 = vmatpush1.msra.mxu0 0.0
      %1045 = vmatprep.subr.mxu0 0.0
      %1046 = vmatpush1.msra.mxu0 0.0
      %1047 = vmatprep.subr.mxu0 0.0
      %1048 = vmatpush1.msra.mxu0 0.0
      %1049 = vmatprep.subr.mxu0 0.0
      %1050 = vmatpush1.msra.mxu0 0.0
      %1051 = vmatprep.subr.mxu0 0.0
      %1052 = vmatpush1.msra.mxu0 0.0
      %1053 = vmatprep.subr.mxu0 0.0
      %1054 = vmatpush1.msra.mxu0 0.0
      %1055 = vmatprep.subr.mxu0 0.0
      %1056 = vmatpush1.msra.mxu0 0.0
      %1057 = vmatprep.subr.mxu0 0.0
      %1058 = vmatpush1.msra.mxu0 0.0
      %1059 = vmatprep.subr.mxu0 0.0
      %1060 = vmatpush1.msra.mxu0 0.0
      %1061 = vmatprep.subr.mxu0 0.0
      %1062 = vmatpush1.msra.mxu0 0.0
      %1063 = vmatprep.subr.mxu0 0.0
      %1064 = vmatpush1.msra.mxu0 0.0
      %1065 = vmatprep.subr.mxu0 0.0
      %1066 = vmatpush1.msra.mxu0 0.0
      %1067 = vmatprep.subr.mxu0 0.0
      %1068 = vmatpush1.msra.mxu0 0.0
      %1069 = vmatprep.subr.mxu0 0.0
      %1070 = vmatpush1.msra.mxu0 0.0
      %1071 = vmatprep.subr.mxu0 0.0
      %1072 = vmatpush1.msra.mxu0 0.0
      %1073 = vmatprep.mubr.f32.mxu0 0.0
      %1074 = vmatmul.mubr.f32.gmra.mrb[0].mxu0 %v799
      %v1075 = vpop.f32.mrb[0].mxu0
      %v1076 = vadd.f32 %v1007, %v1075
      %v1077 = vpop.f32.mrb[0].mxu0
      %1078 = vdwg.mxu0
      %1079 = vmatprep.subr.mxu0 0.0
      %1080 = vmatpush1.xpose.msra.mxu0 %v983
      %1081 = vmatprep.subr.mxu0 0.0
      %1082 = vmatpush1.xpose.msra.mxu0 0.0
      %1083 = vmatprep.subr.mxu0 0.0
      %1084 = vmatpush1.xpose.msra.mxu0 0.0
      %1085 = vmatprep.subr.mxu0 0.0
      %1086 = vmatpush1.xpose.msra.mxu0 0.0
      %1087 = vmatprep.subr.mxu0 0.0
      %1088 = vmatpush1.xpose.msra.mxu0 0.0
      %1089 = vmatprep.subr.mxu0 0.0
      %1090 = vmatpush1.xpose.msra.mxu0 0.0
      %1091 = vmatprep.subr.mxu0 0.0
      %1092 = vmatpush1.xpose.msra.mxu0 0.0
      %1093 = vmatprep.subr.mxu0 0.0
      %1094 = vmatpush1.xpose.msra.mxu0 0.0
      %1095 = vmatprep.subr.mxu0 0.0
      %1096 = vmatpush1.xpose.msra.mxu0 0.0
      %1097 = vmatprep.subr.mxu0 0.0
      %1098 = vmatpush1.xpose.msra.mxu0 0.0
      %1099 = vmatprep.subr.mxu0 0.0
      %1100 = vmatpush1.xpose.msra.mxu0 0.0
      %1101 = vmatprep.subr.mxu0 0.0
      %1102 = vmatpush1.xpose.msra.mxu0 0.0
      %1103 = vmatprep.subr.mxu0 0.0
      %1104 = vmatpush1.xpose.msra.mxu0 0.0
      %1105 = vmatprep.subr.mxu0 0.0
      %1106 = vmatpush1.xpose.msra.mxu0 0.0
      %1107 = vmatprep.subr.mxu0 0.0
      %1108 = vmatpush1.xpose.msra.mxu0 0.0
      %1109 = vmatprep.subr.mxu0 0.0
      %1110 = vmatpush1.xpose.msra.mxu0 0.0
      %1111 = vmatprep.subr.mxu0 0.0
      %1112 = vmatpush1.xpose.msra.mxu0 0.0
      %1113 = vmatprep.subr.mxu0 0.0
      %1114 = vmatpush1.xpose.msra.mxu0 0.0
      %1115 = vmatprep.subr.mxu0 0.0
      %1116 = vmatpush1.xpose.msra.mxu0 0.0
      %1117 = vmatprep.subr.mxu0 0.0
      %1118 = vmatpush1.xpose.msra.mxu0 0.0
      %1119 = vmatprep.subr.mxu0 0.0
      %1120 = vmatpush1.xpose.msra.mxu0 0.0
      %1121 = vmatprep.subr.mxu0 0.0
      %1122 = vmatpush1.xpose.msra.mxu0 0.0
      %1123 = vmatprep.subr.mxu0 0.0
      %1124 = vmatpush1.xpose.msra.mxu0 0.0
      %1125 = vmatprep.subr.mxu0 0.0
      %1126 = vmatpush1.xpose.msra.mxu0 0.0
      %1127 = vmatprep.subr.mxu0 0.0
      %1128 = vmatpush1.xpose.msra.mxu0 0.0
      %1129 = vmatprep.subr.mxu0 0.0
      %1130 = vmatpush1.xpose.msra.mxu0 0.0
      %1131 = vmatprep.subr.mxu0 0.0
      %1132 = vmatpush1.xpose.msra.mxu0 0.0
      %1133 = vmatprep.subr.mxu0 0.0
      %1134 = vmatpush1.xpose.msra.mxu0 0.0
      %1135 = vmatprep.subr.mxu0 0.0
      %1136 = vmatpush1.xpose.msra.mxu0 0.0
      %1137 = vmatprep.subr.mxu0 0.0
      %1138 = vmatpush1.xpose.msra.mxu0 0.0
      %1139 = vmatprep.subr.mxu0 0.0
      %1140 = vmatpush1.xpose.msra.mxu0 0.0
      %1141 = vmatprep.subr.mxu0 0.0
      %1142 = vmatpush1.xpose.msra.mxu0 0.0
      %1143 = vmatprep.mubr.f32.mxu0 0.0
      %1144 = vmatmul.mubr.f32.gmra.mrb[0].mxu0 %v890
      %v1145 = vpop.f32.mrb[0].mxu0
      %v1146 = vadd.f32 0.0, %v1145
      %v1147 = vpop.f32.mrb[0].mxu0
      %1148 = vdwg.mxu0
      %v1149 = vmul.f32 %v1146, 0.125
      %vm1150 = vcmask 64512
      %v1151 = vsel %vm1150, %v1149, -inf
      %1152 = vmax.xlane.f32.xlu0 %v1151
      %v1153 = vpop.xlane.xlu0 %1152
      %v1154 = vsub.f32 %v1149, %v1153
      %v1155 = vmul.f32 %v1154, 1.442695
      %v1156 = vpow.pop %v1155
      %v1157 = vsel %vm1150, %v1156, 0.0
      %1158 = vadd.xlane.f32.xlu0 %v1157
      %v1159 = vpop.xlane.xlu0 %1158
      %v1161 = vsel %vm1150, %v1156, 0
      %1163 = vmatprep.subr.mxu0 0.0
      %1164 = vmatpush1.msra.mxu0 %v1076
      %1165 = vmatprep.subr.mxu0 0.0
      %1166 = vmatpush1.msra.mxu0 0.0
      %1167 = vmatprep.subr.mxu0 0.0
      %1168 = vmatpush1.msra.mxu0 0.0
      %1169 = vmatprep.subr.mxu0 0.0
      %1170 = vmatpush1.msra.mxu0 0.0
      %1171 = vmatprep.subr.mxu0 0.0
      %1172 = vmatpush1.msra.mxu0 0.0
      %1173 = vmatprep.subr.mxu0 0.0
      %1174 = vmatpush1.msra.mxu0 0.0
      %1175 = vmatprep.subr.mxu0 0.0
      %1176 = vmatpush1.msra.mxu0 0.0
      %1177 = vmatprep.subr.mxu0 0.0
      %1178 = vmatpush1.msra.mxu0 0.0
      %1179 = vmatprep.subr.mxu0 0.0
      %1180 = vmatpush1.msra.mxu0 0.0
      %1181 = vmatprep.subr.mxu0 0.0
      %1182 = vmatpush1.msra.mxu0 0.0
      %1183 = vmatprep.subr.mxu0 0.0
      %1184 = vmatpush1.msra.mxu0 0.0
      %1185 = vmatprep.subr.mxu0 0.0
      %1186 = vmatpush1.msra.mxu0 0.0
      %1187 = vmatprep.subr.mxu0 0.0
      %1188 = vmatpush1.msra.mxu0 0.0
      %1189 = vmatprep.subr.mxu0 0.0
      %1190 = vmatpush1.msra.mxu0 0.0
      %1191 = vmatprep.subr.mxu0 0.0
      %1192 = vmatpush1.msra.mxu0 0.0
      %1193 = vmatprep.subr.mxu0 0.0
      %1194 = vmatpush1.msra.mxu0 0.0
      %1195 = vmatprep.subr.mxu0 0.0
      %1196 = vmatpush1.msra.mxu0 0.0
      %1197 = vmatprep.subr.mxu0 0.0
      %1198 = vmatpush1.msra.mxu0 0.0
      %1199 = vmatprep.subr.mxu0 0.0
      %1200 = vmatpush1.msra.mxu0 0.0
      %1201 = vmatprep.subr.mxu0 0.0
      %1202 = vmatpush1.msra.mxu0 0.0
      %1203 = vmatprep.subr.mxu0 0.0
      %1204 = vmatpush1.msra.mxu0 0.0
      %1205 = vmatprep.subr.mxu0 0.0
      %1206 = vmatpush1.msra.mxu0 0.0
      %1207 = vmatprep.subr.mxu0 0.0
      %1208 = vmatpush1.msra.mxu0 0.0
      %1209 = vmatprep.subr.mxu0 0.0
      %1210 = vmatpush1.msra.mxu0 0.0
      %1211 = vmatprep.subr.mxu0 0.0
      %1212 = vmatpush1.msra.mxu0 0.0
      %1213 = vmatprep.subr.mxu0 0.0
      %1214 = vmatpush1.msra.mxu0 0.0
      %1215 = vmatprep.subr.mxu0 0.0
      %1216 = vmatpush1.msra.mxu0 0.0
      %1217 = vmatprep.subr.mxu0 0.0
      %1218 = vmatpush1.msra.mxu0 0.0
      %1219 = vmatprep.subr.mxu0 0.0
      %1220 = vmatpush1.msra.mxu0 0.0
      %1221 = vmatprep.subr.mxu0 0.0
      %1222 = vmatpush1.msra.mxu0 0.0
      %1223 = vmatprep.subr.mxu0 0.0
      %1224 = vmatpush1.msra.mxu0 0.0
      %1225 = vmatprep.subr.mxu0 0.0
      %1226 = vmatpush1.msra.mxu0 0.0
      %1227 = vmatprep.mubr.f32.mxu0 0.0
      %1228 = vmatmul.mubr.f32.gmra.mrb[0].mxu0 %v1161
      %v1229 = vpop.f32.mrb[0].mxu0
      %v1230 = vadd.f32 0.0, %v1229
      %v1231 = vpop.f32.mrb[0].mxu0
      %1232 = vdwg.mxu0
      %v1233 = vrcp.pop %v1159
      %v1234 = vmul.f32 %v1230, %v1233
      %v1235 = vld [vmem:[%s10] sm:$0xff]
      %v1236 = vld [vmem:[%s10 + $0x8] sm:$0xff]
      %v1237 = vld [vmem:[%s10 + $0x10] sm:$0xff]
      %v1238 = vld [vmem:[%s10 + $0x18] sm:$0xff]
      %v1239 = vld [vmem:[%s10 + $0x20] sm:$0xff]
      %v1240 = vld [vmem:[%s10 + $0x28] sm:$0xff]
      %v1241 = vld [vmem:[%s10 + $0x30] sm:$0xff]
      %v1242 = vld [vmem:[%s10 + $0x38] sm:$0xff]
      %v1243 = vld [vmem:[%s10 + $0x40] sm:$0xff]
      %v1244 = vld [vmem:[%s10 + $0x48] sm:$0xff]
      %v1245 = vld [vmem:[%s10 + $0x50] sm:$0xff]
      %v1246 = vld [vmem:[%s10 + $0x58] sm:$0xff]
      %v1247 = vld [vmem:[%s10 + $0x60] sm:$0xff]
      %v1248 = vld [vmem:[%s10 + $0x68] sm:$0xff]
      %v1249 = vld [vmem:[%s10 + $0x70] sm:$0xff]
      %v1250 = vld [vmem:[%s10 + $0x78] sm:$0xff]
      %v1251 = vld [vmem:[%s11] sm:$0x1]
      %v1253 = vlaneseq
      %v1254 = vshrl.u32 %v1253, 7
      %v1255 = vsub.s32 0, %v1254
      %v1256 = vrot.slane %v1251, %v1255
      %1258 = vmatprep.subr.mxu0 0.0
      %1259 = vmatpush1.msra.mxu0 %v1235
      %1260 = vmatprep.subr.mxu0 0.0
      %1261 = vmatpush1.msra.mxu0 %v1236
      %1262 = vmatprep.subr.mxu0 0.0
      %1263 = vmatpush1.msra.mxu0 %v1237
      %1264 = vmatprep.subr.mxu0 0.0
      %1265 = vmatpush1.msra.mxu0 %v1238
      %1266 = vmatprep.subr.mxu0 0.0
      %1267 = vmatpush1.msra.mxu0 %v1239
      %1268 = vmatprep.subr.mxu0 0.0
      %1269 = vmatpush1.msra.mxu0 %v1240
      %1270 = vmatprep.subr.mxu0 0.0
      %1271 = vmatpush1.msra.mxu0 %v1241
      %1272 = vmatprep.subr.mxu0 0.0
      %1273 = vmatpush1.msra.mxu0 %v1242
      %1274 = vmatprep.subr.mxu0 0.0
      %1275 = vmatpush1.msra.mxu0 %v1243
      %1276 = vmatprep.subr.mxu0 0.0
      %1277 = vmatpush1.msra.mxu0 %v1244
      %1278 = vmatprep.subr.mxu0 0.0
      %1279 = vmatpush1.msra.mxu0 %v1245
      %1280 = vmatprep.subr.mxu0 0.0
      %1281 = vmatpush1.msra.mxu0 %v1246
      %1282 = vmatprep.subr.mxu0 0.0
      %1283 = vmatpush1.msra.mxu0 %v1247
      %1284 = vmatprep.subr.mxu0 0.0
      %1285 = vmatpush1.msra.mxu0 %v1248
      %1286 = vmatprep.subr.mxu0 0.0
      %1287 = vmatpush1.msra.mxu0 %v1249
      %1288 = vmatprep.subr.mxu0 0.0
      %1289 = vmatpush1.msra.mxu0 %v1250
      %1290 = vmatprep.subr.mxu0 0.0
      %1291 = vmatpush1.msra.mxu0 0.0
      %1292 = vmatprep.subr.mxu0 0.0
      %1293 = vmatpush1.msra.mxu0 0.0
      %1294 = vmatprep.subr.mxu0 0.0
      %1295 = vmatpush1.msra.mxu0 0.0
      %1296 = vmatprep.subr.mxu0 0.0
      %1297 = vmatpush1.msra.mxu0 0.0
      %1298 = vmatprep.subr.mxu0 0.0
      %1299 = vmatpush1.msra.mxu0 0.0
      %1300 = vmatprep.subr.mxu0 0.0
      %1301 = vmatpush1.msra.mxu0 0.0
      %1302 = vmatprep.subr.mxu0 0.0
      %1303 = vmatpush1.msra.mxu0 0.0
      %1304 = vmatprep.subr.mxu0 0.0
      %1305 = vmatpush1.msra.mxu0 0.0
      %1306 = vmatprep.subr.mxu0 0.0
      %1307 = vmatpush1.msra.mxu0 0.0
      %1308 = vmatprep.subr.mxu0 0.0
      %1309 = vmatpush1.msra.mxu0 0.0
      %1310 = vmatprep.subr.mxu0 0.0
      %1311 = vmatpush1.msra.mxu0 0.0
      %1312 = vmatprep.subr.mxu0 0.0
      %1313 = vmatpush1.msra.mxu0 0.0
      %1314 = vmatprep.subr.mxu0 0.0
      %1315 = vmatpush1.msra.mxu0 0.0
      %1316 = vmatprep.subr.mxu0 0.0
      %1317 = vmatpush1.msra.mxu0 0.0
      %1318 = vmatprep.subr.mxu0 0.0
      %1319 = vmatpush1.msra.mxu0 0.0
      %1320 = vmatprep.subr.mxu0 0.0
      %1321 = vmatpush1.msra.mxu0 0.0
      %1322 = vmatprep.mubr.f32.mxu0 0.0
      %1323 = vmatmul.mubr.f32.gmra.mrb[0].mxu0 %v1234
      %v1324 = vpop.f32.mrb[0].mxu0
      %v1325 = vadd.f32 %v1256, %v1324
      %v1326 = vpop.f32.mrb[0].mxu0
      %1327 = vdwg.mxu0
      %v1328 = vadd.f32 %v410, %v1325
      %v1329 = vpack.c.bf16 %v1328, %v1328
      %1330 = vst [vmem:[%s408] sm:$0xf] %v1329
      %p1331 = scmp.lt.s32.totalorder %s23, 1
      %s1332 = scalar_select %p1331, %s23, 1
      %s1333 = smul.addr %s1332, 4
      %s1334 = scalar_lea.vmem %s12, %s1333
      // Predicated region
      $region69: #{_lambda_.19} parent=67 // pred_check
        %p1335 = pneg %p298
      $region70: #{_lambda_.19} parent=67 // pred_check_branch
        %1337 = sbr.rel (%p1335) target = $region72
      $region71: #{_lambda_.19} parent=67 // pred_region
        _
      $region72: #{_lambda_.19} parent=67 // pred_fallthru
        _
    $region68: #{_lambda_.19} parent=5 // pred_fallthru
      _
    %p1338 = scmp.le.s32.totalorder 2, %s18
    // Predicated region
    $region73: #{_lambda_.19} parent=5 // pred_check
      %p1339 = pneg %p1338
    $region74: #{_lambda_.19} parent=5 // pred_check_branch
      %1341 = sbr.rel (%p1339) target = $region76
    $region75: #{_lambda_.19} parent=5 // pred_region
      %s1342 = ssub.s32 %s18, 2
      // Predicated region
      $region77: #{_lambda_.19} parent=75 // pred_check
        %p1343 = pneg %p304
      $region78: #{_lambda_.19} parent=75 // pred_check_branch
        %1345 = sbr.rel (%p1343) target = $region80
      $region79: #{_lambda_.19} parent=75 // pred_region
        %p1346 = scmp.lt.s32.totalorder %s24, 1
        %s1347 = scalar_select %p1346, %s24, 1
        %s1348 = smul.addr %s1347, 4
        %s1349 = scalar_lea.vmem %s12, %s1348
      $region80: #{_lambda_.19} parent=75 // pred_fallthru
        _
    $region76: #{_lambda_.19} parent=5 // pred_fallthru
      _
  $region6: #{_lambda_.19} parent=0 // loop_footer
    %s22 = sadd.s32 1, %s18
  $region7: #{_lambda_.19} parent=0 // loop_footer_branch
    %17 = sbr.rel target = $region3
  $region8: #{_lambda_.19} parent=0 // loop_exit
    _

// kernel: _lambda_.20
$region0: #{_lambda_.20}
  #allocation0 [shape = 'u32[]', space=smem, size = 0x4, offset = 0x4, fixed_abs, tag = 'smem constant byte address 0x4 - core index']
  #allocation1 [shape = 'u32[144,128]{1,0:T(1,128)}', space=vmem, size = 0x12000, scoped, tag = 'internal scratch']
  %s0 = inlined_call_operand.vmem [shape: bf16[2,8,128], index: 0, kind: input, shape index: {}]
  %s1 = inlined_call_operand.vmem [shape: f32[1,128], index: 1, kind: input, shape index: {}]
  %s2 = inlined_call_operand.vmem [shape: f32[1,128], index: 2, kind: input, shape index: {}]
  %s3 = inlined_call_operand.vmem [shape: f32[128,32], index: 3, kind: input, shape index: {}]
  %s4 = inlined_call_operand.vmem [shape: f32[384,128], index: 4, kind: input, shape index: {}]
  %s5 = inlined_call_operand.vmem [shape: f32[1,128], index: 5, kind: input, shape index: {}]
  %s6 = inlined_call_operand.vmem [shape: bf16[2,8,128], index: 6, kind: output, shape index: {}]
  %s7 = sld [smem:[#allocation0]]
  $region57: #{_lambda_.20} parent=0
    _
  %s9 = ssub.s32 1, %s7
  %s10 = scalar_select 0, %s9, %s7
  loop: start=0, step=1, limit=4
  $region2: #{_lambda_.20} parent=0 // loop_pre_header
    _
  $region3: #{_lambda_.20} parent=0 // loop_header
    %s12 = sphi 0, %s16
    %p13 = scmp.ge.s32.totalorder %s12, 4
    %s22 = sphi 0, %s24
    %s25 = sphi 0, %s22
    %s26 = sphi 0, %s25
    %s42 = sphi 0, %s26
    %s46 = sphi 0, %s46
    %s48 = sphi 0, %s46
    %s49 = sphi 0, %s48
    %s63 = sphi 0, %s49
    %s67 = sphi 0, %s67
    %s69 = sphi 0, %s67
    %s70 = sphi 0, %s69
    %s84 = sphi 0, %s70
    %s88 = sphi 0, %s88
    %s90 = sphi 0, %s88
    %s91 = sphi 0, %s90
    %s105 = sphi 0, %s91
    %s109 = sphi 0, %s109
    %s111 = sphi 0, %s109
    %s112 = sphi 0, %s111
    %s126 = sphi 0, %s112
    %s130 = sphi 0, %s130
    %s132 = sphi 0, %s130
    %s133 = sphi 0, %s132
    %s147 = sphi 0, %s133
    %s153 = sphi 0, %s155
    %s156 = sphi 0, %s153
    %s157 = sphi 0, %s156
    %s173 = sphi 0, %s157
  $region4: #{_lambda_.20} parent=0 // loop_header_branch
    %15 = sbr.rel (%p13) target = $region8
  $region5: #{_lambda_.20} parent=0 // loop_body
    %s17 = ssub.s32 %s12, 1
    %s18 = ssub.s32 %s12, 2
    %s19 = sadd.s32 %s12, 1
    %s20 = ssub.s32 %s12, %s19
    %p21 = scmp.eq.s32.totalorder %s20, 0
    %s23 = sadd.s32 %s22, 1
    %s24 = scalar_select %p21, %s22, %s23
    %p27 = pneg %p21
    %p28 = scmp.eq.s32.totalorder %s12, 1
    %p29 = por %p27, %p28
    %p30 = scmp.ne.s32.totalorder %s22, %s25
    %p31 = scmp.eq.s32.totalorder %s12, 0
    %p32 = por %p30, %p31
    %p33 = scmp.ne.s32.totalorder %s22, %s25
    %p34 = scmp.eq.s32.totalorder %s17, 1
    %p35 = por %p33, %p34
    %p36 = scmp.ne.s32.totalorder %s25, %s26
    %p37 = scmp.eq.s32.totalorder %s17, 0
    %p38 = por %p36, %p37
    %p39 = scmp.ne.s32.totalorder %s25, %s26
    %p40 = scmp.eq.s32.totalorder %s18, 1
    %p41 = por %p39, %p40
    %p43 = scmp.ne.s32.totalorder %s26, %s42
    %p44 = scmp.eq.s32.totalorder %s18, 0
    %p45 = por %p43, %p44
    %s47 = sadd.s32 %s46, 1
    %p50 = scmp.eq.s32.totalorder %s12, 1
    %p51 = scmp.ne.s32.totalorder %s46, %s48
    %p52 = scmp.eq.s32.totalorder %s12, 0
    %p53 = por %p51, %p52
    %p54 = scmp.ne.s32.totalorder %s46, %s48
    %p55 = scmp.eq.s32.totalorder %s17, 1
    %p56 = por %p54, %p55
    %p57 = scmp.ne.s32.totalorder %s48, %s49
    %p58 = scmp.eq.s32.totalorder %s17, 0
    %p59 = por %p57, %p58
    %p60 = scmp.ne.s32.totalorder %s48, %s49
    %p61 = scmp.eq.s32.totalorder %s18, 1
    %p62 = por %p60, %p61
    %p64 = scmp.ne.s32.totalorder %s49, %s63
    %p65 = scmp.eq.s32.totalorder %s18, 0
    %p66 = por %p64, %p65
    %s68 = sadd.s32 %s67, 1
    %p71 = scmp.eq.s32.totalorder %s12, 1
    %p72 = scmp.ne.s32.totalorder %s67, %s69
    %p73 = scmp.eq.s32.totalorder %s12, 0
    %p74 = por %p72, %p73
    %p75 = scmp.ne.s32.totalorder %s67, %s69
    %p76 = scmp.eq.s32.totalorder %s17, 1
    %p77 = por %p75, %p76
    %p78 = scmp.ne.s32.totalorder %s69, %s70
    %p79 = scmp.eq.s32.totalorder %s17, 0
    %p80 = por %p78, %p79
    %p81 = scmp.ne.s32.totalorder %s69, %s70
    %p82 = scmp.eq.s32.totalorder %s18, 1
    %p83 = por %p81, %p82
    %p85 = scmp.ne.s32.totalorder %s70, %s84
    %p86 = scmp.eq.s32.totalorder %s18, 0
    %p87 = por %p85, %p86
    %s89 = sadd.s32 %s88, 1
    %p92 = scmp.eq.s32.totalorder %s12, 1
    %p93 = scmp.ne.s32.totalorder %s88, %s90
    %p94 = scmp.eq.s32.totalorder %s12, 0
    %p95 = por %p93, %p94
    %p96 = scmp.ne.s32.totalorder %s88, %s90
    %p97 = scmp.eq.s32.totalorder %s17, 1
    %p98 = por %p96, %p97
    %p99 = scmp.ne.s32.totalorder %s90, %s91
    %p100 = scmp.eq.s32.totalorder %s17, 0
    %p101 = por %p99, %p100
    %p102 = scmp.ne.s32.totalorder %s90, %s91
    %p103 = scmp.eq.s32.totalorder %s18, 1
    %p104 = por %p102, %p103
    %p106 = scmp.ne.s32.totalorder %s91, %s105
    %p107 = scmp.eq.s32.totalorder %s18, 0
    %p108 = por %p106, %p107
    %s110 = sadd.s32 %s109, 1
    %p113 = scmp.eq.s32.totalorder %s12, 1
    %p114 = scmp.ne.s32.totalorder %s109, %s111
    %p115 = scmp.eq.s32.totalorder %s12, 0
    %p116 = por %p114, %p115
    %p117 = scmp.ne.s32.totalorder %s109, %s111
    %p118 = scmp.eq.s32.totalorder %s17, 1
    %p119 = por %p117, %p118
    %p120 = scmp.ne.s32.totalorder %s111, %s112
    %p121 = scmp.eq.s32.totalorder %s17, 0
    %p122 = por %p120, %p121
    %p123 = scmp.ne.s32.totalorder %s111, %s112
    %p124 = scmp.eq.s32.totalorder %s18, 1
    %p125 = por %p123, %p124
    %p127 = scmp.ne.s32.totalorder %s112, %s126
    %p128 = scmp.eq.s32.totalorder %s18, 0
    %p129 = por %p127, %p128
    %s131 = sadd.s32 %s130, 1
    %p134 = scmp.eq.s32.totalorder %s12, 1
    %p135 = scmp.ne.s32.totalorder %s130, %s132
    %p136 = scmp.eq.s32.totalorder %s12, 0
    %p137 = por %p135, %p136
    %p138 = scmp.ne.s32.totalorder %s130, %s132
    %p139 = scmp.eq.s32.totalorder %s17, 1
    %p140 = por %p138, %p139
    %p141 = scmp.ne.s32.totalorder %s132, %s133
    %p142 = scmp.eq.s32.totalorder %s17, 0
    %p143 = por %p141, %p142
    %p144 = scmp.ne.s32.totalorder %s132, %s133
    %p145 = scmp.eq.s32.totalorder %s18, 1
    %p146 = por %p144, %p145
    %p148 = scmp.ne.s32.totalorder %s133, %s147
    %p149 = scmp.eq.s32.totalorder %s18, 0
    %p150 = por %p148, %p149
    %s151 = ssub.s32 %s12, %s19
    %p152 = scmp.eq.s32.totalorder %s151, 0
    %s154 = sadd.s32 %s153, 1
    %s155 = scalar_select %p152, %s153, %s154
    %p158 = pneg %p152
    %p159 = scmp.eq.s32.totalorder %s12, 1
    %p160 = por %p158, %p159
    %p161 = scmp.ne.s32.totalorder %s153, %s156
    %p162 = scmp.eq.s32.totalorder %s12, 0
    %p163 = por %p161, %p162
    %p164 = scmp.ne.s32.totalorder %s153, %s156
    %p165 = scmp.eq.s32.totalorder %s17, 1
    %p166 = por %p164, %p165
    %p167 = scmp.ne.s32.totalorder %s156, %s157
    %p168 = scmp.eq.s32.totalorder %s17, 0
    %p169 = por %p167, %p168
    %p170 = scmp.ne.s32.totalorder %s156, %s157
    %p171 = scmp.eq.s32.totalorder %s18, 1
    %p172 = por %p170, %p171
    %p174 = scmp.ne.s32.totalorder %s157, %s173
    %p175 = scmp.eq.s32.totalorder %s18, 0
    %p176 = por %p174, %p175
    %p177 = scmp.le.s32.totalorder 1, %s12
    %p178 = scmp.lt.s32.totalorder %s12, 3
    %p179 = pnand %p177, %p178
    %p180 = pneg %p179
    // Predicated region
    $region9: #{_lambda_.20} parent=5 // pred_check
      _
    $region10: #{_lambda_.20} parent=5 // pred_check_branch
      %182 = sbr.rel (%p179) target = $region12
    $region11: #{_lambda_.20} parent=5 // pred_region
      %s183 = ssub.s32 %s12, 1
      // Predicated region
      $region13: #{_lambda_.20} parent=11 // pred_check
        %p184 = pneg %p59
      $region14: #{_lambda_.20} parent=11 // pred_check_branch
        %186 = sbr.rel (%p184) target = $region16
      $region15: #{_lambda_.20} parent=11 // pred_region
        _
      $region16: #{_lambda_.20} parent=11 // pred_fallthru
        _
      // Predicated region
      $region17: #{_lambda_.20} parent=11 // pred_check
        %p187 = pneg %p80
      $region18: #{_lambda_.20} parent=11 // pred_check_branch
        %189 = sbr.rel (%p187) target = $region20
      $region19: #{_lambda_.20} parent=11 // pred_region
        _
      $region20: #{_lambda_.20} parent=11 // pred_fallthru
        _
      // Predicated region
      $region21: #{_lambda_.20} parent=11 // pred_check
        %p190 = pneg %p101
      $region22: #{_lambda_.20} parent=11 // pred_check_branch
        %192 = sbr.rel (%p190) target = $region24
      $region23: #{_lambda_.20} parent=11 // pred_region
        _
      $region24: #{_lambda_.20} parent=11 // pred_fallthru
        _
      // Predicated region
      $region25: #{_lambda_.20} parent=11 // pred_check
        %p193 = pneg %p122
      $region26: #{_lambda_.20} parent=11 // pred_check_branch
        %195 = sbr.rel (%p193) target = $region28
      $region27: #{_lambda_.20} parent=11 // pred_region
        _
      $region28: #{_lambda_.20} parent=11 // pred_fallthru
        _
      // Predicated region
      $region29: #{_lambda_.20} parent=11 // pred_check
        %p196 = pneg %p143
      $region30: #{_lambda_.20} parent=11 // pred_check_branch
        %198 = sbr.rel (%p196) target = $region32
      $region31: #{_lambda_.20} parent=11 // pred_region
        _
      $region32: #{_lambda_.20} parent=11 // pred_fallthru
        _
    $region12: #{_lambda_.20} parent=5 // pred_fallthru
      _
    %p199 = scmp.lt.s32.totalorder %s12, 2
    // Predicated region
    $region33: #{_lambda_.20} parent=5 // pred_check
      %p200 = pneg %p199
    $region34: #{_lambda_.20} parent=5 // pred_check_branch
      %202 = sbr.rel (%p200) target = $region36
    $region35: #{_lambda_.20} parent=5 // pred_region
      // Predicated region
      $region37: #{_lambda_.20} parent=35 // pred_check
        %p203 = pneg %p32
      $region38: #{_lambda_.20} parent=35 // pred_check_branch
        %205 = sbr.rel (%p203) target = $region40
      $region39: #{_lambda_.20} parent=35 // pred_region
        %p206 = scmp.lt.s32.totalorder %s12, 1
        %s207 = scalar_select %p206, %s12, 1
        %s208 = smul.addr %s207, 4
        %s209 = scalar_lea.vmem %s0, %s208
      $region40: #{_lambda_.20} parent=35 // pred_fallthru
        _
    $region36: #{_lambda_.20} parent=5 // pred_fallthru
      _
    %p210 = scmp.le.s32.totalorder 1, %s12
    %p211 = scmp.lt.s32.totalorder %s12, 3
    %p212 = pnand %p210, %p211
    %p213 = pneg %p212
    // Predicated region
    $region41: #{_lambda_.20} parent=5 // pred_check
      _
    $region42: #{_lambda_.20} parent=5 // pred_check_branch
      %215 = sbr.rel (%p212) target = $region44
    $region43: #{_lambda_.20} parent=5 // pred_region
      %s216 = ssub.s32 %s12, 1
      %p217 = scmp.lt.s32.totalorder %s17, 1
      %s218 = scalar_select %p217, %s17, 1
      %s219 = smul.addr %s218, 4
      %s220 = scalar_lea.vmem %s0, %s219
      %p221 = pneg %p38
      %p222 = pneg %p35
      %p223 = pneg %p59
      %p224 = pneg %p56
      %p225 = pneg %p80
      %p226 = pneg %p77
      %p227 = pneg %p101
      %p228 = pneg %p98
      %p229 = pneg %p122
      %p230 = pneg %p119
      %p231 = pneg %p143
      %p232 = pneg %p140
      %p233 = pneg %p169
      %p234 = pneg %p166
      %p235 = scmp.lt.s32.totalorder %s17, 1
      %s236 = scalar_select %p235, %s17, 1
      %s237 = smul.addr %s236, 4
      %s238 = scalar_lea.vmem %s6, %s237
      %p239 = scmp.lt.s32.totalorder %s17, 1
      %s240 = scalar_select %p239, %s17, 1
      %s241 = smul.addr %s240, 4
      %s242 = scalar_lea.vmem %s0, %s241
      %p243 = scmp.lt.s32.totalorder %s17, 1
      %s244 = scalar_select %p243, %s17, 1
      %s245 = smul.addr %s244, 4
      %s246 = scalar_lea.vmem %s6, %s245
      %v247 = vld [vmem:[%s242] sm:$0xf]
      %v248 = vunpack.c.l.bf16 %v247
      %v249 = vld [vmem:[%s3] sm:$0xff]
      %v250 = vld [vmem:[%s3 + $0x8] sm:$0xff]
      %v251 = vld [vmem:[%s3 + $0x10] sm:$0xff]
      %v252 = vld [vmem:[%s3 + $0x18] sm:$0xff]
      %v253 = vld [vmem:[%s3 + $0x20] sm:$0xff]
      %v254 = vld [vmem:[%s3 + $0x28] sm:$0xff]
      %v255 = vld [vmem:[%s3 + $0x30] sm:$0xff]
      %v256 = vld [vmem:[%s3 + $0x38] sm:$0xff]
      %v257 = vld [vmem:[%s3 + $0x40] sm:$0xff]
      %v258 = vld [vmem:[%s3 + $0x48] sm:$0xff]
      %v259 = vld [vmem:[%s3 + $0x50] sm:$0xff]
      %v260 = vld [vmem:[%s3 + $0x58] sm:$0xff]
      %v261 = vld [vmem:[%s3 + $0x60] sm:$0xff]
      %v262 = vld [vmem:[%s3 + $0x68] sm:$0xff]
      %v263 = vld [vmem:[%s3 + $0x70] sm:$0xff]
      %v264 = vld [vmem:[%s3 + $0x78] sm:$0xff]
      %v265 = vrot.slane %v248, 4
      %v266 = vadd.f32 %v248, %v265
      %v267 = vrot.slane %v266, 2
      %v268 = vadd.f32 %v266, %v267
      %v269 = vrot.slane %v268, 1
      %v270 = vadd.f32 %v268, %v269
      %v271 = vmul.f32 %v248, %v248
      %v272 = vrot.slane %v271, 4
      %v273 = vadd.f32 %v271, %v272
      %v274 = vrot.slane %v273, 2
      %v275 = vadd.f32 %v273, %v274
      %v276 = vrot.slane %v275, 1
      %v277 = vadd.f32 %v275, %v276
      %278 = vmatprep.subr.mxu0 0.0
      %279 = vmatpush1.msra.mxu0 %v249
      %280 = vmatprep.subr.mxu0 0.0
      %281 = vmatpush1.msra.mxu0 %v250
      %282 = vmatprep.subr.mxu0 0.0
      %283 = vmatpush1.msra.mxu0 %v251
      %284 = vmatprep.subr.mxu0 0.0
      %285 = vmatpush1.msra.mxu0 %v252
      %286 = vmatprep.subr.mxu0 0.0
      %287 = vmatpush1.msra.mxu0 %v253
      %288 = vmatprep.subr.mxu0 0.0
      %289 = vmatpush1.msra.mxu0 %v254
      %290 = vmatprep.subr.mxu0 0.0
      %291 = vmatpush1.msra.mxu0 %v255
      %292 = vmatprep.subr.mxu0 0.0
      %293 = vmatpush1.msra.mxu0 %v256
      %294 = vmatprep.subr.mxu0 0.0
      %295 = vmatpush1.msra.mxu0 %v257
      %296 = vmatprep.subr.mxu0 0.0
      %297 = vmatpush1.msra.mxu0 %v258
      %298 = vmatprep.subr.mxu0 0.0
      %299 = vmatpush1.msra.mxu0 %v259
      %300 = vmatprep.subr.mxu0 0.0
      %301 = vmatpush1.msra.mxu0 %v260
      %302 = vmatprep.subr.mxu0 0.0
      %303 = vmatpush1.msra.mxu0 %v261
      %304 = vmatprep.subr.mxu0 0.0
      %305 = vmatpush1.msra.mxu0 %v262
      %306 = vmatprep.subr.mxu0 0.0
      %307 = vmatpush1.msra.mxu0 %v263
      %308 = vmatprep.subr.mxu0 0.0
      %309 = vmatpush1.msra.mxu0 %v264
      %310 = vmatprep.subr.mxu0 0.0
      %311 = vmatpush1.msra.mxu0 0.0
      %312 = vmatprep.subr.mxu0 0.0
      %313 = vmatpush1.msra.mxu0 0.0
      %314 = vmatprep.subr.mxu0 0.0
      %315 = vmatpush1.msra.mxu0 0.0
      %316 = vmatprep.subr.mxu0 0.0
      %317 = vmatpush1.msra.mxu0 0.0
      %318 = vmatprep.subr.mxu0 0.0
      %319 = vmatpush1.msra.mxu0 0.0
      %320 = vmatprep.subr.mxu0 0.0
      %321 = vmatpush1.msra.mxu0 0.0
      %322 = vmatprep.subr.mxu0 0.0
      %323 = vmatpush1.msra.mxu0 0.0
      %324 = vmatprep.subr.mxu0 0.0
      %325 = vmatpush1.msra.mxu0 0.0
      %326 = vmatprep.subr.mxu0 0.0
      %327 = vmatpush1.msra.mxu0 0.0
      %328 = vmatprep.subr.mxu0 0.0
      %329 = vmatpush1.msra.mxu0 0.0
      %330 = vmatprep.subr.mxu0 0.0
      %331 = vmatpush1.msra.mxu0 0.0
      %332 = vmatprep.subr.mxu0 0.0
      %333 = vmatpush1.msra.mxu0 0.0
      %334 = vmatprep.subr.mxu0 0.0
      %335 = vmatpush1.msra.mxu0 0.0
      %336 = vmatprep.subr.mxu0 0.0
      %337 = vmatpush1.msra.mxu0 0.0
      %338 = vmatprep.subr.mxu0 0.0
      %339 = vmatpush1.msra.mxu0 0.0
      %340 = vmatprep.subr.mxu0 0.0
      %341 = vmatpush1.msra.mxu0 0.0
      %342 = vmatprep.mubr.f32.mxu0 0.0
      %343 = vmatmul.mubr.f32.gmra.mrb[0].mxu0 %v270
      %v344 = vpop.f32.mrb[0].mxu0
      %v345 = vadd.f32 0.0, %v344
      %v346 = vpop.f32.mrb[0].mxu0
      %347 = vdwg.mxu0
      %v348 = vmul.f32 %v345, 0.0625
      %349 = vmatprep.subr.mxu0 0.0
      %350 = vmatpush1.msra.mxu0 %v249
      %351 = vmatprep.subr.mxu0 0.0
      %352 = vmatpush1.msra.mxu0 %v250
      %353 = vmatprep.subr.mxu0 0.0
      %354 = vmatpush1.msra.mxu0 %v251
      %355 = vmatprep.subr.mxu0 0.0
      %356 = vmatpush1.msra.mxu0 %v252
      %357 = vmatprep.subr.mxu0 0.0
      %358 = vmatpush1.msra.mxu0 %v253
      %359 = vmatprep.subr.mxu0 0.0
      %360 = vmatpush1.msra.mxu0 %v254
      %361 = vmatprep.subr.mxu0 0.0
      %362 = vmatpush1.msra.mxu0 %v255
      %363 = vmatprep.subr.mxu0 0.0
      %364 = vmatpush1.msra.mxu0 %v256
      %365 = vmatprep.subr.mxu0 0.0
      %366 = vmatpush1.msra.mxu0 %v257
      %367 = vmatprep.subr.mxu0 0.0
      %368 = vmatpush1.msra.mxu0 %v258
      %369 = vmatprep.subr.mxu0 0.0
      %370 = vmatpush1.msra.mxu0 %v259
      %371 = vmatprep.subr.mxu0 0.0
      %372 = vmatpush1.msra.mxu0 %v260
      %373 = vmatprep.subr.mxu0 0.0
      %374 = vmatpush1.msra.mxu0 %v261
      %375 = vmatprep.subr.mxu0 0.0
      %376 = vmatpush1.msra.mxu0 %v262
      %377 = vmatprep.subr.mxu0 0.0
      %378 = vmatpush1.msra.mxu0 %v263
      %379 = vmatprep.subr.mxu0 0.0
      %380 = vmatpush1.msra.mxu0 %v264
      %381 = vmatprep.subr.mxu0 0.0
      %382 = vmatpush1.msra.mxu0 0.0
      %383 = vmatprep.subr.mxu0 0.0
      %384 = vmatpush1.msra.mxu0 0.0
      %385 = vmatprep.subr.mxu0 0.0
      %386 = vmatpush1.msra.mxu0 0.0
      %387 = vmatprep.subr.mxu0 0.0
      %388 = vmatpush1.msra.mxu0 0.0
      %389 = vmatprep.subr.mxu0 0.0
      %390 = vmatpush1.msra.mxu0 0.0
      %391 = vmatprep.subr.mxu0 0.0
      %392 = vmatpush1.msra.mxu0 0.0
      %393 = vmatprep.subr.mxu0 0.0
      %394 = vmatpush1.msra.mxu0 0.0
      %395 = vmatprep.subr.mxu0 0.0
      %396 = vmatpush1.msra.mxu0 0.0
      %397 = vmatprep.subr.mxu0 0.0
      %398 = vmatpush1.msra.mxu0 0.0
      %399 = vmatprep.subr.mxu0 0.0
      %400 = vmatpush1.msra.mxu0 0.0
      %401 = vmatprep.subr.mxu0 0.0
      %402 = vmatpush1.msra.mxu0 0.0
      %403 = vmatprep.subr.mxu0 0.0
      %404 = vmatpush1.msra.mxu0 0.0
      %405 = vmatprep.subr.mxu0 0.0
      %406 = vmatpush1.msra.mxu0 0.0
      %407 = vmatprep.subr.mxu0 0.0
      %408 = vmatpush1.msra.mxu0 0.0
      %409 = vmatprep.subr.mxu0 0.0
      %410 = vmatpush1.msra.mxu0 0.0
      %411 = vmatprep.subr.mxu0 0.0
      %412 = vmatpush1.msra.mxu0 0.0
      %413 = vmatprep.mubr.f32.mxu0 0.0
      %414 = vmatmul.mubr.f32.gmra.mrb[0].mxu0 %v277
      %v415 = vpop.f32.mrb[0].mxu0
      %v416 = vadd.f32 0.0, %v415
      %v417 = vpop.f32.mrb[0].mxu0
      %418 = vdwg.mxu0
      %v419 = vmul.f32 %v416, 0.0625
      %v420 = vmul.f32 %v348, %v348
      %v421 = vsub.f32 %v419, %v420
      %v422 = vmax.f32 %v421, 0.0
      %vm423 = vcmask 261120
      %v425 = vsel %vm423, %v348, 0
      %v428 = vsel %vm423, %v249, 0
      %v431 = vsel %vm423, %v250, 0
      %v434 = vsel %vm423, %v251, 0
      %v437 = vsel %vm423, %v252, 0
      %v440 = vsel %vm423, %v253, 0
      %v443 = vsel %vm423, %v254, 0
      %v446 = vsel %vm423, %v255, 0
      %v449 = vsel %vm423, %v256, 0
      %v452 = vsel %vm423, %v257, 0
      %v455 = vsel %vm423, %v258, 0
      %v458 = vsel %vm423, %v259, 0
      %v461 = vsel %vm423, %v260, 0
      %v464 = vsel %vm423, %v261, 0
      %v467 = vsel %vm423, %v262, 0
      %v470 = vsel %vm423, %v263, 0
      %v473 = vsel %vm423, %v264, 0
      %475 = vmatprep.subr.mxu0 0.0
      %476 = vmatpush1.xpose.msra.mxu0 %v428
      %477 = vmatprep.subr.mxu0 0.0
      %478 = vmatpush1.xpose.msra.mxu0 %v431
      %479 = vmatprep.subr.mxu0 0.0
      %480 = vmatpush1.xpose.msra.mxu0 %v434
      %481 = vmatprep.subr.mxu0 0.0
      %482 = vmatpush1.xpose.msra.mxu0 %v437
      %483 = vmatprep.subr.mxu0 0.0
      %484 = vmatpush1.xpose.msra.mxu0 %v440
      %485 = vmatprep.subr.mxu0 0.0
      %486 = vmatpush1.xpose.msra.mxu0 %v443
      %487 = vmatprep.subr.mxu0 0.0
      %488 = vmatpush1.xpose.msra.mxu0 %v446
      %489 = vmatprep.subr.mxu0 0.0
      %490 = vmatpush1.xpose.msra.mxu0 %v449
      %491 = vmatprep.subr.mxu0 0.0
      %492 = vmatpush1.xpose.msra.mxu0 %v452
      %493 = vmatprep.subr.mxu0 0.0
      %494 = vmatpush1.xpose.msra.mxu0 %v455
      %495 = vmatprep.subr.mxu0 0.0
      %496 = vmatpush1.xpose.msra.mxu0 %v458
      %497 = vmatprep.subr.mxu0 0.0
      %498 = vmatpush1.xpose.msra.mxu0 %v461
      %499 = vmatprep.subr.mxu0 0.0
      %500 = vmatpush1.xpose.msra.mxu0 %v464
      %501 = vmatprep.subr.mxu0 0.0
      %502 = vmatpush1.xpose.msra.mxu0 %v467
      %503 = vmatprep.subr.mxu0 0.0
      %504 = vmatpush1.xpose.msra.mxu0 %v470
      %505 = vmatprep.subr.mxu0 0.0
      %506 = vmatpush1.xpose.msra.mxu0 %v473
      %507 = vmatprep.subr.mxu0 0.0
      %508 = vmatpush1.xpose.msra.mxu0 0.0
      %509 = vmatprep.subr.mxu0 0.0
      %510 = vmatpush1.xpose.msra.mxu0 0.0
      %511 = vmatprep.subr.mxu0 0.0
      %512 = vmatpush1.xpose.msra.mxu0 0.0
      %513 = vmatprep.subr.mxu0 0.0
      %514 = vmatpush1.xpose.msra.mxu0 0.0
      %515 = vmatprep.subr.mxu0 0.0
      %516 = vmatpush1.xpose.msra.mxu0 0.0
      %517 = vmatprep.subr.mxu0 0.0
      %518 = vmatpush1.xpose.msra.mxu0 0.0
      %519 = vmatprep.subr.mxu0 0.0
      %520 = vmatpush1.xpose.msra.mxu0 0.0
      %521 = vmatprep.subr.mxu0 0.0
      %522 = vmatpush1.xpose.msra.mxu0 0.0
      %523 = vmatprep.subr.mxu0 0.0
      %524 = vmatpush1.xpose.msra.mxu0 0.0
      %525 = vmatprep.subr.mxu0 0.0
      %526 = vmatpush1.xpose.msra.mxu0 0.0
      %527 = vmatprep.subr.mxu0 0.0
      %528 = vmatpush1.xpose.msra.mxu0 0.0
      %529 = vmatprep.subr.mxu0 0.0
      %530 = vmatpush1.xpose.msra.mxu0 0.0
      %531 = vmatprep.subr.mxu0 0.0
      %532 = vmatpush1.xpose.msra.mxu0 0.0
      %533 = vmatprep.subr.mxu0 0.0
      %534 = vmatpush1.xpose.msra.mxu0 0.0
      %535 = vmatprep.subr.mxu0 0.0
      %536 = vmatpush1.xpose.msra.mxu0 0.0
      %537 = vmatprep.subr.mxu0 0.0
      %538 = vmatpush1.xpose.msra.mxu0 0.0
      %539 = vmatprep.mubr.f32.mxu0 0.0
      %540 = vmatmul.mubr.f32.gmra.mrb[0].mxu0 %v425
      %v541 = vpop.f32.mrb[0].mxu0
      %v542 = vadd.f32 0.0, %v541
      %v543 = vpop.f32.mrb[0].mxu0
      %544 = vdwg.mxu0
      %v546 = vsel %vm423, %v422, 0
      %548 = vmatprep.subr.mxu0 0.0
      %549 = vmatpush1.xpose.msra.mxu0 %v428
      %550 = vmatprep.subr.mxu0 0.0
      %551 = vmatpush1.xpose.msra.mxu0 %v431
      %552 = vmatprep.subr.mxu0 0.0
      %553 = vmatpush1.xpose.msra.mxu0 %v434
      %554 = vmatprep.subr.mxu0 0.0
      %555 = vmatpush1.xpose.msra.mxu0 %v437
      %556 = vmatprep.subr.mxu0 0.0
      %557 = vmatpush1.xpose.msra.mxu0 %v440
      %558 = vmatprep.subr.mxu0 0.0
      %559 = vmatpush1.xpose.msra.mxu0 %v443
      %560 = vmatprep.subr.mxu0 0.0
      %561 = vmatpush1.xpose.msra.mxu0 %v446
      %562 = vmatprep.subr.mxu0 0.0
      %563 = vmatpush1.xpose.msra.mxu0 %v449
      %564 = vmatprep.subr.mxu0 0.0
      %565 = vmatpush1.xpose.msra.mxu0 %v452
      %566 = vmatprep.subr.mxu0 0.0
      %567 = vmatpush1.xpose.msra.mxu0 %v455
      %568 = vmatprep.subr.mxu0 0.0
      %569 = vmatpush1.xpose.msra.mxu0 %v458
      %570 = vmatprep.subr.mxu0 0.0
      %571 = vmatpush1.xpose.msra.mxu0 %v461
      %572 = vmatprep.subr.mxu0 0.0
      %573 = vmatpush1.xpose.msra.mxu0 %v464
      %574 = vmatprep.subr.mxu0 0.0
      %575 = vmatpush1.xpose.msra.mxu0 %v467
      %576 = vmatprep.subr.mxu0 0.0
      %577 = vmatpush1.xpose.msra.mxu0 %v470
      %578 = vmatprep.subr.mxu0 0.0
      %579 = vmatpush1.xpose.msra.mxu0 %v473
      %580 = vmatprep.subr.mxu0 0.0
      %581 = vmatpush1.xpose.msra.mxu0 0.0
      %582 = vmatprep.subr.mxu0 0.0
      %583 = vmatpush1.xpose.msra.mxu0 0.0
      %584 = vmatprep.subr.mxu0 0.0
      %585 = vmatpush1.xpose.msra.mxu0 0.0
      %586 = vmatprep.subr.mxu0 0.0
      %587 = vmatpush1.xpose.msra.mxu0 0.0
      %588 = vmatprep.subr.mxu0 0.0
      %589 = vmatpush1.xpose.msra.mxu0 0.0
      %590 = vmatprep.subr.mxu0 0.0
      %591 = vmatpush1.xpose.msra.mxu0 0.0
      %592 = vmatprep.subr.mxu0 0.0
      %593 = vmatpush1.xpose.msra.mxu0 0.0
      %594 = vmatprep.subr.mxu0 0.0
      %595 = vmatpush1.xpose.msra.mxu0 0.0
      %596 = vmatprep.subr.mxu0 0.0
      %597 = vmatpush1.xpose.msra.mxu0 0.0
      %598 = vmatprep.subr.mxu0 0.0
      %599 = vmatpush1.xpose.msra.mxu0 0.0
      %600 = vmatprep.subr.mxu0 0.0
      %601 = vmatpush1.xpose.msra.mxu0 0.0
      %602 = vmatprep.subr.mxu0 0.0
      %603 = vmatpush1.xpose.msra.mxu0 0.0
      %604 = vmatprep.subr.mxu0 0.0
      %605 = vmatpush1.xpose.msra.mxu0 0.0
      %606 = vmatprep.subr.mxu0 0.0
      %607 = vmatpush1.xpose.msra.mxu0 0.0
      %608 = vmatprep.subr.mxu0 0.0
      %609 = vmatpush1.xpose.msra.mxu0 0.0
      %610 = vmatprep.subr.mxu0 0.0
      %611 = vmatpush1.xpose.msra.mxu0 0.0
      %612 = vmatprep.mubr.f32.mxu0 0.0
      %613 = vmatmul.mubr.f32.gmra.mrb[0].mxu0 %v546
      %v614 = vpop.f32.mrb[0].mxu0
      %v615 = vadd.f32 1e-06, %v614
      %v616 = vpop.f32.mrb[0].mxu0
      %617 = vdwg.mxu0
      %v618 = vrsqrt.pop %v615
      %v619 = vld [vmem:[%s1] sm:$0x1]
      %v620 = vmul.f32 %v619, %v618
      %v621 = vld [vmem:[%s2] sm:$0x1]
      %v622 = vmul.f32 %v542, %v620
      %v623 = vsub.f32 %v621, %v622
      %v625 = vlaneseq
      %v626 = vshrl.u32 %v625, 7
      %v627 = vsub.s32 0, %v626
      %v628 = vrot.slane %v620, %v627
      %v630 = vmul.f32 %v248, %v628
      %v632 = vlaneseq
      %v633 = vshrl.u32 %v632, 7
      %v634 = vsub.s32 0, %v633
      %v635 = vrot.slane %v623, %v634
      %v637 = vadd.f32 %v630, %v635
      %v638 = vxor.u32 %v637, 2147483648
      %v639 = vmul.f32 %v638, 1.442695
      %v640 = vpow.pop %v639
      %v641 = vadd.f32 %v640, 1.0
      %v642 = vrcp.pop %v641
      %v643 = vmul.f32 1.0, %v642
      %v644 = vmul.f32 %v637, %v643
      %v645 = vrot.slane %v644, 7
      %v646 = vlaneseq
      %v647 = vshrl.u32 %v646, 7
      %vm648 = vcmp.eq.s32.totalorder %v647, 0
      %v649 = vsel %vm648, 0.0, %v645
      %v650 = vrot.slane %v644, 1
      %vm651 = vcmp.eq.s32.totalorder %v647, 7
      %v652 = vsel %vm651, 0.0, %v650
      %v653 = vld [vmem:[%s4] sm:$0xff]
      %v654 = vld [vmem:[%s4 + $0x8] sm:$0xff]
      %v655 = vld [vmem:[%s4 + $0x10] sm:$0xff]
      %v656 = vld [vmem:[%s4 + $0x18] sm:$0xff]
      %v657 = vld [vmem:[%s4 + $0x20] sm:$0xff]
      %v658 = vld [vmem:[%s4 + $0x28] sm:$0xff]
      %v659 = vld [vmem:[%s4 + $0x30] sm:$0xff]
      %v660 = vld [vmem:[%s4 + $0x38] sm:$0xff]
      %v661 = vld [vmem:[%s4 + $0x40] sm:$0xff]
      %v662 = vld [vmem:[%s4 + $0x48] sm:$0xff]
      %v663 = vld [vmem:[%s4 + $0x50] sm:$0xff]
      %v664 = vld [vmem:[%s4 + $0x58] sm:$0xff]
      %v665 = vld [vmem:[%s4 + $0x60] sm:$0xff]
      %v666 = vld [vmem:[%s4 + $0x68] sm:$0xff]
      %v667 = vld [vmem:[%s4 + $0x70] sm:$0xff]
      %v668 = vld [vmem:[%s4 + $0x78] sm:$0xff]
      %v669 = vld [vmem:[%s4 + $0x80] sm:$0xff]
      %v670 = vld [vmem:[%s4 + $0x88] sm:$0xff]
      %v671 = vld [vmem:[%s4 + $0x90] sm:$0xff]
      %v672 = vld [vmem:[%s4 + $0x98] sm:$0xff]
      %v673 = vld [vmem:[%s4 + $0xa0] sm:$0xff]
      %v674 = vld [vmem:[%s4 + $0xa8] sm:$0xff]
      %v675 = vld [vmem:[%s4 + $0xb0] sm:$0xff]
      %v676 = vld [vmem:[%s4 + $0xb8] sm:$0xff]
      %v677 = vld [vmem:[%s4 + $0xc0] sm:$0xff]
      %v678 = vld [vmem:[%s4 + $0xc8] sm:$0xff]
      %v679 = vld [vmem:[%s4 + $0xd0] sm:$0xff]
      %v680 = vld [vmem:[%s4 + $0xd8] sm:$0xff]
      %v681 = vld [vmem:[%s4 + $0xe0] sm:$0xff]
      %v682 = vld [vmem:[%s4 + $0xe8] sm:$0xff]
      %v683 = vld [vmem:[%s4 + $0xf0] sm:$0xff]
      %v684 = vld [vmem:[%s4 + $0xf8] sm:$0xff]
      %v685 = vld [vmem:[%s4 + $0x100] sm:$0xff]
      %v686 = vld [vmem:[%s4 + $0x108] sm:$0xff]
      %v687 = vld [vmem:[%s4 + $0x110] sm:$0xff]
      %v688 = vld [vmem:[%s4 + $0x118] sm:$0xff]
      %v689 = vld [vmem:[%s4 + $0x120] sm:$0xff]
      %v690 = vld [vmem:[%s4 + $0x128] sm:$0xff]
      %v691 = vld [vmem:[%s4 + $0x130] sm:$0xff]
      %v692 = vld [vmem:[%s4 + $0x138] sm:$0xff]
      %v693 = vld [vmem:[%s4 + $0x140] sm:$0xff]
      %v694 = vld [vmem:[%s4 + $0x148] sm:$0xff]
      %v695 = vld [vmem:[%s4 + $0x150] sm:$0xff]
      %v696 = vld [vmem:[%s4 + $0x158] sm:$0xff]
      %v697 = vld [vmem:[%s4 + $0x160] sm:$0xff]
      %v698 = vld [vmem:[%s4 + $0x168] sm:$0xff]
      %v699 = vld [vmem:[%s4 + $0x170] sm:$0xff]
      %v700 = vld [vmem:[%s4 + $0x178] sm:$0xff]
      %v701 = vld [vmem:[%s5] sm:$0x1]
      %v703 = vlaneseq
      %v704 = vshrl.u32 %v703, 7
      %v705 = vsub.s32 0, %v704
      %v706 = vrot.slane %v701, %v705
      %708 = vmatprep.subr.mxu0 0.0
      %709 = vmatpush1.msra.mxu0 %v653
      %710 = vmatprep.subr.mxu0 0.0
      %711 = vmatpush1.msra.mxu0 %v654
      %712 = vmatprep.subr.mxu0 0.0
      %713 = vmatpush1.msra.mxu0 %v655
      %714 = vmatprep.subr.mxu0 0.0
      %715 = vmatpush1.msra.mxu0 %v656
      %716 = vmatprep.subr.mxu0 0.0
      %717 = vmatpush1.msra.mxu0 %v657
      %718 = vmatprep.subr.mxu0 0.0
      %719 = vmatpush1.msra.mxu0 %v658
      %720 = vmatprep.subr.mxu0 0.0
      %721 = vmatpush1.msra.mxu0 %v659
      %722 = vmatprep.subr.mxu0 0.0
      %723 = vmatpush1.msra.mxu0 %v660
      %724 = vmatprep.subr.mxu0 0.0
      %725 = vmatpush1.msra.mxu0 %v661
      %726 = vmatprep.subr.mxu0 0.0
      %727 = vmatpush1.msra.mxu0 %v662
      %728 = vmatprep.subr.mxu0 0.0
      %729 = vmatpush1.msra.mxu0 %v663
      %730 = vmatprep.subr.mxu0 0.0
      %731 = vmatpush1.msra.mxu0 %v664
      %732 = vmatprep.subr.mxu0 0.0
      %733 = vmatpush1.msra.mxu0 %v665
      %734 = vmatprep.subr.mxu0 0.0
      %735 = vmatpush1.msra.mxu0 %v666
      %736 = vmatprep.subr.mxu0 0.0
      %737 = vmatpush1.msra.mxu0 %v667
      %738 = vmatprep.subr.mxu0 0.0
      %739 = vmatpush1.msra.mxu0 %v668
      %740 = vmatprep.subr.mxu0 0.0
      %741 = vmatpush1.msra.mxu0 %v669
      %742 = vmatprep.subr.mxu0 0.0
      %743 = vmatpush1.msra.mxu0 %v670
      %744 = vmatprep.subr.mxu0 0.0
      %745 = vmatpush1.msra.mxu0 %v671
      %746 = vmatprep.subr.mxu0 0.0
      %747 = vmatpush1.msra.mxu0 %v672
      %748 = vmatprep.subr.mxu0 0.0
      %749 = vmatpush1.msra.mxu0 %v673
      %750 = vmatprep.subr.mxu0 0.0
      %751 = vmatpush1.msra.mxu0 %v674
      %752 = vmatprep.subr.mxu0 0.0
      %753 = vmatpush1.msra.mxu0 %v675
      %754 = vmatprep.subr.mxu0 0.0
      %755 = vmatpush1.msra.mxu0 %v676
      %756 = vmatprep.subr.mxu0 0.0
      %757 = vmatpush1.msra.mxu0 %v677
      %758 = vmatprep.subr.mxu0 0.0
      %759 = vmatpush1.msra.mxu0 %v678
      %760 = vmatprep.subr.mxu0 0.0
      %761 = vmatpush1.msra.mxu0 %v679
      %762 = vmatprep.subr.mxu0 0.0
      %763 = vmatpush1.msra.mxu0 %v680
      %764 = vmatprep.subr.mxu0 0.0
      %765 = vmatpush1.msra.mxu0 %v681
      %766 = vmatprep.subr.mxu0 0.0
      %767 = vmatpush1.msra.mxu0 %v682
      %768 = vmatprep.subr.mxu0 0.0
      %769 = vmatpush1.msra.mxu0 %v683
      %770 = vmatprep.subr.mxu0 0.0
      %771 = vmatpush1.msra.mxu0 %v684
      %772 = vmatprep.mubr.f32.mxu0 %v644
      %773 = vmatmul.mubr.f32.gmra.mrb[0].mxu0 %v649
      %v774 = vpop.f32.mrb[0].mxu0
      %v775 = vadd.f32 %v706, %v774
      %v776 = vpop.f32.mrb[0].mxu0
      %777 = vdwg.mxu0
      %778 = vmatprep.subr.mxu0 0.0
      %779 = vmatpush1.msra.mxu0 %v685
      %780 = vmatprep.subr.mxu0 0.0
      %781 = vmatpush1.msra.mxu0 %v686
      %782 = vmatprep.subr.mxu0 0.0
      %783 = vmatpush1.msra.mxu0 %v687
      %784 = vmatprep.subr.mxu0 0.0
      %785 = vmatpush1.msra.mxu0 %v688
      %786 = vmatprep.subr.mxu0 0.0
      %787 = vmatpush1.msra.mxu0 %v689
      %788 = vmatprep.subr.mxu0 0.0
      %789 = vmatpush1.msra.mxu0 %v690
      %790 = vmatprep.subr.mxu0 0.0
      %791 = vmatpush1.msra.mxu0 %v691
      %792 = vmatprep.subr.mxu0 0.0
      %793 = vmatpush1.msra.mxu0 %v692
      %794 = vmatprep.subr.mxu0 0.0
      %795 = vmatpush1.msra.mxu0 %v693
      %796 = vmatprep.subr.mxu0 0.0
      %797 = vmatpush1.msra.mxu0 %v694
      %798 = vmatprep.subr.mxu0 0.0
      %799 = vmatpush1.msra.mxu0 %v695
      %800 = vmatprep.subr.mxu0 0.0
      %801 = vmatpush1.msra.mxu0 %v696
      %802 = vmatprep.subr.mxu0 0.0
      %803 = vmatpush1.msra.mxu0 %v697
      %804 = vmatprep.subr.mxu0 0.0
      %805 = vmatpush1.msra.mxu0 %v698
      %806 = vmatprep.subr.mxu0 0.0
      %807 = vmatpush1.msra.mxu0 %v699
      %808 = vmatprep.subr.mxu0 0.0
      %809 = vmatpush1.msra.mxu0 %v700
      %810 = vmatprep.subr.mxu0 0.0
      %811 = vmatpush1.msra.mxu0 0.0
      %812 = vmatprep.subr.mxu0 0.0
      %813 = vmatpush1.msra.mxu0 0.0
      %814 = vmatprep.subr.mxu0 0.0
      %815 = vmatpush1.msra.mxu0 0.0
      %816 = vmatprep.subr.mxu0 0.0
      %817 = vmatpush1.msra.mxu0 0.0
      %818 = vmatprep.subr.mxu0 0.0
      %819 = vmatpush1.msra.mxu0 0.0
      %820 = vmatprep.subr.mxu0 0.0
      %821 = vmatpush1.msra.mxu0 0.0
      %822 = vmatprep.subr.mxu0 0.0
      %823 = vmatpush1.msra.mxu0 0.0
      %824 = vmatprep.subr.mxu0 0.0
      %825 = vmatpush1.msra.mxu0 0.0
      %826 = vmatprep.subr.mxu0 0.0
      %827 = vmatpush1.msra.mxu0 0.0
      %828 = vmatprep.subr.mxu0 0.0
      %829 = vmatpush1.msra.mxu0 0.0
      %830 = vmatprep.subr.mxu0 0.0
      %831 = vmatpush1.msra.mxu0 0.0
      %832 = vmatprep.subr.mxu0 0.0
      %833 = vmatpush1.msra.mxu0 0.0
      %834 = vmatprep.subr.mxu0 0.0
      %835 = vmatpush1.msra.mxu0 0.0
      %836 = vmatprep.subr.mxu0 0.0
      %837 = vmatpush1.msra.mxu0 0.0
      %838 = vmatprep.subr.mxu0 0.0
      %839 = vmatpush1.msra.mxu0 0.0
      %840 = vmatprep.subr.mxu0 0.0
      %841 = vmatpush1.msra.mxu0 0.0
      %842 = vmatprep.mubr.f32.mxu0 0.0
      %843 = vmatmul.mubr.f32.gmra.mrb[0].mxu0 %v652
      %v844 = vpop.f32.mrb[0].mxu0
      %v845 = vadd.f32 %v775, %v844
      %v846 = vpop.f32.mrb[0].mxu0
      %847 = vdwg.mxu0
      %v848 = vpack.c.bf16 %v845, %v845
      %849 = vst [vmem:[%s246] sm:$0xf] %v848
      %p850 = scmp.lt.s32.totalorder %s17, 1
      %s851 = scalar_select %p850, %s17, 1
      %s852 = smul.addr %s851, 4
      %s853 = scalar_lea.vmem %s6, %s852
      // Predicated region
      $region45: #{_lambda_.20} parent=43 // pred_check
        %p854 = pneg %p166
      $region46: #{_lambda_.20} parent=43 // pred_check_branch
        %856 = sbr.rel (%p854) target = $region48
      $region47: #{_lambda_.20} parent=43 // pred_region
        _
      $region48: #{_lambda_.20} parent=43 // pred_fallthru
        _
    $region44: #{_lambda_.20} parent=5 // pred_fallthru
      _
    %p857 = scmp.le.s32.totalorder 2, %s12
    // Predicated region
    $region49: #{_lambda_.20} parent=5 // pred_check
      %p858 = pneg %p857
    $region50: #{_lambda_.20} parent=5 // pred_check_branch
      %860 = sbr.rel (%p858) target = $region52
    $region51: #{_lambda_.20} parent=5 // pred_region
      %s861 = ssub.s32 %s12, 2
      // Predicated region
      $region53: #{_lambda_.20} parent=51 // pred_check
        %p862 = pneg %p172
      $region54: #{_lambda_.20} parent=51 // pred_check_branch
        %864 = sbr.rel (%p862) target = $region56
      $region55: #{_lambda_.20} parent=51 // pred_region
        %p865 = scmp.lt.s32.totalorder %s18, 1
        %s866 = scalar_select %p865, %s18, 1
        %s867 = smul.addr %s866, 4
        %s868 = scalar_lea.vmem %s6, %s867
      $region56: #{_lambda_.20} parent=51 // pred_fallthru
        _
    $region52: #{_lambda_.20} parent=5 // pred_fallthru
      _
  $region6: #{_lambda_.20} parent=0 // loop_footer
    %s16 = sadd.s32 1, %s12
  $region7: #{_lambda_.20} parent=0 // loop_footer_branch
    %11 = sbr.rel target = $region3
  $region8: #{_lambda_.20} parent=0 // loop_exit
    _

// kernel: _lambda_.25
$region0: #{_lambda_.25}
  #allocation0 [shape = 'u32[]', space=smem, size = 0x4, offset = 0x4, fixed_abs, tag = 'smem constant byte address 0x4 - core index']
  #allocation1 [shape = 'u32[144,128]{1,0:T(1,128)}', space=vmem, size = 0x12000, scoped, tag = 'internal scratch']
  %s0 = inlined_call_operand.vmem [shape: bf16[2,8,128], index: 0, kind: input, shape index: {}]
  %s1 = inlined_call_operand.vmem [shape: f32[1,128], index: 1, kind: input, shape index: {}]
  %s2 = inlined_call_operand.vmem [shape: f32[1,128], index: 2, kind: input, shape index: {}]
  %s3 = inlined_call_operand.vmem [shape: f32[128,32], index: 3, kind: input, shape index: {}]
  %s4 = inlined_call_operand.vmem [shape: f32[384,128], index: 4, kind: input, shape index: {}]
  %s5 = inlined_call_operand.vmem [shape: f32[1,128], index: 5, kind: input, shape index: {}]
  %s6 = inlined_call_operand.hbm [shape: f32[2,8,128], index: 6, kind: output, shape index: {}]
  %s7 = sld [smem:[#allocation0]]
  $region57: #{_lambda_.25} parent=0
    _
  %s9 = ssub.s32 1, %s7
  %s10 = scalar_select 0, %s9, %s7
  $region1: #{_lambda_.25} parent=0
    #allocation2 [shape = 'u8[8192]{0}', space=vmem, size = 0x2000, scoped, tag = 'output window, operand 0']
    #allocation3 [shape = 's32[2]{0}', space=sflag, size = 0x8, scoped, tag = 'scoped memory for _lambda_.25']
    %11 = vsyncpa [#allocation3], 0
    %s12 = scalar_lea.sflag [#allocation3], 1
    %13 = vsyncpa %s12, 0
    loop: start=0, step=1, limit=4
    $region2: #{_lambda_.25} parent=1 // loop_pre_header
      _
    $region3: #{_lambda_.25} parent=1 // loop_header
      %s15 = sphi 0, %s19
      %p16 = scmp.ge.s32.totalorder %s15, 4
      %s25 = sphi 0, %s27
      %s28 = sphi 0, %s25
      %s29 = sphi 0, %s28
      %s45 = sphi 0, %s29
      %s49 = sphi 0, %s49
      %s51 = sphi 0, %s49
      %s52 = sphi 0, %s51
      %s66 = sphi 0, %s52
      %s70 = sphi 0, %s70
      %s72 = sphi 0, %s70
      %s73 = sphi 0, %s72
      %s87 = sphi 0, %s73
      %s91 = sphi 0, %s91
      %s93 = sphi 0, %s91
      %s94 = sphi 0, %s93
      %s108 = sphi 0, %s94
      %s112 = sphi 0, %s112
      %s114 = sphi 0, %s112
      %s115 = sphi 0, %s114
      %s129 = sphi 0, %s115
      %s133 = sphi 0, %s133
      %s135 = sphi 0, %s133
      %s136 = sphi 0, %s135
      %s150 = sphi 0, %s136
      %s156 = sphi 0, %s158
      %s159 = sphi 0, %s156
      %s160 = sphi 0, %s159
      %s176 = sphi 0, %s160
    $region4: #{_lambda_.25} parent=1 // loop_header_branch
      %18 = sbr.rel (%p16) target = $region8
    $region5: #{_lambda_.25} parent=1 // loop_body
      %s20 = ssub.s32 %s15, 1
      %s21 = ssub.s32 %s15, 2
      %s22 = sadd.s32 %s15, 1
      %s23 = ssub.s32 %s15, %s22
      %p24 = scmp.eq.s32.totalorder %s23, 0
      %s26 = sadd.s32 %s25, 1
      %s27 = scalar_select %p24, %s25, %s26
      %p30 = pneg %p24
      %p31 = scmp.eq.s32.totalorder %s15, 1
      %p32 = por %p30, %p31
      %p33 = scmp.ne.s32.totalorder %s25, %s28
      %p34 = scmp.eq.s32.totalorder %s15, 0
      %p35 = por %p33, %p34
      %p36 = scmp.ne.s32.totalorder %s25, %s28
      %p37 = scmp.eq.s32.totalorder %s20, 1
      %p38 = por %p36, %p37
      %p39 = scmp.ne.s32.totalorder %s28, %s29
      %p40 = scmp.eq.s32.totalorder %s20, 0
      %p41 = por %p39, %p40
      %p42 = scmp.ne.s32.totalorder %s28, %s29
      %p43 = scmp.eq.s32.totalorder %s21, 1
      %p44 = por %p42, %p43
      %p46 = scmp.ne.s32.totalorder %s29, %s45
      %p47 = scmp.eq.s32.totalorder %s21, 0
      %p48 = por %p46, %p47
      %s50 = sadd.s32 %s49, 1
      %p53 = scmp.eq.s32.totalorder %s15, 1
      %p54 = scmp.ne.s32.totalorder %s49, %s51
      %p55 = scmp.eq.s32.totalorder %s15, 0
      %p56 = por %p54, %p55
      %p57 = scmp.ne.s32.totalorder %s49, %s51
      %p58 = scmp.eq.s32.totalorder %s20, 1
      %p59 = por %p57, %p58
      %p60 = scmp.ne.s32.totalorder %s51, %s52
      %p61 = scmp.eq.s32.totalorder %s20, 0
      %p62 = por %p60, %p61
      %p63 = scmp.ne.s32.totalorder %s51, %s52
      %p64 = scmp.eq.s32.totalorder %s21, 1
      %p65 = por %p63, %p64
      %p67 = scmp.ne.s32.totalorder %s52, %s66
      %p68 = scmp.eq.s32.totalorder %s21, 0
      %p69 = por %p67, %p68
      %s71 = sadd.s32 %s70, 1
      %p74 = scmp.eq.s32.totalorder %s15, 1
      %p75 = scmp.ne.s32.totalorder %s70, %s72
      %p76 = scmp.eq.s32.totalorder %s15, 0
      %p77 = por %p75, %p76
      %p78 = scmp.ne.s32.totalorder %s70, %s72
      %p79 = scmp.eq.s32.totalorder %s20, 1
      %p80 = por %p78, %p79
      %p81 = scmp.ne.s32.totalorder %s72, %s73
      %p82 = scmp.eq.s32.totalorder %s20, 0
      %p83 = por %p81, %p82
      %p84 = scmp.ne.s32.totalorder %s72, %s73
      %p85 = scmp.eq.s32.totalorder %s21, 1
      %p86 = por %p84, %p85
      %p88 = scmp.ne.s32.totalorder %s73, %s87
      %p89 = scmp.eq.s32.totalorder %s21, 0
      %p90 = por %p88, %p89
      %s92 = sadd.s32 %s91, 1
      %p95 = scmp.eq.s32.totalorder %s15, 1
      %p96 = scmp.ne.s32.totalorder %s91, %s93
      %p97 = scmp.eq.s32.totalorder %s15, 0
      %p98 = por %p96, %p97
      %p99 = scmp.ne.s32.totalorder %s91, %s93
      %p100 = scmp.eq.s32.totalorder %s20, 1
      %p101 = por %p99, %p100
      %p102 = scmp.ne.s32.totalorder %s93, %s94
      %p103 = scmp.eq.s32.totalorder %s20, 0
      %p104 = por %p102, %p103
      %p105 = scmp.ne.s32.totalorder %s93, %s94
      %p106 = scmp.eq.s32.totalorder %s21, 1
      %p107 = por %p105, %p106
      %p109 = scmp.ne.s32.totalorder %s94, %s108
      %p110 = scmp.eq.s32.totalorder %s21, 0
      %p111 = por %p109, %p110
      %s113 = sadd.s32 %s112, 1
      %p116 = scmp.eq.s32.totalorder %s15, 1
      %p117 = scmp.ne.s32.totalorder %s112, %s114
      %p118 = scmp.eq.s32.totalorder %s15, 0
      %p119 = por %p117, %p118
      %p120 = scmp.ne.s32.totalorder %s112, %s114
      %p121 = scmp.eq.s32.totalorder %s20, 1
      %p122 = por %p120, %p121
      %p123 = scmp.ne.s32.totalorder %s114, %s115
      %p124 = scmp.eq.s32.totalorder %s20, 0
      %p125 = por %p123, %p124
      %p126 = scmp.ne.s32.totalorder %s114, %s115
      %p127 = scmp.eq.s32.totalorder %s21, 1
      %p128 = por %p126, %p127
      %p130 = scmp.ne.s32.totalorder %s115, %s129
      %p131 = scmp.eq.s32.totalorder %s21, 0
      %p132 = por %p130, %p131
      %s134 = sadd.s32 %s133, 1
      %p137 = scmp.eq.s32.totalorder %s15, 1
      %p138 = scmp.ne.s32.totalorder %s133, %s135
      %p139 = scmp.eq.s32.totalorder %s15, 0
      %p140 = por %p138, %p139
      %p141 = scmp.ne.s32.totalorder %s133, %s135
      %p142 = scmp.eq.s32.totalorder %s20, 1
      %p143 = por %p141, %p142
      %p144 = scmp.ne.s32.totalorder %s135, %s136
      %p145 = scmp.eq.s32.totalorder %s20, 0
      %p146 = por %p144, %p145
      %p147 = scmp.ne.s32.totalorder %s135, %s136
      %p148 = scmp.eq.s32.totalorder %s21, 1
      %p149 = por %p147, %p148
      %p151 = scmp.ne.s32.totalorder %s136, %s150
      %p152 = scmp.eq.s32.totalorder %s21, 0
      %p153 = por %p151, %p152
      %s154 = ssub.s32 %s15, %s22
      %p155 = scmp.eq.s32.totalorder %s154, 0
      %s157 = sadd.s32 %s156, 1
      %s158 = scalar_select %p155, %s156, %s157
      %p161 = pneg %p155
      %p162 = scmp.eq.s32.totalorder %s15, 1
      %p163 = por %p161, %p162
      %p164 = scmp.ne.s32.totalorder %s156, %s159
      %p165 = scmp.eq.s32.totalorder %s15, 0
      %p166 = por %p164, %p165
      %p167 = scmp.ne.s32.totalorder %s156, %s159
      %p168 = scmp.eq.s32.totalorder %s20, 1
      %p169 = por %p167, %p168
      %p170 = scmp.ne.s32.totalorder %s159, %s160
      %p171 = scmp.eq.s32.totalorder %s20, 0
      %p172 = por %p170, %p171
      %p173 = scmp.ne.s32.totalorder %s159, %s160
      %p174 = scmp.eq.s32.totalorder %s21, 1
      %p175 = por %p173, %p174
      %p177 = scmp.ne.s32.totalorder %s160, %s176
      %p178 = scmp.eq.s32.totalorder %s21, 0
      %p179 = por %p177, %p178
      %p180 = scmp.le.s32.totalorder 1, %s15
      %p181 = scmp.lt.s32.totalorder %s15, 3
      %p182 = pnand %p180, %p181
      %p183 = pneg %p182
      // Predicated region
      $region9: #{_lambda_.25} parent=5 // pred_check
        _
      $region10: #{_lambda_.25} parent=5 // pred_check_branch
        %185 = sbr.rel (%p182) target = $region12
      $region11: #{_lambda_.25} parent=5 // pred_region
        %s186 = ssub.s32 %s15, 1
        // Predicated region
        $region13: #{_lambda_.25} parent=11 // pred_check
          %p187 = pneg %p62
        $region14: #{_lambda_.25} parent=11 // pred_check_branch
          %189 = sbr.rel (%p187) target = $region16
        $region15: #{_lambda_.25} parent=11 // pred_region
          _
        $region16: #{_lambda_.25} parent=11 // pred_fallthru
          _
        // Predicated region
        $region17: #{_lambda_.25} parent=11 // pred_check
          %p190 = pneg %p83
        $region18: #{_lambda_.25} parent=11 // pred_check_branch
          %192 = sbr.rel (%p190) target = $region20
        $region19: #{_lambda_.25} parent=11 // pred_region
          _
        $region20: #{_lambda_.25} parent=11 // pred_fallthru
          _
        // Predicated region
        $region21: #{_lambda_.25} parent=11 // pred_check
          %p193 = pneg %p104
        $region22: #{_lambda_.25} parent=11 // pred_check_branch
          %195 = sbr.rel (%p193) target = $region24
        $region23: #{_lambda_.25} parent=11 // pred_region
          _
        $region24: #{_lambda_.25} parent=11 // pred_fallthru
          _
        // Predicated region
        $region25: #{_lambda_.25} parent=11 // pred_check
          %p196 = pneg %p125
        $region26: #{_lambda_.25} parent=11 // pred_check_branch
          %198 = sbr.rel (%p196) target = $region28
        $region27: #{_lambda_.25} parent=11 // pred_region
          _
        $region28: #{_lambda_.25} parent=11 // pred_fallthru
          _
        // Predicated region
        $region29: #{_lambda_.25} parent=11 // pred_check
          %p199 = pneg %p146
        $region30: #{_lambda_.25} parent=11 // pred_check_branch
          %201 = sbr.rel (%p199) target = $region32
        $region31: #{_lambda_.25} parent=11 // pred_region
          _
        $region32: #{_lambda_.25} parent=11 // pred_fallthru
          _
      $region12: #{_lambda_.25} parent=5 // pred_fallthru
        _
      %p202 = scmp.lt.s32.totalorder %s15, 2
      // Predicated region
      $region33: #{_lambda_.25} parent=5 // pred_check
        %p203 = pneg %p202
      $region34: #{_lambda_.25} parent=5 // pred_check_branch
        %205 = sbr.rel (%p203) target = $region36
      $region35: #{_lambda_.25} parent=5 // pred_region
        // Predicated region
        $region37: #{_lambda_.25} parent=35 // pred_check
          %p206 = pneg %p35
        $region38: #{_lambda_.25} parent=35 // pred_check_branch
          %208 = sbr.rel (%p206) target = $region40
        $region39: #{_lambda_.25} parent=35 // pred_region
          %p209 = scmp.lt.s32.totalorder %s15, 1
          %s210 = scalar_select %p209, %s15, 1
          %s211 = smul.addr %s210, 4
          %s212 = scalar_lea.vmem %s0, %s211
        $region40: #{_lambda_.25} parent=35 // pred_fallthru
          _
      $region36: #{_lambda_.25} parent=5 // pred_fallthru
        _
      %p213 = scmp.le.s32.totalorder 1, %s15
      %p214 = scmp.lt.s32.totalorder %s15, 3
      %p215 = pnand %p213, %p214
      %p216 = pneg %p215
      // Predicated region
      $region41: #{_lambda_.25} parent=5 // pred_check
        _
      $region42: #{_lambda_.25} parent=5 // pred_check_branch
        %218 = sbr.rel (%p215) target = $region44
      $region43: #{_lambda_.25} parent=5 // pred_region
        %s219 = ssub.s32 %s15, 1
        %p220 = scmp.lt.s32.totalorder %s20, 1
        %s221 = scalar_select %p220, %s20, 1
        %s222 = smul.addr %s221, 4
        %s223 = scalar_lea.vmem %s0, %s222
        %p224 = pneg %p41
        %p225 = pneg %p38
        %p226 = pneg %p62
        %p227 = pneg %p59
        %p228 = pneg %p83
        %p229 = pneg %p80
        %p230 = pneg %p104
        %p231 = pneg %p101
        %p232 = pneg %p125
        %p233 = pneg %p122
        %p234 = pneg %p146
        %p235 = pneg %p143
        %p236 = pneg %p172
        %p237 = pneg %p169
        %s238 = sand.u32 %s159, 1
        %s239 = scalar_lea.sflag [#allocation3], %s238
        %s240 = sand.u32 %s159, 1
        %s241 = smul.addr %s240, 8
        %s242 = scalar_lea.vmem [#allocation2], %s241
        %p243 = scmp.lt.s32.totalorder %s20, 1
        %s244 = scalar_select %p243, %s20, 1
        %s245 = smul.addr %s244, 4
        %s246 = scalar_lea.vmem %s0, %s245
        %v247 = vld [vmem:[%s246] sm:$0xf]
        %v248 = vunpack.c.l.bf16 %v247
        %v249 = vld [vmem:[%s3] sm:$0xff]
        %v250 = vld [vmem:[%s3 + $0x8] sm:$0xff]
        %v251 = vld [vmem:[%s3 + $0x10] sm:$0xff]
        %v252 = vld [vmem:[%s3 + $0x18] sm:$0xff]
        %v253 = vld [vmem:[%s3 + $0x20] sm:$0xff]
        %v254 = vld [vmem:[%s3 + $0x28] sm:$0xff]
        %v255 = vld [vmem:[%s3 + $0x30] sm:$0xff]
        %v256 = vld [vmem:[%s3 + $0x38] sm:$0xff]
        %v257 = vld [vmem:[%s3 + $0x40] sm:$0xff]
        %v258 = vld [vmem:[%s3 + $0x48] sm:$0xff]
        %v259 = vld [vmem:[%s3 + $0x50] sm:$0xff]
        %v260 = vld [vmem:[%s3 + $0x58] sm:$0xff]
        %v261 = vld [vmem:[%s3 + $0x60] sm:$0xff]
        %v262 = vld [vmem:[%s3 + $0x68] sm:$0xff]
        %v263 = vld [vmem:[%s3 + $0x70] sm:$0xff]
        %v264 = vld [vmem:[%s3 + $0x78] sm:$0xff]
        %v265 = vrot.slane %v248, 4
        %v266 = vadd.f32 %v248, %v265
        %v267 = vrot.slane %v266, 2
        %v268 = vadd.f32 %v266, %v267
        %v269 = vrot.slane %v268, 1
        %v270 = vadd.f32 %v268, %v269
        %v271 = vmul.f32 %v248, %v248
        %v272 = vrot.slane %v271, 4
        %v273 = vadd.f32 %v271, %v272
        %v274 = vrot.slane %v273, 2
        %v275 = vadd.f32 %v273, %v274
        %v276 = vrot.slane %v275, 1
        %v277 = vadd.f32 %v275, %v276
        %278 = vmatprep.subr.mxu0 0.0
        %279 = vmatpush1.msra.mxu0 %v249
        %280 = vmatprep.subr.mxu0 0.0
        %281 = vmatpush1.msra.mxu0 %v250
        %282 = vmatprep.subr.mxu0 0.0
        %283 = vmatpush1.msra.mxu0 %v251
        %284 = vmatprep.subr.mxu0 0.0
        %285 = vmatpush1.msra.mxu0 %v252
        %286 = vmatprep.subr.mxu0 0.0
        %287 = vmatpush1.msra.mxu0 %v253
        %288 = vmatprep.subr.mxu0 0.0
        %289 = vmatpush1.msra.mxu0 %v254
        %290 = vmatprep.subr.mxu0 0.0
        %291 = vmatpush1.msra.mxu0 %v255
        %292 = vmatprep.subr.mxu0 0.0
        %293 = vmatpush1.msra.mxu0 %v256
        %294 = vmatprep.subr.mxu0 0.0
        %295 = vmatpush1.msra.mxu0 %v257
        %296 = vmatprep.subr.mxu0 0.0
        %297 = vmatpush1.msra.mxu0 %v258
        %298 = vmatprep.subr.mxu0 0.0
        %299 = vmatpush1.msra.mxu0 %v259
        %300 = vmatprep.subr.mxu0 0.0
        %301 = vmatpush1.msra.mxu0 %v260
        %302 = vmatprep.subr.mxu0 0.0
        %303 = vmatpush1.msra.mxu0 %v261
        %304 = vmatprep.subr.mxu0 0.0
        %305 = vmatpush1.msra.mxu0 %v262
        %306 = vmatprep.subr.mxu0 0.0
        %307 = vmatpush1.msra.mxu0 %v263
        %308 = vmatprep.subr.mxu0 0.0
        %309 = vmatpush1.msra.mxu0 %v264
        %310 = vmatprep.subr.mxu0 0.0
        %311 = vmatpush1.msra.mxu0 0.0
        %312 = vmatprep.subr.mxu0 0.0
        %313 = vmatpush1.msra.mxu0 0.0
        %314 = vmatprep.subr.mxu0 0.0
        %315 = vmatpush1.msra.mxu0 0.0
        %316 = vmatprep.subr.mxu0 0.0
        %317 = vmatpush1.msra.mxu0 0.0
        %318 = vmatprep.subr.mxu0 0.0
        %319 = vmatpush1.msra.mxu0 0.0
        %320 = vmatprep.subr.mxu0 0.0
        %321 = vmatpush1.msra.mxu0 0.0
        %322 = vmatprep.subr.mxu0 0.0
        %323 = vmatpush1.msra.mxu0 0.0
        %324 = vmatprep.subr.mxu0 0.0
        %325 = vmatpush1.msra.mxu0 0.0
        %326 = vmatprep.subr.mxu0 0.0
        %327 = vmatpush1.msra.mxu0 0.0
        %328 = vmatprep.subr.mxu0 0.0
        %329 = vmatpush1.msra.mxu0 0.0
        %330 = vmatprep.subr.mxu0 0.0
        %331 = vmatpush1.msra.mxu0 0.0
        %332 = vmatprep.subr.mxu0 0.0
        %333 = vmatpush1.msra.mxu0 0.0
        %334 = vmatprep.subr.mxu0 0.0
        %335 = vmatpush1.msra.mxu0 0.0
        %336 = vmatprep.subr.mxu0 0.0
        %337 = vmatpush1.msra.mxu0 0.0
        %338 = vmatprep.subr.mxu0 0.0
        %339 = vmatpush1.msra.mxu0 0.0
        %340 = vmatprep.subr.mxu0 0.0
        %341 = vmatpush1.msra.mxu0 0.0
        %342 = vmatprep.mubr.f32.mxu0 0.0
        %343 = vmatmul.mubr.f32.gmra.mrb[0].mxu0 %v270
        %v344 = vpop.f32.mrb[0].mxu0
        %v345 = vadd.f32 0.0, %v344
        %v346 = vpop.f32.mrb[0].mxu0
        %347 = vdwg.mxu0
        %v348 = vmul.f32 %v345, 0.0625
        %349 = vmatprep.subr.mxu0 0.0
        %350 = vmatpush1.msra.mxu0 %v249
        %351 = vmatprep.subr.mxu0 0.0
        %352 = vmatpush1.msra.mxu0 %v250
        %353 = vmatprep.subr.mxu0 0.0
        %354 = vmatpush1.msra.mxu0 %v251
        %355 = vmatprep.subr.mxu0 0.0
        %356 = vmatpush1.msra.mxu0 %v252
        %357 = vmatprep.subr.mxu0 0.0
        %358 = vmatpush1.msra.mxu0 %v253
        %359 = vmatprep.subr.mxu0 0.0
        %360 = vmatpush1.msra.mxu0 %v254
        %361 = vmatprep.subr.mxu0 0.0
        %362 = vmatpush1.msra.mxu0 %v255
        %363 = vmatprep.subr.mxu0 0.0
        %364 = vmatpush1.msra.mxu0 %v256
        %365 = vmatprep.subr.mxu0 0.0
        %366 = vmatpush1.msra.mxu0 %v257
        %367 = vmatprep.subr.mxu0 0.0
        %368 = vmatpush1.msra.mxu0 %v258
        %369 = vmatprep.subr.mxu0 0.0
        %370 = vmatpush1.msra.mxu0 %v259
        %371 = vmatprep.subr.mxu0 0.0
        %372 = vmatpush1.msra.mxu0 %v260
        %373 = vmatprep.subr.mxu0 0.0
        %374 = vmatpush1.msra.mxu0 %v261
        %375 = vmatprep.subr.mxu0 0.0
        %376 = vmatpush1.msra.mxu0 %v262
        %377 = vmatprep.subr.mxu0 0.0
        %378 = vmatpush1.msra.mxu0 %v263
        %379 = vmatprep.subr.mxu0 0.0
        %380 = vmatpush1.msra.mxu0 %v264
        %381 = vmatprep.subr.mxu0 0.0
        %382 = vmatpush1.msra.mxu0 0.0
        %383 = vmatprep.subr.mxu0 0.0
        %384 = vmatpush1.msra.mxu0 0.0
        %385 = vmatprep.subr.mxu0 0.0
        %386 = vmatpush1.msra.mxu0 0.0
        %387 = vmatprep.subr.mxu0 0.0
        %388 = vmatpush1.msra.mxu0 0.0
        %389 = vmatprep.subr.mxu0 0.0
        %390 = vmatpush1.msra.mxu0 0.0
        %391 = vmatprep.subr.mxu0 0.0
        %392 = vmatpush1.msra.mxu0 0.0
        %393 = vmatprep.subr.mxu0 0.0
        %394 = vmatpush1.msra.mxu0 0.0
        %395 = vmatprep.subr.mxu0 0.0
        %396 = vmatpush1.msra.mxu0 0.0
        %397 = vmatprep.subr.mxu0 0.0
        %398 = vmatpush1.msra.mxu0 0.0
        %399 = vmatprep.subr.mxu0 0.0
        %400 = vmatpush1.msra.mxu0 0.0
        %401 = vmatprep.subr.mxu0 0.0
        %402 = vmatpush1.msra.mxu0 0.0
        %403 = vmatprep.subr.mxu0 0.0
        %404 = vmatpush1.msra.mxu0 0.0
        %405 = vmatprep.subr.mxu0 0.0
        %406 = vmatpush1.msra.mxu0 0.0
        %407 = vmatprep.subr.mxu0 0.0
        %408 = vmatpush1.msra.mxu0 0.0
        %409 = vmatprep.subr.mxu0 0.0
        %410 = vmatpush1.msra.mxu0 0.0
        %411 = vmatprep.subr.mxu0 0.0
        %412 = vmatpush1.msra.mxu0 0.0
        %413 = vmatprep.mubr.f32.mxu0 0.0
        %414 = vmatmul.mubr.f32.gmra.mrb[0].mxu0 %v277
        %v415 = vpop.f32.mrb[0].mxu0
        %v416 = vadd.f32 0.0, %v415
        %v417 = vpop.f32.mrb[0].mxu0
        %418 = vdwg.mxu0
        %v419 = vmul.f32 %v416, 0.0625
        %v420 = vmul.f32 %v348, %v348
        %v421 = vsub.f32 %v419, %v420
        %v422 = vmax.f32 %v421, 0.0
        %vm423 = vcmask 261120
        %v425 = vsel %vm423, %v348, 0
        %v428 = vsel %vm423, %v249, 0
        %v431 = vsel %vm423, %v250, 0
        %v434 = vsel %vm423, %v251, 0
        %v437 = vsel %vm423, %v252, 0
        %v440 = vsel %vm423, %v253, 0
        %v443 = vsel %vm423, %v254, 0
        %v446 = vsel %vm423, %v255, 0
        %v449 = vsel %vm423, %v256, 0
        %v452 = vsel %vm423, %v257, 0
        %v455 = vsel %vm423, %v258, 0
        %v458 = vsel %vm423, %v259, 0
        %v461 = vsel %vm423, %v260, 0
        %v464 = vsel %vm423, %v261, 0
        %v467 = vsel %vm423, %v262, 0
        %v470 = vsel %vm423, %v263, 0
        %v473 = vsel %vm423, %v264, 0
        %475 = vmatprep.subr.mxu0 0.0
        %476 = vmatpush1.xpose.msra.mxu0 %v428
        %477 = vmatprep.subr.mxu0 0.0
        %478 = vmatpush1.xpose.msra.mxu0 %v431
        %479 = vmatprep.subr.mxu0 0.0
        %480 = vmatpush1.xpose.msra.mxu0 %v434
        %481 = vmatprep.subr.mxu0 0.0
        %482 = vmatpush1.xpose.msra.mxu0 %v437
        %483 = vmatprep.subr.mxu0 0.0
        %484 = vmatpush1.xpose.msra.mxu0 %v440
        %485 = vmatprep.subr.mxu0 0.0
        %486 = vmatpush1.xpose.msra.mxu0 %v443
        %487 = vmatprep.subr.mxu0 0.0
        %488 = vmatpush1.xpose.msra.mxu0 %v446
        %489 = vmatprep.subr.mxu0 0.0
        %490 = vmatpush1.xpose.msra.mxu0 %v449
        %491 = vmatprep.subr.mxu0 0.0
        %492 = vmatpush1.xpose.msra.mxu0 %v452
        %493 = vmatprep.subr.mxu0 0.0
        %494 = vmatpush1.xpose.msra.mxu0 %v455
        %495 = vmatprep.subr.mxu0 0.0
        %496 = vmatpush1.xpose.msra.mxu0 %v458
        %497 = vmatprep.subr.mxu0 0.0
        %498 = vmatpush1.xpose.msra.mxu0 %v461
        %499 = vmatprep.subr.mxu0 0.0
        %500 = vmatpush1.xpose.msra.mxu0 %v464
        %501 = vmatprep.subr.mxu0 0.0
        %502 = vmatpush1.xpose.msra.mxu0 %v467
        %503 = vmatprep.subr.mxu0 0.0
        %504 = vmatpush1.xpose.msra.mxu0 %v470
        %505 = vmatprep.subr.mxu0 0.0
        %506 = vmatpush1.xpose.msra.mxu0 %v473
        %507 = vmatprep.subr.mxu0 0.0
        %508 = vmatpush1.xpose.msra.mxu0 0.0
        %509 = vmatprep.subr.mxu0 0.0
        %510 = vmatpush1.xpose.msra.mxu0 0.0
        %511 = vmatprep.subr.mxu0 0.0
        %512 = vmatpush1.xpose.msra.mxu0 0.0
        %513 = vmatprep.subr.mxu0 0.0
        %514 = vmatpush1.xpose.msra.mxu0 0.0
        %515 = vmatprep.subr.mxu0 0.0
        %516 = vmatpush1.xpose.msra.mxu0 0.0
        %517 = vmatprep.subr.mxu0 0.0
        %518 = vmatpush1.xpose.msra.mxu0 0.0
        %519 = vmatprep.subr.mxu0 0.0
        %520 = vmatpush1.xpose.msra.mxu0 0.0
        %521 = vmatprep.subr.mxu0 0.0
        %522 = vmatpush1.xpose.msra.mxu0 0.0
        %523 = vmatprep.subr.mxu0 0.0
        %524 = vmatpush1.xpose.msra.mxu0 0.0
        %525 = vmatprep.subr.mxu0 0.0
        %526 = vmatpush1.xpose.msra.mxu0 0.0
        %527 = vmatprep.subr.mxu0 0.0
        %528 = vmatpush1.xpose.msra.mxu0 0.0
        %529 = vmatprep.subr.mxu0 0.0
        %530 = vmatpush1.xpose.msra.mxu0 0.0
        %531 = vmatprep.subr.mxu0 0.0
        %532 = vmatpush1.xpose.msra.mxu0 0.0
        %533 = vmatprep.subr.mxu0 0.0
        %534 = vmatpush1.xpose.msra.mxu0 0.0
        %535 = vmatprep.subr.mxu0 0.0
        %536 = vmatpush1.xpose.msra.mxu0 0.0
        %537 = vmatprep.subr.mxu0 0.0
        %538 = vmatpush1.xpose.msra.mxu0 0.0
        %539 = vmatprep.mubr.f32.mxu0 0.0
        %540 = vmatmul.mubr.f32.gmra.mrb[0].mxu0 %v425
        %v541 = vpop.f32.mrb[0].mxu0
        %v542 = vadd.f32 0.0, %v541
        %v543 = vpop.f32.mrb[0].mxu0
        %544 = vdwg.mxu0
        %v546 = vsel %vm423, %v422, 0
        %548 = vmatprep.subr.mxu0 0.0
        %549 = vmatpush1.xpose.msra.mxu0 %v428
        %550 = vmatprep.subr.mxu0 0.0
        %551 = vmatpush1.xpose.msra.mxu0 %v431
        %552 = vmatprep.subr.mxu0 0.0
        %553 = vmatpush1.xpose.msra.mxu0 %v434
        %554 = vmatprep.subr.mxu0 0.0
        %555 = vmatpush1.xpose.msra.mxu0 %v437
        %556 = vmatprep.subr.mxu0 0.0
        %557 = vmatpush1.xpose.msra.mxu0 %v440
        %558 = vmatprep.subr.mxu0 0.0
        %559 = vmatpush1.xpose.msra.mxu0 %v443
        %560 = vmatprep.subr.mxu0 0.0
        %561 = vmatpush1.xpose.msra.mxu0 %v446
        %562 = vmatprep.subr.mxu0 0.0
        %563 = vmatpush1.xpose.msra.mxu0 %v449
        %564 = vmatprep.subr.mxu0 0.0
        %565 = vmatpush1.xpose.msra.mxu0 %v452
        %566 = vmatprep.subr.mxu0 0.0
        %567 = vmatpush1.xpose.msra.mxu0 %v455
        %568 = vmatprep.subr.mxu0 0.0
        %569 = vmatpush1.xpose.msra.mxu0 %v458
        %570 = vmatprep.subr.mxu0 0.0
        %571 = vmatpush1.xpose.msra.mxu0 %v461
        %572 = vmatprep.subr.mxu0 0.0
        %573 = vmatpush1.xpose.msra.mxu0 %v464
        %574 = vmatprep.subr.mxu0 0.0
        %575 = vmatpush1.xpose.msra.mxu0 %v467
        %576 = vmatprep.subr.mxu0 0.0
        %577 = vmatpush1.xpose.msra.mxu0 %v470
        %578 = vmatprep.subr.mxu0 0.0
        %579 = vmatpush1.xpose.msra.mxu0 %v473
        %580 = vmatprep.subr.mxu0 0.0
        %581 = vmatpush1.xpose.msra.mxu0 0.0
        %582 = vmatprep.subr.mxu0 0.0
        %583 = vmatpush1.xpose.msra.mxu0 0.0
        %584 = vmatprep.subr.mxu0 0.0
        %585 = vmatpush1.xpose.msra.mxu0 0.0
        %586 = vmatprep.subr.mxu0 0.0
        %587 = vmatpush1.xpose.msra.mxu0 0.0
        %588 = vmatprep.subr.mxu0 0.0
        %589 = vmatpush1.xpose.msra.mxu0 0.0
        %590 = vmatprep.subr.mxu0 0.0
        %591 = vmatpush1.xpose.msra.mxu0 0.0
        %592 = vmatprep.subr.mxu0 0.0
        %593 = vmatpush1.xpose.msra.mxu0 0.0
        %594 = vmatprep.subr.mxu0 0.0
        %595 = vmatpush1.xpose.msra.mxu0 0.0
        %596 = vmatprep.subr.mxu0 0.0
        %597 = vmatpush1.xpose.msra.mxu0 0.0
        %598 = vmatprep.subr.mxu0 0.0
        %599 = vmatpush1.xpose.msra.mxu0 0.0
        %600 = vmatprep.subr.mxu0 0.0
        %601 = vmatpush1.xpose.msra.mxu0 0.0
        %602 = vmatprep.subr.mxu0 0.0
        %603 = vmatpush1.xpose.msra.mxu0 0.0
        %604 = vmatprep.subr.mxu0 0.0
        %605 = vmatpush1.xpose.msra.mxu0 0.0
        %606 = vmatprep.subr.mxu0 0.0
        %607 = vmatpush1.xpose.msra.mxu0 0.0
        %608 = vmatprep.subr.mxu0 0.0
        %609 = vmatpush1.xpose.msra.mxu0 0.0
        %610 = vmatprep.subr.mxu0 0.0
        %611 = vmatpush1.xpose.msra.mxu0 0.0
        %612 = vmatprep.mubr.f32.mxu0 0.0
        %613 = vmatmul.mubr.f32.gmra.mrb[0].mxu0 %v546
        %v614 = vpop.f32.mrb[0].mxu0
        %v615 = vadd.f32 1e-06, %v614
        %v616 = vpop.f32.mrb[0].mxu0
        %617 = vdwg.mxu0
        %v618 = vrsqrt.pop %v615
        %v619 = vld [vmem:[%s1] sm:$0x1]
        %v620 = vmul.f32 %v619, %v618
        %v621 = vld [vmem:[%s2] sm:$0x1]
        %v622 = vmul.f32 %v542, %v620
        %v623 = vsub.f32 %v621, %v622
        %v625 = vlaneseq
        %v626 = vshrl.u32 %v625, 7
        %v627 = vsub.s32 0, %v626
        %v628 = vrot.slane %v620, %v627
        %v630 = vmul.f32 %v248, %v628
        %v632 = vlaneseq
        %v633 = vshrl.u32 %v632, 7
        %v634 = vsub.s32 0, %v633
        %v635 = vrot.slane %v623, %v634
        %v637 = vadd.f32 %v630, %v635
        %v638 = vxor.u32 %v637, 2147483648
        %v639 = vmul.f32 %v638, 1.442695
        %v640 = vpow.pop %v639
        %v641 = vadd.f32 %v640, 1.0
        %v642 = vrcp.pop %v641
        %v643 = vmul.f32 1.0, %v642
        %v644 = vmul.f32 %v637, %v643
        %v645 = vrot.slane %v644, 7
        %v646 = vlaneseq
        %v647 = vshrl.u32 %v646, 7
        %vm648 = vcmp.eq.s32.totalorder %v647, 0
        %v649 = vsel %vm648, 0.0, %v645
        %v650 = vrot.slane %v644, 1
        %vm651 = vcmp.eq.s32.totalorder %v647, 7
        %v652 = vsel %vm651, 0.0, %v650
        %v653 = vld [vmem:[%s4] sm:$0xff]
        %v654 = vld [vmem:[%s4 + $0x8] sm:$0xff]
        %v655 = vld [vmem:[%s4 + $0x10] sm:$0xff]
        %v656 = vld [vmem:[%s4 + $0x18] sm:$0xff]
        %v657 = vld [vmem:[%s4 + $0x20] sm:$0xff]
        %v658 = vld [vmem:[%s4 + $0x28] sm:$0xff]
        %v659 = vld [vmem:[%s4 + $0x30] sm:$0xff]
        %v660 = vld [vmem:[%s4 + $0x38] sm:$0xff]
        %v661 = vld [vmem:[%s4 + $0x40] sm:$0xff]
        %v662 = vld [vmem:[%s4 + $0x48] sm:$0xff]
        %v663 = vld [vmem:[%s4 + $0x50] sm:$0xff]
        %v664 = vld [vmem:[%s4 + $0x58] sm:$0xff]
        %v665 = vld [vmem:[%s4 + $0x60] sm:$0xff]
        %v666 = vld [vmem:[%s4 + $0x68] sm:$0xff]
        %v667 = vld [vmem:[%s4 + $0x70] sm:$0xff]
        %v668 = vld [vmem:[%s4 + $0x78] sm:$0xff]
        %v669 = vld [vmem:[%s4 + $0x80] sm:$0xff]
        %v670 = vld [vmem:[%s4 + $0x88] sm:$0xff]
        %v671 = vld [vmem:[%s4 + $0x90] sm:$0xff]
        %v672 = vld [vmem:[%s4 + $0x98] sm:$0xff]
        %v673 = vld [vmem:[%s4 + $0xa0] sm:$0xff]
        %v674 = vld [vmem:[%s4 + $0xa8] sm:$0xff]
        %v675 = vld [vmem:[%s4 + $0xb0] sm:$0xff]
        %v676 = vld [vmem:[%s4 + $0xb8] sm:$0xff]
        %v677 = vld [vmem:[%s4 + $0xc0] sm:$0xff]
        %v678 = vld [vmem:[%s4 + $0xc8] sm:$0xff]
        %v679 = vld [vmem:[%s4 + $0xd0] sm:$0xff]
        %v680 = vld [vmem:[%s4 + $0xd8] sm:$0xff]
        %v681 = vld [vmem:[%s4 + $0xe0] sm:$0xff]
        %v682 = vld [vmem:[%s4 + $0xe8] sm:$0xff]
        %v683 = vld [vmem:[%s4 + $0xf0] sm:$0xff]
        %v684 = vld [vmem:[%s4 + $0xf8] sm:$0xff]
        %v685 = vld [vmem:[%s4 + $0x100] sm:$0xff]
        %v686 = vld [vmem:[%s4 + $0x108] sm:$0xff]
        %v687 = vld [vmem:[%s4 + $0x110] sm:$0xff]
        %v688 = vld [vmem:[%s4 + $0x118] sm:$0xff]
        %v689 = vld [vmem:[%s4 + $0x120] sm:$0xff]
        %v690 = vld [vmem:[%s4 + $0x128] sm:$0xff]
        %v691 = vld [vmem:[%s4 + $0x130] sm:$0xff]
        %v692 = vld [vmem:[%s4 + $0x138] sm:$0xff]
        %v693 = vld [vmem:[%s4 + $0x140] sm:$0xff]
        %v694 = vld [vmem:[%s4 + $0x148] sm:$0xff]
        %v695 = vld [vmem:[%s4 + $0x150] sm:$0xff]
        %v696 = vld [vmem:[%s4 + $0x158] sm:$0xff]
        %v697 = vld [vmem:[%s4 + $0x160] sm:$0xff]
        %v698 = vld [vmem:[%s4 + $0x168] sm:$0xff]
        %v699 = vld [vmem:[%s4 + $0x170] sm:$0xff]
        %v700 = vld [vmem:[%s4 + $0x178] sm:$0xff]
        %v701 = vld [vmem:[%s5] sm:$0x1]
        %v703 = vlaneseq
        %v704 = vshrl.u32 %v703, 7
        %v705 = vsub.s32 0, %v704
        %v706 = vrot.slane %v701, %v705
        %708 = vmatprep.subr.mxu0 0.0
        %709 = vmatpush1.msra.mxu0 %v653
        %710 = vmatprep.subr.mxu0 0.0
        %711 = vmatpush1.msra.mxu0 %v654
        %712 = vmatprep.subr.mxu0 0.0
        %713 = vmatpush1.msra.mxu0 %v655
        %714 = vmatprep.subr.mxu0 0.0
        %715 = vmatpush1.msra.mxu0 %v656
        %716 = vmatprep.subr.mxu0 0.0
        %717 = vmatpush1.msra.mxu0 %v657
        %718 = vmatprep.subr.mxu0 0.0
        %719 = vmatpush1.msra.mxu0 %v658
        %720 = vmatprep.subr.mxu0 0.0
        %721 = vmatpush1.msra.mxu0 %v659
        %722 = vmatprep.subr.mxu0 0.0
        %723 = vmatpush1.msra.mxu0 %v660
        %724 = vmatprep.subr.mxu0 0.0
        %725 = vmatpush1.msra.mxu0 %v661
        %726 = vmatprep.subr.mxu0 0.0
        %727 = vmatpush1.msra.mxu0 %v662
        %728 = vmatprep.subr.mxu0 0.0
        %729 = vmatpush1.msra.mxu0 %v663
        %730 = vmatprep.subr.mxu0 0.0
        %731 = vmatpush1.msra.mxu0 %v664
        %732 = vmatprep.subr.mxu0 0.0
        %733 = vmatpush1.msra.mxu0 %v665
        %734 = vmatprep.subr.mxu0 0.0
        %735 = vmatpush1.msra.mxu0 %v666
        %736 = vmatprep.subr.mxu0 0.0
        %737 = vmatpush1.msra.mxu0 %v667
        %738 = vmatprep.subr.mxu0 0.0
        %739 = vmatpush1.msra.mxu0 %v668
        %740 = vmatprep.subr.mxu0 0.0
        %741 = vmatpush1.msra.mxu0 %v669
        %742 = vmatprep.subr.mxu0 0.0
        %743 = vmatpush1.msra.mxu0 %v670
        %744 = vmatprep.subr.mxu0 0.0
        %745 = vmatpush1.msra.mxu0 %v671
        %746 = vmatprep.subr.mxu0 0.0
        %747 = vmatpush1.msra.mxu0 %v672
        %748 = vmatprep.subr.mxu0 0.0
        %749 = vmatpush1.msra.mxu0 %v673
        %750 = vmatprep.subr.mxu0 0.0
        %751 = vmatpush1.msra.mxu0 %v674
        %752 = vmatprep.subr.mxu0 0.0
        %753 = vmatpush1.msra.mxu0 %v675
        %754 = vmatprep.subr.mxu0 0.0
        %755 = vmatpush1.msra.mxu0 %v676
        %756 = vmatprep.subr.mxu0 0.0
        %757 = vmatpush1.msra.mxu0 %v677
        %758 = vmatprep.subr.mxu0 0.0
        %759 = vmatpush1.msra.mxu0 %v678
        %760 = vmatprep.subr.mxu0 0.0
        %761 = vmatpush1.msra.mxu0 %v679
        %762 = vmatprep.subr.mxu0 0.0
        %763 = vmatpush1.msra.mxu0 %v680
        %764 = vmatprep.subr.mxu0 0.0
        %765 = vmatpush1.msra.mxu0 %v681
        %766 = vmatprep.subr.mxu0 0.0
        %767 = vmatpush1.msra.mxu0 %v682
        %768 = vmatprep.subr.mxu0 0.0
        %769 = vmatpush1.msra.mxu0 %v683
        %770 = vmatprep.subr.mxu0 0.0
        %771 = vmatpush1.msra.mxu0 %v684
        %772 = vmatprep.mubr.f32.mxu0 %v644
        %773 = vmatmul.mubr.f32.gmra.mrb[0].mxu0 %v649
        %v774 = vpop.f32.mrb[0].mxu0
        %v775 = vadd.f32 %v706, %v774
        %v776 = vpop.f32.mrb[0].mxu0
        %777 = vdwg.mxu0
        %778 = vmatprep.subr.mxu0 0.0
        %779 = vmatpush1.msra.mxu0 %v685
        %780 = vmatprep.subr.mxu0 0.0
        %781 = vmatpush1.msra.mxu0 %v686
        %782 = vmatprep.subr.mxu0 0.0
        %783 = vmatpush1.msra.mxu0 %v687
        %784 = vmatprep.subr.mxu0 0.0
        %785 = vmatpush1.msra.mxu0 %v688
        %786 = vmatprep.subr.mxu0 0.0
        %787 = vmatpush1.msra.mxu0 %v689
        %788 = vmatprep.subr.mxu0 0.0
        %789 = vmatpush1.msra.mxu0 %v690
        %790 = vmatprep.subr.mxu0 0.0
        %791 = vmatpush1.msra.mxu0 %v691
        %792 = vmatprep.subr.mxu0 0.0
        %793 = vmatpush1.msra.mxu0 %v692
        %794 = vmatprep.subr.mxu0 0.0
        %795 = vmatpush1.msra.mxu0 %v693
        %796 = vmatprep.subr.mxu0 0.0
        %797 = vmatpush1.msra.mxu0 %v694
        %798 = vmatprep.subr.mxu0 0.0
        %799 = vmatpush1.msra.mxu0 %v695
        %800 = vmatprep.subr.mxu0 0.0
        %801 = vmatpush1.msra.mxu0 %v696
        %802 = vmatprep.subr.mxu0 0.0
        %803 = vmatpush1.msra.mxu0 %v697
        %804 = vmatprep.subr.mxu0 0.0
        %805 = vmatpush1.msra.mxu0 %v698
        %806 = vmatprep.subr.mxu0 0.0
        %807 = vmatpush1.msra.mxu0 %v699
        %808 = vmatprep.subr.mxu0 0.0
        %809 = vmatpush1.msra.mxu0 %v700
        %810 = vmatprep.subr.mxu0 0.0
        %811 = vmatpush1.msra.mxu0 0.0
        %812 = vmatprep.subr.mxu0 0.0
        %813 = vmatpush1.msra.mxu0 0.0
        %814 = vmatprep.subr.mxu0 0.0
        %815 = vmatpush1.msra.mxu0 0.0
        %816 = vmatprep.subr.mxu0 0.0
        %817 = vmatpush1.msra.mxu0 0.0
        %818 = vmatprep.subr.mxu0 0.0
        %819 = vmatpush1.msra.mxu0 0.0
        %820 = vmatprep.subr.mxu0 0.0
        %821 = vmatpush1.msra.mxu0 0.0
        %822 = vmatprep.subr.mxu0 0.0
        %823 = vmatpush1.msra.mxu0 0.0
        %824 = vmatprep.subr.mxu0 0.0
        %825 = vmatpush1.msra.mxu0 0.0
        %826 = vmatprep.subr.mxu0 0.0
        %827 = vmatpush1.msra.mxu0 0.0
        %828 = vmatprep.subr.mxu0 0.0
        %829 = vmatpush1.msra.mxu0 0.0
        %830 = vmatprep.subr.mxu0 0.0
        %831 = vmatpush1.msra.mxu0 0.0
        %832 = vmatprep.subr.mxu0 0.0
        %833 = vmatpush1.msra.mxu0 0.0
        %834 = vmatprep.subr.mxu0 0.0
        %835 = vmatpush1.msra.mxu0 0.0
        %836 = vmatprep.subr.mxu0 0.0
        %837 = vmatpush1.msra.mxu0 0.0
        %838 = vmatprep.subr.mxu0 0.0
        %839 = vmatpush1.msra.mxu0 0.0
        %840 = vmatprep.subr.mxu0 0.0
        %841 = vmatpush1.msra.mxu0 0.0
        %842 = vmatprep.mubr.f32.mxu0 0.0
        %843 = vmatmul.mubr.f32.gmra.mrb[0].mxu0 %v652
        %v844 = vpop.f32.mrb[0].mxu0
        %v845 = vadd.f32 %v775, %v844
        %v846 = vpop.f32.mrb[0].mxu0
        %847 = vdwg.mxu0
        %848 = vst [vmem:[%s242] sm:$0xff] %v845
        %s849 = sand.u32 %s159, 1
        %s850 = scalar_lea.sflag [#allocation3], %s849
        %s851 = sand.u32 %s159, 1
        %s852 = smul.addr %s851, 8
        %s853 = scalar_lea.vmem [#allocation2], %s852
        // Predicated region
        $region45: #{_lambda_.25} parent=43 // pred_check
          %p854 = pneg %p169
        $region46: #{_lambda_.25} parent=43 // pred_check_branch
          %856 = sbr.rel (%p854) target = $region48
        $region47: #{_lambda_.25} parent=43 // pred_region
          %s858 = ssub.s32 128, 128
          %859 = vsyncadd %s850, %s858
          %s860 = smul.addr %s20, 128
          %s861 = scalar_lea.hbm %s6, %s860
          %s863 = sshll.u32 %s853, 4
          %s864 = int_to_ptr.vmem [resolvable:$true] %s863
          %866 = dma.vmem_to_hbm [thread:$0]  %s864, 128, %s861, %s850
        $region48: #{_lambda_.25} parent=43 // pred_fallthru
          _
      $region44: #{_lambda_.25} parent=5 // pred_fallthru
        _
      %p867 = scmp.le.s32.totalorder 2, %s15
      // Predicated region
      $region49: #{_lambda_.25} parent=5 // pred_check
        %p868 = pneg %p867
      $region50: #{_lambda_.25} parent=5 // pred_check_branch
        %870 = sbr.rel (%p868) target = $region52
      $region51: #{_lambda_.25} parent=5 // pred_region
        %s871 = ssub.s32 %s15, 2
        // Predicated region
        $region53: #{_lambda_.25} parent=51 // pred_check
          %p872 = pneg %p175
        $region54: #{_lambda_.25} parent=51 // pred_check_branch
          %874 = sbr.rel (%p872) target = $region56
        $region55: #{_lambda_.25} parent=51 // pred_region
          %s875 = sand.u32 %s160, 1
          %s876 = scalar_lea.sflag [#allocation3], %s875
          %s877 = sand.u32 %s160, 1
          %s878 = smul.addr %s877, 8
          %s879 = scalar_lea.vmem [#allocation2], %s878
          %880 = dma.done %s876, 128
        $region56: #{_lambda_.25} parent=51 // pred_fallthru
          _
      $region52: #{_lambda_.25} parent=5 // pred_fallthru
        _
    $region6: #{_lambda_.25} parent=1 // loop_footer
      %s19 = sadd.s32 1, %s15
    $region7: #{_lambda_.25} parent=1 // loop_footer_branch
      %14 = sbr.rel target = $region3
    $region8: #{_lambda_.25} parent=1 // loop_exit
      _
    %881 = vsyncpa [#allocation3], 1
    %s882 = scalar_lea.sflag [#allocation3], 1
    %883 = vsyncpa %s882, 1

</llo_original>
